<compile_context>
chip_gen: v5e
topology: v5e:2x2
jax: 0.10.0
libtpu: 0.0.40
codegen_flags: <defaults>
</compile_context>

<pallas_src>
import jax
import jax.numpy as jnp
from jax.experimental import pallas as pl
from jax.experimental.pallas import tpu as pltpu

BN_EPS = 1e-5
LANES = 128
MAX_TM = 4096                    # upper bound on row tile
MIN_SPLIT_ROWS = 2048            # split rows >= this into an even tile count (v7x megacore)
VMEM_BUDGET = 10 * 1024 * 1024   # conservative vs v5e's 16 MiB scoped-VMEM default


def _round_up(x, m):
    return pl.cdiv(x, m) * m


def _row_tiling(m, k_dim, c_pad, y_bytes=2):
    """Byte-budgeted row tile: biggest multiple-of-8 tile whose double-buffered
    A (bf16) + y blocks (plus the resident weight / stats blocks) fit VMEM_BUDGET.
    Large layers get an even tile count so the 'parallel' axis splits across both
    v7x TensorCores."""
    resident = 2 * (k_dim * c_pad * 2) + 2 * (2 * c_pad * 4)   # B (bf16) + stats, x2 buffers
    per_row = 2 * (k_dim * 2 + c_pad * y_bytes)                # A row + y row, x2 buffers
    tm_cap = (max(VMEM_BUDGET - resident, 8 * per_row) // per_row) // 8 * 8
    tm_cap = max(8, min(MAX_TM, tm_cap))
    n_tiles = pl.cdiv(m, tm_cap)
    if m >= MIN_SPLIT_ROWS and n_tiles < 2:
        n_tiles = 2
    if n_tiles > 1 and n_tiles % 2 == 1:
        n_tiles += 1
    tm = _round_up(pl.cdiv(m, n_tiles), 8)
    return tm, n_tiles * tm, n_tiles


# ----------------------------- Pallas kernels ------------------------------

def matmul_stats_kernel(a_ref, b_ref, y_ref, stats_ref):
    """One row-tile of y = A @ B (bf16 in, f32 accumulate) plus per-tile column
    sum / sum-of-squares packed into a single (1, 2, c_pad) stats block."""
    y = jnp.dot(a_ref[...], b_ref[...], preferred_element_type=jnp.float32)
    y_ref[...] = y.astype(y_ref.dtype)
    stats_ref[:, 0:1, :] = jnp.sum(y, axis=0, keepdims=True)[None]
    stats_ref[:, 1:2, :] = jnp.sum(y * y, axis=0, keepdims=True)[None]


def matmul_stats(a, b, tm, n_tiles):
    m_pad, K = a.shape
    _, c_pad = b.shape
    # NOTE: B has a constant block index so it is only DMA'd once; on v7x one could
    # additionally pass pipeline_mode=pl.Buffered(1) to reclaim its second buffer.
    return pl.pallas_call(
        matmul_stats_kernel,
        out_shape=(jax.ShapeDtypeStruct((m_pad, c_pad), jnp.bfloat16),
                   jax.ShapeDtypeStruct((n_tiles, 2, c_pad), jnp.float32)),
        grid_spec=pltpu.PrefetchScalarGridSpec(
            num_scalar_prefetch=0,
            grid=(n_tiles,),
            in_specs=[
                pl.BlockSpec((tm, K), lambda i: (i, 0)),
                pl.BlockSpec((K, c_pad), lambda i: (0, 0)),
            ],
            out_specs=(
                pl.BlockSpec((tm, c_pad), lambda i: (i, 0)),
                pl.BlockSpec((1, 2, c_pad), lambda i: (i, 0, 0)),
            ),
        ),
        compiler_params=pltpu.CompilerParams(dimension_semantics=("parallel",)),
    )(a, b)


def matmul_bias_tanh_kernel(a_ref, b_ref, bias_ref, o_ref):
    """Final layer: y = tanh(A @ B + bias), fused into the GEMM epilogue."""
    y = jnp.dot(a_ref[...], b_ref[...], preferred_element_type=jnp.float32)
    o_ref[...] = jnp.tanh(y + bias_ref[...])


def matmul_bias_tanh(a, b, bias, tm, n_tiles):
    m_pad, K = a.shape
    _, c_pad = b.shape
    return pl.pallas_call(
        matmul_bias_tanh_kernel,
        out_shape=jax.ShapeDtypeStruct((m_pad, c_pad), jnp.float32),
        grid_spec=pltpu.PrefetchScalarGridSpec(
            num_scalar_prefetch=0,
            grid=(n_tiles,),
            in_specs=[
                pl.BlockSpec((tm, K), lambda i: (i, 0)),
                pl.BlockSpec((K, c_pad), lambda i: (0, 0)),
                pl.BlockSpec((1, c_pad), lambda i: (0, 0)),
            ],
            out_specs=pl.BlockSpec((tm, c_pad), lambda i: (i, 0)),
        ),
        compiler_params=pltpu.CompilerParams(dimension_semantics=("parallel",)),
    )(a, b, bias)


def affine_relu_kernel(x_ref, scale_ref, shift_ref, o_ref):
    y = x_ref[...].astype(jnp.float32) * scale_ref[...] + shift_ref[...]
    o_ref[...] = jnp.maximum(y, 0.0).astype(o_ref.dtype)


def affine_relu(x, scale, shift, tm, n_tiles):
    """y = relu(x*scale + shift); scale/shift broadcast per column (1, c_pad).
    Reads bf16, computes in f32, writes bf16 (next layer consumes bf16)."""
    m_pad, c_pad = x.shape
    return pl.pallas_call(
        affine_relu_kernel,
        out_shape=jax.ShapeDtypeStruct((m_pad, c_pad), jnp.bfloat16),
        grid_spec=pltpu.PrefetchScalarGridSpec(
            num_scalar_prefetch=0,
            grid=(n_tiles,),
            in_specs=[
                pl.BlockSpec((tm, c_pad), lambda i: (i, 0)),
                pl.BlockSpec((1, c_pad), lambda i: (0, 0)),
                pl.BlockSpec((1, c_pad), lambda i: (0, 0)),
            ],
            out_specs=pl.BlockSpec((tm, c_pad), lambda i: (i, 0)),
        ),
        compiler_params=pltpu.CompilerParams(dimension_semantics=("parallel",)),
    )(x, scale, shift)


# ------------------------------- JAX glue -----------------------------------

def phase_patches_nhwc(x, k, s):
    """Sub-pixel (phase) decomposition of ConvTranspose2d(k, stride=s, pad=0) on
    NHWC x: im2col over only the q^2 = (k/s)^2 taps shared by all s^2 output phases.
    Returns (N*PH*PW, Cin*q*q) with column order (ci, a, b), plus (N, PH, PW)
    where PH = H + q - 1 (per-phase output height)."""
    N, H, W, Cin = x.shape
    q = k // s
    PH, PW = H + q - 1, W + q - 1
    if q == 1:                                       # k == s: pure pixel-shuffle GEMM
        return x.reshape(N * H * W, Cin), (N, PH, PW)
    xp = jnp.pad(x, ((0, 0), (q - 1, q - 1), (q - 1, q - 1), (0, 0)))
    cols = [xp[:, q - 1 - a:q - 1 - a + PH, q - 1 - b:q - 1 - b + PW, :]
            for a in range(q) for b in range(q)]
    p = jnp.stack(cols, axis=-1)                     # (N, PH, PW, Cin, q*q)
    return p.reshape(N * PH * PW, Cin * q * q), (N, PH, PW)


def weight_to_matrix(W, k, s, c_pad):
    """PyTorch ConvTranspose2d weight (Cin, Cout, k, k) -> GEMM matrix
    (Cin*q*q, c_pad) with row order (ci, a, b) and column order (r_h, r_w, co)
    (phase-major), zero-padded along columns to the lane width, cast to bf16."""
    Cin, Cout = W.shape[0], W.shape[1]
    q = k // s
    Wr = W.reshape(Cin, Cout, q, s, q, s)            # kh = a*s + r_h, kw = b*s + r_w
    Wt = jnp.transpose(Wr, (0, 2, 4, 3, 5, 1))       # (ci, a, b, r_h, r_w, co)
    B = Wt.reshape(Cin * q * q, s * s * Cout)
    B = jnp.pad(B, ((0, 0), (0, c_pad - B.shape[1])))
    return B.astype(jnp.bfloat16)


def phases_to_nhwc(y, N, PH, PW, s, Cout):
    """Pixel-shuffle the (rows=(N,PH,PW), cols=(r_h,r_w,co)) GEMM output back to NHWC."""
    y = y.reshape(N, PH, PW, s, s, Cout)
    y = jnp.transpose(y, (0, 1, 3, 2, 4, 5))
    return y.reshape(N, PH * s, PW * s, Cout)


def _pad_cols(v, c_pad):
    v = v.reshape(1, -1)
    return jnp.pad(v, ((0, 0), (0, c_pad - v.shape[1])))


def _convT_prep(h, W, k, s):
    """Build the padded bf16 GEMM operands for one transposed conv."""
    s2 = s * s
    Cout = W.shape[1]
    c_pad = _round_up(s2 * Cout, LANES)
    A, (N, PH, PW) = phase_patches_nhwc(h, k, s)
    M = A.shape[0]
    tm, m_pad, n_tiles = _row_tiling(M, A.shape[1], c_pad)
    A = jnp.pad(A, ((0, m_pad - M), (0, 0)))
    B = weight_to_matrix(W, k, s, c_pad)
    return A, B, (N, PH, PW, M, Cout, c_pad, tm, n_tiles)


LAYER_KS = [(4, 2), (4, 2), (4, 2), (2, 2)]
FINAL_KS = (4, 2)


def dc_generator_forward(x, params):
    # External layout is NCHW; activations stay channel-last bf16 internally,
    # so NCHW transposes happen only at the network boundaries.
    h = jnp.transpose(x, (0, 2, 3, 1)).astype(jnp.bfloat16)

    for (k, s), layer in zip(LAYER_KS, params["blocks"]):
        A, B, meta = _convT_prep(h, layer["W"], k, s)
        N, PH, PW, M, Cout, c_pad, tm, n_tiles = meta
        y, stats = matmul_stats(A, B, tm, n_tiles)
        # Train-mode BatchNorm: batch mean / biased variance over all N*OH*OW output
        # positions = all rows x all s^2 phase column-groups.  Padded rows/columns are
        # zero and the divisor is the true count, so the stats are exact.
        s2 = s * s
        ncol = s2 * Cout
        tot = jnp.sum(stats, axis=0)                               # (2, c_pad)
        cnt = jnp.float32(M * s2)
        mean = tot[0, :ncol].reshape(s2, Cout).sum(axis=0) / cnt
        var = jnp.maximum(tot[1, :ncol].reshape(s2, Cout).sum(axis=0) / cnt - mean * mean, 0.0)
        # TODO(synk): E[x^2]-mean^2 can lose precision for large-mean activations;
        # a centered second pass would be numerically safer for arbitrary weights.
        scale_c = layer["gamma"] / jnp.sqrt(var + BN_EPS)          # (Cout,)
        shift_c = layer["beta"] - mean * scale_c
        scale = _pad_cols(jnp.tile(scale_c, s2), c_pad)            # per (phase, cout) column
        shift = _pad_cols(jnp.tile(shift_c, s2), c_pad)
        y = affine_relu(y, scale, shift, tm, n_tiles)              # bf16, padded layout
        h = phases_to_nhwc(y[:M, :ncol], N, PH, PW, s, Cout)       # single slice, stay NHWC

    # Final layer: bias + tanh fused into the GEMM epilogue (no extra pass over y).
    k, s = FINAL_KS
    A, B, meta = _convT_prep(h, params["final"]["W"], k, s)
    N, PH, PW, M, Cout, c_pad, tm, n_tiles = meta
    bias = _pad_cols(jnp.tile(params["final"]["bias"], s * s), c_pad)
    y = matmul_bias_tanh(A, B, bias, tm, n_tiles)
    out = phases_to_nhwc(y[:M, :s * s * Cout], N, PH, PW, s, Cout)
    return jnp.transpose(out, (0, 3, 1, 2))                        # back to NCHW at the end


# Pure-JAX reference (lax conv with lhs dilation).  It mirrors the kernel's precision
# choices: bf16 MXU inputs with f32 accumulation, f32 stats/affine, bf16 intermediates.
def ref_forward(x, params):
    def convT(h, W, k, s):
        Wf = jnp.transpose(W[:, :, ::-1, ::-1], (1, 0, 2, 3)).astype(jnp.bfloat16)
        return jax.lax.conv_general_dilated(
            h.astype(jnp.bfloat16), Wf, window_strides=(1, 1),
            padding=[(k - 1, k - 1), (k - 1, k - 1)],
            lhs_dilation=(s, s),
            dimension_numbers=("NCHW", "OIHW", "NCHW"),
            preferred_element_type=jnp.float32)

    h = x
    for (k, s), layer in zip(LAYER_KS, params["blocks"]):
        y = convT(h, layer["W"], k, s)
        mean = y.mean(axis=(0, 2, 3))
        var = jnp.maximum((y * y).mean(axis=(0, 2, 3)) - mean * mean, 0.0)
        scale = (layer["gamma"] / jnp.sqrt(var + BN_EPS)).reshape(1, -1, 1, 1)
        shift = layer["beta"].reshape(1, -1, 1, 1) - mean.reshape(1, -1, 1, 1) * scale
        yq = y.astype(jnp.bfloat16).astype(jnp.float32)   # kernel stores y in bf16
        h = jnp.maximum(yq * scale + shift, 0.0)
    k, s = FINAL_KS
    y = convT(h, params["final"]["W"], k, s) + params["final"]["bias"].reshape(1, -1, 1, 1)
    return jnp.tanh(y)


def init_params(key, channels_noise, channels_img, features_g):
    layer_channels = [
        (channels_noise,  features_g * 16),
        (features_g * 16, features_g * 8),
        (features_g * 8,  features_g * 4),
        (features_g * 4,  features_g * 2),
    ]
    blocks = []
    for (cin, cout), (k, _) in zip(layer_channels, LAYER_KS):
        key, wk = jax.random.split(key)
        W = 0.02 * jax.random.normal(wk, (cin, cout, k, k), jnp.float32)
        blocks.append({
            "W": W,
            "gamma": jnp.ones((cout,), jnp.float32),   # BatchNorm2d default init
            "beta": jnp.zeros((cout,), jnp.float32),
        })
    key, wk, bk = jax.random.split(key, 3)
    kf = FINAL_KS[0]
    Wf = 0.02 * jax.random.normal(wk, (features_g * 2, channels_img, kf, kf), jnp.float32)
    bf = 0.02 * jax.random.normal(bk, (channels_img,), jnp.float32)
    return {"blocks": blocks, "final": {"W": Wf, "bias": bf}}


if __name__ == "__main__":
    channels_noise, channels_img, features_g = 4, 3, 4
    key = jax.random.PRNGKey(0)
    key, pk, xk = jax.random.split(key, 3)
    params = init_params(pk, channels_noise, channels_img, features_g)

    # DCGAN generator input: latent noise (N, channels_noise, 1, 1)
    x = jax.random.normal(xk, (2, channels_noise, 1, 1), jnp.float32)

    fwd = jax.jit(dc_generator_forward)
    out = jax.block_until_ready(fwd(x, params))
    assert out.shape == (2, channels_img, 90, 90), out.shape

    ref = jax.block_until_ready(jax.jit(ref_forward)(x, params))
    max_err = float(jnp.max(jnp.abs(out - ref)))
    assert jnp.allclose(out, ref, atol=1e-2, rtol=1e-2), max_err

    print("KERNEL_OK")
</pallas_src>

<mosaic_0001>
module attributes {stable_mosaic.version = 11 : i64} {
  func.func @affine_relu_kernel(%arg0: i32, %arg1: memref<8x256xbf16, #tpu.memory_space<vmem>>, %arg2: memref<1x256xf32, #tpu.memory_space<vmem>>, %arg3: memref<1x256xf32, #tpu.memory_space<vmem>>, %arg4: memref<8x256xbf16, #tpu.memory_space<vmem>>) attributes {dimension_semantics = [#tpu.dimension_semantics<parallel>], iteration_bounds = array<i64: 1>, scalar_prefetch = 0 : i64, scratch_operands = 0 : i64, tpu.core_type = #tpu.core_type<tc>, window_params = [{transform_indices = @transform_0, window_bounds = array<i64: 8, 256>}, {pipeline_mode = #tpu.pipeline_mode<synchronous>, transform_indices = @transform_1, window_bounds = array<i64: 1, 256>}, {pipeline_mode = #tpu.pipeline_mode<synchronous>, transform_indices = @transform_2, window_bounds = array<i64: 1, 256>}, {transform_indices = @transform_3, window_bounds = array<i64: 8, 256>}]} {
    %c0 = arith.constant 0 : index
    %c0_0 = arith.constant 0 : index
    %0 = vector.load %arg1[%c0, %c0_0] : memref<8x256xbf16, #tpu.memory_space<vmem>>, vector<8x256xbf16>
    %1 = arith.extf %0 : vector<8x256xbf16> to vector<8x256xf32>
    %c0_1 = arith.constant 0 : index
    %c0_2 = arith.constant 0 : index
    %2 = vector.load %arg2[%c0_1, %c0_2] : memref<1x256xf32, #tpu.memory_space<vmem>>, vector<1x256xf32>
    %3 = vector.broadcast %2 : vector<1x256xf32> to vector<8x256xf32>
    %4 = arith.mulf %1, %3 : vector<8x256xf32>
    %c0_3 = arith.constant 0 : index
    %c0_4 = arith.constant 0 : index
    %5 = vector.load %arg3[%c0_3, %c0_4] : memref<1x256xf32, #tpu.memory_space<vmem>>, vector<1x256xf32>
    %6 = vector.broadcast %5 : vector<1x256xf32> to vector<8x256xf32>
    %7 = arith.addf %4, %6 : vector<8x256xf32>
    %cst = arith.constant 0.000000e+00 : f32
    %8 = vector.broadcast %cst : f32 to vector<8x256xf32>
    %9 = arith.maximumf %7, %8 : vector<8x256xf32>
    %10 = arith.truncf %9 : vector<8x256xf32> to vector<8x256xbf16>
    %c0_5 = arith.constant 0 : index
    %c0_6 = arith.constant 0 : index
    %11 = vector.load %arg4[%c0_5, %c0_6] : memref<8x256xbf16, #tpu.memory_space<vmem>>, vector<8x256xbf16>
    tpu.vector_store %arg4[%c0_5, %c0_6], %10 {strides = array<i32>} : memref<8x256xbf16, #tpu.memory_space<vmem>>, vector<8x256xbf16>,
    return
  }
  func.func @transform_0(%arg0: i32) -> (i32, i32) {
    %c0_i32 = arith.constant 0 : i32
    %c0_i32_0 = arith.constant 0 : i32
    return %arg0, %c0_i32 : i32, i32
  }
  func.func @transform_1(%arg0: i32) -> (i32, i32) {
    %c0_i32 = arith.constant 0 : i32
    %c0_i32_0 = arith.constant 0 : i32
    %c0_i32_1 = arith.constant 0 : i32
    return %c0_i32, %c0_i32_0 : i32, i32
  }
  func.func @transform_2(%arg0: i32) -> (i32, i32) {
    %c0_i32 = arith.constant 0 : i32
    %c0_i32_0 = arith.constant 0 : i32
    %c0_i32_1 = arith.constant 0 : i32
    return %c0_i32, %c0_i32_0 : i32, i32
  }
  func.func @transform_3(%arg0: i32) -> (i32, i32) {
    %c0_i32 = arith.constant 0 : i32
    %c0_i32_0 = arith.constant 0 : i32
    return %arg0, %c0_i32 : i32, i32
  }
}

module attributes {stable_mosaic.version = 11 : i64} {
  func.func @matmul_stats_kernel(%arg0: i32, %arg1: memref<8x16xbf16, #tpu.memory_space<vmem>>, %arg2: memref<16x256xbf16, #tpu.memory_space<vmem>>, %arg3: memref<8x256xbf16, #tpu.memory_space<vmem>>, %arg4: memref<1x2x256xf32, #tpu.memory_space<vmem>>) attributes {dimension_semantics = [#tpu.dimension_semantics<parallel>], iteration_bounds = array<i64: 1>, scalar_prefetch = 0 : i64, scratch_operands = 0 : i64, tpu.core_type = #tpu.core_type<tc>, window_params = [{transform_indices = @transform_0, window_bounds = array<i64: 8, 16>}, {pipeline_mode = #tpu.pipeline_mode<synchronous>, transform_indices = @transform_1, window_bounds = array<i64: 16, 256>}, {transform_indices = @transform_2, window_bounds = array<i64: 8, 256>}, {transform_indices = @transform_3, window_bounds = array<i64: 1, 2, 256>}]} {
    %c0 = arith.constant 0 : index
    %c0_0 = arith.constant 0 : index
    %0 = vector.load %arg1[%c0, %c0_0] : memref<8x16xbf16, #tpu.memory_space<vmem>>, vector<8x16xbf16>
    %c0_1 = arith.constant 0 : index
    %c0_2 = arith.constant 0 : index
    %1 = vector.load %arg2[%c0_1, %c0_2] : memref<16x256xbf16, #tpu.memory_space<vmem>>, vector<16x256xbf16>
    %cst = arith.constant dense<0.000000e+00> : vector<8x256xf32>
    %2 = tpu.matmul %0, %1, %cst {dimension_numbers = #tpu.dot_dimension_numbers<[1], [0], [0], [1], [0, 0, 1, 1], [], []>} : vector<8x16xbf16>, vector<16x256xbf16>, vector<8x256xf32> -> vector<8x256xf32>
    %3 = arith.truncf %2 : vector<8x256xf32> to vector<8x256xbf16>
    %c0_3 = arith.constant 0 : index
    %c0_4 = arith.constant 0 : index
    %4 = vector.load %arg3[%c0_3, %c0_4] : memref<8x256xbf16, #tpu.memory_space<vmem>>, vector<8x256xbf16>
    tpu.vector_store %arg3[%c0_3, %c0_4], %3 {strides = array<i32>} : memref<8x256xbf16, #tpu.memory_space<vmem>>, vector<8x256xbf16>,
    %cst_5 = arith.constant dense<0.000000e+00> : vector<256xf32>
    %5 = vector.multi_reduction <add>, %2, %cst_5 [0] : vector<8x256xf32> to vector<256xf32>
    %6 = vector.shape_cast %5 : vector<256xf32> to vector<1x256xf32>
    %7 = vector.shape_cast %6 : vector<1x256xf32> to vector<1x1x256xf32>
    %c0_6 = arith.constant 0 : index
    %c0_7 = arith.constant 0 : index
    %c0_8 = arith.constant 0 : index
    %8 = vector.load %arg4[%c0_6, %c0_7, %c0_8] : memref<1x2x256xf32, #tpu.memory_space<vmem>>, vector<1x1x256xf32>
    tpu.vector_store %arg4[%c0_6, %c0_7, %c0_8], %7 {strides = array<i32>} : memref<1x2x256xf32, #tpu.memory_space<vmem>>, vector<1x1x256xf32>,
    %9 = arith.mulf %2, %2 : vector<8x256xf32>
    %cst_9 = arith.constant dense<0.000000e+00> : vector<256xf32>
    %10 = vector.multi_reduction <add>, %9, %cst_9 [0] : vector<8x256xf32> to vector<256xf32>
    %11 = vector.shape_cast %10 : vector<256xf32> to vector<1x256xf32>
    %12 = vector.shape_cast %11 : vector<1x256xf32> to vector<1x1x256xf32>
    %c0_10 = arith.constant 0 : index
    %c1 = arith.constant 1 : index
    %c0_11 = arith.constant 0 : index
    %13 = vector.load %arg4[%c0_10, %c1, %c0_11] : memref<1x2x256xf32, #tpu.memory_space<vmem>>, vector<1x1x256xf32>
    tpu.vector_store %arg4[%c0_10, %c1, %c0_11], %12 {strides = array<i32>} : memref<1x2x256xf32, #tpu.memory_space<vmem>>, vector<1x1x256xf32>,
    return
  }
  func.func @transform_0(%arg0: i32) -> (i32, i32) {
    %c0_i32 = arith.constant 0 : i32
    %c0_i32_0 = arith.constant 0 : i32
    return %arg0, %c0_i32 : i32, i32
  }
  func.func @transform_1(%arg0: i32) -> (i32, i32) {
    %c0_i32 = arith.constant 0 : i32
    %c0_i32_0 = arith.constant 0 : i32
    %c0_i32_1 = arith.constant 0 : i32
    return %c0_i32, %c0_i32_0 : i32, i32
  }
  func.func @transform_2(%arg0: i32) -> (i32, i32) {
    %c0_i32 = arith.constant 0 : i32
    %c0_i32_0 = arith.constant 0 : i32
    return %arg0, %c0_i32 : i32, i32
  }
  func.func @transform_3(%arg0: i32) -> (i32, i32, i32) {
    %c0_i32 = arith.constant 0 : i32
    %c0_i32_0 = arith.constant 0 : i32
    %c0_i32_1 = arith.constant 0 : i32
    return %arg0, %c0_i32, %c0_i32_0 : i32, i32, i32
  }
}

module attributes {stable_mosaic.version = 11 : i64} {
  func.func @matmul_stats_kernel(%arg0: i32, %arg1: memref<56x256xbf16, #tpu.memory_space<vmem>>, %arg2: memref<256x128xbf16, #tpu.memory_space<vmem>>, %arg3: memref<56x128xbf16, #tpu.memory_space<vmem>>, %arg4: memref<1x2x128xf32, #tpu.memory_space<vmem>>) attributes {dimension_semantics = [#tpu.dimension_semantics<parallel>], iteration_bounds = array<i64: 1>, scalar_prefetch = 0 : i64, scratch_operands = 0 : i64, tpu.core_type = #tpu.core_type<tc>, window_params = [{transform_indices = @transform_0, window_bounds = array<i64: 56, 256>}, {pipeline_mode = #tpu.pipeline_mode<synchronous>, transform_indices = @transform_1, window_bounds = array<i64: 256, 128>}, {transform_indices = @transform_2, window_bounds = array<i64: 56, 128>}, {transform_indices = @transform_3, window_bounds = array<i64: 1, 2, 128>}]} {
    %c0 = arith.constant 0 : index
    %c0_0 = arith.constant 0 : index
    %0 = vector.load %arg1[%c0, %c0_0] : memref<56x256xbf16, #tpu.memory_space<vmem>>, vector<56x256xbf16>
    %c0_1 = arith.constant 0 : index
    %c0_2 = arith.constant 0 : index
    %1 = vector.load %arg2[%c0_1, %c0_2] : memref<256x128xbf16, #tpu.memory_space<vmem>>, vector<256x128xbf16>
    %cst = arith.constant dense<0.000000e+00> : vector<56x128xf32>
    %2 = tpu.matmul %0, %1, %cst {dimension_numbers = #tpu.dot_dimension_numbers<[1], [0], [0], [1], [0, 0, 1, 1], [], []>} : vector<56x256xbf16>, vector<256x128xbf16>, vector<56x128xf32> -> vector<56x128xf32>
    %3 = arith.truncf %2 : vector<56x128xf32> to vector<56x128xbf16>
    %c0_3 = arith.constant 0 : index
    %c0_4 = arith.constant 0 : index
    %4 = vector.load %arg3[%c0_3, %c0_4] : memref<56x128xbf16, #tpu.memory_space<vmem>>, vector<56x128xbf16>
    tpu.vector_store %arg3[%c0_3, %c0_4], %3 {strides = array<i32>} : memref<56x128xbf16, #tpu.memory_space<vmem>>, vector<56x128xbf16>,
    %cst_5 = arith.constant dense<0.000000e+00> : vector<128xf32>
    %5 = vector.multi_reduction <add>, %2, %cst_5 [0] : vector<56x128xf32> to vector<128xf32>
    %6 = vector.shape_cast %5 : vector<128xf32> to vector<1x128xf32>
    %7 = vector.shape_cast %6 : vector<1x128xf32> to vector<1x1x128xf32>
    %c0_6 = arith.constant 0 : index
    %c0_7 = arith.constant 0 : index
    %c0_8 = arith.constant 0 : index
    %8 = vector.load %arg4[%c0_6, %c0_7, %c0_8] : memref<1x2x128xf32, #tpu.memory_space<vmem>>, vector<1x1x128xf32>
    tpu.vector_store %arg4[%c0_6, %c0_7, %c0_8], %7 {strides = array<i32>} : memref<1x2x128xf32, #tpu.memory_space<vmem>>, vector<1x1x128xf32>,
    %9 = arith.mulf %2, %2 : vector<56x128xf32>
    %cst_9 = arith.constant dense<0.000000e+00> : vector<128xf32>
    %10 = vector.multi_reduction <add>, %9, %cst_9 [0] : vector<56x128xf32> to vector<128xf32>
    %11 = vector.shape_cast %10 : vector<128xf32> to vector<1x128xf32>
    %12 = vector.shape_cast %11 : vector<1x128xf32> to vector<1x1x128xf32>
    %c0_10 = arith.constant 0 : index
    %c1 = arith.constant 1 : index
    %c0_11 = arith.constant 0 : index
    %13 = vector.load %arg4[%c0_10, %c1, %c0_11] : memref<1x2x128xf32, #tpu.memory_space<vmem>>, vector<1x1x128xf32>
    tpu.vector_store %arg4[%c0_10, %c1, %c0_11], %12 {strides = array<i32>} : memref<1x2x128xf32, #tpu.memory_space<vmem>>, vector<1x1x128xf32>,
    return
  }
  func.func @transform_0(%arg0: i32) -> (i32, i32) {
    %c0_i32 = arith.constant 0 : i32
    %c0_i32_0 = arith.constant 0 : i32
    return %arg0, %c0_i32 : i32, i32
  }
  func.func @transform_1(%arg0: i32) -> (i32, i32) {
    %c0_i32 = arith.constant 0 : i32
    %c0_i32_0 = arith.constant 0 : i32
    %c0_i32_1 = arith.constant 0 : i32
    return %c0_i32, %c0_i32_0 : i32, i32
  }
  func.func @transform_2(%arg0: i32) -> (i32, i32) {
    %c0_i32 = arith.constant 0 : i32
    %c0_i32_0 = arith.constant 0 : i32
    return %arg0, %c0_i32 : i32, i32
  }
  func.func @transform_3(%arg0: i32) -> (i32, i32, i32) {
    %c0_i32 = arith.constant 0 : i32
    %c0_i32_0 = arith.constant 0 : i32
    %c0_i32_1 = arith.constant 0 : i32
    return %arg0, %c0_i32, %c0_i32_0 : i32, i32, i32
  }
}

module attributes {stable_mosaic.version = 11 : i64} {
  func.func @affine_relu_kernel(%arg0: i32, %arg1: memref<56x128xbf16, #tpu.memory_space<vmem>>, %arg2: memref<1x128xf32, #tpu.memory_space<vmem>>, %arg3: memref<1x128xf32, #tpu.memory_space<vmem>>, %arg4: memref<56x128xbf16, #tpu.memory_space<vmem>>) attributes {dimension_semantics = [#tpu.dimension_semantics<parallel>], iteration_bounds = array<i64: 1>, scalar_prefetch = 0 : i64, scratch_operands = 0 : i64, tpu.core_type = #tpu.core_type<tc>, window_params = [{transform_indices = @transform_0, window_bounds = array<i64: 56, 128>}, {pipeline_mode = #tpu.pipeline_mode<synchronous>, transform_indices = @transform_1, window_bounds = array<i64: 1, 128>}, {pipeline_mode = #tpu.pipeline_mode<synchronous>, transform_indices = @transform_2, window_bounds = array<i64: 1, 128>}, {transform_indices = @transform_3, window_bounds = array<i64: 56, 128>}]} {
    %c0 = arith.constant 0 : index
    %c0_0 = arith.constant 0 : index
    %0 = vector.load %arg1[%c0, %c0_0] : memref<56x128xbf16, #tpu.memory_space<vmem>>, vector<56x128xbf16>
    %1 = arith.extf %0 : vector<56x128xbf16> to vector<56x128xf32>
    %c0_1 = arith.constant 0 : index
    %c0_2 = arith.constant 0 : index
    %2 = vector.load %arg2[%c0_1, %c0_2] : memref<1x128xf32, #tpu.memory_space<vmem>>, vector<1x128xf32>
    %3 = vector.broadcast %2 : vector<1x128xf32> to vector<56x128xf32>
    %4 = arith.mulf %1, %3 : vector<56x128xf32>
    %c0_3 = arith.constant 0 : index
    %c0_4 = arith.constant 0 : index
    %5 = vector.load %arg3[%c0_3, %c0_4] : memref<1x128xf32, #tpu.memory_space<vmem>>, vector<1x128xf32>
    %6 = vector.broadcast %5 : vector<1x128xf32> to vector<56x128xf32>
    %7 = arith.addf %4, %6 : vector<56x128xf32>
    %cst = arith.constant 0.000000e+00 : f32
    %8 = vector.broadcast %cst : f32 to vector<56x128xf32>
    %9 = arith.maximumf %7, %8 : vector<56x128xf32>
    %10 = arith.truncf %9 : vector<56x128xf32> to vector<56x128xbf16>
    %c0_5 = arith.constant 0 : index
    %c0_6 = arith.constant 0 : index
    %11 = vector.load %arg4[%c0_5, %c0_6] : memref<56x128xbf16, #tpu.memory_space<vmem>>, vector<56x128xbf16>
    tpu.vector_store %arg4[%c0_5, %c0_6], %10 {strides = array<i32>} : memref<56x128xbf16, #tpu.memory_space<vmem>>, vector<56x128xbf16>,
    return
  }
  func.func @transform_0(%arg0: i32) -> (i32, i32) {
    %c0_i32 = arith.constant 0 : i32
    %c0_i32_0 = arith.constant 0 : i32
    return %arg0, %c0_i32 : i32, i32
  }
  func.func @transform_1(%arg0: i32) -> (i32, i32) {
    %c0_i32 = arith.constant 0 : i32
    %c0_i32_0 = arith.constant 0 : i32
    %c0_i32_1 = arith.constant 0 : i32
    return %c0_i32, %c0_i32_0 : i32, i32
  }
  func.func @transform_2(%arg0: i32) -> (i32, i32) {
    %c0_i32 = arith.constant 0 : i32
    %c0_i32_0 = arith.constant 0 : i32
    %c0_i32_1 = arith.constant 0 : i32
    return %c0_i32, %c0_i32_0 : i32, i32
  }
  func.func @transform_3(%arg0: i32) -> (i32, i32) {
    %c0_i32 = arith.constant 0 : i32
    %c0_i32_0 = arith.constant 0 : i32
    return %arg0, %c0_i32 : i32, i32
  }
}

module attributes {stable_mosaic.version = 11 : i64} {
  func.func @matmul_stats_kernel(%arg0: i32, %arg1: memref<248x128xbf16, #tpu.memory_space<vmem>>, %arg2: memref<128x128xbf16, #tpu.memory_space<vmem>>, %arg3: memref<248x128xbf16, #tpu.memory_space<vmem>>, %arg4: memref<1x2x128xf32, #tpu.memory_space<vmem>>) attributes {dimension_semantics = [#tpu.dimension_semantics<parallel>], iteration_bounds = array<i64: 1>, scalar_prefetch = 0 : i64, scratch_operands = 0 : i64, tpu.core_type = #tpu.core_type<tc>, window_params = [{transform_indices = @transform_0, window_bounds = array<i64: 248, 128>}, {pipeline_mode = #tpu.pipeline_mode<synchronous>, transform_indices = @transform_1, window_bounds = array<i64: 128, 128>}, {transform_indices = @transform_2, window_bounds = array<i64: 248, 128>}, {transform_indices = @transform_3, window_bounds = array<i64: 1, 2, 128>}]} {
    %c0 = arith.constant 0 : index
    %c0_0 = arith.constant 0 : index
    %0 = vector.load %arg1[%c0, %c0_0] : memref<248x128xbf16, #tpu.memory_space<vmem>>, vector<248x128xbf16>
    %c0_1 = arith.constant 0 : index
    %c0_2 = arith.constant 0 : index
    %1 = vector.load %arg2[%c0_1, %c0_2] : memref<128x128xbf16, #tpu.memory_space<vmem>>, vector<128x128xbf16>
    %cst = arith.constant dense<0.000000e+00> : vector<248x128xf32>
    %2 = tpu.matmul %0, %1, %cst {dimension_numbers = #tpu.dot_dimension_numbers<[1], [0], [0], [1], [0, 0, 1, 1], [], []>} : vector<248x128xbf16>, vector<128x128xbf16>, vector<248x128xf32> -> vector<248x128xf32>
    %3 = arith.truncf %2 : vector<248x128xf32> to vector<248x128xbf16>
    %c0_3 = arith.constant 0 : index
    %c0_4 = arith.constant 0 : index
    %4 = vector.load %arg3[%c0_3, %c0_4] : memref<248x128xbf16, #tpu.memory_space<vmem>>, vector<248x128xbf16>
    tpu.vector_store %arg3[%c0_3, %c0_4], %3 {strides = array<i32>} : memref<248x128xbf16, #tpu.memory_space<vmem>>, vector<248x128xbf16>,
    %cst_5 = arith.constant dense<0.000000e+00> : vector<128xf32>
    %5 = vector.multi_reduction <add>, %2, %cst_5 [0] : vector<248x128xf32> to vector<128xf32>
    %6 = vector.shape_cast %5 : vector<128xf32> to vector<1x128xf32>
    %7 = vector.shape_cast %6 : vector<1x128xf32> to vector<1x1x128xf32>
    %c0_6 = arith.constant 0 : index
    %c0_7 = arith.constant 0 : index
    %c0_8 = arith.constant 0 : index
    %8 = vector.load %arg4[%c0_6, %c0_7, %c0_8] : memref<1x2x128xf32, #tpu.memory_space<vmem>>, vector<1x1x128xf32>
    tpu.vector_store %arg4[%c0_6, %c0_7, %c0_8], %7 {strides = array<i32>} : memref<1x2x128xf32, #tpu.memory_space<vmem>>, vector<1x1x128xf32>,
    %9 = arith.mulf %2, %2 : vector<248x128xf32>
    %cst_9 = arith.constant dense<0.000000e+00> : vector<128xf32>
    %10 = vector.multi_reduction <add>, %9, %cst_9 [0] : vector<248x128xf32> to vector<128xf32>
    %11 = vector.shape_cast %10 : vector<128xf32> to vector<1x128xf32>
    %12 = vector.shape_cast %11 : vector<1x128xf32> to vector<1x1x128xf32>
    %c0_10 = arith.constant 0 : index
    %c1 = arith.constant 1 : index
    %c0_11 = arith.constant 0 : index
    %13 = vector.load %arg4[%c0_10, %c1, %c0_11] : memref<1x2x128xf32, #tpu.memory_space<vmem>>, vector<1x1x128xf32>
    tpu.vector_store %arg4[%c0_10, %c1, %c0_11], %12 {strides = array<i32>} : memref<1x2x128xf32, #tpu.memory_space<vmem>>, vector<1x1x128xf32>,
    return
  }
  func.func @transform_0(%arg0: i32) -> (i32, i32) {
    %c0_i32 = arith.constant 0 : i32
    %c0_i32_0 = arith.constant 0 : i32
    return %arg0, %c0_i32 : i32, i32
  }
  func.func @transform_1(%arg0: i32) -> (i32, i32) {
    %c0_i32 = arith.constant 0 : i32
    %c0_i32_0 = arith.constant 0 : i32
    %c0_i32_1 = arith.constant 0 : i32
    return %c0_i32, %c0_i32_0 : i32, i32
  }
  func.func @transform_2(%arg0: i32) -> (i32, i32) {
    %c0_i32 = arith.constant 0 : i32
    %c0_i32_0 = arith.constant 0 : i32
    return %arg0, %c0_i32 : i32, i32
  }
  func.func @transform_3(%arg0: i32) -> (i32, i32, i32) {
    %c0_i32 = arith.constant 0 : i32
    %c0_i32_0 = arith.constant 0 : i32
    %c0_i32_1 = arith.constant 0 : i32
    return %arg0, %c0_i32, %c0_i32_0 : i32, i32, i32
  }
}

module attributes {stable_mosaic.version = 11 : i64} {
  func.func @affine_relu_kernel(%arg0: i32, %arg1: memref<248x128xbf16, #tpu.memory_space<vmem>>, %arg2: memref<1x128xf32, #tpu.memory_space<vmem>>, %arg3: memref<1x128xf32, #tpu.memory_space<vmem>>, %arg4: memref<248x128xbf16, #tpu.memory_space<vmem>>) attributes {dimension_semantics = [#tpu.dimension_semantics<parallel>], iteration_bounds = array<i64: 1>, scalar_prefetch = 0 : i64, scratch_operands = 0 : i64, tpu.core_type = #tpu.core_type<tc>, window_params = [{transform_indices = @transform_0, window_bounds = array<i64: 248, 128>}, {pipeline_mode = #tpu.pipeline_mode<synchronous>, transform_indices = @transform_1, window_bounds = array<i64: 1, 128>}, {pipeline_mode = #tpu.pipeline_mode<synchronous>, transform_indices = @transform_2, window_bounds = array<i64: 1, 128>}, {transform_indices = @transform_3, window_bounds = array<i64: 248, 128>}]} {
    %c0 = arith.constant 0 : index
    %c0_0 = arith.constant 0 : index
    %0 = vector.load %arg1[%c0, %c0_0] : memref<248x128xbf16, #tpu.memory_space<vmem>>, vector<248x128xbf16>
    %1 = arith.extf %0 : vector<248x128xbf16> to vector<248x128xf32>
    %c0_1 = arith.constant 0 : index
    %c0_2 = arith.constant 0 : index
    %2 = vector.load %arg2[%c0_1, %c0_2] : memref<1x128xf32, #tpu.memory_space<vmem>>, vector<1x128xf32>
    %3 = vector.broadcast %2 : vector<1x128xf32> to vector<248x128xf32>
    %4 = arith.mulf %1, %3 : vector<248x128xf32>
    %c0_3 = arith.constant 0 : index
    %c0_4 = arith.constant 0 : index
    %5 = vector.load %arg3[%c0_3, %c0_4] : memref<1x128xf32, #tpu.memory_space<vmem>>, vector<1x128xf32>
    %6 = vector.broadcast %5 : vector<1x128xf32> to vector<248x128xf32>
    %7 = arith.addf %4, %6 : vector<248x128xf32>
    %cst = arith.constant 0.000000e+00 : f32
    %8 = vector.broadcast %cst : f32 to vector<248x128xf32>
    %9 = arith.maximumf %7, %8 : vector<248x128xf32>
    %10 = arith.truncf %9 : vector<248x128xf32> to vector<248x128xbf16>
    %c0_5 = arith.constant 0 : index
    %c0_6 = arith.constant 0 : index
    %11 = vector.load %arg4[%c0_5, %c0_6] : memref<248x128xbf16, #tpu.memory_space<vmem>>, vector<248x128xbf16>
    tpu.vector_store %arg4[%c0_5, %c0_6], %10 {strides = array<i32>} : memref<248x128xbf16, #tpu.memory_space<vmem>>, vector<248x128xbf16>,
    return
  }
  func.func @transform_0(%arg0: i32) -> (i32, i32) {
    %c0_i32 = arith.constant 0 : i32
    %c0_i32_0 = arith.constant 0 : i32
    return %arg0, %c0_i32 : i32, i32
  }
  func.func @transform_1(%arg0: i32) -> (i32, i32) {
    %c0_i32 = arith.constant 0 : i32
    %c0_i32_0 = arith.constant 0 : i32
    %c0_i32_1 = arith.constant 0 : i32
    return %c0_i32, %c0_i32_0 : i32, i32
  }
  func.func @transform_2(%arg0: i32) -> (i32, i32) {
    %c0_i32 = arith.constant 0 : i32
    %c0_i32_0 = arith.constant 0 : i32
    %c0_i32_1 = arith.constant 0 : i32
    return %c0_i32, %c0_i32_0 : i32, i32
  }
  func.func @transform_3(%arg0: i32) -> (i32, i32) {
    %c0_i32 = arith.constant 0 : i32
    %c0_i32_0 = arith.constant 0 : i32
    return %arg0, %c0_i32 : i32, i32
  }
}

module attributes {stable_mosaic.version = 11 : i64} {
  func.func @matmul_stats_kernel(%arg0: i32, %arg1: memref<968x16xbf16, #tpu.memory_space<vmem>>, %arg2: memref<16x128xbf16, #tpu.memory_space<vmem>>, %arg3: memref<968x128xbf16, #tpu.memory_space<vmem>>, %arg4: memref<1x2x128xf32, #tpu.memory_space<vmem>>) attributes {dimension_semantics = [#tpu.dimension_semantics<parallel>], iteration_bounds = array<i64: 1>, scalar_prefetch = 0 : i64, scratch_operands = 0 : i64, tpu.core_type = #tpu.core_type<tc>, window_params = [{transform_indices = @transform_0, window_bounds = array<i64: 968, 16>}, {pipeline_mode = #tpu.pipeline_mode<synchronous>, transform_indices = @transform_1, window_bounds = array<i64: 16, 128>}, {transform_indices = @transform_2, window_bounds = array<i64: 968, 128>}, {transform_indices = @transform_3, window_bounds = array<i64: 1, 2, 128>}]} {
    %c0 = arith.constant 0 : index
    %c0_0 = arith.constant 0 : index
    %0 = vector.load %arg1[%c0, %c0_0] : memref<968x16xbf16, #tpu.memory_space<vmem>>, vector<968x16xbf16>
    %c0_1 = arith.constant 0 : index
    %c0_2 = arith.constant 0 : index
    %1 = vector.load %arg2[%c0_1, %c0_2] : memref<16x128xbf16, #tpu.memory_space<vmem>>, vector<16x128xbf16>
    %cst = arith.constant dense<0.000000e+00> : vector<968x128xf32>
    %2 = tpu.matmul %0, %1, %cst {dimension_numbers = #tpu.dot_dimension_numbers<[1], [0], [0], [1], [0, 0, 1, 1], [], []>} : vector<968x16xbf16>, vector<16x128xbf16>, vector<968x128xf32> -> vector<968x128xf32>
    %3 = arith.truncf %2 : vector<968x128xf32> to vector<968x128xbf16>
    %c0_3 = arith.constant 0 : index
    %c0_4 = arith.constant 0 : index
    %4 = vector.load %arg3[%c0_3, %c0_4] : memref<968x128xbf16, #tpu.memory_space<vmem>>, vector<968x128xbf16>
    tpu.vector_store %arg3[%c0_3, %c0_4], %3 {strides = array<i32>} : memref<968x128xbf16, #tpu.memory_space<vmem>>, vector<968x128xbf16>,
    %cst_5 = arith.constant dense<0.000000e+00> : vector<128xf32>
    %5 = vector.multi_reduction <add>, %2, %cst_5 [0] : vector<968x128xf32> to vector<128xf32>
    %6 = vector.shape_cast %5 : vector<128xf32> to vector<1x128xf32>
    %7 = vector.shape_cast %6 : vector<1x128xf32> to vector<1x1x128xf32>
    %c0_6 = arith.constant 0 : index
    %c0_7 = arith.constant 0 : index
    %c0_8 = arith.constant 0 : index
    %8 = vector.load %arg4[%c0_6, %c0_7, %c0_8] : memref<1x2x128xf32, #tpu.memory_space<vmem>>, vector<1x1x128xf32>
    tpu.vector_store %arg4[%c0_6, %c0_7, %c0_8], %7 {strides = array<i32>} : memref<1x2x128xf32, #tpu.memory_space<vmem>>, vector<1x1x128xf32>,
    %9 = arith.mulf %2, %2 : vector<968x128xf32>
    %cst_9 = arith.constant dense<0.000000e+00> : vector<128xf32>
    %10 = vector.multi_reduction <add>, %9, %cst_9 [0] : vector<968x128xf32> to vector<128xf32>
    %11 = vector.shape_cast %10 : vector<128xf32> to vector<1x128xf32>
    %12 = vector.shape_cast %11 : vector<1x128xf32> to vector<1x1x128xf32>
    %c0_10 = arith.constant 0 : index
    %c1 = arith.constant 1 : index
    %c0_11 = arith.constant 0 : index
    %13 = vector.load %arg4[%c0_10, %c1, %c0_11] : memref<1x2x128xf32, #tpu.memory_space<vmem>>, vector<1x1x128xf32>
    tpu.vector_store %arg4[%c0_10, %c1, %c0_11], %12 {strides = array<i32>} : memref<1x2x128xf32, #tpu.memory_space<vmem>>, vector<1x1x128xf32>,
    return
  }
  func.func @transform_0(%arg0: i32) -> (i32, i32) {
    %c0_i32 = arith.constant 0 : i32
    %c0_i32_0 = arith.constant 0 : i32
    return %arg0, %c0_i32 : i32, i32
  }
  func.func @transform_1(%arg0: i32) -> (i32, i32) {
    %c0_i32 = arith.constant 0 : i32
    %c0_i32_0 = arith.constant 0 : i32
    %c0_i32_1 = arith.constant 0 : i32
    return %c0_i32, %c0_i32_0 : i32, i32
  }
  func.func @transform_2(%arg0: i32) -> (i32, i32) {
    %c0_i32 = arith.constant 0 : i32
    %c0_i32_0 = arith.constant 0 : i32
    return %arg0, %c0_i32 : i32, i32
  }
  func.func @transform_3(%arg0: i32) -> (i32, i32, i32) {
    %c0_i32 = arith.constant 0 : i32
    %c0_i32_0 = arith.constant 0 : i32
    %c0_i32_1 = arith.constant 0 : i32
    return %arg0, %c0_i32, %c0_i32_0 : i32, i32, i32
  }
}

module attributes {stable_mosaic.version = 11 : i64} {
  func.func @affine_relu_kernel(%arg0: i32, %arg1: memref<968x128xbf16, #tpu.memory_space<vmem>>, %arg2: memref<1x128xf32, #tpu.memory_space<vmem>>, %arg3: memref<1x128xf32, #tpu.memory_space<vmem>>, %arg4: memref<968x128xbf16, #tpu.memory_space<vmem>>) attributes {dimension_semantics = [#tpu.dimension_semantics<parallel>], iteration_bounds = array<i64: 1>, scalar_prefetch = 0 : i64, scratch_operands = 0 : i64, tpu.core_type = #tpu.core_type<tc>, window_params = [{transform_indices = @transform_0, window_bounds = array<i64: 968, 128>}, {pipeline_mode = #tpu.pipeline_mode<synchronous>, transform_indices = @transform_1, window_bounds = array<i64: 1, 128>}, {pipeline_mode = #tpu.pipeline_mode<synchronous>, transform_indices = @transform_2, window_bounds = array<i64: 1, 128>}, {transform_indices = @transform_3, window_bounds = array<i64: 968, 128>}]} {
    %c0 = arith.constant 0 : index
    %c0_0 = arith.constant 0 : index
    %0 = vector.load %arg1[%c0, %c0_0] : memref<968x128xbf16, #tpu.memory_space<vmem>>, vector<968x128xbf16>
    %1 = arith.extf %0 : vector<968x128xbf16> to vector<968x128xf32>
    %c0_1 = arith.constant 0 : index
    %c0_2 = arith.constant 0 : index
    %2 = vector.load %arg2[%c0_1, %c0_2] : memref<1x128xf32, #tpu.memory_space<vmem>>, vector<1x128xf32>
    %3 = vector.broadcast %2 : vector<1x128xf32> to vector<968x128xf32>
    %4 = arith.mulf %1, %3 : vector<968x128xf32>
    %c0_3 = arith.constant 0 : index
    %c0_4 = arith.constant 0 : index
    %5 = vector.load %arg3[%c0_3, %c0_4] : memref<1x128xf32, #tpu.memory_space<vmem>>, vector<1x128xf32>
    %6 = vector.broadcast %5 : vector<1x128xf32> to vector<968x128xf32>
    %7 = arith.addf %4, %6 : vector<968x128xf32>
    %cst = arith.constant 0.000000e+00 : f32
    %8 = vector.broadcast %cst : f32 to vector<968x128xf32>
    %9 = arith.maximumf %7, %8 : vector<968x128xf32>
    %10 = arith.truncf %9 : vector<968x128xf32> to vector<968x128xbf16>
    %c0_5 = arith.constant 0 : index
    %c0_6 = arith.constant 0 : index
    %11 = vector.load %arg4[%c0_5, %c0_6] : memref<968x128xbf16, #tpu.memory_space<vmem>>, vector<968x128xbf16>
    tpu.vector_store %arg4[%c0_5, %c0_6], %10 {strides = array<i32>} : memref<968x128xbf16, #tpu.memory_space<vmem>>, vector<968x128xbf16>,
    return
  }
  func.func @transform_0(%arg0: i32) -> (i32, i32) {
    %c0_i32 = arith.constant 0 : i32
    %c0_i32_0 = arith.constant 0 : i32
    return %arg0, %c0_i32 : i32, i32
  }
  func.func @transform_1(%arg0: i32) -> (i32, i32) {
    %c0_i32 = arith.constant 0 : i32
    %c0_i32_0 = arith.constant 0 : i32
    %c0_i32_1 = arith.constant 0 : i32
    return %c0_i32, %c0_i32_0 : i32, i32
  }
  func.func @transform_2(%arg0: i32) -> (i32, i32) {
    %c0_i32 = arith.constant 0 : i32
    %c0_i32_0 = arith.constant 0 : i32
    %c0_i32_1 = arith.constant 0 : i32
    return %c0_i32, %c0_i32_0 : i32, i32
  }
  func.func @transform_3(%arg0: i32) -> (i32, i32) {
    %c0_i32 = arith.constant 0 : i32
    %c0_i32_0 = arith.constant 0 : i32
    return %arg0, %c0_i32 : i32, i32
  }
}

module attributes {stable_mosaic.version = 11 : i64} {
  func.func @matmul_bias_tanh_kernel(%arg0: i32, %arg1: memref<2032x32xbf16, #tpu.memory_space<vmem>>, %arg2: memref<32x128xbf16, #tpu.memory_space<vmem>>, %arg3: memref<1x128xf32, #tpu.memory_space<vmem>>, %arg4: memref<2032x128xf32, #tpu.memory_space<vmem>>) attributes {dimension_semantics = [#tpu.dimension_semantics<parallel>], iteration_bounds = array<i64: 2>, scalar_prefetch = 0 : i64, scratch_operands = 0 : i64, tpu.core_type = #tpu.core_type<tc>, window_params = [{transform_indices = @transform_0, window_bounds = array<i64: 2032, 32>}, {pipeline_mode = #tpu.pipeline_mode<synchronous>, transform_indices = @transform_1, window_bounds = array<i64: 32, 128>}, {pipeline_mode = #tpu.pipeline_mode<synchronous>, transform_indices = @transform_2, window_bounds = array<i64: 1, 128>}, {transform_indices = @transform_3, window_bounds = array<i64: 2032, 128>}]} {
    %c0 = arith.constant 0 : index
    %c0_0 = arith.constant 0 : index
    %0 = vector.load %arg1[%c0, %c0_0] : memref<2032x32xbf16, #tpu.memory_space<vmem>>, vector<2032x32xbf16>
    %c0_1 = arith.constant 0 : index
    %c0_2 = arith.constant 0 : index
    %1 = vector.load %arg2[%c0_1, %c0_2] : memref<32x128xbf16, #tpu.memory_space<vmem>>, vector<32x128xbf16>
    %cst = arith.constant dense<0.000000e+00> : vector<2032x128xf32>
    %2 = tpu.matmul %0, %1, %cst {dimension_numbers = #tpu.dot_dimension_numbers<[1], [0], [0], [1], [0, 0, 1, 1], [], []>} : vector<2032x32xbf16>, vector<32x128xbf16>, vector<2032x128xf32> -> vector<2032x128xf32>
    %c0_3 = arith.constant 0 : index
    %c0_4 = arith.constant 0 : index
    %3 = vector.load %arg3[%c0_3, %c0_4] : memref<1x128xf32, #tpu.memory_space<vmem>>, vector<1x128xf32>
    %4 = vector.broadcast %3 : vector<1x128xf32> to vector<2032x128xf32>
    %5 = arith.addf %2, %4 : vector<2032x128xf32>
    %6 = math.tanh %5 : vector<2032x128xf32>
    %c0_5 = arith.constant 0 : index
    %c0_6 = arith.constant 0 : index
    %7 = vector.load %arg4[%c0_5, %c0_6] : memref<2032x128xf32, #tpu.memory_space<vmem>>, vector<2032x128xf32>
    tpu.vector_store %arg4[%c0_5, %c0_6], %6 {strides = array<i32>} : memref<2032x128xf32, #tpu.memory_space<vmem>>, vector<2032x128xf32>,
    return
  }
  func.func @transform_0(%arg0: i32) -> (i32, i32) {
    %c0_i32 = arith.constant 0 : i32
    %c0_i32_0 = arith.constant 0 : i32
    return %arg0, %c0_i32 : i32, i32
  }
  func.func @transform_1(%arg0: i32) -> (i32, i32) {
    %c0_i32 = arith.constant 0 : i32
    %c0_i32_0 = arith.constant 0 : i32
    %c0_i32_1 = arith.constant 0 : i32
    return %c0_i32, %c0_i32_0 : i32, i32
  }
  func.func @transform_2(%arg0: i32) -> (i32, i32) {
    %c0_i32 = arith.constant 0 : i32
    %c0_i32_0 = arith.constant 0 : i32
    %c0_i32_1 = arith.constant 0 : i32
    return %c0_i32, %c0_i32_0 : i32, i32
  }
  func.func @transform_3(%arg0: i32) -> (i32, i32) {
    %c0_i32 = arith.constant 0 : i32
    %c0_i32_0 = arith.constant 0 : i32
    return %arg0, %c0_i32 : i32, i32
  }
}

</mosaic_0001>

<llo_original>
// kernel: tile.89
$region0: #{tile.89}
  %s0 = inlined_call_operand.vmem [shape: f32[4,3], index: 0, kind: input, shape index: {}]
  %s1 = inlined_call_operand.vmem [shape: f32[1,12], index: 1, kind: output, shape index: {}]
  $region1: #{tile.89} parent=0
    #allocation0 [shape = 'u8[4096]{0}', space=vmem, size = 0x1000, scoped, tag = 'scoped mem for output reshape']
    #allocation1 [shape = 'u8[4096]{0}', space=vmem, size = 0x1000, scoped, tag = 'scoped mem for input reshape']
    %s3 = ssub.s32 16, 1
    %v4 = vld [vmem:[%s0] sm:%s3]
    %5 = vst [vmem:[#allocation1] sm:%s3] %v4
    %v6 = vld [vmem:[#allocation1] sm:$0x1]
    %vm7 = vcmask 23552
    %8 = vst.msk [vmem:[#allocation0] sm:$0x1] %vm7, %v6
    %s9 = scalar_lea.vmem [#allocation1], 3
    %v10 = vld [vmem:[%s9] sm:$0x1]
    %11 = vrot.lane.b32.xlu0 %v10, 9
    %v12 = vpop.permute.xlu0 %11
    %vm13 = vcmask 97352
    %14 = vst.msk [vmem:[#allocation0] sm:$0x1] %vm13, %v12
    %s15 = scalar_lea.vmem [#allocation1], 2
    %v16 = vld [vmem:[%s15] sm:$0x1]
    %17 = vrot.lane.b32.xlu0 %v16, 6
    %v18 = vpop.permute.xlu0 %17
    %vm19 = vcmask 72752
    %20 = vst.msk [vmem:[#allocation0] sm:$0x1] %vm19, %v18
    %s21 = scalar_lea.vmem [#allocation1], 1
    %v22 = vld [vmem:[%s21] sm:$0x1]
    %23 = vrot.lane.b32.xlu0 %v22, 3
    %v24 = vpop.permute.xlu0 %23
    %vm25 = vcmask 48152
    %26 = vst.msk [vmem:[#allocation0] sm:$0x1] %vm25, %v24
    %s28 = ssub.s32 2, 1
    %v29 = vld [vmem:[#allocation0] sm:%s28]
    %s31 = ssub.s32 2, 1
    %32 = vst [vmem:[%s1] sm:%s31] %v29

// kernel: tile.88
$region0: #{tile.88}
  #allocation2 [shape = 's32[1]{0}', space=sflag, size = 0x4, scoped, tag = 'scoped memory for tile.88']
  %s0 = inlined_call_operand.hbm [shape: f32[3], index: 0, kind: input, shape index: {}]
  %s1 = inlined_call_operand.vmem [shape: f32[4,3], index: 1, kind: output, shape index: {}]
  $region1: #{tile.88} parent=0
    #allocation0 [shape = 'u8[512]{0}', space=vmem, size = 0x400, scoped, tag = 'operand span for operand 0']
    #allocation1 [shape = 's32[1]{0}', space=sflag, size = 0x4, scoped, tag = 'scoped memory for tile.88']
    %2 = vsyncpa [#allocation1], 0
    // Predicated region
    $region2: #{tile.88} parent=1 // pred_check
      _
    $region3: #{tile.88} parent=1 // pred_check_branch
      %4 = sbr.rel (0) target = $region5
    $region4: #{tile.88} parent=1 // pred_region
      %6 = vsyncadd [#allocation1], 0
      %s8 = sshll.u32 %s0, 4
      %s9 = int_to_ptr.hbm [resolvable:$true] %s8
      %s10 = sshll.u32 [#allocation0], 4
      %s11 = int_to_ptr.vmem [resolvable:$true] %s10
      %13 = dma.hbm_to_vmem [thread:$0]  %s9, 16, %s11, [#allocation1]
    $region5: #{tile.88} parent=1 // pred_fallthru
      _
    // Predicated region
    $region6: #{tile.88} parent=1 // pred_check
      _
    $region7: #{tile.88} parent=1 // pred_check_branch
      %15 = sbr.rel (0) target = $region9
    $region8: #{tile.88} parent=1 // pred_region
      %17 = dma.done [#allocation1], 16
    $region9: #{tile.88} parent=1 // pred_fallthru
      _
    %v18 = vld [vmem:[#allocation0] ss:$0 sm:$0xff]
    %19 = vst [vmem:[%s1] sm:$0xf] %v18
    %20 = vsyncpa [#allocation1], 1

// kernel: squeeze.9
$region0: #{squeeze.9}
  %s0 = inlined_call_operand.vmem [shape: f32[256], index: 0, kind: input, shape index: {}]
  %s1 = inlined_call_operand.vmem [shape: f32[4,64], index: 1, kind: output, shape index: {}]
  $region1: #{squeeze.9} parent=0
    #allocation0 [shape = 'u8[4096]{0}', space=vmem, size = 0x1000, scoped, tag = 'scoped mem for output reshape']
    #allocation1 [shape = 'u8[4096]{0}', space=vmem, size = 0x1000, scoped, tag = 'scoped mem for input reshape']
    %s3 = ssub.s32 4, 1
    %v4 = vld [vmem:[%s0] sm:%s3]
    %5 = vst [vmem:[#allocation1] sm:%s3] %v4
    %v6 = vld [vmem:[#allocation1] sm:$0x3]
    %vm7 = vcmask 523264
    %8 = vst.msk [vmem:[#allocation0] ss:$2 sm:$0x3] %vm7, %v6
    %v9 = vld [vmem:[#allocation1] sm:$0x3]
    %10 = vrot.lane.b32.xlu0 %v9, 64
    %v11 = vpop.permute.xlu0 %10
    %vm12 = vcmask 523264
    %s13 = scalar_lea.vmem [#allocation0], 1
    %14 = vst.msk [vmem:[%s13] ss:$2 sm:$0x3] %vm12, %v11
    %s16 = ssub.s32 16, 1
    %v17 = vld [vmem:[#allocation0] sm:%s16]
    %s19 = ssub.s32 16, 1
    %20 = vst [vmem:[%s1] sm:%s19] %v17

// kernel: tile.53
$region0: #{tile.53}
  #allocation0 [shape = 's32[1]{0}', space=sflag, size = 0x4, scoped, tag = 'scoped memory for tile.53']
  %s0 = inlined_call_operand.vmem [shape: f32[64], index: 0, kind: input, shape index: {}]
  %s1 = inlined_call_operand.vmem [shape: f32[4,64], index: 1, kind: output, shape index: {}]
  // Predicated region
  $region2: #{tile.53} parent=0 // pred_check
    _
  $region3: #{tile.53} parent=0 // pred_check_branch
    %3 = sbr.rel (0) target = $region5
  $region4: #{tile.53} parent=0 // pred_region
    _
  $region5: #{tile.53} parent=0 // pred_fallthru
    _
  %v4 = vld [vmem:[%s0] ss:$0 sm:$0xff]
  %5 = vst [vmem:[%s1] sm:$0xf] %v4

// kernel: tile.54
$region0: #{tile.54}
  %s0 = inlined_call_operand.vmem [shape: f32[4,64], index: 0, kind: input, shape index: {}]
  %s1 = inlined_call_operand.vmem [shape: f32[1,256], index: 1, kind: output, shape index: {}]
  $region1: #{tile.54} parent=0
    #allocation0 [shape = 'u8[8192]{0}', space=vmem, size = 0x2000, scoped, tag = 'scoped mem for output reshape']
    #allocation1 [shape = 'u8[4096]{0}', space=vmem, size = 0x1000, scoped, tag = 'scoped mem for input reshape']
    %s3 = ssub.s32 16, 1
    %v4 = vld [vmem:[%s0] sm:%s3]
    %5 = vst [vmem:[#allocation1] sm:%s3] %v4
    %s6 = smov 3
    %v7 = vld [vmem:[#allocation1] ss:$2 sm:%s6]
    %vm8 = vcmask 523264
    %9 = vst.msk [vmem:[#allocation0] ss:$8 sm:$0x3] %vm8, %v7
    %s10 = scalar_lea.vmem [#allocation1], 1
    %s11 = smov 3
    %v12 = vld [vmem:[%s10] ss:$2 sm:%s11]
    %13 = vrot.lane.b32.xlu0 %v12, 64
    %v14 = vpop.permute.xlu0 %13
    %vm15 = vcmask 1048064
    %16 = vst.msk [vmem:[#allocation0] ss:$8 sm:$0x3] %vm15, %v14
    %s18 = ssub.s32 2, 1
    %v19 = vld [vmem:[#allocation0] sm:%s18]
    %s21 = ssub.s32 2, 1
    %22 = vst [vmem:[%s1] sm:%s21] %v19
    %s23 = scalar_lea.vmem [#allocation0], 8
    %v24 = vld [vmem:[%s23] sm:%s18]
    %s26 = ssub.s32 2, 1
    %s27 = scalar_lea.vmem %s1, 1
    %28 = vst [vmem:[%s27] sm:%s26] %v24

// kernel: dc_generator_forward.10
$region0: #{dc_generator_forward.10}
  #allocation0 [shape = 'u32[]', space=smem, size = 0x4, offset = 0x4, fixed_abs, tag = 'smem constant byte address 0x4 - core index']
  #allocation1 [shape = 'u32[72,128]{1,0:T(1,128)}', space=vmem, size = 0x9000, scoped, tag = 'internal scratch']
  %s0 = inlined_call_operand.vmem [shape: bf16[8,256], index: 0, kind: input, shape index: {}]
  %s1 = inlined_call_operand.vmem [shape: f32[1,256], index: 1, kind: input, shape index: {}]
  %s2 = inlined_call_operand.vmem [shape: f32[1,256], index: 2, kind: input, shape index: {}]
  %s3 = inlined_call_operand.vmem [shape: bf16[8,256], index: 3, kind: output, shape index: {}]
  %s4 = sld [smem:[#allocation0]]
  $region22: #{dc_generator_forward.10} parent=0
    _
  %s6 = ssub.s32 1, %s4
  %s7 = scalar_select 0, %s6, %s4
  // Predicated region
  $region2: #{dc_generator_forward.10} parent=0 // pred_check
    _
  $region3: #{dc_generator_forward.10} parent=0 // pred_check_branch
    %9 = sbr.rel (0) target = $region5
  $region4: #{dc_generator_forward.10} parent=0 // pred_region
    _
  $region5: #{dc_generator_forward.10} parent=0 // pred_fallthru
    _
  // Predicated region
  $region6: #{dc_generator_forward.10} parent=0 // pred_check
    _
  $region7: #{dc_generator_forward.10} parent=0 // pred_check_branch
    %11 = sbr.rel (0) target = $region9
  $region8: #{dc_generator_forward.10} parent=0 // pred_region
    _
  $region9: #{dc_generator_forward.10} parent=0 // pred_fallthru
    _
  // Predicated region
  $region10: #{dc_generator_forward.10} parent=0 // pred_check
    _
  $region11: #{dc_generator_forward.10} parent=0 // pred_check_branch
    %13 = sbr.rel (0) target = $region13
  $region12: #{dc_generator_forward.10} parent=0 // pred_region
    _
  $region13: #{dc_generator_forward.10} parent=0 // pred_fallthru
    _
  %v14 = vld [vmem:[%s0] sm:$0xff]
  %v15 = vunpack.c.l.bf16 %v14
  %v16 = vunpack.c.h.bf16 %v14
  %v17 = vld [vmem:[%s1] sm:$0x3]
  %v19 = vperm.slane %v17, 0
  %v20 = vperm.slane %v17, 1
  %v23 = vmul.f32 %v15, %v19
  %v24 = vmul.f32 %v16, %v20
  %v25 = vld [vmem:[%s2] sm:$0x3]
  %v27 = vperm.slane %v25, 0
  %v28 = vperm.slane %v25, 1
  %v31 = vadd.f32 %v23, %v27
  %v32 = vadd.f32 %v24, %v28
  %v33 = vmax.f32 %v31, 0.0
  %v34 = vmax.f32 %v32, 0.0
  %v35 = vpack.c.bf16 %v34, %v33
  %36 = vst [vmem:[%s3] sm:$0xff] %v35
  // Predicated region
  $region14: #{dc_generator_forward.10} parent=0 // pred_check
    _
  $region15: #{dc_generator_forward.10} parent=0 // pred_check_branch
    %38 = sbr.rel (0) target = $region17
  $region16: #{dc_generator_forward.10} parent=0 // pred_region
    _
  $region17: #{dc_generator_forward.10} parent=0 // pred_fallthru
    _
  // Predicated region
  $region18: #{dc_generator_forward.10} parent=0 // pred_check
    _
  $region19: #{dc_generator_forward.10} parent=0 // pred_check_branch
    %40 = sbr.rel (0) target = $region21
  $region20: #{dc_generator_forward.10} parent=0 // pred_region
    _
  $region21: #{dc_generator_forward.10} parent=0 // pred_fallthru
    _

// kernel: dc_generator_forward.9
$region0: #{dc_generator_forward.9}
  #allocation0 [shape = 'u32[]', space=smem, size = 0x4, offset = 0x4, fixed_abs, tag = 'smem constant byte address 0x4 - core index']
  #allocation1 [shape = 'u32[72,128]{1,0:T(1,128)}', space=vmem, size = 0x9000, scoped, tag = 'internal scratch']
  %s0 = inlined_call_operand.vmem [shape: bf16[8,16], index: 0, kind: input, shape index: {}]
  %s1 = inlined_call_operand.vmem [shape: bf16[16,256], index: 1, kind: input, shape index: {}]
  %s2 = inlined_call_operand.vmem [shape: bf16[8,256], index: 2, kind: output, shape index: {0}]
  %s3 = inlined_call_operand.vmem [shape: f32[1,2,256], index: 3, kind: output, shape index: {1}]
  %4 = xla_tuple %s2, %s3
  %s5 = sld [smem:[#allocation0]]
  $region26: #{dc_generator_forward.9} parent=0
    _
  %s7 = ssub.s32 1, %s5
  %s8 = scalar_select 0, %s7, %s5
  // Predicated region
  $region2: #{dc_generator_forward.9} parent=0 // pred_check
    _
  $region3: #{dc_generator_forward.9} parent=0 // pred_check_branch
    %10 = sbr.rel (0) target = $region5
  $region4: #{dc_generator_forward.9} parent=0 // pred_region
    _
  $region5: #{dc_generator_forward.9} parent=0 // pred_fallthru
    _
  // Predicated region
  $region6: #{dc_generator_forward.9} parent=0 // pred_check
    _
  $region7: #{dc_generator_forward.9} parent=0 // pred_check_branch
    %12 = sbr.rel (0) target = $region9
  $region8: #{dc_generator_forward.9} parent=0 // pred_region
    _
  $region9: #{dc_generator_forward.9} parent=0 // pred_fallthru
    _
  %v14 = vld [vmem:[%s0] sm:$0xf]
  %v15 = vld [vmem:[%s1] sm:$0xff]
  %v16 = vld [vmem:[%s1 + $0x8] sm:$0xff]
  %v19 = vunpack.c.l.b16 %v15
  %v20 = vunpack.c.h.b16 %v15
  %v21 = vunpack.c.l.b16 %v16
  %v22 = vunpack.c.h.b16 %v16
  %v23 = vpack.c.b16 %v21, %v19
  %v24 = vpack.c.b16 %v22, %v20
  %vm27 = vcmask 130048
  %v29 = vsel %vm27, %v14, 0
  %31 = vmatpush.bf16.msra.mxu0 0
  %32 = vmatpush.bf16.msra.mxu0 0
  %33 = vmatpush.bf16.msra.mxu0 0
  %34 = vmatpush.bf16.msra.mxu0 0
  %35 = vmatpush.bf16.msra.mxu0 0
  %36 = vmatpush.bf16.msra.mxu0 0
  %37 = vmatpush.bf16.msra.mxu0 0
  %38 = vmatpush.bf16.msra.mxu0 %v23
  %39 = vmatmul.bf16.gmra.mxu0 %v29
  %v40 = vpop.f32.mrf.mxu0
  %v41 = vadd.f32 0.0, %v40
  %v42 = vpop.f32.mrf.mxu0
  %43 = vdwg.mxu0
  %44 = vmatpush.bf16.msra.mxu0 0
  %45 = vmatpush.bf16.msra.mxu0 0
  %46 = vmatpush.bf16.msra.mxu0 0
  %47 = vmatpush.bf16.msra.mxu0 0
  %48 = vmatpush.bf16.msra.mxu0 0
  %49 = vmatpush.bf16.msra.mxu0 0
  %50 = vmatpush.bf16.msra.mxu0 0
  %51 = vmatpush.bf16.msra.mxu0 %v24
  %52 = vmatmul.bf16.gmra.mxu0 %v29
  %v53 = vpop.f32.mrf.mxu0
  %v54 = vadd.f32 0.0, %v53
  %v55 = vpop.f32.mrf.mxu0
  %56 = vdwg.mxu0
  %v57 = vpack.c.bf16 %v54, %v41
  %58 = vst [vmem:[%s2] sm:$0xff] %v57
  %v59 = vrot.slane %v41, 4
  %v60 = vadd.f32 %v41, %v59
  %v61 = vrot.slane %v60, 2
  %v62 = vadd.f32 %v60, %v61
  %v63 = vrot.slane %v62, 1
  %v64 = vadd.f32 %v62, %v63
  %v65 = vrot.slane %v54, 4
  %v66 = vadd.f32 %v54, %v65
  %v67 = vrot.slane %v66, 2
  %v68 = vadd.f32 %v66, %v67
  %v69 = vrot.slane %v68, 1
  %v70 = vadd.f32 %v68, %v69
  %v73 = vrot.slane %v70, 7
  %vm74 = vcmask 1040384
  %v75 = vsel %vm74, %v64, %v73
  %v77 = vlaneseq
  %vm78 = vcmp.ge.s32.totalorder %v77, 0
  %vm79 = vcmp.lt.s32.totalorder %v77, 256
  %vm80 = vmand %vm78, %vm79
  %81 = vst.msk [vmem:[%s3] ss:$2 sm:$0x3] %vm80, %v75
  %v82 = vmul.f32 %v41, %v41
  %v83 = vmul.f32 %v54, %v54
  %v84 = vrot.slane %v82, 4
  %v85 = vadd.f32 %v82, %v84
  %v86 = vrot.slane %v85, 2
  %v87 = vadd.f32 %v85, %v86
  %v88 = vrot.slane %v87, 1
  %v89 = vadd.f32 %v87, %v88
  %v90 = vrot.slane %v83, 4
  %v91 = vadd.f32 %v83, %v90
  %v92 = vrot.slane %v91, 2
  %v93 = vadd.f32 %v91, %v92
  %v94 = vrot.slane %v93, 1
  %v95 = vadd.f32 %v93, %v94
  %v98 = vrot.slane %v95, 7
  %v99 = vsel %vm74, %v89, %v98
  %s101 = scalar_lea.vmem %s3, 1
  %102 = vst.msk [vmem:[%s101] ss:$2 sm:$0x3] %vm80, %v99
  // Predicated region
  $region10: #{dc_generator_forward.9} parent=0 // pred_check
    _
  $region11: #{dc_generator_forward.9} parent=0 // pred_check_branch
    %104 = sbr.rel (0) target = $region13
  $region12: #{dc_generator_forward.9} parent=0 // pred_region
    _
  $region13: #{dc_generator_forward.9} parent=0 // pred_fallthru
    _
  // Predicated region
  $region14: #{dc_generator_forward.9} parent=0 // pred_check
    _
  $region15: #{dc_generator_forward.9} parent=0 // pred_check_branch
    %106 = sbr.rel (0) target = $region17
  $region16: #{dc_generator_forward.9} parent=0 // pred_region
    _
  $region17: #{dc_generator_forward.9} parent=0 // pred_fallthru
    _
  // Predicated region
  $region18: #{dc_generator_forward.9} parent=0 // pred_check
    _
  $region19: #{dc_generator_forward.9} parent=0 // pred_check_branch
    %108 = sbr.rel (0) target = $region21
  $region20: #{dc_generator_forward.9} parent=0 // pred_region
    _
  $region21: #{dc_generator_forward.9} parent=0 // pred_fallthru
    _
  // Predicated region
  $region22: #{dc_generator_forward.9} parent=0 // pred_check
    _
  $region23: #{dc_generator_forward.9} parent=0 // pred_check_branch
    %110 = sbr.rel (0) target = $region25
  $region24: #{dc_generator_forward.9} parent=0 // pred_region
    _
  $region25: #{dc_generator_forward.9} parent=0 // pred_fallthru
    _

// kernel: squeeze.10
$region0: #{squeeze.10}
  %s0 = inlined_call_operand.vmem [shape: f32[128], index: 0, kind: input, shape index: {}]
  %s1 = inlined_call_operand.vmem [shape: f32[4,32], index: 1, kind: output, shape index: {}]
  $region1: #{squeeze.10} parent=0
    #allocation0 [shape = 'u8[4096]{0}', space=vmem, size = 0x1000, scoped, tag = 'scoped mem for output reshape']
    #allocation1 [shape = 'u8[4096]{0}', space=vmem, size = 0x1000, scoped, tag = 'scoped mem for input reshape']
    %s3 = ssub.s32 2, 1
    %v4 = vld [vmem:[%s0] sm:%s3]
    %5 = vst [vmem:[#allocation1] sm:%s3] %v4
    %v6 = vld [vmem:[#allocation1] sm:$0x1]
    %vm7 = vcmask 261120
    %8 = vst.msk [vmem:[#allocation0] sm:$0x1] %vm7, %v6
    %v9 = vld [vmem:[#allocation1] sm:$0x1]
    %10 = vrot.lane.b32.xlu0 %v9, 96
    %v11 = vpop.permute.xlu0 %10
    %vm12 = vcmask 261120
    %s13 = scalar_lea.vmem [#allocation0], 1
    %14 = vst.msk [vmem:[%s13] sm:$0x1] %vm12, %v11
    %v15 = vld [vmem:[#allocation1] sm:$0x1]
    %16 = vrot.lane.b32.xlu0 %v15, 64
    %v17 = vpop.permute.xlu0 %16
    %vm18 = vcmask 261120
    %s19 = scalar_lea.vmem [#allocation0], 2
    %20 = vst.msk [vmem:[%s19] sm:$0x1] %vm18, %v17
    %v21 = vld [vmem:[#allocation1] sm:$0x1]
    %22 = vrot.lane.b32.xlu0 %v21, 32
    %v23 = vpop.permute.xlu0 %22
    %vm24 = vcmask 261120
    %s25 = scalar_lea.vmem [#allocation0], 3
    %26 = vst.msk [vmem:[%s25] sm:$0x1] %vm24, %v23
    %s28 = ssub.s32 16, 1
    %v29 = vld [vmem:[#allocation0] sm:%s28]
    %s31 = ssub.s32 16, 1
    %32 = vst [vmem:[%s1] sm:%s31] %v29

// kernel: dc_generator_forward.11
$region0: #{dc_generator_forward.11}
  #allocation0 [shape = 'u32[]', space=smem, size = 0x4, offset = 0x4, fixed_abs, tag = 'smem constant byte address 0x4 - core index']
  #allocation1 [shape = 'u32[72,128]{1,0:T(1,128)}', space=vmem, size = 0x9000, scoped, tag = 'internal scratch']
  %s0 = inlined_call_operand.vmem [shape: bf16[56,256], index: 0, kind: input, shape index: {}]
  %s1 = inlined_call_operand.vmem [shape: bf16[256,128], index: 1, kind: input, shape index: {}]
  %s2 = inlined_call_operand.vmem [shape: bf16[56,128], index: 2, kind: output, shape index: {0}]
  %s3 = inlined_call_operand.vmem [shape: f32[1,2,128], index: 3, kind: output, shape index: {1}]
  %4 = xla_tuple %s2, %s3
  %s5 = sld [smem:[#allocation0]]
  $region26: #{dc_generator_forward.11} parent=0
    _
  %s7 = ssub.s32 1, %s5
  %s8 = scalar_select 0, %s7, %s5
  // Predicated region
  $region2: #{dc_generator_forward.11} parent=0 // pred_check
    _
  $region3: #{dc_generator_forward.11} parent=0 // pred_check_branch
    %10 = sbr.rel (0) target = $region5
  $region4: #{dc_generator_forward.11} parent=0 // pred_region
    _
  $region5: #{dc_generator_forward.11} parent=0 // pred_fallthru
    _
  // Predicated region
  $region6: #{dc_generator_forward.11} parent=0 // pred_check
    _
  $region7: #{dc_generator_forward.11} parent=0 // pred_check_branch
    %12 = sbr.rel (0) target = $region9
  $region8: #{dc_generator_forward.11} parent=0 // pred_region
    _
  $region9: #{dc_generator_forward.11} parent=0 // pred_fallthru
    _
  %v13 = vld [vmem:[%s0] sm:$0xff]
  %v14 = vld [vmem:[%s0 + $0x8] sm:$0xff]
  %v15 = vld [vmem:[%s0 + $0x10] sm:$0xff]
  %v16 = vld [vmem:[%s0 + $0x18] sm:$0xff]
  %v17 = vld [vmem:[%s0 + $0x20] sm:$0xff]
  %v18 = vld [vmem:[%s0 + $0x28] sm:$0xff]
  %v19 = vld [vmem:[%s0 + $0x30] sm:$0xff]
  %v20 = vld [vmem:[%s1] sm:$0xf]
  %v21 = vld [vmem:[%s1 + $0x4] sm:$0xf]
  %v22 = vld [vmem:[%s1 + $0x8] sm:$0xf]
  %v23 = vld [vmem:[%s1 + $0xc] sm:$0xf]
  %v24 = vld [vmem:[%s1 + $0x10] sm:$0xf]
  %v25 = vld [vmem:[%s1 + $0x14] sm:$0xf]
  %v26 = vld [vmem:[%s1 + $0x18] sm:$0xf]
  %v27 = vld [vmem:[%s1 + $0x1c] sm:$0xf]
  %v28 = vld [vmem:[%s1 + $0x20] sm:$0xf]
  %v29 = vld [vmem:[%s1 + $0x24] sm:$0xf]
  %v30 = vld [vmem:[%s1 + $0x28] sm:$0xf]
  %v31 = vld [vmem:[%s1 + $0x2c] sm:$0xf]
  %v32 = vld [vmem:[%s1 + $0x30] sm:$0xf]
  %v33 = vld [vmem:[%s1 + $0x34] sm:$0xf]
  %v34 = vld [vmem:[%s1 + $0x38] sm:$0xf]
  %v35 = vld [vmem:[%s1 + $0x3c] sm:$0xf]
  %v36 = vld [vmem:[%s1 + $0x40] sm:$0xf]
  %v37 = vld [vmem:[%s1 + $0x44] sm:$0xf]
  %v38 = vld [vmem:[%s1 + $0x48] sm:$0xf]
  %v39 = vld [vmem:[%s1 + $0x4c] sm:$0xf]
  %v40 = vld [vmem:[%s1 + $0x50] sm:$0xf]
  %v41 = vld [vmem:[%s1 + $0x54] sm:$0xf]
  %v42 = vld [vmem:[%s1 + $0x58] sm:$0xf]
  %v43 = vld [vmem:[%s1 + $0x5c] sm:$0xf]
  %v44 = vld [vmem:[%s1 + $0x60] sm:$0xf]
  %v45 = vld [vmem:[%s1 + $0x64] sm:$0xf]
  %v46 = vld [vmem:[%s1 + $0x68] sm:$0xf]
  %v47 = vld [vmem:[%s1 + $0x6c] sm:$0xf]
  %v48 = vld [vmem:[%s1 + $0x70] sm:$0xf]
  %v49 = vld [vmem:[%s1 + $0x74] sm:$0xf]
  %v50 = vld [vmem:[%s1 + $0x78] sm:$0xf]
  %v51 = vld [vmem:[%s1 + $0x7c] sm:$0xf]
  %v59 = vunpack.c.l.b16 %v13
  %v60 = vunpack.c.h.b16 %v13
  %v61 = vunpack.c.l.b16 %v14
  %v62 = vunpack.c.h.b16 %v14
  %v63 = vunpack.c.l.b16 %v15
  %v64 = vunpack.c.h.b16 %v15
  %v65 = vunpack.c.l.b16 %v16
  %v66 = vunpack.c.h.b16 %v16
  %v67 = vunpack.c.l.b16 %v17
  %v68 = vunpack.c.h.b16 %v17
  %v69 = vunpack.c.l.b16 %v18
  %v70 = vunpack.c.h.b16 %v18
  %v71 = vunpack.c.l.b16 %v19
  %v72 = vunpack.c.h.b16 %v19
  %v73 = vpack.c.b16 %v61, %v59
  %v74 = vpack.c.b16 %v62, %v60
  %v75 = vpack.c.b16 %v65, %v63
  %v76 = vpack.c.b16 %v66, %v64
  %v77 = vpack.c.b16 %v69, %v67
  %v78 = vpack.c.b16 %v70, %v68
  %v79 = vpack.c.b16 %v71, %v71
  %v80 = vpack.c.b16 %v72, %v72
  %v121 = vunpack.c.l.b16 %v20
  %v122 = vunpack.c.l.b16 %v21
  %v123 = vunpack.c.l.b16 %v22
  %v124 = vunpack.c.l.b16 %v23
  %v125 = vunpack.c.l.b16 %v24
  %v126 = vunpack.c.l.b16 %v25
  %v127 = vunpack.c.l.b16 %v26
  %v128 = vunpack.c.l.b16 %v27
  %v129 = vunpack.c.l.b16 %v28
  %v130 = vunpack.c.l.b16 %v29
  %v131 = vunpack.c.l.b16 %v30
  %v132 = vunpack.c.l.b16 %v31
  %v133 = vunpack.c.l.b16 %v32
  %v134 = vunpack.c.l.b16 %v33
  %v135 = vunpack.c.l.b16 %v34
  %v136 = vunpack.c.l.b16 %v35
  %v137 = vunpack.c.l.b16 %v36
  %v138 = vunpack.c.l.b16 %v37
  %v139 = vunpack.c.l.b16 %v38
  %v140 = vunpack.c.l.b16 %v39
  %v141 = vunpack.c.l.b16 %v40
  %v142 = vunpack.c.l.b16 %v41
  %v143 = vunpack.c.l.b16 %v42
  %v144 = vunpack.c.l.b16 %v43
  %v145 = vunpack.c.l.b16 %v44
  %v146 = vunpack.c.l.b16 %v45
  %v147 = vunpack.c.l.b16 %v46
  %v148 = vunpack.c.l.b16 %v47
  %v149 = vunpack.c.l.b16 %v48
  %v150 = vunpack.c.l.b16 %v49
  %v151 = vunpack.c.l.b16 %v50
  %v152 = vunpack.c.l.b16 %v51
  %v153 = vpack.c.b16 %v122, %v121
  %v154 = vpack.c.b16 %v124, %v123
  %v155 = vpack.c.b16 %v126, %v125
  %v156 = vpack.c.b16 %v128, %v127
  %v157 = vpack.c.b16 %v130, %v129
  %v158 = vpack.c.b16 %v132, %v131
  %v159 = vpack.c.b16 %v134, %v133
  %v160 = vpack.c.b16 %v136, %v135
  %v161 = vpack.c.b16 %v138, %v137
  %v162 = vpack.c.b16 %v140, %v139
  %v163 = vpack.c.b16 %v142, %v141
  %v164 = vpack.c.b16 %v144, %v143
  %v165 = vpack.c.b16 %v146, %v145
  %v166 = vpack.c.b16 %v148, %v147
  %v167 = vpack.c.b16 %v150, %v149
  %v168 = vpack.c.b16 %v152, %v151
  %185 = vmatpush.bf16.msra.mxu0 %v160
  %186 = vmatpush.bf16.msra.mxu0 %v159
  %187 = vmatpush.bf16.msra.mxu0 %v158
  %188 = vmatpush.bf16.msra.mxu0 %v157
  %189 = vmatpush.bf16.msra.mxu0 %v156
  %190 = vmatpush.bf16.msra.mxu0 %v155
  %191 = vmatpush.bf16.msra.mxu0 %v154
  %192 = vmatpush.bf16.msra.mxu0 %v153
  %193 = vmatmul.bf16.gmra.mxu0 %v73
  %v194 = vpop.f32.mrf.mxu0
  %v195 = vadd.f32 0.0, %v194
  %v196 = vpop.f32.mrf.mxu0
  %v197 = vadd.f32 0.0, %v196
  %198 = vmatmul.bf16.gmra.mxu0 %v75
  %v199 = vpop.f32.mrf.mxu0
  %v200 = vadd.f32 0.0, %v199
  %v201 = vpop.f32.mrf.mxu0
  %v202 = vadd.f32 0.0, %v201
  %203 = vmatmul.bf16.gmra.mxu0 %v77
  %v204 = vpop.f32.mrf.mxu0
  %v205 = vadd.f32 0.0, %v204
  %v206 = vpop.f32.mrf.mxu0
  %v207 = vadd.f32 0.0, %v206
  %208 = vmatmul.bf16.gmra.mxu0 %v79
  %v209 = vpop.f32.mrf.mxu0
  %v210 = vadd.f32 0.0, %v209
  %v211 = vpop.f32.mrf.mxu0
  %212 = vdwg.mxu0
  %213 = vmatpush.bf16.msra.mxu0 %v168
  %214 = vmatpush.bf16.msra.mxu0 %v167
  %215 = vmatpush.bf16.msra.mxu0 %v166
  %216 = vmatpush.bf16.msra.mxu0 %v165
  %217 = vmatpush.bf16.msra.mxu0 %v164
  %218 = vmatpush.bf16.msra.mxu0 %v163
  %219 = vmatpush.bf16.msra.mxu0 %v162
  %220 = vmatpush.bf16.msra.mxu0 %v161
  %221 = vmatmul.bf16.gmra.mxu0 %v74
  %v222 = vpop.f32.mrf.mxu0
  %v223 = vadd.f32 %v195, %v222
  %v224 = vpop.f32.mrf.mxu0
  %v225 = vadd.f32 %v197, %v224
  %226 = vmatmul.bf16.gmra.mxu0 %v76
  %v227 = vpop.f32.mrf.mxu0
  %v228 = vadd.f32 %v200, %v227
  %v229 = vpop.f32.mrf.mxu0
  %v230 = vadd.f32 %v202, %v229
  %231 = vmatmul.bf16.gmra.mxu0 %v78
  %v232 = vpop.f32.mrf.mxu0
  %v233 = vadd.f32 %v205, %v232
  %v234 = vpop.f32.mrf.mxu0
  %v235 = vadd.f32 %v207, %v234
  %236 = vmatmul.bf16.gmra.mxu0 %v80
  %v237 = vpop.f32.mrf.mxu0
  %v238 = vadd.f32 %v210, %v237
  %v239 = vpop.f32.mrf.mxu0
  %240 = vdwg.mxu0
  %v241 = vpack.c.bf16 %v223, %v223
  %v242 = vpack.c.bf16 %v225, %v225
  %v243 = vpack.c.bf16 %v228, %v228
  %v244 = vpack.c.bf16 %v230, %v230
  %v245 = vpack.c.bf16 %v233, %v233
  %v246 = vpack.c.bf16 %v235, %v235
  %v247 = vpack.c.bf16 %v238, %v238
  %248 = vst [vmem:[%s2] sm:$0xf] %v241
  %249 = vst [vmem:[%s2 + $0x4] sm:$0xf] %v242
  %250 = vst [vmem:[%s2 + $0x8] sm:$0xf] %v243
  %251 = vst [vmem:[%s2 + $0xc] sm:$0xf] %v244
  %252 = vst [vmem:[%s2 + $0x10] sm:$0xf] %v245
  %253 = vst [vmem:[%s2 + $0x14] sm:$0xf] %v246
  %254 = vst [vmem:[%s2 + $0x18] sm:$0xf] %v247
  %v255 = vadd.f32 %v223, %v225
  %v256 = vadd.f32 %v255, %v228
  %v257 = vadd.f32 %v256, %v230
  %v258 = vadd.f32 %v257, %v233
  %v259 = vadd.f32 %v258, %v235
  %v260 = vadd.f32 %v259, %v238
  %v261 = vrot.slane %v260, 4
  %v262 = vadd.f32 %v260, %v261
  %v263 = vrot.slane %v262, 2
  %v264 = vadd.f32 %v262, %v263
  %v265 = vrot.slane %v264, 1
  %v266 = vadd.f32 %v264, %v265
  %267 = vst [vmem:[%s3] sm:$0x1] %v266
  %v268 = vmul.f32 %v223, %v223
  %v269 = vmul.f32 %v225, %v225
  %v270 = vmul.f32 %v228, %v228
  %v271 = vmul.f32 %v230, %v230
  %v272 = vmul.f32 %v233, %v233
  %v273 = vmul.f32 %v235, %v235
  %v274 = vmul.f32 %v238, %v238
  %v275 = vadd.f32 %v268, %v269
  %v276 = vadd.f32 %v275, %v270
  %v277 = vadd.f32 %v276, %v271
  %v278 = vadd.f32 %v277, %v272
  %v279 = vadd.f32 %v278, %v273
  %v280 = vadd.f32 %v279, %v274
  %v281 = vrot.slane %v280, 4
  %v282 = vadd.f32 %v280, %v281
  %v283 = vrot.slane %v282, 2
  %v284 = vadd.f32 %v282, %v283
  %v285 = vrot.slane %v284, 1
  %v286 = vadd.f32 %v284, %v285
  %287 = vst [vmem:[%s3 + $0x1] sm:$0x1] %v286
  // Predicated region
  $region10: #{dc_generator_forward.11} parent=0 // pred_check
    _
  $region11: #{dc_generator_forward.11} parent=0 // pred_check_branch
    %289 = sbr.rel (0) target = $region13
  $region12: #{dc_generator_forward.11} parent=0 // pred_region
    _
  $region13: #{dc_generator_forward.11} parent=0 // pred_fallthru
    _
  // Predicated region
  $region14: #{dc_generator_forward.11} parent=0 // pred_check
    _
  $region15: #{dc_generator_forward.11} parent=0 // pred_check_branch
    %291 = sbr.rel (0) target = $region17
  $region16: #{dc_generator_forward.11} parent=0 // pred_region
    _
  $region17: #{dc_generator_forward.11} parent=0 // pred_fallthru
    _
  // Predicated region
  $region18: #{dc_generator_forward.11} parent=0 // pred_check
    _
  $region19: #{dc_generator_forward.11} parent=0 // pred_check_branch
    %293 = sbr.rel (0) target = $region21
  $region20: #{dc_generator_forward.11} parent=0 // pred_region
    _
  $region21: #{dc_generator_forward.11} parent=0 // pred_fallthru
    _
  // Predicated region
  $region22: #{dc_generator_forward.11} parent=0 // pred_check
    _
  $region23: #{dc_generator_forward.11} parent=0 // pred_check_branch
    %295 = sbr.rel (0) target = $region25
  $region24: #{dc_generator_forward.11} parent=0 // pred_region
    _
  $region25: #{dc_generator_forward.11} parent=0 // pred_fallthru
    _

// kernel: tile.63
$region0: #{tile.63}
  #allocation0 [shape = 's32[1]{0}', space=sflag, size = 0x4, scoped, tag = 'scoped memory for tile.63']
  %s0 = inlined_call_operand.vmem [shape: f32[32], index: 0, kind: input, shape index: {}]
  %s1 = inlined_call_operand.vmem [shape: f32[4,32], index: 1, kind: output, shape index: {}]
  // Predicated region
  $region2: #{tile.63} parent=0 // pred_check
    _
  $region3: #{tile.63} parent=0 // pred_check_branch
    %3 = sbr.rel (0) target = $region5
  $region4: #{tile.63} parent=0 // pred_region
    _
  $region5: #{tile.63} parent=0 // pred_fallthru
    _
  %v4 = vld [vmem:[%s0] ss:$0 sm:$0xff]
  %5 = vst [vmem:[%s1] sm:$0xf] %v4

// kernel: tile.64
$region0: #{tile.64}
  %s0 = inlined_call_operand.vmem [shape: f32[4,32], index: 0, kind: input, shape index: {}]
  %s1 = inlined_call_operand.vmem [shape: f32[1,128], index: 1, kind: output, shape index: {}]
  $region1: #{tile.64} parent=0
    #allocation0 [shape = 'u8[4096]{0}', space=vmem, size = 0x1000, scoped, tag = 'scoped mem for output reshape']
    #allocation1 [shape = 'u8[4096]{0}', space=vmem, size = 0x1000, scoped, tag = 'scoped mem for input reshape']
    %s3 = ssub.s32 16, 1
    %v4 = vld [vmem:[%s0] sm:%s3]
    %5 = vst [vmem:[#allocation1] sm:%s3] %v4
    %v6 = vld [vmem:[#allocation1] sm:$0x1]
    %vm7 = vcmask 261120
    %8 = vst.msk [vmem:[#allocation0] sm:$0x1] %vm7, %v6
    %s9 = scalar_lea.vmem [#allocation1], 3
    %v10 = vld [vmem:[%s9] sm:$0x1]
    %11 = vrot.lane.b32.xlu0 %v10, 96
    %v12 = vpop.permute.xlu0 %11
    %vm13 = vcmask 1048320
    %14 = vst.msk [vmem:[#allocation0] sm:$0x1] %vm13, %v12
    %s15 = scalar_lea.vmem [#allocation1], 2
    %v16 = vld [vmem:[%s15] sm:$0x1]
    %17 = vrot.lane.b32.xlu0 %v16, 64
    %v18 = vpop.permute.xlu0 %17
    %vm19 = vcmask 785920
    %20 = vst.msk [vmem:[#allocation0] sm:$0x1] %vm19, %v18
    %s21 = scalar_lea.vmem [#allocation1], 1
    %v22 = vld [vmem:[%s21] sm:$0x1]
    %23 = vrot.lane.b32.xlu0 %v22, 32
    %v24 = vpop.permute.xlu0 %23
    %vm25 = vcmask 523520
    %26 = vst.msk [vmem:[#allocation0] sm:$0x1] %vm25, %v24
    %s28 = ssub.s32 2, 1
    %v29 = vld [vmem:[#allocation0] sm:%s28]
    %s31 = ssub.s32 2, 1
    %32 = vst [vmem:[%s1] sm:%s31] %v29

// kernel: dc_generator_forward.12
$region0: #{dc_generator_forward.12}
  #allocation0 [shape = 'u32[]', space=smem, size = 0x4, offset = 0x4, fixed_abs, tag = 'smem constant byte address 0x4 - core index']
  #allocation1 [shape = 'u32[72,128]{1,0:T(1,128)}', space=vmem, size = 0x9000, scoped, tag = 'internal scratch']
  %s0 = inlined_call_operand.vmem [shape: bf16[56,128], index: 0, kind: input, shape index: {}]
  %s1 = inlined_call_operand.vmem [shape: f32[1,128], index: 1, kind: input, shape index: {}]
  %s2 = inlined_call_operand.vmem [shape: f32[1,128], index: 2, kind: input, shape index: {}]
  %s3 = inlined_call_operand.vmem [shape: bf16[56,128], index: 3, kind: output, shape index: {}]
  %s4 = sld [smem:[#allocation0]]
  $region22: #{dc_generator_forward.12} parent=0
    _
  %s6 = ssub.s32 1, %s4
  %s7 = scalar_select 0, %s6, %s4
  // Predicated region
  $region2: #{dc_generator_forward.12} parent=0 // pred_check
    _
  $region3: #{dc_generator_forward.12} parent=0 // pred_check_branch
    %9 = sbr.rel (0) target = $region5
  $region4: #{dc_generator_forward.12} parent=0 // pred_region
    _
  $region5: #{dc_generator_forward.12} parent=0 // pred_fallthru
    _
  // Predicated region
  $region6: #{dc_generator_forward.12} parent=0 // pred_check
    _
  $region7: #{dc_generator_forward.12} parent=0 // pred_check_branch
    %11 = sbr.rel (0) target = $region9
  $region8: #{dc_generator_forward.12} parent=0 // pred_region
    _
  $region9: #{dc_generator_forward.12} parent=0 // pred_fallthru
    _
  // Predicated region
  $region10: #{dc_generator_forward.12} parent=0 // pred_check
    _
  $region11: #{dc_generator_forward.12} parent=0 // pred_check_branch
    %13 = sbr.rel (0) target = $region13
  $region12: #{dc_generator_forward.12} parent=0 // pred_region
    _
  $region13: #{dc_generator_forward.12} parent=0 // pred_fallthru
    _
  %v14 = vld [vmem:[%s0] sm:$0xf]
  %v15 = vld [vmem:[%s0 + $0x4] sm:$0xf]
  %v16 = vld [vmem:[%s0 + $0x8] sm:$0xf]
  %v17 = vld [vmem:[%s0 + $0xc] sm:$0xf]
  %v18 = vld [vmem:[%s0 + $0x10] sm:$0xf]
  %v19 = vld [vmem:[%s0 + $0x14] sm:$0xf]
  %v20 = vld [vmem:[%s0 + $0x18] sm:$0xf]
  %v21 = vunpack.c.l.bf16 %v14
  %v22 = vunpack.c.l.bf16 %v15
  %v23 = vunpack.c.l.bf16 %v16
  %v24 = vunpack.c.l.bf16 %v17
  %v25 = vunpack.c.l.bf16 %v18
  %v26 = vunpack.c.l.bf16 %v19
  %v27 = vunpack.c.l.bf16 %v20
  %v28 = vld [vmem:[%s1] sm:$0x1]
  %v30 = vperm.slane %v28, 0
  %v32 = vmul.f32 %v21, %v30
  %v33 = vmul.f32 %v22, %v30
  %v34 = vmul.f32 %v23, %v30
  %v35 = vmul.f32 %v24, %v30
  %v36 = vmul.f32 %v25, %v30
  %v37 = vmul.f32 %v26, %v30
  %v38 = vmul.f32 %v27, %v30
  %v39 = vld [vmem:[%s2] sm:$0x1]
  %v41 = vperm.slane %v39, 0
  %v43 = vadd.f32 %v32, %v41
  %v44 = vadd.f32 %v33, %v41
  %v45 = vadd.f32 %v34, %v41
  %v46 = vadd.f32 %v35, %v41
  %v47 = vadd.f32 %v36, %v41
  %v48 = vadd.f32 %v37, %v41
  %v49 = vadd.f32 %v38, %v41
  %v50 = vmax.f32 %v43, 0.0
  %v51 = vmax.f32 %v44, 0.0
  %v52 = vmax.f32 %v45, 0.0
  %v53 = vmax.f32 %v46, 0.0
  %v54 = vmax.f32 %v47, 0.0
  %v55 = vmax.f32 %v48, 0.0
  %v56 = vmax.f32 %v49, 0.0
  %v57 = vpack.c.bf16 %v50, %v50
  %v58 = vpack.c.bf16 %v51, %v51
  %v59 = vpack.c.bf16 %v52, %v52
  %v60 = vpack.c.bf16 %v53, %v53
  %v61 = vpack.c.bf16 %v54, %v54
  %v62 = vpack.c.bf16 %v55, %v55
  %v63 = vpack.c.bf16 %v56, %v56
  %64 = vst [vmem:[%s3] sm:$0xf] %v57
  %65 = vst [vmem:[%s3 + $0x4] sm:$0xf] %v58
  %66 = vst [vmem:[%s3 + $0x8] sm:$0xf] %v59
  %67 = vst [vmem:[%s3 + $0xc] sm:$0xf] %v60
  %68 = vst [vmem:[%s3 + $0x10] sm:$0xf] %v61
  %69 = vst [vmem:[%s3 + $0x14] sm:$0xf] %v62
  %70 = vst [vmem:[%s3 + $0x18] sm:$0xf] %v63
  // Predicated region
  $region14: #{dc_generator_forward.12} parent=0 // pred_check
    _
  $region15: #{dc_generator_forward.12} parent=0 // pred_check_branch
    %72 = sbr.rel (0) target = $region17
  $region16: #{dc_generator_forward.12} parent=0 // pred_region
    _
  $region17: #{dc_generator_forward.12} parent=0 // pred_fallthru
    _
  // Predicated region
  $region18: #{dc_generator_forward.12} parent=0 // pred_check
    _
  $region19: #{dc_generator_forward.12} parent=0 // pred_check_branch
    %74 = sbr.rel (0) target = $region21
  $region20: #{dc_generator_forward.12} parent=0 // pred_region
    _
  $region21: #{dc_generator_forward.12} parent=0 // pred_fallthru
    _

// kernel: dc_generator_forward.13
$region0: #{dc_generator_forward.13}
  #allocation0 [shape = 'u32[]', space=smem, size = 0x4, offset = 0x4, fixed_abs, tag = 'smem constant byte address 0x4 - core index']
  #allocation1 [shape = 'u32[72,128]{1,0:T(1,128)}', space=vmem, size = 0x9000, scoped, tag = 'internal scratch']
  %s0 = inlined_call_operand.vmem [shape: bf16[248,128], index: 0, kind: input, shape index: {}]
  %s1 = inlined_call_operand.vmem [shape: bf16[128,128], index: 1, kind: input, shape index: {}]
  %s2 = inlined_call_operand.vmem [shape: bf16[248,128], index: 2, kind: output, shape index: {0}]
  %s3 = inlined_call_operand.vmem [shape: f32[1,2,128], index: 3, kind: output, shape index: {1}]
  %4 = xla_tuple %s2, %s3
  %s5 = sld [smem:[#allocation0]]
  $region26: #{dc_generator_forward.13} parent=0
    _
  %s7 = ssub.s32 1, %s5
  %s8 = scalar_select 0, %s7, %s5
  // Predicated region
  $region2: #{dc_generator_forward.13} parent=0 // pred_check
    _
  $region3: #{dc_generator_forward.13} parent=0 // pred_check_branch
    %10 = sbr.rel (0) target = $region5
  $region4: #{dc_generator_forward.13} parent=0 // pred_region
    _
  $region5: #{dc_generator_forward.13} parent=0 // pred_fallthru
    _
  // Predicated region
  $region6: #{dc_generator_forward.13} parent=0 // pred_check
    _
  $region7: #{dc_generator_forward.13} parent=0 // pred_check_branch
    %12 = sbr.rel (0) target = $region9
  $region8: #{dc_generator_forward.13} parent=0 // pred_region
    _
  $region9: #{dc_generator_forward.13} parent=0 // pred_fallthru
    _
  %v13 = vld [vmem:[%s0] sm:$0xf]
  %v14 = vld [vmem:[%s0 + $0x4] sm:$0xf]
  %v15 = vld [vmem:[%s0 + $0x8] sm:$0xf]
  %v16 = vld [vmem:[%s0 + $0xc] sm:$0xf]
  %v17 = vld [vmem:[%s0 + $0x10] sm:$0xf]
  %v18 = vld [vmem:[%s0 + $0x14] sm:$0xf]
  %v19 = vld [vmem:[%s0 + $0x18] sm:$0xf]
  %v20 = vld [vmem:[%s0 + $0x1c] sm:$0xf]
  %v21 = vld [vmem:[%s0 + $0x20] sm:$0xf]
  %v22 = vld [vmem:[%s0 + $0x24] sm:$0xf]
  %v23 = vld [vmem:[%s0 + $0x28] sm:$0xf]
  %v24 = vld [vmem:[%s0 + $0x2c] sm:$0xf]
  %v25 = vld [vmem:[%s0 + $0x30] sm:$0xf]
  %v26 = vld [vmem:[%s0 + $0x34] sm:$0xf]
  %v27 = vld [vmem:[%s0 + $0x38] sm:$0xf]
  %v28 = vld [vmem:[%s0 + $0x3c] sm:$0xf]
  %v29 = vld [vmem:[%s0 + $0x40] sm:$0xf]
  %v30 = vld [vmem:[%s0 + $0x44] sm:$0xf]
  %v31 = vld [vmem:[%s0 + $0x48] sm:$0xf]
  %v32 = vld [vmem:[%s0 + $0x4c] sm:$0xf]
  %v33 = vld [vmem:[%s0 + $0x50] sm:$0xf]
  %v34 = vld [vmem:[%s0 + $0x54] sm:$0xf]
  %v35 = vld [vmem:[%s0 + $0x58] sm:$0xf]
  %v36 = vld [vmem:[%s0 + $0x5c] sm:$0xf]
  %v37 = vld [vmem:[%s0 + $0x60] sm:$0xf]
  %v38 = vld [vmem:[%s0 + $0x64] sm:$0xf]
  %v39 = vld [vmem:[%s0 + $0x68] sm:$0xf]
  %v40 = vld [vmem:[%s0 + $0x6c] sm:$0xf]
  %v41 = vld [vmem:[%s0 + $0x70] sm:$0xf]
  %v42 = vld [vmem:[%s0 + $0x74] sm:$0xf]
  %v43 = vld [vmem:[%s0 + $0x78] sm:$0xf]
  %v44 = vld [vmem:[%s1] sm:$0xf]
  %v45 = vld [vmem:[%s1 + $0x4] sm:$0xf]
  %v46 = vld [vmem:[%s1 + $0x8] sm:$0xf]
  %v47 = vld [vmem:[%s1 + $0xc] sm:$0xf]
  %v48 = vld [vmem:[%s1 + $0x10] sm:$0xf]
  %v49 = vld [vmem:[%s1 + $0x14] sm:$0xf]
  %v50 = vld [vmem:[%s1 + $0x18] sm:$0xf]
  %v51 = vld [vmem:[%s1 + $0x1c] sm:$0xf]
  %v52 = vld [vmem:[%s1 + $0x20] sm:$0xf]
  %v53 = vld [vmem:[%s1 + $0x24] sm:$0xf]
  %v54 = vld [vmem:[%s1 + $0x28] sm:$0xf]
  %v55 = vld [vmem:[%s1 + $0x2c] sm:$0xf]
  %v56 = vld [vmem:[%s1 + $0x30] sm:$0xf]
  %v57 = vld [vmem:[%s1 + $0x34] sm:$0xf]
  %v58 = vld [vmem:[%s1 + $0x38] sm:$0xf]
  %v59 = vld [vmem:[%s1 + $0x3c] sm:$0xf]
  %v91 = vunpack.c.l.b16 %v13
  %v92 = vunpack.c.l.b16 %v14
  %v93 = vunpack.c.l.b16 %v15
  %v94 = vunpack.c.l.b16 %v16
  %v95 = vunpack.c.l.b16 %v17
  %v96 = vunpack.c.l.b16 %v18
  %v97 = vunpack.c.l.b16 %v19
  %v98 = vunpack.c.l.b16 %v20
  %v99 = vunpack.c.l.b16 %v21
  %v100 = vunpack.c.l.b16 %v22
  %v101 = vunpack.c.l.b16 %v23
  %v102 = vunpack.c.l.b16 %v24
  %v103 = vunpack.c.l.b16 %v25
  %v104 = vunpack.c.l.b16 %v26
  %v105 = vunpack.c.l.b16 %v27
  %v106 = vunpack.c.l.b16 %v28
  %v107 = vunpack.c.l.b16 %v29
  %v108 = vunpack.c.l.b16 %v30
  %v109 = vunpack.c.l.b16 %v31
  %v110 = vunpack.c.l.b16 %v32
  %v111 = vunpack.c.l.b16 %v33
  %v112 = vunpack.c.l.b16 %v34
  %v113 = vunpack.c.l.b16 %v35
  %v114 = vunpack.c.l.b16 %v36
  %v115 = vunpack.c.l.b16 %v37
  %v116 = vunpack.c.l.b16 %v38
  %v117 = vunpack.c.l.b16 %v39
  %v118 = vunpack.c.l.b16 %v40
  %v119 = vunpack.c.l.b16 %v41
  %v120 = vunpack.c.l.b16 %v42
  %v121 = vunpack.c.l.b16 %v43
  %v122 = vpack.c.b16 %v92, %v91
  %v123 = vpack.c.b16 %v94, %v93
  %v124 = vpack.c.b16 %v96, %v95
  %v125 = vpack.c.b16 %v98, %v97
  %v126 = vpack.c.b16 %v100, %v99
  %v127 = vpack.c.b16 %v102, %v101
  %v128 = vpack.c.b16 %v104, %v103
  %v129 = vpack.c.b16 %v106, %v105
  %v130 = vpack.c.b16 %v108, %v107
  %v131 = vpack.c.b16 %v110, %v109
  %v132 = vpack.c.b16 %v112, %v111
  %v133 = vpack.c.b16 %v114, %v113
  %v134 = vpack.c.b16 %v116, %v115
  %v135 = vpack.c.b16 %v118, %v117
  %v136 = vpack.c.b16 %v120, %v119
  %v137 = vpack.c.b16 %v121, %v121
  %v170 = vunpack.c.l.b16 %v44
  %v171 = vunpack.c.l.b16 %v45
  %v172 = vunpack.c.l.b16 %v46
  %v173 = vunpack.c.l.b16 %v47
  %v174 = vunpack.c.l.b16 %v48
  %v175 = vunpack.c.l.b16 %v49
  %v176 = vunpack.c.l.b16 %v50
  %v177 = vunpack.c.l.b16 %v51
  %v178 = vunpack.c.l.b16 %v52
  %v179 = vunpack.c.l.b16 %v53
  %v180 = vunpack.c.l.b16 %v54
  %v181 = vunpack.c.l.b16 %v55
  %v182 = vunpack.c.l.b16 %v56
  %v183 = vunpack.c.l.b16 %v57
  %v184 = vunpack.c.l.b16 %v58
  %v185 = vunpack.c.l.b16 %v59
  %v186 = vpack.c.b16 %v171, %v170
  %v187 = vpack.c.b16 %v173, %v172
  %v188 = vpack.c.b16 %v175, %v174
  %v189 = vpack.c.b16 %v177, %v176
  %v190 = vpack.c.b16 %v179, %v178
  %v191 = vpack.c.b16 %v181, %v180
  %v192 = vpack.c.b16 %v183, %v182
  %v193 = vpack.c.b16 %v185, %v184
  %202 = vmatpush.bf16.msra.mxu0 %v193
  %203 = vmatpush.bf16.msra.mxu0 %v192
  %204 = vmatpush.bf16.msra.mxu0 %v191
  %205 = vmatpush.bf16.msra.mxu0 %v190
  %206 = vmatpush.bf16.msra.mxu0 %v189
  %207 = vmatpush.bf16.msra.mxu0 %v188
  %208 = vmatpush.bf16.msra.mxu0 %v187
  %209 = vmatpush.bf16.msra.mxu0 %v186
  %210 = vmatmul.bf16.gmra.mxu0 %v122
  %v211 = vpop.f32.mrf.mxu0
  %v212 = vadd.f32 0.0, %v211
  %v213 = vpop.f32.mrf.mxu0
  %v214 = vadd.f32 0.0, %v213
  %215 = vmatmul.bf16.gmra.mxu0 %v123
  %v216 = vpop.f32.mrf.mxu0
  %v217 = vadd.f32 0.0, %v216
  %v218 = vpop.f32.mrf.mxu0
  %v219 = vadd.f32 0.0, %v218
  %220 = vmatmul.bf16.gmra.mxu0 %v124
  %v221 = vpop.f32.mrf.mxu0
  %v222 = vadd.f32 0.0, %v221
  %v223 = vpop.f32.mrf.mxu0
  %v224 = vadd.f32 0.0, %v223
  %225 = vmatmul.bf16.gmra.mxu0 %v125
  %v226 = vpop.f32.mrf.mxu0
  %v227 = vadd.f32 0.0, %v226
  %v228 = vpop.f32.mrf.mxu0
  %v229 = vadd.f32 0.0, %v228
  %230 = vmatmul.bf16.gmra.mxu0 %v126
  %v231 = vpop.f32.mrf.mxu0
  %v232 = vadd.f32 0.0, %v231
  %v233 = vpop.f32.mrf.mxu0
  %v234 = vadd.f32 0.0, %v233
  %235 = vmatmul.bf16.gmra.mxu0 %v127
  %v236 = vpop.f32.mrf.mxu0
  %v237 = vadd.f32 0.0, %v236
  %v238 = vpop.f32.mrf.mxu0
  %v239 = vadd.f32 0.0, %v238
  %240 = vmatmul.bf16.gmra.mxu0 %v128
  %v241 = vpop.f32.mrf.mxu0
  %v242 = vadd.f32 0.0, %v241
  %v243 = vpop.f32.mrf.mxu0
  %v244 = vadd.f32 0.0, %v243
  %245 = vmatmul.bf16.gmra.mxu0 %v129
  %v246 = vpop.f32.mrf.mxu0
  %v247 = vadd.f32 0.0, %v246
  %v248 = vpop.f32.mrf.mxu0
  %v249 = vadd.f32 0.0, %v248
  %250 = vmatmul.bf16.gmra.mxu0 %v130
  %v251 = vpop.f32.mrf.mxu0
  %v252 = vadd.f32 0.0, %v251
  %v253 = vpop.f32.mrf.mxu0
  %v254 = vadd.f32 0.0, %v253
  %255 = vmatmul.bf16.gmra.mxu0 %v131
  %v256 = vpop.f32.mrf.mxu0
  %v257 = vadd.f32 0.0, %v256
  %v258 = vpop.f32.mrf.mxu0
  %v259 = vadd.f32 0.0, %v258
  %260 = vmatmul.bf16.gmra.mxu0 %v132
  %v261 = vpop.f32.mrf.mxu0
  %v262 = vadd.f32 0.0, %v261
  %v263 = vpop.f32.mrf.mxu0
  %v264 = vadd.f32 0.0, %v263
  %265 = vmatmul.bf16.gmra.mxu0 %v133
  %v266 = vpop.f32.mrf.mxu0
  %v267 = vadd.f32 0.0, %v266
  %v268 = vpop.f32.mrf.mxu0
  %v269 = vadd.f32 0.0, %v268
  %270 = vmatmul.bf16.gmra.mxu0 %v134
  %v271 = vpop.f32.mrf.mxu0
  %v272 = vadd.f32 0.0, %v271
  %v273 = vpop.f32.mrf.mxu0
  %v274 = vadd.f32 0.0, %v273
  %275 = vmatmul.bf16.gmra.mxu0 %v135
  %v276 = vpop.f32.mrf.mxu0
  %v277 = vadd.f32 0.0, %v276
  %v278 = vpop.f32.mrf.mxu0
  %v279 = vadd.f32 0.0, %v278
  %280 = vmatmul.bf16.gmra.mxu0 %v136
  %v281 = vpop.f32.mrf.mxu0
  %v282 = vadd.f32 0.0, %v281
  %v283 = vpop.f32.mrf.mxu0
  %v284 = vadd.f32 0.0, %v283
  %285 = vmatmul.bf16.gmra.mxu0 %v137
  %v286 = vpop.f32.mrf.mxu0
  %v287 = vadd.f32 0.0, %v286
  %v288 = vpop.f32.mrf.mxu0
  %289 = vdwg.mxu0
  %v290 = vpack.c.bf16 %v212, %v212
  %v291 = vpack.c.bf16 %v214, %v214
  %v292 = vpack.c.bf16 %v217, %v217
  %v293 = vpack.c.bf16 %v219, %v219
  %v294 = vpack.c.bf16 %v222, %v222
  %v295 = vpack.c.bf16 %v224, %v224
  %v296 = vpack.c.bf16 %v227, %v227
  %v297 = vpack.c.bf16 %v229, %v229
  %v298 = vpack.c.bf16 %v232, %v232
  %v299 = vpack.c.bf16 %v234, %v234
  %v300 = vpack.c.bf16 %v237, %v237
  %v301 = vpack.c.bf16 %v239, %v239
  %v302 = vpack.c.bf16 %v242, %v242
  %v303 = vpack.c.bf16 %v244, %v244
  %v304 = vpack.c.bf16 %v247, %v247
  %v305 = vpack.c.bf16 %v249, %v249
  %v306 = vpack.c.bf16 %v252, %v252
  %v307 = vpack.c.bf16 %v254, %v254
  %v308 = vpack.c.bf16 %v257, %v257
  %v309 = vpack.c.bf16 %v259, %v259
  %v310 = vpack.c.bf16 %v262, %v262
  %v311 = vpack.c.bf16 %v264, %v264
  %v312 = vpack.c.bf16 %v267, %v267
  %v313 = vpack.c.bf16 %v269, %v269
  %v314 = vpack.c.bf16 %v272, %v272
  %v315 = vpack.c.bf16 %v274, %v274
  %v316 = vpack.c.bf16 %v277, %v277
  %v317 = vpack.c.bf16 %v279, %v279
  %v318 = vpack.c.bf16 %v282, %v282
  %v319 = vpack.c.bf16 %v284, %v284
  %v320 = vpack.c.bf16 %v287, %v287
  %321 = vst [vmem:[%s2] sm:$0xf] %v290
  %322 = vst [vmem:[%s2 + $0x4] sm:$0xf] %v291
  %323 = vst [vmem:[%s2 + $0x8] sm:$0xf] %v292
  %324 = vst [vmem:[%s2 + $0xc] sm:$0xf] %v293
  %325 = vst [vmem:[%s2 + $0x10] sm:$0xf] %v294
  %326 = vst [vmem:[%s2 + $0x14] sm:$0xf] %v295
  %327 = vst [vmem:[%s2 + $0x18] sm:$0xf] %v296
  %328 = vst [vmem:[%s2 + $0x1c] sm:$0xf] %v297
  %329 = vst [vmem:[%s2 + $0x20] sm:$0xf] %v298
  %330 = vst [vmem:[%s2 + $0x24] sm:$0xf] %v299
  %331 = vst [vmem:[%s2 + $0x28] sm:$0xf] %v300
  %332 = vst [vmem:[%s2 + $0x2c] sm:$0xf] %v301
  %333 = vst [vmem:[%s2 + $0x30] sm:$0xf] %v302
  %334 = vst [vmem:[%s2 + $0x34] sm:$0xf] %v303
  %335 = vst [vmem:[%s2 + $0x38] sm:$0xf] %v304
  %336 = vst [vmem:[%s2 + $0x3c] sm:$0xf] %v305
  %337 = vst [vmem:[%s2 + $0x40] sm:$0xf] %v306
  %338 = vst [vmem:[%s2 + $0x44] sm:$0xf] %v307
  %339 = vst [vmem:[%s2 + $0x48] sm:$0xf] %v308
  %340 = vst [vmem:[%s2 + $0x4c] sm:$0xf] %v309
  %341 = vst [vmem:[%s2 + $0x50] sm:$0xf] %v310
  %342 = vst [vmem:[%s2 + $0x54] sm:$0xf] %v311
  %343 = vst [vmem:[%s2 + $0x58] sm:$0xf] %v312
  %344 = vst [vmem:[%s2 + $0x5c] sm:$0xf] %v313
  %345 = vst [vmem:[%s2 + $0x60] sm:$0xf] %v314
  %346 = vst [vmem:[%s2 + $0x64] sm:$0xf] %v315
  %347 = vst [vmem:[%s2 + $0x68] sm:$0xf] %v316
  %348 = vst [vmem:[%s2 + $0x6c] sm:$0xf] %v317
  %349 = vst [vmem:[%s2 + $0x70] sm:$0xf] %v318
  %350 = vst [vmem:[%s2 + $0x74] sm:$0xf] %v319
  %351 = vst [vmem:[%s2 + $0x78] sm:$0xf] %v320
  %v352 = vadd.f32 %v212, %v214
  %v353 = vadd.f32 %v352, %v217
  %v354 = vadd.f32 %v353, %v219
  %v355 = vadd.f32 %v354, %v222
  %v356 = vadd.f32 %v355, %v224
  %v357 = vadd.f32 %v356, %v227
  %v358 = vadd.f32 %v357, %v229
  %v359 = vadd.f32 %v358, %v232
  %v360 = vadd.f32 %v359, %v234
  %v361 = vadd.f32 %v360, %v237
  %v362 = vadd.f32 %v361, %v239
  %v363 = vadd.f32 %v362, %v242
  %v364 = vadd.f32 %v363, %v244
  %v365 = vadd.f32 %v364, %v247
  %v366 = vadd.f32 %v365, %v249
  %v367 = vadd.f32 %v366, %v252
  %v368 = vadd.f32 %v367, %v254
  %v369 = vadd.f32 %v368, %v257
  %v370 = vadd.f32 %v369, %v259
  %v371 = vadd.f32 %v370, %v262
  %v372 = vadd.f32 %v371, %v264
  %v373 = vadd.f32 %v372, %v267
  %v374 = vadd.f32 %v373, %v269
  %v375 = vadd.f32 %v374, %v272
  %v376 = vadd.f32 %v375, %v274
  %v377 = vadd.f32 %v376, %v277
  %v378 = vadd.f32 %v377, %v279
  %v379 = vadd.f32 %v378, %v282
  %v380 = vadd.f32 %v379, %v284
  %v381 = vadd.f32 %v380, %v287
  %v382 = vrot.slane %v381, 4
  %v383 = vadd.f32 %v381, %v382
  %v384 = vrot.slane %v383, 2
  %v385 = vadd.f32 %v383, %v384
  %v386 = vrot.slane %v385, 1
  %v387 = vadd.f32 %v385, %v386
  %388 = vst [vmem:[%s3] sm:$0x1] %v387
  %v389 = vmul.f32 %v212, %v212
  %v390 = vmul.f32 %v214, %v214
  %v391 = vmul.f32 %v217, %v217
  %v392 = vmul.f32 %v219, %v219
  %v393 = vmul.f32 %v222, %v222
  %v394 = vmul.f32 %v224, %v224
  %v395 = vmul.f32 %v227, %v227
  %v396 = vmul.f32 %v229, %v229
  %v397 = vmul.f32 %v232, %v232
  %v398 = vmul.f32 %v234, %v234
  %v399 = vmul.f32 %v237, %v237
  %v400 = vmul.f32 %v239, %v239
  %v401 = vmul.f32 %v242, %v242
  %v402 = vmul.f32 %v244, %v244
  %v403 = vmul.f32 %v247, %v247
  %v404 = vmul.f32 %v249, %v249
  %v405 = vmul.f32 %v252, %v252
  %v406 = vmul.f32 %v254, %v254
  %v407 = vmul.f32 %v257, %v257
  %v408 = vmul.f32 %v259, %v259
  %v409 = vmul.f32 %v262, %v262
  %v410 = vmul.f32 %v264, %v264
  %v411 = vmul.f32 %v267, %v267
  %v412 = vmul.f32 %v269, %v269
  %v413 = vmul.f32 %v272, %v272
  %v414 = vmul.f32 %v274, %v274
  %v415 = vmul.f32 %v277, %v277
  %v416 = vmul.f32 %v279, %v279
  %v417 = vmul.f32 %v282, %v282
  %v418 = vmul.f32 %v284, %v284
  %v419 = vmul.f32 %v287, %v287
  %v420 = vadd.f32 %v389, %v390
  %v421 = vadd.f32 %v420, %v391
  %v422 = vadd.f32 %v421, %v392
  %v423 = vadd.f32 %v422, %v393
  %v424 = vadd.f32 %v423, %v394
  %v425 = vadd.f32 %v424, %v395
  %v426 = vadd.f32 %v425, %v396
  %v427 = vadd.f32 %v426, %v397
  %v428 = vadd.f32 %v427, %v398
  %v429 = vadd.f32 %v428, %v399
  %v430 = vadd.f32 %v429, %v400
  %v431 = vadd.f32 %v430, %v401
  %v432 = vadd.f32 %v431, %v402
  %v433 = vadd.f32 %v432, %v403
  %v434 = vadd.f32 %v433, %v404
  %v435 = vadd.f32 %v434, %v405
  %v436 = vadd.f32 %v435, %v406
  %v437 = vadd.f32 %v436, %v407
  %v438 = vadd.f32 %v437, %v408
  %v439 = vadd.f32 %v438, %v409
  %v440 = vadd.f32 %v439, %v410
  %v441 = vadd.f32 %v440, %v411
  %v442 = vadd.f32 %v441, %v412
  %v443 = vadd.f32 %v442, %v413
  %v444 = vadd.f32 %v443, %v414
  %v445 = vadd.f32 %v444, %v415
  %v446 = vadd.f32 %v445, %v416
  %v447 = vadd.f32 %v446, %v417
  %v448 = vadd.f32 %v447, %v418
  %v449 = vadd.f32 %v448, %v419
  %v450 = vrot.slane %v449, 4
  %v451 = vadd.f32 %v449, %v450
  %v452 = vrot.slane %v451, 2
  %v453 = vadd.f32 %v451, %v452
  %v454 = vrot.slane %v453, 1
  %v455 = vadd.f32 %v453, %v454
  %456 = vst [vmem:[%s3 + $0x1] sm:$0x1] %v455
  // Predicated region
  $region10: #{dc_generator_forward.13} parent=0 // pred_check
    _
  $region11: #{dc_generator_forward.13} parent=0 // pred_check_branch
    %458 = sbr.rel (0) target = $region13
  $region12: #{dc_generator_forward.13} parent=0 // pred_region
    _
  $region13: #{dc_generator_forward.13} parent=0 // pred_fallthru
    _
  // Predicated region
  $region14: #{dc_generator_forward.13} parent=0 // pred_check
    _
  $region15: #{dc_generator_forward.13} parent=0 // pred_check_branch
    %460 = sbr.rel (0) target = $region17
  $region16: #{dc_generator_forward.13} parent=0 // pred_region
    _
  $region17: #{dc_generator_forward.13} parent=0 // pred_fallthru
    _
  // Predicated region
  $region18: #{dc_generator_forward.13} parent=0 // pred_check
    _
  $region19: #{dc_generator_forward.13} parent=0 // pred_check_branch
    %462 = sbr.rel (0) target = $region21
  $region20: #{dc_generator_forward.13} parent=0 // pred_region
    _
  $region21: #{dc_generator_forward.13} parent=0 // pred_fallthru
    _
  // Predicated region
  $region22: #{dc_generator_forward.13} parent=0 // pred_check
    _
  $region23: #{dc_generator_forward.13} parent=0 // pred_check_branch
    %464 = sbr.rel (0) target = $region25
  $region24: #{dc_generator_forward.13} parent=0 // pred_region
    _
  $region25: #{dc_generator_forward.13} parent=0 // pred_fallthru
    _

// kernel: squeeze.12
$region0: #{squeeze.12}
  %s0 = inlined_call_operand.vmem [shape: f32[64], index: 0, kind: input, shape index: {}]
  %s1 = inlined_call_operand.vmem [shape: f32[4,16], index: 1, kind: output, shape index: {}]
  $region1: #{squeeze.12} parent=0
    #allocation0 [shape = 'u8[4096]{0}', space=vmem, size = 0x1000, scoped, tag = 'scoped mem for output reshape']
    #allocation1 [shape = 'u8[4096]{0}', space=vmem, size = 0x1000, scoped, tag = 'scoped mem for input reshape']
    %s3 = ssub.s32 2, 1
    %v4 = vld [vmem:[%s0] sm:%s3]
    %5 = vst [vmem:[#allocation1] sm:%s3] %v4
    %v6 = vld [vmem:[#allocation1] sm:$0x1]
    %vm7 = vcmask 130048
    %8 = vst.msk [vmem:[#allocation0] sm:$0x1] %vm7, %v6
    %v9 = vld [vmem:[#allocation1] sm:$0x1]
    %10 = vrot.lane.b32.xlu0 %v9, 112
    %v11 = vpop.permute.xlu0 %10
    %vm12 = vcmask 130048
    %s13 = scalar_lea.vmem [#allocation0], 1
    %14 = vst.msk [vmem:[%s13] sm:$0x1] %vm12, %v11
    %v15 = vld [vmem:[#allocation1] sm:$0x1]
    %16 = vrot.lane.b32.xlu0 %v15, 96
    %v17 = vpop.permute.xlu0 %16
    %vm18 = vcmask 130048
    %s19 = scalar_lea.vmem [#allocation0], 2
    %20 = vst.msk [vmem:[%s19] sm:$0x1] %vm18, %v17
    %v21 = vld [vmem:[#allocation1] sm:$0x1]
    %22 = vrot.lane.b32.xlu0 %v21, 80
    %v23 = vpop.permute.xlu0 %22
    %vm24 = vcmask 130048
    %s25 = scalar_lea.vmem [#allocation0], 3
    %26 = vst.msk [vmem:[%s25] sm:$0x1] %vm24, %v23
    %s28 = ssub.s32 16, 1
    %v29 = vld [vmem:[#allocation0] sm:%s28]
    %s31 = ssub.s32 16, 1
    %32 = vst [vmem:[%s1] sm:%s31] %v29

// kernel: tile.73
$region0: #{tile.73}
  #allocation0 [shape = 's32[1]{0}', space=sflag, size = 0x4, scoped, tag = 'scoped memory for tile.73']
  %s0 = inlined_call_operand.vmem [shape: f32[16], index: 0, kind: input, shape index: {}]
  %s1 = inlined_call_operand.vmem [shape: f32[4,16], index: 1, kind: output, shape index: {}]
  // Predicated region
  $region2: #{tile.73} parent=0 // pred_check
    _
  $region3: #{tile.73} parent=0 // pred_check_branch
    %3 = sbr.rel (0) target = $region5
  $region4: #{tile.73} parent=0 // pred_region
    _
  $region5: #{tile.73} parent=0 // pred_fallthru
    _
  %v4 = vld [vmem:[%s0] ss:$0 sm:$0xff]
  %5 = vst [vmem:[%s1] sm:$0xf] %v4

// kernel: tile.74
$region0: #{tile.74}
  %s0 = inlined_call_operand.vmem [shape: f32[4,16], index: 0, kind: input, shape index: {}]
  %s1 = inlined_call_operand.vmem [shape: f32[1,64], index: 1, kind: output, shape index: {}]
  $region1: #{tile.74} parent=0
    #allocation0 [shape = 'u8[4096]{0}', space=vmem, size = 0x1000, scoped, tag = 'scoped mem for output reshape']
    #allocation1 [shape = 'u8[4096]{0}', space=vmem, size = 0x1000, scoped, tag = 'scoped mem for input reshape']
    %s3 = ssub.s32 16, 1
    %v4 = vld [vmem:[%s0] sm:%s3]
    %5 = vst [vmem:[#allocation1] sm:%s3] %v4
    %v6 = vld [vmem:[#allocation1] sm:$0x1]
    %vm7 = vcmask 130048
    %8 = vst.msk [vmem:[#allocation0] sm:$0x1] %vm7, %v6
    %s9 = scalar_lea.vmem [#allocation1], 3
    %v10 = vld [vmem:[%s9] sm:$0x1]
    %11 = vrot.lane.b32.xlu0 %v10, 48
    %v12 = vpop.permute.xlu0 %11
    %vm13 = vcmask 523648
    %14 = vst.msk [vmem:[#allocation0] sm:$0x1] %vm13, %v12
    %s15 = scalar_lea.vmem [#allocation1], 2
    %v16 = vld [vmem:[%s15] sm:$0x1]
    %17 = vrot.lane.b32.xlu0 %v16, 32
    %v18 = vpop.permute.xlu0 %17
    %vm19 = vcmask 392448
    %20 = vst.msk [vmem:[#allocation0] sm:$0x1] %vm19, %v18
    %s21 = scalar_lea.vmem [#allocation1], 1
    %v22 = vld [vmem:[%s21] sm:$0x1]
    %23 = vrot.lane.b32.xlu0 %v22, 16
    %v24 = vpop.permute.xlu0 %23
    %vm25 = vcmask 261248
    %26 = vst.msk [vmem:[#allocation0] sm:$0x1] %vm25, %v24
    %s28 = ssub.s32 2, 1
    %v29 = vld [vmem:[#allocation0] sm:%s28]
    %s31 = ssub.s32 2, 1
    %32 = vst [vmem:[%s1] sm:%s31] %v29

// kernel: dc_generator_forward.14
$region0: #{dc_generator_forward.14}
  #allocation0 [shape = 'u32[]', space=smem, size = 0x4, offset = 0x4, fixed_abs, tag = 'smem constant byte address 0x4 - core index']
  #allocation1 [shape = 'u32[72,128]{1,0:T(1,128)}', space=vmem, size = 0x9000, scoped, tag = 'internal scratch']
  %s0 = inlined_call_operand.vmem [shape: bf16[248,128], index: 0, kind: input, shape index: {}]
  %s1 = inlined_call_operand.vmem [shape: f32[1,128], index: 1, kind: input, shape index: {}]
  %s2 = inlined_call_operand.vmem [shape: f32[1,128], index: 2, kind: input, shape index: {}]
  %s3 = inlined_call_operand.vmem [shape: bf16[248,128], index: 3, kind: output, shape index: {}]
  %s4 = sld [smem:[#allocation0]]
  $region22: #{dc_generator_forward.14} parent=0
    _
  %s6 = ssub.s32 1, %s4
  %s7 = scalar_select 0, %s6, %s4
  // Predicated region
  $region2: #{dc_generator_forward.14} parent=0 // pred_check
    _
  $region3: #{dc_generator_forward.14} parent=0 // pred_check_branch
    %9 = sbr.rel (0) target = $region5
  $region4: #{dc_generator_forward.14} parent=0 // pred_region
    _
  $region5: #{dc_generator_forward.14} parent=0 // pred_fallthru
    _
  // Predicated region
  $region6: #{dc_generator_forward.14} parent=0 // pred_check
    _
  $region7: #{dc_generator_forward.14} parent=0 // pred_check_branch
    %11 = sbr.rel (0) target = $region9
  $region8: #{dc_generator_forward.14} parent=0 // pred_region
    _
  $region9: #{dc_generator_forward.14} parent=0 // pred_fallthru
    _
  // Predicated region
  $region10: #{dc_generator_forward.14} parent=0 // pred_check
    _
  $region11: #{dc_generator_forward.14} parent=0 // pred_check_branch
    %13 = sbr.rel (0) target = $region13
  $region12: #{dc_generator_forward.14} parent=0 // pred_region
    _
  $region13: #{dc_generator_forward.14} parent=0 // pred_fallthru
    _
  %v14 = vld [vmem:[%s0] sm:$0xf]
  %v15 = vld [vmem:[%s0 + $0x4] sm:$0xf]
  %v16 = vld [vmem:[%s0 + $0x8] sm:$0xf]
  %v17 = vld [vmem:[%s0 + $0xc] sm:$0xf]
  %v18 = vld [vmem:[%s0 + $0x10] sm:$0xf]
  %v19 = vld [vmem:[%s0 + $0x14] sm:$0xf]
  %v20 = vld [vmem:[%s0 + $0x18] sm:$0xf]
  %v21 = vld [vmem:[%s0 + $0x1c] sm:$0xf]
  %v22 = vld [vmem:[%s0 + $0x20] sm:$0xf]
  %v23 = vld [vmem:[%s0 + $0x24] sm:$0xf]
  %v24 = vld [vmem:[%s0 + $0x28] sm:$0xf]
  %v25 = vld [vmem:[%s0 + $0x2c] sm:$0xf]
  %v26 = vld [vmem:[%s0 + $0x30] sm:$0xf]
  %v27 = vld [vmem:[%s0 + $0x34] sm:$0xf]
  %v28 = vld [vmem:[%s0 + $0x38] sm:$0xf]
  %v29 = vld [vmem:[%s0 + $0x3c] sm:$0xf]
  %v30 = vld [vmem:[%s0 + $0x40] sm:$0xf]
  %v31 = vld [vmem:[%s0 + $0x44] sm:$0xf]
  %v32 = vld [vmem:[%s0 + $0x48] sm:$0xf]
  %v33 = vld [vmem:[%s0 + $0x4c] sm:$0xf]
  %v34 = vld [vmem:[%s0 + $0x50] sm:$0xf]
  %v35 = vld [vmem:[%s0 + $0x54] sm:$0xf]
  %v36 = vld [vmem:[%s0 + $0x58] sm:$0xf]
  %v37 = vld [vmem:[%s0 + $0x5c] sm:$0xf]
  %v38 = vld [vmem:[%s0 + $0x60] sm:$0xf]
  %v39 = vld [vmem:[%s0 + $0x64] sm:$0xf]
  %v40 = vld [vmem:[%s0 + $0x68] sm:$0xf]
  %v41 = vld [vmem:[%s0 + $0x6c] sm:$0xf]
  %v42 = vld [vmem:[%s0 + $0x70] sm:$0xf]
  %v43 = vld [vmem:[%s0 + $0x74] sm:$0xf]
  %v44 = vld [vmem:[%s0 + $0x78] sm:$0xf]
  %v45 = vunpack.c.l.bf16 %v14
  %v46 = vunpack.c.l.bf16 %v15
  %v47 = vunpack.c.l.bf16 %v16
  %v48 = vunpack.c.l.bf16 %v17
  %v49 = vunpack.c.l.bf16 %v18
  %v50 = vunpack.c.l.bf16 %v19
  %v51 = vunpack.c.l.bf16 %v20
  %v52 = vunpack.c.l.bf16 %v21
  %v53 = vunpack.c.l.bf16 %v22
  %v54 = vunpack.c.l.bf16 %v23
  %v55 = vunpack.c.l.bf16 %v24
  %v56 = vunpack.c.l.bf16 %v25
  %v57 = vunpack.c.l.bf16 %v26
  %v58 = vunpack.c.l.bf16 %v27
  %v59 = vunpack.c.l.bf16 %v28
  %v60 = vunpack.c.l.bf16 %v29
  %v61 = vunpack.c.l.bf16 %v30
  %v62 = vunpack.c.l.bf16 %v31
  %v63 = vunpack.c.l.bf16 %v32
  %v64 = vunpack.c.l.bf16 %v33
  %v65 = vunpack.c.l.bf16 %v34
  %v66 = vunpack.c.l.bf16 %v35
  %v67 = vunpack.c.l.bf16 %v36
  %v68 = vunpack.c.l.bf16 %v37
  %v69 = vunpack.c.l.bf16 %v38
  %v70 = vunpack.c.l.bf16 %v39
  %v71 = vunpack.c.l.bf16 %v40
  %v72 = vunpack.c.l.bf16 %v41
  %v73 = vunpack.c.l.bf16 %v42
  %v74 = vunpack.c.l.bf16 %v43
  %v75 = vunpack.c.l.bf16 %v44
  %v76 = vld [vmem:[%s1] sm:$0x1]
  %v78 = vperm.slane %v76, 0
  %v80 = vmul.f32 %v45, %v78
  %v81 = vmul.f32 %v46, %v78
  %v82 = vmul.f32 %v47, %v78
  %v83 = vmul.f32 %v48, %v78
  %v84 = vmul.f32 %v49, %v78
  %v85 = vmul.f32 %v50, %v78
  %v86 = vmul.f32 %v51, %v78
  %v87 = vmul.f32 %v52, %v78
  %v88 = vmul.f32 %v53, %v78
  %v89 = vmul.f32 %v54, %v78
  %v90 = vmul.f32 %v55, %v78
  %v91 = vmul.f32 %v56, %v78
  %v92 = vmul.f32 %v57, %v78
  %v93 = vmul.f32 %v58, %v78
  %v94 = vmul.f32 %v59, %v78
  %v95 = vmul.f32 %v60, %v78
  %v96 = vmul.f32 %v61, %v78
  %v97 = vmul.f32 %v62, %v78
  %v98 = vmul.f32 %v63, %v78
  %v99 = vmul.f32 %v64, %v78
  %v100 = vmul.f32 %v65, %v78
  %v101 = vmul.f32 %v66, %v78
  %v102 = vmul.f32 %v67, %v78
  %v103 = vmul.f32 %v68, %v78
  %v104 = vmul.f32 %v69, %v78
  %v105 = vmul.f32 %v70, %v78
  %v106 = vmul.f32 %v71, %v78
  %v107 = vmul.f32 %v72, %v78
  %v108 = vmul.f32 %v73, %v78
  %v109 = vmul.f32 %v74, %v78
  %v110 = vmul.f32 %v75, %v78
  %v111 = vld [vmem:[%s2] sm:$0x1]
  %v113 = vperm.slane %v111, 0
  %v115 = vadd.f32 %v80, %v113
  %v116 = vadd.f32 %v81, %v113
  %v117 = vadd.f32 %v82, %v113
  %v118 = vadd.f32 %v83, %v113
  %v119 = vadd.f32 %v84, %v113
  %v120 = vadd.f32 %v85, %v113
  %v121 = vadd.f32 %v86, %v113
  %v122 = vadd.f32 %v87, %v113
  %v123 = vadd.f32 %v88, %v113
  %v124 = vadd.f32 %v89, %v113
  %v125 = vadd.f32 %v90, %v113
  %v126 = vadd.f32 %v91, %v113
  %v127 = vadd.f32 %v92, %v113
  %v128 = vadd.f32 %v93, %v113
  %v129 = vadd.f32 %v94, %v113
  %v130 = vadd.f32 %v95, %v113
  %v131 = vadd.f32 %v96, %v113
  %v132 = vadd.f32 %v97, %v113
  %v133 = vadd.f32 %v98, %v113
  %v134 = vadd.f32 %v99, %v113
  %v135 = vadd.f32 %v100, %v113
  %v136 = vadd.f32 %v101, %v113
  %v137 = vadd.f32 %v102, %v113
  %v138 = vadd.f32 %v103, %v113
  %v139 = vadd.f32 %v104, %v113
  %v140 = vadd.f32 %v105, %v113
  %v141 = vadd.f32 %v106, %v113
  %v142 = vadd.f32 %v107, %v113
  %v143 = vadd.f32 %v108, %v113
  %v144 = vadd.f32 %v109, %v113
  %v145 = vadd.f32 %v110, %v113
  %v146 = vmax.f32 %v115, 0.0
  %v147 = vmax.f32 %v116, 0.0
  %v148 = vmax.f32 %v117, 0.0
  %v149 = vmax.f32 %v118, 0.0
  %v150 = vmax.f32 %v119, 0.0
  %v151 = vmax.f32 %v120, 0.0
  %v152 = vmax.f32 %v121, 0.0
  %v153 = vmax.f32 %v122, 0.0
  %v154 = vmax.f32 %v123, 0.0
  %v155 = vmax.f32 %v124, 0.0
  %v156 = vmax.f32 %v125, 0.0
  %v157 = vmax.f32 %v126, 0.0
  %v158 = vmax.f32 %v127, 0.0
  %v159 = vmax.f32 %v128, 0.0
  %v160 = vmax.f32 %v129, 0.0
  %v161 = vmax.f32 %v130, 0.0
  %v162 = vmax.f32 %v131, 0.0
  %v163 = vmax.f32 %v132, 0.0
  %v164 = vmax.f32 %v133, 0.0
  %v165 = vmax.f32 %v134, 0.0
  %v166 = vmax.f32 %v135, 0.0
  %v167 = vmax.f32 %v136, 0.0
  %v168 = vmax.f32 %v137, 0.0
  %v169 = vmax.f32 %v138, 0.0
  %v170 = vmax.f32 %v139, 0.0
  %v171 = vmax.f32 %v140, 0.0
  %v172 = vmax.f32 %v141, 0.0
  %v173 = vmax.f32 %v142, 0.0
  %v174 = vmax.f32 %v143, 0.0
  %v175 = vmax.f32 %v144, 0.0
  %v176 = vmax.f32 %v145, 0.0
  %v177 = vpack.c.bf16 %v146, %v146
  %v178 = vpack.c.bf16 %v147, %v147
  %v179 = vpack.c.bf16 %v148, %v148
  %v180 = vpack.c.bf16 %v149, %v149
  %v181 = vpack.c.bf16 %v150, %v150
  %v182 = vpack.c.bf16 %v151, %v151
  %v183 = vpack.c.bf16 %v152, %v152
  %v184 = vpack.c.bf16 %v153, %v153
  %v185 = vpack.c.bf16 %v154, %v154
  %v186 = vpack.c.bf16 %v155, %v155
  %v187 = vpack.c.bf16 %v156, %v156
  %v188 = vpack.c.bf16 %v157, %v157
  %v189 = vpack.c.bf16 %v158, %v158
  %v190 = vpack.c.bf16 %v159, %v159
  %v191 = vpack.c.bf16 %v160, %v160
  %v192 = vpack.c.bf16 %v161, %v161
  %v193 = vpack.c.bf16 %v162, %v162
  %v194 = vpack.c.bf16 %v163, %v163
  %v195 = vpack.c.bf16 %v164, %v164
  %v196 = vpack.c.bf16 %v165, %v165
  %v197 = vpack.c.bf16 %v166, %v166
  %v198 = vpack.c.bf16 %v167, %v167
  %v199 = vpack.c.bf16 %v168, %v168
  %v200 = vpack.c.bf16 %v169, %v169
  %v201 = vpack.c.bf16 %v170, %v170
  %v202 = vpack.c.bf16 %v171, %v171
  %v203 = vpack.c.bf16 %v172, %v172
  %v204 = vpack.c.bf16 %v173, %v173
  %v205 = vpack.c.bf16 %v174, %v174
  %v206 = vpack.c.bf16 %v175, %v175
  %v207 = vpack.c.bf16 %v176, %v176
  %208 = vst [vmem:[%s3] sm:$0xf] %v177
  %209 = vst [vmem:[%s3 + $0x4] sm:$0xf] %v178
  %210 = vst [vmem:[%s3 + $0x8] sm:$0xf] %v179
  %211 = vst [vmem:[%s3 + $0xc] sm:$0xf] %v180
  %212 = vst [vmem:[%s3 + $0x10] sm:$0xf] %v181
  %213 = vst [vmem:[%s3 + $0x14] sm:$0xf] %v182
  %214 = vst [vmem:[%s3 + $0x18] sm:$0xf] %v183
  %215 = vst [vmem:[%s3 + $0x1c] sm:$0xf] %v184
  %216 = vst [vmem:[%s3 + $0x20] sm:$0xf] %v185
  %217 = vst [vmem:[%s3 + $0x24] sm:$0xf] %v186
  %218 = vst [vmem:[%s3 + $0x28] sm:$0xf] %v187
  %219 = vst [vmem:[%s3 + $0x2c] sm:$0xf] %v188
  %220 = vst [vmem:[%s3 + $0x30] sm:$0xf] %v189
  %221 = vst [vmem:[%s3 + $0x34] sm:$0xf] %v190
  %222 = vst [vmem:[%s3 + $0x38] sm:$0xf] %v191
  %223 = vst [vmem:[%s3 + $0x3c] sm:$0xf] %v192
  %224 = vst [vmem:[%s3 + $0x40] sm:$0xf] %v193
  %225 = vst [vmem:[%s3 + $0x44] sm:$0xf] %v194
  %226 = vst [vmem:[%s3 + $0x48] sm:$0xf] %v195
  %227 = vst [vmem:[%s3 + $0x4c] sm:$0xf] %v196
  %228 = vst [vmem:[%s3 + $0x50] sm:$0xf] %v197
  %229 = vst [vmem:[%s3 + $0x54] sm:$0xf] %v198
  %230 = vst [vmem:[%s3 + $0x58] sm:$0xf] %v199
  %231 = vst [vmem:[%s3 + $0x5c] sm:$0xf] %v200
  %232 = vst [vmem:[%s3 + $0x60] sm:$0xf] %v201
  %233 = vst [vmem:[%s3 + $0x64] sm:$0xf] %v202
  %234 = vst [vmem:[%s3 + $0x68] sm:$0xf] %v203
  %235 = vst [vmem:[%s3 + $0x6c] sm:$0xf] %v204
  %236 = vst [vmem:[%s3 + $0x70] sm:$0xf] %v205
  %237 = vst [vmem:[%s3 + $0x74] sm:$0xf] %v206
  %238 = vst [vmem:[%s3 + $0x78] sm:$0xf] %v207
  // Predicated region
  $region14: #{dc_generator_forward.14} parent=0 // pred_check
    _
  $region15: #{dc_generator_forward.14} parent=0 // pred_check_branch
    %240 = sbr.rel (0) target = $region17
  $region16: #{dc_generator_forward.14} parent=0 // pred_region
    _
  $region17: #{dc_generator_forward.14} parent=0 // pred_fallthru
    _
  // Predicated region
  $region18: #{dc_generator_forward.14} parent=0 // pred_check
    _
  $region19: #{dc_generator_forward.14} parent=0 // pred_check_branch
    %242 = sbr.rel (0) target = $region21
  $region20: #{dc_generator_forward.14} parent=0 // pred_region
    _
  $region21: #{dc_generator_forward.14} parent=0 // pred_fallthru
    _

// kernel: squeeze.14
$region0: #{squeeze.14}
  %s0 = inlined_call_operand.vmem [shape: f32[32], index: 0, kind: input, shape index: {}]
  %s1 = inlined_call_operand.vmem [shape: f32[4,8], index: 1, kind: output, shape index: {}]
  $region1: #{squeeze.14} parent=0
    #allocation0 [shape = 'u8[4096]{0}', space=vmem, size = 0x1000, scoped, tag = 'scoped mem for output reshape']
    #allocation1 [shape = 'u8[4096]{0}', space=vmem, size = 0x1000, scoped, tag = 'scoped mem for input reshape']
    %s3 = ssub.s32 2, 1
    %v4 = vld [vmem:[%s0] sm:%s3]
    %5 = vst [vmem:[#allocation1] sm:%s3] %v4
    %v6 = vld [vmem:[#allocation1] sm:$0x1]
    %vm7 = vcmask 64512
    %8 = vst.msk [vmem:[#allocation0] sm:$0x1] %vm7, %v6
    %v9 = vld [vmem:[#allocation1] sm:$0x1]
    %10 = vrot.lane.b32.xlu0 %v9, 120
    %v11 = vpop.permute.xlu0 %10
    %vm12 = vcmask 64512
    %s13 = scalar_lea.vmem [#allocation0], 1
    %14 = vst.msk [vmem:[%s13] sm:$0x1] %vm12, %v11
    %v15 = vld [vmem:[#allocation1] sm:$0x1]
    %16 = vrot.lane.b32.xlu0 %v15, 112
    %v17 = vpop.permute.xlu0 %16
    %vm18 = vcmask 64512
    %s19 = scalar_lea.vmem [#allocation0], 2
    %20 = vst.msk [vmem:[%s19] sm:$0x1] %vm18, %v17
    %v21 = vld [vmem:[#allocation1] sm:$0x1]
    %22 = vrot.lane.b32.xlu0 %v21, 104
    %v23 = vpop.permute.xlu0 %22
    %vm24 = vcmask 64512
    %s25 = scalar_lea.vmem [#allocation0], 3
    %26 = vst.msk [vmem:[%s25] sm:$0x1] %vm24, %v23
    %s28 = ssub.s32 16, 1
    %v29 = vld [vmem:[#allocation0] sm:%s28]
    %s31 = ssub.s32 16, 1
    %32 = vst [vmem:[%s1] sm:%s31] %v29

// kernel: tile.83
$region0: #{tile.83}
  #allocation0 [shape = 's32[1]{0}', space=sflag, size = 0x4, scoped, tag = 'scoped memory for tile.83']
  %s0 = inlined_call_operand.vmem [shape: f32[8], index: 0, kind: input, shape index: {}]
  %s1 = inlined_call_operand.vmem [shape: f32[4,8], index: 1, kind: output, shape index: {}]
  // Predicated region
  $region2: #{tile.83} parent=0 // pred_check
    _
  $region3: #{tile.83} parent=0 // pred_check_branch
    %3 = sbr.rel (0) target = $region5
  $region4: #{tile.83} parent=0 // pred_region
    _
  $region5: #{tile.83} parent=0 // pred_fallthru
    _
  %v4 = vld [vmem:[%s0] ss:$0 sm:$0xff]
  %5 = vst [vmem:[%s1] sm:$0xf] %v4

// kernel: tile.84
$region0: #{tile.84}
  %s0 = inlined_call_operand.vmem [shape: f32[4,8], index: 0, kind: input, shape index: {}]
  %s1 = inlined_call_operand.vmem [shape: f32[1,32], index: 1, kind: output, shape index: {}]
  $region1: #{tile.84} parent=0
    #allocation0 [shape = 'u8[4096]{0}', space=vmem, size = 0x1000, scoped, tag = 'scoped mem for output reshape']
    #allocation1 [shape = 'u8[4096]{0}', space=vmem, size = 0x1000, scoped, tag = 'scoped mem for input reshape']
    %s3 = ssub.s32 16, 1
    %v4 = vld [vmem:[%s0] sm:%s3]
    %5 = vst [vmem:[#allocation1] sm:%s3] %v4
    %v6 = vld [vmem:[#allocation1] sm:$0x1]
    %vm7 = vcmask 64512
    %8 = vst.msk [vmem:[#allocation0] sm:$0x1] %vm7, %v6
    %s9 = scalar_lea.vmem [#allocation1], 3
    %v10 = vld [vmem:[%s9] sm:$0x1]
    %11 = vrot.lane.b32.xlu0 %v10, 24
    %v12 = vpop.permute.xlu0 %11
    %vm13 = vcmask 261312
    %14 = vst.msk [vmem:[#allocation0] sm:$0x1] %vm13, %v12
    %s15 = scalar_lea.vmem [#allocation1], 2
    %v16 = vld [vmem:[%s15] sm:$0x1]
    %17 = vrot.lane.b32.xlu0 %v16, 16
    %v18 = vpop.permute.xlu0 %17
    %vm19 = vcmask 195712
    %20 = vst.msk [vmem:[#allocation0] sm:$0x1] %vm19, %v18
    %s21 = scalar_lea.vmem [#allocation1], 1
    %v22 = vld [vmem:[%s21] sm:$0x1]
    %23 = vrot.lane.b32.xlu0 %v22, 8
    %v24 = vpop.permute.xlu0 %23
    %vm25 = vcmask 130112
    %26 = vst.msk [vmem:[#allocation0] sm:$0x1] %vm25, %v24
    %s28 = ssub.s32 2, 1
    %v29 = vld [vmem:[#allocation0] sm:%s28]
    %s31 = ssub.s32 2, 1
    %32 = vst [vmem:[%s1] sm:%s31] %v29

// kernel: dc_generator_forward.15
$region0: #{dc_generator_forward.15}
  #allocation0 [shape = 'u32[]', space=smem, size = 0x4, offset = 0x4, fixed_abs, tag = 'smem constant byte address 0x4 - core index']
  #allocation1 [shape = 'u32[72,128]{1,0:T(1,128)}', space=vmem, size = 0x9000, scoped, tag = 'internal scratch']
  %s0 = inlined_call_operand.vmem [shape: bf16[968,16], index: 0, kind: input, shape index: {}]
  %s1 = inlined_call_operand.vmem [shape: bf16[16,128], index: 1, kind: input, shape index: {}]
  %s2 = inlined_call_operand.vmem [shape: bf16[968,128], index: 2, kind: output, shape index: {0}]
  %s3 = inlined_call_operand.vmem [shape: f32[1,2,128], index: 3, kind: output, shape index: {1}]
  %4 = xla_tuple %s2, %s3
  %s5 = sld [smem:[#allocation0]]
  $region26: #{dc_generator_forward.15} parent=0
    _
  %s7 = ssub.s32 1, %s5
  %s8 = scalar_select 0, %s7, %s5
  // Predicated region
  $region2: #{dc_generator_forward.15} parent=0 // pred_check
    _
  $region3: #{dc_generator_forward.15} parent=0 // pred_check_branch
    %10 = sbr.rel (0) target = $region5
  $region4: #{dc_generator_forward.15} parent=0 // pred_region
    _
  $region5: #{dc_generator_forward.15} parent=0 // pred_fallthru
    _
  // Predicated region
  $region6: #{dc_generator_forward.15} parent=0 // pred_check
    _
  $region7: #{dc_generator_forward.15} parent=0 // pred_check_branch
    %12 = sbr.rel (0) target = $region9
  $region8: #{dc_generator_forward.15} parent=0 // pred_region
    _
  $region9: #{dc_generator_forward.15} parent=0 // pred_fallthru
    _
  %v14 = vld [vmem:[%s0] sm:$0xf]
  %v15 = vld [vmem:[%s0 + $0x4] sm:$0xf]
  %v16 = vld [vmem:[%s0 + $0x8] sm:$0xf]
  %v17 = vld [vmem:[%s0 + $0xc] sm:$0xf]
  %v18 = vld [vmem:[%s0 + $0x10] sm:$0xf]
  %v19 = vld [vmem:[%s0 + $0x14] sm:$0xf]
  %v20 = vld [vmem:[%s0 + $0x18] sm:$0xf]
  %v21 = vld [vmem:[%s0 + $0x1c] sm:$0xf]
  %v22 = vld [vmem:[%s0 + $0x20] sm:$0xf]
  %v23 = vld [vmem:[%s0 + $0x24] sm:$0xf]
  %v24 = vld [vmem:[%s0 + $0x28] sm:$0xf]
  %v25 = vld [vmem:[%s0 + $0x2c] sm:$0xf]
  %v26 = vld [vmem:[%s0 + $0x30] sm:$0xf]
  %v27 = vld [vmem:[%s0 + $0x34] sm:$0xf]
  %v28 = vld [vmem:[%s0 + $0x38] sm:$0xf]
  %v29 = vld [vmem:[%s0 + $0x3c] sm:$0xf]
  %v30 = vld [vmem:[%s0 + $0x40] sm:$0xf]
  %v31 = vld [vmem:[%s0 + $0x44] sm:$0xf]
  %v32 = vld [vmem:[%s0 + $0x48] sm:$0xf]
  %v33 = vld [vmem:[%s0 + $0x4c] sm:$0xf]
  %v34 = vld [vmem:[%s0 + $0x50] sm:$0xf]
  %v35 = vld [vmem:[%s0 + $0x54] sm:$0xf]
  %v36 = vld [vmem:[%s0 + $0x58] sm:$0xf]
  %v37 = vld [vmem:[%s0 + $0x5c] sm:$0xf]
  %v38 = vld [vmem:[%s0 + $0x60] sm:$0xf]
  %v39 = vld [vmem:[%s0 + $0x64] sm:$0xf]
  %v40 = vld [vmem:[%s0 + $0x68] sm:$0xf]
  %v41 = vld [vmem:[%s0 + $0x6c] sm:$0xf]
  %v42 = vld [vmem:[%s0 + $0x70] sm:$0xf]
  %v43 = vld [vmem:[%s0 + $0x74] sm:$0xf]
  %v44 = vld [vmem:[%s0 + $0x78] sm:$0xf]
  %v45 = vld [vmem:[%s0 + $0x7c] sm:$0xf]
  %v46 = vld [vmem:[%s0 + $0x80] sm:$0xf]
  %v47 = vld [vmem:[%s0 + $0x84] sm:$0xf]
  %v48 = vld [vmem:[%s0 + $0x88] sm:$0xf]
  %v49 = vld [vmem:[%s0 + $0x8c] sm:$0xf]
  %v50 = vld [vmem:[%s0 + $0x90] sm:$0xf]
  %v51 = vld [vmem:[%s0 + $0x94] sm:$0xf]
  %v52 = vld [vmem:[%s0 + $0x98] sm:$0xf]
  %v53 = vld [vmem:[%s0 + $0x9c] sm:$0xf]
  %v54 = vld [vmem:[%s0 + $0xa0] sm:$0xf]
  %v55 = vld [vmem:[%s0 + $0xa4] sm:$0xf]
  %v56 = vld [vmem:[%s0 + $0xa8] sm:$0xf]
  %v57 = vld [vmem:[%s0 + $0xac] sm:$0xf]
  %v58 = vld [vmem:[%s0 + $0xb0] sm:$0xf]
  %v59 = vld [vmem:[%s0 + $0xb4] sm:$0xf]
  %v60 = vld [vmem:[%s0 + $0xb8] sm:$0xf]
  %v61 = vld [vmem:[%s0 + $0xbc] sm:$0xf]
  %v62 = vld [vmem:[%s0 + $0xc0] sm:$0xf]
  %v63 = vld [vmem:[%s0 + $0xc4] sm:$0xf]
  %v64 = vld [vmem:[%s0 + $0xc8] sm:$0xf]
  %v65 = vld [vmem:[%s0 + $0xcc] sm:$0xf]
  %v66 = vld [vmem:[%s0 + $0xd0] sm:$0xf]
  %v67 = vld [vmem:[%s0 + $0xd4] sm:$0xf]
  %v68 = vld [vmem:[%s0 + $0xd8] sm:$0xf]
  %v69 = vld [vmem:[%s0 + $0xdc] sm:$0xf]
  %v70 = vld [vmem:[%s0 + $0xe0] sm:$0xf]
  %v71 = vld [vmem:[%s0 + $0xe4] sm:$0xf]
  %v72 = vld [vmem:[%s0 + $0xe8] sm:$0xf]
  %v73 = vld [vmem:[%s0 + $0xec] sm:$0xf]
  %v74 = vld [vmem:[%s0 + $0xf0] sm:$0xf]
  %v75 = vld [vmem:[%s0 + $0xf4] sm:$0xf]
  %v76 = vld [vmem:[%s0 + $0xf8] sm:$0xf]
  %v77 = vld [vmem:[%s0 + $0xfc] sm:$0xf]
  %v78 = vld [vmem:[%s0 + $0x100] sm:$0xf]
  %v79 = vld [vmem:[%s0 + $0x104] sm:$0xf]
  %v80 = vld [vmem:[%s0 + $0x108] sm:$0xf]
  %v81 = vld [vmem:[%s0 + $0x10c] sm:$0xf]
  %v82 = vld [vmem:[%s0 + $0x110] sm:$0xf]
  %v83 = vld [vmem:[%s0 + $0x114] sm:$0xf]
  %v84 = vld [vmem:[%s0 + $0x118] sm:$0xf]
  %v85 = vld [vmem:[%s0 + $0x11c] sm:$0xf]
  %v86 = vld [vmem:[%s0 + $0x120] sm:$0xf]
  %v87 = vld [vmem:[%s0 + $0x124] sm:$0xf]
  %v88 = vld [vmem:[%s0 + $0x128] sm:$0xf]
  %v89 = vld [vmem:[%s0 + $0x12c] sm:$0xf]
  %v90 = vld [vmem:[%s0 + $0x130] sm:$0xf]
  %v91 = vld [vmem:[%s0 + $0x134] sm:$0xf]
  %v92 = vld [vmem:[%s0 + $0x138] sm:$0xf]
  %v93 = vld [vmem:[%s0 + $0x13c] sm:$0xf]
  %v94 = vld [vmem:[%s0 + $0x140] sm:$0xf]
  %v95 = vld [vmem:[%s0 + $0x144] sm:$0xf]
  %v96 = vld [vmem:[%s0 + $0x148] sm:$0xf]
  %v97 = vld [vmem:[%s0 + $0x14c] sm:$0xf]
  %v98 = vld [vmem:[%s0 + $0x150] sm:$0xf]
  %v99 = vld [vmem:[%s0 + $0x154] sm:$0xf]
  %v100 = vld [vmem:[%s0 + $0x158] sm:$0xf]
  %v101 = vld [vmem:[%s0 + $0x15c] sm:$0xf]
  %v102 = vld [vmem:[%s0 + $0x160] sm:$0xf]
  %v103 = vld [vmem:[%s0 + $0x164] sm:$0xf]
  %v104 = vld [vmem:[%s0 + $0x168] sm:$0xf]
  %v105 = vld [vmem:[%s0 + $0x16c] sm:$0xf]
  %v106 = vld [vmem:[%s0 + $0x170] sm:$0xf]
  %v107 = vld [vmem:[%s0 + $0x174] sm:$0xf]
  %v108 = vld [vmem:[%s0 + $0x178] sm:$0xf]
  %v109 = vld [vmem:[%s0 + $0x17c] sm:$0xf]
  %v110 = vld [vmem:[%s0 + $0x180] sm:$0xf]
  %v111 = vld [vmem:[%s0 + $0x184] sm:$0xf]
  %v112 = vld [vmem:[%s0 + $0x188] sm:$0xf]
  %v113 = vld [vmem:[%s0 + $0x18c] sm:$0xf]
  %v114 = vld [vmem:[%s0 + $0x190] sm:$0xf]
  %v115 = vld [vmem:[%s0 + $0x194] sm:$0xf]
  %v116 = vld [vmem:[%s0 + $0x198] sm:$0xf]
  %v117 = vld [vmem:[%s0 + $0x19c] sm:$0xf]
  %v118 = vld [vmem:[%s0 + $0x1a0] sm:$0xf]
  %v119 = vld [vmem:[%s0 + $0x1a4] sm:$0xf]
  %v120 = vld [vmem:[%s0 + $0x1a8] sm:$0xf]
  %v121 = vld [vmem:[%s0 + $0x1ac] sm:$0xf]
  %v122 = vld [vmem:[%s0 + $0x1b0] sm:$0xf]
  %v123 = vld [vmem:[%s0 + $0x1b4] sm:$0xf]
  %v124 = vld [vmem:[%s0 + $0x1b8] sm:$0xf]
  %v125 = vld [vmem:[%s0 + $0x1bc] sm:$0xf]
  %v126 = vld [vmem:[%s0 + $0x1c0] sm:$0xf]
  %v127 = vld [vmem:[%s0 + $0x1c4] sm:$0xf]
  %v128 = vld [vmem:[%s0 + $0x1c8] sm:$0xf]
  %v129 = vld [vmem:[%s0 + $0x1cc] sm:$0xf]
  %v130 = vld [vmem:[%s0 + $0x1d0] sm:$0xf]
  %v131 = vld [vmem:[%s0 + $0x1d4] sm:$0xf]
  %v132 = vld [vmem:[%s0 + $0x1d8] sm:$0xf]
  %v133 = vld [vmem:[%s0 + $0x1dc] sm:$0xf]
  %v134 = vld [vmem:[%s0 + $0x1e0] sm:$0xf]
  %v135 = vld [vmem:[%s1] sm:$0xf]
  %v136 = vld [vmem:[%s1 + $0x4] sm:$0xf]
  %v258 = vunpack.c.l.b16 %v14
  %v259 = vunpack.c.l.b16 %v15
  %v260 = vunpack.c.l.b16 %v16
  %v261 = vunpack.c.l.b16 %v17
  %v262 = vunpack.c.l.b16 %v18
  %v263 = vunpack.c.l.b16 %v19
  %v264 = vunpack.c.l.b16 %v20
  %v265 = vunpack.c.l.b16 %v21
  %v266 = vunpack.c.l.b16 %v22
  %v267 = vunpack.c.l.b16 %v23
  %v268 = vunpack.c.l.b16 %v24
  %v269 = vunpack.c.l.b16 %v25
  %v270 = vunpack.c.l.b16 %v26
  %v271 = vunpack.c.l.b16 %v27
  %v272 = vunpack.c.l.b16 %v28
  %v273 = vunpack.c.l.b16 %v29
  %v274 = vunpack.c.l.b16 %v30
  %v275 = vunpack.c.l.b16 %v31
  %v276 = vunpack.c.l.b16 %v32
  %v277 = vunpack.c.l.b16 %v33
  %v278 = vunpack.c.l.b16 %v34
  %v279 = vunpack.c.l.b16 %v35
  %v280 = vunpack.c.l.b16 %v36
  %v281 = vunpack.c.l.b16 %v37
  %v282 = vunpack.c.l.b16 %v38
  %v283 = vunpack.c.l.b16 %v39
  %v284 = vunpack.c.l.b16 %v40
  %v285 = vunpack.c.l.b16 %v41
  %v286 = vunpack.c.l.b16 %v42
  %v287 = vunpack.c.l.b16 %v43
  %v288 = vunpack.c.l.b16 %v44
  %v289 = vunpack.c.l.b16 %v45
  %v290 = vunpack.c.l.b16 %v46
  %v291 = vunpack.c.l.b16 %v47
  %v292 = vunpack.c.l.b16 %v48
  %v293 = vunpack.c.l.b16 %v49
  %v294 = vunpack.c.l.b16 %v50
  %v295 = vunpack.c.l.b16 %v51
  %v296 = vunpack.c.l.b16 %v52
  %v297 = vunpack.c.l.b16 %v53
  %v298 = vunpack.c.l.b16 %v54
  %v299 = vunpack.c.l.b16 %v55
  %v300 = vunpack.c.l.b16 %v56
  %v301 = vunpack.c.l.b16 %v57
  %v302 = vunpack.c.l.b16 %v58
  %v303 = vunpack.c.l.b16 %v59
  %v304 = vunpack.c.l.b16 %v60
  %v305 = vunpack.c.l.b16 %v61
  %v306 = vunpack.c.l.b16 %v62
  %v307 = vunpack.c.l.b16 %v63
  %v308 = vunpack.c.l.b16 %v64
  %v309 = vunpack.c.l.b16 %v65
  %v310 = vunpack.c.l.b16 %v66
  %v311 = vunpack.c.l.b16 %v67
  %v312 = vunpack.c.l.b16 %v68
  %v313 = vunpack.c.l.b16 %v69
  %v314 = vunpack.c.l.b16 %v70
  %v315 = vunpack.c.l.b16 %v71
  %v316 = vunpack.c.l.b16 %v72
  %v317 = vunpack.c.l.b16 %v73
  %v318 = vunpack.c.l.b16 %v74
  %v319 = vunpack.c.l.b16 %v75
  %v320 = vunpack.c.l.b16 %v76
  %v321 = vunpack.c.l.b16 %v77
  %v322 = vunpack.c.l.b16 %v78
  %v323 = vunpack.c.l.b16 %v79
  %v324 = vunpack.c.l.b16 %v80
  %v325 = vunpack.c.l.b16 %v81
  %v326 = vunpack.c.l.b16 %v82
  %v327 = vunpack.c.l.b16 %v83
  %v328 = vunpack.c.l.b16 %v84
  %v329 = vunpack.c.l.b16 %v85
  %v330 = vunpack.c.l.b16 %v86
  %v331 = vunpack.c.l.b16 %v87
  %v332 = vunpack.c.l.b16 %v88
  %v333 = vunpack.c.l.b16 %v89
  %v334 = vunpack.c.l.b16 %v90
  %v335 = vunpack.c.l.b16 %v91
  %v336 = vunpack.c.l.b16 %v92
  %v337 = vunpack.c.l.b16 %v93
  %v338 = vunpack.c.l.b16 %v94
  %v339 = vunpack.c.l.b16 %v95
  %v340 = vunpack.c.l.b16 %v96
  %v341 = vunpack.c.l.b16 %v97
  %v342 = vunpack.c.l.b16 %v98
  %v343 = vunpack.c.l.b16 %v99
  %v344 = vunpack.c.l.b16 %v100
  %v345 = vunpack.c.l.b16 %v101
  %v346 = vunpack.c.l.b16 %v102
  %v347 = vunpack.c.l.b16 %v103
  %v348 = vunpack.c.l.b16 %v104
  %v349 = vunpack.c.l.b16 %v105
  %v350 = vunpack.c.l.b16 %v106
  %v351 = vunpack.c.l.b16 %v107
  %v352 = vunpack.c.l.b16 %v108
  %v353 = vunpack.c.l.b16 %v109
  %v354 = vunpack.c.l.b16 %v110
  %v355 = vunpack.c.l.b16 %v111
  %v356 = vunpack.c.l.b16 %v112
  %v357 = vunpack.c.l.b16 %v113
  %v358 = vunpack.c.l.b16 %v114
  %v359 = vunpack.c.l.b16 %v115
  %v360 = vunpack.c.l.b16 %v116
  %v361 = vunpack.c.l.b16 %v117
  %v362 = vunpack.c.l.b16 %v118
  %v363 = vunpack.c.l.b16 %v119
  %v364 = vunpack.c.l.b16 %v120
  %v365 = vunpack.c.l.b16 %v121
  %v366 = vunpack.c.l.b16 %v122
  %v367 = vunpack.c.l.b16 %v123
  %v368 = vunpack.c.l.b16 %v124
  %v369 = vunpack.c.l.b16 %v125
  %v370 = vunpack.c.l.b16 %v126
  %v371 = vunpack.c.l.b16 %v127
  %v372 = vunpack.c.l.b16 %v128
  %v373 = vunpack.c.l.b16 %v129
  %v374 = vunpack.c.l.b16 %v130
  %v375 = vunpack.c.l.b16 %v131
  %v376 = vunpack.c.l.b16 %v132
  %v377 = vunpack.c.l.b16 %v133
  %v378 = vunpack.c.l.b16 %v134
  %v379 = vpack.c.b16 %v259, %v258
  %v380 = vpack.c.b16 %v261, %v260
  %v381 = vpack.c.b16 %v263, %v262
  %v382 = vpack.c.b16 %v265, %v264
  %v383 = vpack.c.b16 %v267, %v266
  %v384 = vpack.c.b16 %v269, %v268
  %v385 = vpack.c.b16 %v271, %v270
  %v386 = vpack.c.b16 %v273, %v272
  %v387 = vpack.c.b16 %v275, %v274
  %v388 = vpack.c.b16 %v277, %v276
  %v389 = vpack.c.b16 %v279, %v278
  %v390 = vpack.c.b16 %v281, %v280
  %v391 = vpack.c.b16 %v283, %v282
  %v392 = vpack.c.b16 %v285, %v284
  %v393 = vpack.c.b16 %v287, %v286
  %v394 = vpack.c.b16 %v289, %v288
  %v395 = vpack.c.b16 %v291, %v290
  %v396 = vpack.c.b16 %v293, %v292
  %v397 = vpack.c.b16 %v295, %v294
  %v398 = vpack.c.b16 %v297, %v296
  %v399 = vpack.c.b16 %v299, %v298
  %v400 = vpack.c.b16 %v301, %v300
  %v401 = vpack.c.b16 %v303, %v302
  %v402 = vpack.c.b16 %v305, %v304
  %v403 = vpack.c.b16 %v307, %v306
  %v404 = vpack.c.b16 %v309, %v308
  %v405 = vpack.c.b16 %v311, %v310
  %v406 = vpack.c.b16 %v313, %v312
  %v407 = vpack.c.b16 %v315, %v314
  %v408 = vpack.c.b16 %v317, %v316
  %v409 = vpack.c.b16 %v319, %v318
  %v410 = vpack.c.b16 %v321, %v320
  %v411 = vpack.c.b16 %v323, %v322
  %v412 = vpack.c.b16 %v325, %v324
  %v413 = vpack.c.b16 %v327, %v326
  %v414 = vpack.c.b16 %v329, %v328
  %v415 = vpack.c.b16 %v331, %v330
  %v416 = vpack.c.b16 %v333, %v332
  %v417 = vpack.c.b16 %v335, %v334
  %v418 = vpack.c.b16 %v337, %v336
  %v419 = vpack.c.b16 %v339, %v338
  %v420 = vpack.c.b16 %v341, %v340
  %v421 = vpack.c.b16 %v343, %v342
  %v422 = vpack.c.b16 %v345, %v344
  %v423 = vpack.c.b16 %v347, %v346
  %v424 = vpack.c.b16 %v349, %v348
  %v425 = vpack.c.b16 %v351, %v350
  %v426 = vpack.c.b16 %v353, %v352
  %v427 = vpack.c.b16 %v355, %v354
  %v428 = vpack.c.b16 %v357, %v356
  %v429 = vpack.c.b16 %v359, %v358
  %v430 = vpack.c.b16 %v361, %v360
  %v431 = vpack.c.b16 %v363, %v362
  %v432 = vpack.c.b16 %v365, %v364
  %v433 = vpack.c.b16 %v367, %v366
  %v434 = vpack.c.b16 %v369, %v368
  %v435 = vpack.c.b16 %v371, %v370
  %v436 = vpack.c.b16 %v373, %v372
  %v437 = vpack.c.b16 %v375, %v374
  %v438 = vpack.c.b16 %v377, %v376
  %v439 = vpack.c.b16 %v378, %v378
  %v442 = vunpack.c.l.b16 %v135
  %v443 = vunpack.c.l.b16 %v136
  %v444 = vpack.c.b16 %v443, %v442
  %vm446 = vcmask 130048
  %v448 = vsel %vm446, %v379, 0
  %v451 = vsel %vm446, %v380, 0
  %v454 = vsel %vm446, %v381, 0
  %v457 = vsel %vm446, %v382, 0
  %v460 = vsel %vm446, %v383, 0
  %v463 = vsel %vm446, %v384, 0
  %v466 = vsel %vm446, %v385, 0
  %v469 = vsel %vm446, %v386, 0
  %v472 = vsel %vm446, %v387, 0
  %v475 = vsel %vm446, %v388, 0
  %v478 = vsel %vm446, %v389, 0
  %v481 = vsel %vm446, %v390, 0
  %v484 = vsel %vm446, %v391, 0
  %v487 = vsel %vm446, %v392, 0
  %v490 = vsel %vm446, %v393, 0
  %v493 = vsel %vm446, %v394, 0
  %v496 = vsel %vm446, %v395, 0
  %v499 = vsel %vm446, %v396, 0
  %v502 = vsel %vm446, %v397, 0
  %v505 = vsel %vm446, %v398, 0
  %v508 = vsel %vm446, %v399, 0
  %v511 = vsel %vm446, %v400, 0
  %v514 = vsel %vm446, %v401, 0
  %v517 = vsel %vm446, %v402, 0
  %v520 = vsel %vm446, %v403, 0
  %v523 = vsel %vm446, %v404, 0
  %v526 = vsel %vm446, %v405, 0
  %v529 = vsel %vm446, %v406, 0
  %v532 = vsel %vm446, %v407, 0
  %v535 = vsel %vm446, %v408, 0
  %v538 = vsel %vm446, %v409, 0
  %v541 = vsel %vm446, %v410, 0
  %v544 = vsel %vm446, %v411, 0
  %v547 = vsel %vm446, %v412, 0
  %v550 = vsel %vm446, %v413, 0
  %v553 = vsel %vm446, %v414, 0
  %v556 = vsel %vm446, %v415, 0
  %v559 = vsel %vm446, %v416, 0
  %v562 = vsel %vm446, %v417, 0
  %v565 = vsel %vm446, %v418, 0
  %v568 = vsel %vm446, %v419, 0
  %v571 = vsel %vm446, %v420, 0
  %v574 = vsel %vm446, %v421, 0
  %v577 = vsel %vm446, %v422, 0
  %v580 = vsel %vm446, %v423, 0
  %v583 = vsel %vm446, %v424, 0
  %v586 = vsel %vm446, %v425, 0
  %v589 = vsel %vm446, %v426, 0
  %v592 = vsel %vm446, %v427, 0
  %v595 = vsel %vm446, %v428, 0
  %v598 = vsel %vm446, %v429, 0
  %v601 = vsel %vm446, %v430, 0
  %v604 = vsel %vm446, %v431, 0
  %v607 = vsel %vm446, %v432, 0
  %v610 = vsel %vm446, %v433, 0
  %v613 = vsel %vm446, %v434, 0
  %v616 = vsel %vm446, %v435, 0
  %v619 = vsel %vm446, %v436, 0
  %v622 = vsel %vm446, %v437, 0
  %v625 = vsel %vm446, %v438, 0
  %v628 = vsel %vm446, %v439, 0
  %630 = vmatpush.bf16.msra.mxu0 0
  %631 = vmatpush.bf16.msra.mxu0 0
  %632 = vmatpush.bf16.msra.mxu0 0
  %633 = vmatpush.bf16.msra.mxu0 0
  %634 = vmatpush.bf16.msra.mxu0 0
  %635 = vmatpush.bf16.msra.mxu0 0
  %636 = vmatpush.bf16.msra.mxu0 0
  %637 = vmatpush.bf16.msra.mxu0 %v444
  %638 = vmatmul.bf16.gmra.mxu0 %v448
  %v639 = vpop.f32.mrf.mxu0
  %v640 = vadd.f32 0.0, %v639
  %v641 = vpop.f32.mrf.mxu0
  %v642 = vadd.f32 0.0, %v641
  %643 = vmatmul.bf16.gmra.mxu0 %v451
  %v644 = vpop.f32.mrf.mxu0
  %v645 = vadd.f32 0.0, %v644
  %v646 = vpop.f32.mrf.mxu0
  %v647 = vadd.f32 0.0, %v646
  %648 = vmatmul.bf16.gmra.mxu0 %v454
  %v649 = vpop.f32.mrf.mxu0
  %v650 = vadd.f32 0.0, %v649
  %v651 = vpop.f32.mrf.mxu0
  %v652 = vadd.f32 0.0, %v651
  %653 = vmatmul.bf16.gmra.mxu0 %v457
  %v654 = vpop.f32.mrf.mxu0
  %v655 = vadd.f32 0.0, %v654
  %v656 = vpop.f32.mrf.mxu0
  %v657 = vadd.f32 0.0, %v656
  %658 = vmatmul.bf16.gmra.mxu0 %v460
  %v659 = vpop.f32.mrf.mxu0
  %v660 = vadd.f32 0.0, %v659
  %v661 = vpop.f32.mrf.mxu0
  %v662 = vadd.f32 0.0, %v661
  %663 = vmatmul.bf16.gmra.mxu0 %v463
  %v664 = vpop.f32.mrf.mxu0
  %v665 = vadd.f32 0.0, %v664
  %v666 = vpop.f32.mrf.mxu0
  %v667 = vadd.f32 0.0, %v666
  %668 = vmatmul.bf16.gmra.mxu0 %v466
  %v669 = vpop.f32.mrf.mxu0
  %v670 = vadd.f32 0.0, %v669
  %v671 = vpop.f32.mrf.mxu0
  %v672 = vadd.f32 0.0, %v671
  %673 = vmatmul.bf16.gmra.mxu0 %v469
  %v674 = vpop.f32.mrf.mxu0
  %v675 = vadd.f32 0.0, %v674
  %v676 = vpop.f32.mrf.mxu0
  %v677 = vadd.f32 0.0, %v676
  %678 = vmatmul.bf16.gmra.mxu0 %v472
  %v679 = vpop.f32.mrf.mxu0
  %v680 = vadd.f32 0.0, %v679
  %v681 = vpop.f32.mrf.mxu0
  %v682 = vadd.f32 0.0, %v681
  %683 = vmatmul.bf16.gmra.mxu0 %v475
  %v684 = vpop.f32.mrf.mxu0
  %v685 = vadd.f32 0.0, %v684
  %v686 = vpop.f32.mrf.mxu0
  %v687 = vadd.f32 0.0, %v686
  %688 = vmatmul.bf16.gmra.mxu0 %v478
  %v689 = vpop.f32.mrf.mxu0
  %v690 = vadd.f32 0.0, %v689
  %v691 = vpop.f32.mrf.mxu0
  %v692 = vadd.f32 0.0, %v691
  %693 = vmatmul.bf16.gmra.mxu0 %v481
  %v694 = vpop.f32.mrf.mxu0
  %v695 = vadd.f32 0.0, %v694
  %v696 = vpop.f32.mrf.mxu0
  %v697 = vadd.f32 0.0, %v696
  %698 = vmatmul.bf16.gmra.mxu0 %v484
  %v699 = vpop.f32.mrf.mxu0
  %v700 = vadd.f32 0.0, %v699
  %v701 = vpop.f32.mrf.mxu0
  %v702 = vadd.f32 0.0, %v701
  %703 = vmatmul.bf16.gmra.mxu0 %v487
  %v704 = vpop.f32.mrf.mxu0
  %v705 = vadd.f32 0.0, %v704
  %v706 = vpop.f32.mrf.mxu0
  %v707 = vadd.f32 0.0, %v706
  %708 = vmatmul.bf16.gmra.mxu0 %v490
  %v709 = vpop.f32.mrf.mxu0
  %v710 = vadd.f32 0.0, %v709
  %v711 = vpop.f32.mrf.mxu0
  %v712 = vadd.f32 0.0, %v711
  %713 = vmatmul.bf16.gmra.mxu0 %v493
  %v714 = vpop.f32.mrf.mxu0
  %v715 = vadd.f32 0.0, %v714
  %v716 = vpop.f32.mrf.mxu0
  %v717 = vadd.f32 0.0, %v716
  %718 = vmatmul.bf16.gmra.mxu0 %v496
  %v719 = vpop.f32.mrf.mxu0
  %v720 = vadd.f32 0.0, %v719
  %v721 = vpop.f32.mrf.mxu0
  %v722 = vadd.f32 0.0, %v721
  %723 = vmatmul.bf16.gmra.mxu0 %v499
  %v724 = vpop.f32.mrf.mxu0
  %v725 = vadd.f32 0.0, %v724
  %v726 = vpop.f32.mrf.mxu0
  %v727 = vadd.f32 0.0, %v726
  %728 = vmatmul.bf16.gmra.mxu0 %v502
  %v729 = vpop.f32.mrf.mxu0
  %v730 = vadd.f32 0.0, %v729
  %v731 = vpop.f32.mrf.mxu0
  %v732 = vadd.f32 0.0, %v731
  %733 = vmatmul.bf16.gmra.mxu0 %v505
  %v734 = vpop.f32.mrf.mxu0
  %v735 = vadd.f32 0.0, %v734
  %v736 = vpop.f32.mrf.mxu0
  %v737 = vadd.f32 0.0, %v736
  %738 = vmatmul.bf16.gmra.mxu0 %v508
  %v739 = vpop.f32.mrf.mxu0
  %v740 = vadd.f32 0.0, %v739
  %v741 = vpop.f32.mrf.mxu0
  %v742 = vadd.f32 0.0, %v741
  %743 = vmatmul.bf16.gmra.mxu0 %v511
  %v744 = vpop.f32.mrf.mxu0
  %v745 = vadd.f32 0.0, %v744
  %v746 = vpop.f32.mrf.mxu0
  %v747 = vadd.f32 0.0, %v746
  %748 = vmatmul.bf16.gmra.mxu0 %v514
  %v749 = vpop.f32.mrf.mxu0
  %v750 = vadd.f32 0.0, %v749
  %v751 = vpop.f32.mrf.mxu0
  %v752 = vadd.f32 0.0, %v751
  %753 = vmatmul.bf16.gmra.mxu0 %v517
  %v754 = vpop.f32.mrf.mxu0
  %v755 = vadd.f32 0.0, %v754
  %v756 = vpop.f32.mrf.mxu0
  %v757 = vadd.f32 0.0, %v756
  %758 = vmatmul.bf16.gmra.mxu0 %v520
  %v759 = vpop.f32.mrf.mxu0
  %v760 = vadd.f32 0.0, %v759
  %v761 = vpop.f32.mrf.mxu0
  %v762 = vadd.f32 0.0, %v761
  %763 = vmatmul.bf16.gmra.mxu0 %v523
  %v764 = vpop.f32.mrf.mxu0
  %v765 = vadd.f32 0.0, %v764
  %v766 = vpop.f32.mrf.mxu0
  %v767 = vadd.f32 0.0, %v766
  %768 = vmatmul.bf16.gmra.mxu0 %v526
  %v769 = vpop.f32.mrf.mxu0
  %v770 = vadd.f32 0.0, %v769
  %v771 = vpop.f32.mrf.mxu0
  %v772 = vadd.f32 0.0, %v771
  %773 = vmatmul.bf16.gmra.mxu0 %v529
  %v774 = vpop.f32.mrf.mxu0
  %v775 = vadd.f32 0.0, %v774
  %v776 = vpop.f32.mrf.mxu0
  %v777 = vadd.f32 0.0, %v776
  %778 = vmatmul.bf16.gmra.mxu0 %v532
  %v779 = vpop.f32.mrf.mxu0
  %v780 = vadd.f32 0.0, %v779
  %v781 = vpop.f32.mrf.mxu0
  %v782 = vadd.f32 0.0, %v781
  %783 = vmatmul.bf16.gmra.mxu0 %v535
  %v784 = vpop.f32.mrf.mxu0
  %v785 = vadd.f32 0.0, %v784
  %v786 = vpop.f32.mrf.mxu0
  %v787 = vadd.f32 0.0, %v786
  %788 = vmatmul.bf16.gmra.mxu0 %v538
  %v789 = vpop.f32.mrf.mxu0
  %v790 = vadd.f32 0.0, %v789
  %v791 = vpop.f32.mrf.mxu0
  %v792 = vadd.f32 0.0, %v791
  %793 = vmatmul.bf16.gmra.mxu0 %v541
  %v794 = vpop.f32.mrf.mxu0
  %v795 = vadd.f32 0.0, %v794
  %v796 = vpop.f32.mrf.mxu0
  %v797 = vadd.f32 0.0, %v796
  %798 = vmatmul.bf16.gmra.mxu0 %v544
  %v799 = vpop.f32.mrf.mxu0
  %v800 = vadd.f32 0.0, %v799
  %v801 = vpop.f32.mrf.mxu0
  %v802 = vadd.f32 0.0, %v801
  %803 = vmatmul.bf16.gmra.mxu0 %v547
  %v804 = vpop.f32.mrf.mxu0
  %v805 = vadd.f32 0.0, %v804
  %v806 = vpop.f32.mrf.mxu0
  %v807 = vadd.f32 0.0, %v806
  %808 = vmatmul.bf16.gmra.mxu0 %v550
  %v809 = vpop.f32.mrf.mxu0
  %v810 = vadd.f32 0.0, %v809
  %v811 = vpop.f32.mrf.mxu0
  %v812 = vadd.f32 0.0, %v811
  %813 = vmatmul.bf16.gmra.mxu0 %v553
  %v814 = vpop.f32.mrf.mxu0
  %v815 = vadd.f32 0.0, %v814
  %v816 = vpop.f32.mrf.mxu0
  %v817 = vadd.f32 0.0, %v816
  %818 = vmatmul.bf16.gmra.mxu0 %v556
  %v819 = vpop.f32.mrf.mxu0
  %v820 = vadd.f32 0.0, %v819
  %v821 = vpop.f32.mrf.mxu0
  %v822 = vadd.f32 0.0, %v821
  %823 = vmatmul.bf16.gmra.mxu0 %v559
  %v824 = vpop.f32.mrf.mxu0
  %v825 = vadd.f32 0.0, %v824
  %v826 = vpop.f32.mrf.mxu0
  %v827 = vadd.f32 0.0, %v826
  %828 = vmatmul.bf16.gmra.mxu0 %v562
  %v829 = vpop.f32.mrf.mxu0
  %v830 = vadd.f32 0.0, %v829
  %v831 = vpop.f32.mrf.mxu0
  %v832 = vadd.f32 0.0, %v831
  %833 = vmatmul.bf16.gmra.mxu0 %v565
  %v834 = vpop.f32.mrf.mxu0
  %v835 = vadd.f32 0.0, %v834
  %v836 = vpop.f32.mrf.mxu0
  %v837 = vadd.f32 0.0, %v836
  %838 = vmatmul.bf16.gmra.mxu0 %v568
  %v839 = vpop.f32.mrf.mxu0
  %v840 = vadd.f32 0.0, %v839
  %v841 = vpop.f32.mrf.mxu0
  %v842 = vadd.f32 0.0, %v841
  %843 = vmatmul.bf16.gmra.mxu0 %v571
  %v844 = vpop.f32.mrf.mxu0
  %v845 = vadd.f32 0.0, %v844
  %v846 = vpop.f32.mrf.mxu0
  %v847 = vadd.f32 0.0, %v846
  %848 = vmatmul.bf16.gmra.mxu0 %v574
  %v849 = vpop.f32.mrf.mxu0
  %v850 = vadd.f32 0.0, %v849
  %v851 = vpop.f32.mrf.mxu0
  %v852 = vadd.f32 0.0, %v851
  %853 = vmatmul.bf16.gmra.mxu0 %v577
  %v854 = vpop.f32.mrf.mxu0
  %v855 = vadd.f32 0.0, %v854
  %v856 = vpop.f32.mrf.mxu0
  %v857 = vadd.f32 0.0, %v856
  %858 = vmatmul.bf16.gmra.mxu0 %v580
  %v859 = vpop.f32.mrf.mxu0
  %v860 = vadd.f32 0.0, %v859
  %v861 = vpop.f32.mrf.mxu0
  %v862 = vadd.f32 0.0, %v861
  %863 = vmatmul.bf16.gmra.mxu0 %v583
  %v864 = vpop.f32.mrf.mxu0
  %v865 = vadd.f32 0.0, %v864
  %v866 = vpop.f32.mrf.mxu0
  %v867 = vadd.f32 0.0, %v866
  %868 = vmatmul.bf16.gmra.mxu0 %v586
  %v869 = vpop.f32.mrf.mxu0
  %v870 = vadd.f32 0.0, %v869
  %v871 = vpop.f32.mrf.mxu0
  %v872 = vadd.f32 0.0, %v871
  %873 = vmatmul.bf16.gmra.mxu0 %v589
  %v874 = vpop.f32.mrf.mxu0
  %v875 = vadd.f32 0.0, %v874
  %v876 = vpop.f32.mrf.mxu0
  %v877 = vadd.f32 0.0, %v876
  %878 = vmatmul.bf16.gmra.mxu0 %v592
  %v879 = vpop.f32.mrf.mxu0
  %v880 = vadd.f32 0.0, %v879
  %v881 = vpop.f32.mrf.mxu0
  %v882 = vadd.f32 0.0, %v881
  %883 = vmatmul.bf16.gmra.mxu0 %v595
  %v884 = vpop.f32.mrf.mxu0
  %v885 = vadd.f32 0.0, %v884
  %v886 = vpop.f32.mrf.mxu0
  %v887 = vadd.f32 0.0, %v886
  %888 = vmatmul.bf16.gmra.mxu0 %v598
  %v889 = vpop.f32.mrf.mxu0
  %v890 = vadd.f32 0.0, %v889
  %v891 = vpop.f32.mrf.mxu0
  %v892 = vadd.f32 0.0, %v891
  %893 = vmatmul.bf16.gmra.mxu0 %v601
  %v894 = vpop.f32.mrf.mxu0
  %v895 = vadd.f32 0.0, %v894
  %v896 = vpop.f32.mrf.mxu0
  %v897 = vadd.f32 0.0, %v896
  %898 = vmatmul.bf16.gmra.mxu0 %v604
  %v899 = vpop.f32.mrf.mxu0
  %v900 = vadd.f32 0.0, %v899
  %v901 = vpop.f32.mrf.mxu0
  %v902 = vadd.f32 0.0, %v901
  %903 = vmatmul.bf16.gmra.mxu0 %v607
  %v904 = vpop.f32.mrf.mxu0
  %v905 = vadd.f32 0.0, %v904
  %v906 = vpop.f32.mrf.mxu0
  %v907 = vadd.f32 0.0, %v906
  %908 = vmatmul.bf16.gmra.mxu0 %v610
  %v909 = vpop.f32.mrf.mxu0
  %v910 = vadd.f32 0.0, %v909
  %v911 = vpop.f32.mrf.mxu0
  %v912 = vadd.f32 0.0, %v911
  %913 = vmatmul.bf16.gmra.mxu0 %v613
  %v914 = vpop.f32.mrf.mxu0
  %v915 = vadd.f32 0.0, %v914
  %v916 = vpop.f32.mrf.mxu0
  %v917 = vadd.f32 0.0, %v916
  %918 = vmatmul.bf16.gmra.mxu0 %v616
  %v919 = vpop.f32.mrf.mxu0
  %v920 = vadd.f32 0.0, %v919
  %v921 = vpop.f32.mrf.mxu0
  %v922 = vadd.f32 0.0, %v921
  %923 = vmatmul.bf16.gmra.mxu0 %v619
  %v924 = vpop.f32.mrf.mxu0
  %v925 = vadd.f32 0.0, %v924
  %v926 = vpop.f32.mrf.mxu0
  %v927 = vadd.f32 0.0, %v926
  %928 = vmatmul.bf16.gmra.mxu0 %v622
  %v929 = vpop.f32.mrf.mxu0
  %v930 = vadd.f32 0.0, %v929
  %v931 = vpop.f32.mrf.mxu0
  %v932 = vadd.f32 0.0, %v931
  %933 = vmatmul.bf16.gmra.mxu0 %v625
  %v934 = vpop.f32.mrf.mxu0
  %v935 = vadd.f32 0.0, %v934
  %v936 = vpop.f32.mrf.mxu0
  %v937 = vadd.f32 0.0, %v936
  %938 = vmatmul.bf16.gmra.mxu0 %v628
  %v939 = vpop.f32.mrf.mxu0
  %v940 = vadd.f32 0.0, %v939
  %v941 = vpop.f32.mrf.mxu0
  %942 = vdwg.mxu0
  %v943 = vpack.c.bf16 %v640, %v640
  %v944 = vpack.c.bf16 %v642, %v642
  %v945 = vpack.c.bf16 %v645, %v645
  %v946 = vpack.c.bf16 %v647, %v647
  %v947 = vpack.c.bf16 %v650, %v650
  %v948 = vpack.c.bf16 %v652, %v652
  %v949 = vpack.c.bf16 %v655, %v655
  %v950 = vpack.c.bf16 %v657, %v657
  %v951 = vpack.c.bf16 %v660, %v660
  %v952 = vpack.c.bf16 %v662, %v662
  %v953 = vpack.c.bf16 %v665, %v665
  %v954 = vpack.c.bf16 %v667, %v667
  %v955 = vpack.c.bf16 %v670, %v670
  %v956 = vpack.c.bf16 %v672, %v672
  %v957 = vpack.c.bf16 %v675, %v675
  %v958 = vpack.c.bf16 %v677, %v677
  %v959 = vpack.c.bf16 %v680, %v680
  %v960 = vpack.c.bf16 %v682, %v682
  %v961 = vpack.c.bf16 %v685, %v685
  %v962 = vpack.c.bf16 %v687, %v687
  %v963 = vpack.c.bf16 %v690, %v690
  %v964 = vpack.c.bf16 %v692, %v692
  %v965 = vpack.c.bf16 %v695, %v695
  %v966 = vpack.c.bf16 %v697, %v697
  %v967 = vpack.c.bf16 %v700, %v700
  %v968 = vpack.c.bf16 %v702, %v702
  %v969 = vpack.c.bf16 %v705, %v705
  %v970 = vpack.c.bf16 %v707, %v707
  %v971 = vpack.c.bf16 %v710, %v710
  %v972 = vpack.c.bf16 %v712, %v712
  %v973 = vpack.c.bf16 %v715, %v715
  %v974 = vpack.c.bf16 %v717, %v717
  %v975 = vpack.c.bf16 %v720, %v720
  %v976 = vpack.c.bf16 %v722, %v722
  %v977 = vpack.c.bf16 %v725, %v725
  %v978 = vpack.c.bf16 %v727, %v727
  %v979 = vpack.c.bf16 %v730, %v730
  %v980 = vpack.c.bf16 %v732, %v732
  %v981 = vpack.c.bf16 %v735, %v735
  %v982 = vpack.c.bf16 %v737, %v737
  %v983 = vpack.c.bf16 %v740, %v740
  %v984 = vpack.c.bf16 %v742, %v742
  %v985 = vpack.c.bf16 %v745, %v745
  %v986 = vpack.c.bf16 %v747, %v747
  %v987 = vpack.c.bf16 %v750, %v750
  %v988 = vpack.c.bf16 %v752, %v752
  %v989 = vpack.c.bf16 %v755, %v755
  %v990 = vpack.c.bf16 %v757, %v757
  %v991 = vpack.c.bf16 %v760, %v760
  %v992 = vpack.c.bf16 %v762, %v762
  %v993 = vpack.c.bf16 %v765, %v765
  %v994 = vpack.c.bf16 %v767, %v767
  %v995 = vpack.c.bf16 %v770, %v770
  %v996 = vpack.c.bf16 %v772, %v772
  %v997 = vpack.c.bf16 %v775, %v775
  %v998 = vpack.c.bf16 %v777, %v777
  %v999 = vpack.c.bf16 %v780, %v780
  %v1000 = vpack.c.bf16 %v782, %v782
  %v1001 = vpack.c.bf16 %v785, %v785
  %v1002 = vpack.c.bf16 %v787, %v787
  %v1003 = vpack.c.bf16 %v790, %v790
  %v1004 = vpack.c.bf16 %v792, %v792
  %v1005 = vpack.c.bf16 %v795, %v795
  %v1006 = vpack.c.bf16 %v797, %v797
  %v1007 = vpack.c.bf16 %v800, %v800
  %v1008 = vpack.c.bf16 %v802, %v802
  %v1009 = vpack.c.bf16 %v805, %v805
  %v1010 = vpack.c.bf16 %v807, %v807
  %v1011 = vpack.c.bf16 %v810, %v810
  %v1012 = vpack.c.bf16 %v812, %v812
  %v1013 = vpack.c.bf16 %v815, %v815
  %v1014 = vpack.c.bf16 %v817, %v817
  %v1015 = vpack.c.bf16 %v820, %v820
  %v1016 = vpack.c.bf16 %v822, %v822
  %v1017 = vpack.c.bf16 %v825, %v825
  %v1018 = vpack.c.bf16 %v827, %v827
  %v1019 = vpack.c.bf16 %v830, %v830
  %v1020 = vpack.c.bf16 %v832, %v832
  %v1021 = vpack.c.bf16 %v835, %v835
  %v1022 = vpack.c.bf16 %v837, %v837
  %v1023 = vpack.c.bf16 %v840, %v840
  %v1024 = vpack.c.bf16 %v842, %v842
  %v1025 = vpack.c.bf16 %v845, %v845
  %v1026 = vpack.c.bf16 %v847, %v847
  %v1027 = vpack.c.bf16 %v850, %v850
  %v1028 = vpack.c.bf16 %v852, %v852
  %v1029 = vpack.c.bf16 %v855, %v855
  %v1030 = vpack.c.bf16 %v857, %v857
  %v1031 = vpack.c.bf16 %v860, %v860
  %v1032 = vpack.c.bf16 %v862, %v862
  %v1033 = vpack.c.bf16 %v865, %v865
  %v1034 = vpack.c.bf16 %v867, %v867
  %v1035 = vpack.c.bf16 %v870, %v870
  %v1036 = vpack.c.bf16 %v872, %v872
  %v1037 = vpack.c.bf16 %v875, %v875
  %v1038 = vpack.c.bf16 %v877, %v877
  %v1039 = vpack.c.bf16 %v880, %v880
  %v1040 = vpack.c.bf16 %v882, %v882
  %v1041 = vpack.c.bf16 %v885, %v885
  %v1042 = vpack.c.bf16 %v887, %v887
  %v1043 = vpack.c.bf16 %v890, %v890
  %v1044 = vpack.c.bf16 %v892, %v892
  %v1045 = vpack.c.bf16 %v895, %v895
  %v1046 = vpack.c.bf16 %v897, %v897
  %v1047 = vpack.c.bf16 %v900, %v900
  %v1048 = vpack.c.bf16 %v902, %v902
  %v1049 = vpack.c.bf16 %v905, %v905
  %v1050 = vpack.c.bf16 %v907, %v907
  %v1051 = vpack.c.bf16 %v910, %v910
  %v1052 = vpack.c.bf16 %v912, %v912
  %v1053 = vpack.c.bf16 %v915, %v915
  %v1054 = vpack.c.bf16 %v917, %v917
  %v1055 = vpack.c.bf16 %v920, %v920
  %v1056 = vpack.c.bf16 %v922, %v922
  %v1057 = vpack.c.bf16 %v925, %v925
  %v1058 = vpack.c.bf16 %v927, %v927
  %v1059 = vpack.c.bf16 %v930, %v930
  %v1060 = vpack.c.bf16 %v932, %v932
  %v1061 = vpack.c.bf16 %v935, %v935
  %v1062 = vpack.c.bf16 %v937, %v937
  %v1063 = vpack.c.bf16 %v940, %v940
  %1064 = vst [vmem:[%s2] sm:$0xf] %v943
  %1065 = vst [vmem:[%s2 + $0x4] sm:$0xf] %v944
  %1066 = vst [vmem:[%s2 + $0x8] sm:$0xf] %v945
  %1067 = vst [vmem:[%s2 + $0xc] sm:$0xf] %v946
  %1068 = vst [vmem:[%s2 + $0x10] sm:$0xf] %v947
  %1069 = vst [vmem:[%s2 + $0x14] sm:$0xf] %v948
  %1070 = vst [vmem:[%s2 + $0x18] sm:$0xf] %v949
  %1071 = vst [vmem:[%s2 + $0x1c] sm:$0xf] %v950
  %1072 = vst [vmem:[%s2 + $0x20] sm:$0xf] %v951
  %1073 = vst [vmem:[%s2 + $0x24] sm:$0xf] %v952
  %1074 = vst [vmem:[%s2 + $0x28] sm:$0xf] %v953
  %1075 = vst [vmem:[%s2 + $0x2c] sm:$0xf] %v954
  %1076 = vst [vmem:[%s2 + $0x30] sm:$0xf] %v955
  %1077 = vst [vmem:[%s2 + $0x34] sm:$0xf] %v956
  %1078 = vst [vmem:[%s2 + $0x38] sm:$0xf] %v957
  %1079 = vst [vmem:[%s2 + $0x3c] sm:$0xf] %v958
  %1080 = vst [vmem:[%s2 + $0x40] sm:$0xf] %v959
  %1081 = vst [vmem:[%s2 + $0x44] sm:$0xf] %v960
  %1082 = vst [vmem:[%s2 + $0x48] sm:$0xf] %v961
  %1083 = vst [vmem:[%s2 + $0x4c] sm:$0xf] %v962
  %1084 = vst [vmem:[%s2 + $0x50] sm:$0xf] %v963
  %1085 = vst [vmem:[%s2 + $0x54] sm:$0xf] %v964
  %1086 = vst [vmem:[%s2 + $0x58] sm:$0xf] %v965
  %1087 = vst [vmem:[%s2 + $0x5c] sm:$0xf] %v966
  %1088 = vst [vmem:[%s2 + $0x60] sm:$0xf] %v967
  %1089 = vst [vmem:[%s2 + $0x64] sm:$0xf] %v968
  %1090 = vst [vmem:[%s2 + $0x68] sm:$0xf] %v969
  %1091 = vst [vmem:[%s2 + $0x6c] sm:$0xf] %v970
  %1092 = vst [vmem:[%s2 + $0x70] sm:$0xf] %v971
  %1093 = vst [vmem:[%s2 + $0x74] sm:$0xf] %v972
  %1094 = vst [vmem:[%s2 + $0x78] sm:$0xf] %v973
  %1095 = vst [vmem:[%s2 + $0x7c] sm:$0xf] %v974
  %1096 = vst [vmem:[%s2 + $0x80] sm:$0xf] %v975
  %1097 = vst [vmem:[%s2 + $0x84] sm:$0xf] %v976
  %1098 = vst [vmem:[%s2 + $0x88] sm:$0xf] %v977
  %1099 = vst [vmem:[%s2 + $0x8c] sm:$0xf] %v978
  %1100 = vst [vmem:[%s2 + $0x90] sm:$0xf] %v979
  %1101 = vst [vmem:[%s2 + $0x94] sm:$0xf] %v980
  %1102 = vst [vmem:[%s2 + $0x98] sm:$0xf] %v981
  %1103 = vst [vmem:[%s2 + $0x9c] sm:$0xf] %v982
  %1104 = vst [vmem:[%s2 + $0xa0] sm:$0xf] %v983
  %1105 = vst [vmem:[%s2 + $0xa4] sm:$0xf] %v984
  %1106 = vst [vmem:[%s2 + $0xa8] sm:$0xf] %v985
  %1107 = vst [vmem:[%s2 + $0xac] sm:$0xf] %v986
  %1108 = vst [vmem:[%s2 + $0xb0] sm:$0xf] %v987
  %1109 = vst [vmem:[%s2 + $0xb4] sm:$0xf] %v988
  %1110 = vst [vmem:[%s2 + $0xb8] sm:$0xf] %v989
  %1111 = vst [vmem:[%s2 + $0xbc] sm:$0xf] %v990
  %1112 = vst [vmem:[%s2 + $0xc0] sm:$0xf] %v991
  %1113 = vst [vmem:[%s2 + $0xc4] sm:$0xf] %v992
  %1114 = vst [vmem:[%s2 + $0xc8] sm:$0xf] %v993
  %1115 = vst [vmem:[%s2 + $0xcc] sm:$0xf] %v994
  %1116 = vst [vmem:[%s2 + $0xd0] sm:$0xf] %v995
  %1117 = vst [vmem:[%s2 + $0xd4] sm:$0xf] %v996
  %1118 = vst [vmem:[%s2 + $0xd8] sm:$0xf] %v997
  %1119 = vst [vmem:[%s2 + $0xdc] sm:$0xf] %v998
  %1120 = vst [vmem:[%s2 + $0xe0] sm:$0xf] %v999
  %1121 = vst [vmem:[%s2 + $0xe4] sm:$0xf] %v1000
  %1122 = vst [vmem:[%s2 + $0xe8] sm:$0xf] %v1001
  %1123 = vst [vmem:[%s2 + $0xec] sm:$0xf] %v1002
  %1124 = vst [vmem:[%s2 + $0xf0] sm:$0xf] %v1003
  %1125 = vst [vmem:[%s2 + $0xf4] sm:$0xf] %v1004
  %1126 = vst [vmem:[%s2 + $0xf8] sm:$0xf] %v1005
  %1127 = vst [vmem:[%s2 + $0xfc] sm:$0xf] %v1006
  %1128 = vst [vmem:[%s2 + $0x100] sm:$0xf] %v1007
  %1129 = vst [vmem:[%s2 + $0x104] sm:$0xf] %v1008
  %1130 = vst [vmem:[%s2 + $0x108] sm:$0xf] %v1009
  %1131 = vst [vmem:[%s2 + $0x10c] sm:$0xf] %v1010
  %1132 = vst [vmem:[%s2 + $0x110] sm:$0xf] %v1011
  %1133 = vst [vmem:[%s2 + $0x114] sm:$0xf] %v1012
  %1134 = vst [vmem:[%s2 + $0x118] sm:$0xf] %v1013
  %1135 = vst [vmem:[%s2 + $0x11c] sm:$0xf] %v1014
  %1136 = vst [vmem:[%s2 + $0x120] sm:$0xf] %v1015
  %1137 = vst [vmem:[%s2 + $0x124] sm:$0xf] %v1016
  %1138 = vst [vmem:[%s2 + $0x128] sm:$0xf] %v1017
  %1139 = vst [vmem:[%s2 + $0x12c] sm:$0xf] %v1018
  %1140 = vst [vmem:[%s2 + $0x130] sm:$0xf] %v1019
  %1141 = vst [vmem:[%s2 + $0x134] sm:$0xf] %v1020
  %1142 = vst [vmem:[%s2 + $0x138] sm:$0xf] %v1021
  %1143 = vst [vmem:[%s2 + $0x13c] sm:$0xf] %v1022
  %1144 = vst [vmem:[%s2 + $0x140] sm:$0xf] %v1023
  %1145 = vst [vmem:[%s2 + $0x144] sm:$0xf] %v1024
  %1146 = vst [vmem:[%s2 + $0x148] sm:$0xf] %v1025
  %1147 = vst [vmem:[%s2 + $0x14c] sm:$0xf] %v1026
  %1148 = vst [vmem:[%s2 + $0x150] sm:$0xf] %v1027
  %1149 = vst [vmem:[%s2 + $0x154] sm:$0xf] %v1028
  %1150 = vst [vmem:[%s2 + $0x158] sm:$0xf] %v1029
  %1151 = vst [vmem:[%s2 + $0x15c] sm:$0xf] %v1030
  %1152 = vst [vmem:[%s2 + $0x160] sm:$0xf] %v1031
  %1153 = vst [vmem:[%s2 + $0x164] sm:$0xf] %v1032
  %1154 = vst [vmem:[%s2 + $0x168] sm:$0xf] %v1033
  %1155 = vst [vmem:[%s2 + $0x16c] sm:$0xf] %v1034
  %1156 = vst [vmem:[%s2 + $0x170] sm:$0xf] %v1035
  %1157 = vst [vmem:[%s2 + $0x174] sm:$0xf] %v1036
  %1158 = vst [vmem:[%s2 + $0x178] sm:$0xf] %v1037
  %1159 = vst [vmem:[%s2 + $0x17c] sm:$0xf] %v1038
  %1160 = vst [vmem:[%s2 + $0x180] sm:$0xf] %v1039
  %1161 = vst [vmem:[%s2 + $0x184] sm:$0xf] %v1040
  %1162 = vst [vmem:[%s2 + $0x188] sm:$0xf] %v1041
  %1163 = vst [vmem:[%s2 + $0x18c] sm:$0xf] %v1042
  %1164 = vst [vmem:[%s2 + $0x190] sm:$0xf] %v1043
  %1165 = vst [vmem:[%s2 + $0x194] sm:$0xf] %v1044
  %1166 = vst [vmem:[%s2 + $0x198] sm:$0xf] %v1045
  %1167 = vst [vmem:[%s2 + $0x19c] sm:$0xf] %v1046
  %1168 = vst [vmem:[%s2 + $0x1a0] sm:$0xf] %v1047
  %1169 = vst [vmem:[%s2 + $0x1a4] sm:$0xf] %v1048
  %1170 = vst [vmem:[%s2 + $0x1a8] sm:$0xf] %v1049
  %1171 = vst [vmem:[%s2 + $0x1ac] sm:$0xf] %v1050
  %1172 = vst [vmem:[%s2 + $0x1b0] sm:$0xf] %v1051
  %1173 = vst [vmem:[%s2 + $0x1b4] sm:$0xf] %v1052
  %1174 = vst [vmem:[%s2 + $0x1b8] sm:$0xf] %v1053
  %1175 = vst [vmem:[%s2 + $0x1bc] sm:$0xf] %v1054
  %1176 = vst [vmem:[%s2 + $0x1c0] sm:$0xf] %v1055
  %1177 = vst [vmem:[%s2 + $0x1c4] sm:$0xf] %v1056
  %1178 = vst [vmem:[%s2 + $0x1c8] sm:$0xf] %v1057
  %1179 = vst [vmem:[%s2 + $0x1cc] sm:$0xf] %v1058
  %1180 = vst [vmem:[%s2 + $0x1d0] sm:$0xf] %v1059
  %1181 = vst [vmem:[%s2 + $0x1d4] sm:$0xf] %v1060
  %1182 = vst [vmem:[%s2 + $0x1d8] sm:$0xf] %v1061
  %1183 = vst [vmem:[%s2 + $0x1dc] sm:$0xf] %v1062
  %1184 = vst [vmem:[%s2 + $0x1e0] sm:$0xf] %v1063
  %v1185 = vadd.f32 %v640, %v642
  %v1186 = vadd.f32 %v1185, %v645
  %v1187 = vadd.f32 %v1186, %v647
  %v1188 = vadd.f32 %v1187, %v650
  %v1189 = vadd.f32 %v1188, %v652
  %v1190 = vadd.f32 %v1189, %v655
  %v1191 = vadd.f32 %v1190, %v657
  %v1192 = vadd.f32 %v1191, %v660
  %v1193 = vadd.f32 %v1192, %v662
  %v1194 = vadd.f32 %v1193, %v665
  %v1195 = vadd.f32 %v1194, %v667
  %v1196 = vadd.f32 %v1195, %v670
  %v1197 = vadd.f32 %v1196, %v672
  %v1198 = vadd.f32 %v1197, %v675
  %v1199 = vadd.f32 %v1198, %v677
  %v1200 = vadd.f32 %v1199, %v680
  %v1201 = vadd.f32 %v1200, %v682
  %v1202 = vadd.f32 %v1201, %v685
  %v1203 = vadd.f32 %v1202, %v687
  %v1204 = vadd.f32 %v1203, %v690
  %v1205 = vadd.f32 %v1204, %v692
  %v1206 = vadd.f32 %v1205, %v695
  %v1207 = vadd.f32 %v1206, %v697
  %v1208 = vadd.f32 %v1207, %v700
  %v1209 = vadd.f32 %v1208, %v702
  %v1210 = vadd.f32 %v1209, %v705
  %v1211 = vadd.f32 %v1210, %v707
  %v1212 = vadd.f32 %v1211, %v710
  %v1213 = vadd.f32 %v1212, %v712
  %v1214 = vadd.f32 %v1213, %v715
  %v1215 = vadd.f32 %v1214, %v717
  %v1216 = vadd.f32 %v1215, %v720
  %v1217 = vadd.f32 %v1216, %v722
  %v1218 = vadd.f32 %v1217, %v725
  %v1219 = vadd.f32 %v1218, %v727
  %v1220 = vadd.f32 %v1219, %v730
  %v1221 = vadd.f32 %v1220, %v732
  %v1222 = vadd.f32 %v1221, %v735
  %v1223 = vadd.f32 %v1222, %v737
  %v1224 = vadd.f32 %v1223, %v740
  %v1225 = vadd.f32 %v1224, %v742
  %v1226 = vadd.f32 %v1225, %v745
  %v1227 = vadd.f32 %v1226, %v747
  %v1228 = vadd.f32 %v1227, %v750
  %v1229 = vadd.f32 %v1228, %v752
  %v1230 = vadd.f32 %v1229, %v755
  %v1231 = vadd.f32 %v1230, %v757
  %v1232 = vadd.f32 %v1231, %v760
  %v1233 = vadd.f32 %v1232, %v762
  %v1234 = vadd.f32 %v1233, %v765
  %v1235 = vadd.f32 %v1234, %v767
  %v1236 = vadd.f32 %v1235, %v770
  %v1237 = vadd.f32 %v1236, %v772
  %v1238 = vadd.f32 %v1237, %v775
  %v1239 = vadd.f32 %v1238, %v777
  %v1240 = vadd.f32 %v1239, %v780
  %v1241 = vadd.f32 %v1240, %v782
  %v1242 = vadd.f32 %v1241, %v785
  %v1243 = vadd.f32 %v1242, %v787
  %v1244 = vadd.f32 %v1243, %v790
  %v1245 = vadd.f32 %v1244, %v792
  %v1246 = vadd.f32 %v1245, %v795
  %v1247 = vadd.f32 %v1246, %v797
  %v1248 = vadd.f32 %v1247, %v800
  %v1249 = vadd.f32 %v1248, %v802
  %v1250 = vadd.f32 %v1249, %v805
  %v1251 = vadd.f32 %v1250, %v807
  %v1252 = vadd.f32 %v1251, %v810
  %v1253 = vadd.f32 %v1252, %v812
  %v1254 = vadd.f32 %v1253, %v815
  %v1255 = vadd.f32 %v1254, %v817
  %v1256 = vadd.f32 %v1255, %v820
  %v1257 = vadd.f32 %v1256, %v822
  %v1258 = vadd.f32 %v1257, %v825
  %v1259 = vadd.f32 %v1258, %v827
  %v1260 = vadd.f32 %v1259, %v830
  %v1261 = vadd.f32 %v1260, %v832
  %v1262 = vadd.f32 %v1261, %v835
  %v1263 = vadd.f32 %v1262, %v837
  %v1264 = vadd.f32 %v1263, %v840
  %v1265 = vadd.f32 %v1264, %v842
  %v1266 = vadd.f32 %v1265, %v845
  %v1267 = vadd.f32 %v1266, %v847
  %v1268 = vadd.f32 %v1267, %v850
  %v1269 = vadd.f32 %v1268, %v852
  %v1270 = vadd.f32 %v1269, %v855
  %v1271 = vadd.f32 %v1270, %v857
  %v1272 = vadd.f32 %v1271, %v860
  %v1273 = vadd.f32 %v1272, %v862
  %v1274 = vadd.f32 %v1273, %v865
  %v1275 = vadd.f32 %v1274, %v867
  %v1276 = vadd.f32 %v1275, %v870
  %v1277 = vadd.f32 %v1276, %v872
  %v1278 = vadd.f32 %v1277, %v875
  %v1279 = vadd.f32 %v1278, %v877
  %v1280 = vadd.f32 %v1279, %v880
  %v1281 = vadd.f32 %v1280, %v882
  %v1282 = vadd.f32 %v1281, %v885
  %v1283 = vadd.f32 %v1282, %v887
  %v1284 = vadd.f32 %v1283, %v890
  %v1285 = vadd.f32 %v1284, %v892
  %v1286 = vadd.f32 %v1285, %v895
  %v1287 = vadd.f32 %v1286, %v897
  %v1288 = vadd.f32 %v1287, %v900
  %v1289 = vadd.f32 %v1288, %v902
  %v1290 = vadd.f32 %v1289, %v905
  %v1291 = vadd.f32 %v1290, %v907
  %v1292 = vadd.f32 %v1291, %v910
  %v1293 = vadd.f32 %v1292, %v912
  %v1294 = vadd.f32 %v1293, %v915
  %v1295 = vadd.f32 %v1294, %v917
  %v1296 = vadd.f32 %v1295, %v920
  %v1297 = vadd.f32 %v1296, %v922
  %v1298 = vadd.f32 %v1297, %v925
  %v1299 = vadd.f32 %v1298, %v927
  %v1300 = vadd.f32 %v1299, %v930
  %v1301 = vadd.f32 %v1300, %v932
  %v1302 = vadd.f32 %v1301, %v935
  %v1303 = vadd.f32 %v1302, %v937
  %v1304 = vadd.f32 %v1303, %v940
  %v1305 = vrot.slane %v1304, 4
  %v1306 = vadd.f32 %v1304, %v1305
  %v1307 = vrot.slane %v1306, 2
  %v1308 = vadd.f32 %v1306, %v1307
  %v1309 = vrot.slane %v1308, 1
  %v1310 = vadd.f32 %v1308, %v1309
  %1311 = vst [vmem:[%s3] sm:$0x1] %v1310
  %v1312 = vmul.f32 %v640, %v640
  %v1313 = vmul.f32 %v642, %v642
  %v1314 = vmul.f32 %v645, %v645
  %v1315 = vmul.f32 %v647, %v647
  %v1316 = vmul.f32 %v650, %v650
  %v1317 = vmul.f32 %v652, %v652
  %v1318 = vmul.f32 %v655, %v655
  %v1319 = vmul.f32 %v657, %v657
  %v1320 = vmul.f32 %v660, %v660
  %v1321 = vmul.f32 %v662, %v662
  %v1322 = vmul.f32 %v665, %v665
  %v1323 = vmul.f32 %v667, %v667
  %v1324 = vmul.f32 %v670, %v670
  %v1325 = vmul.f32 %v672, %v672
  %v1326 = vmul.f32 %v675, %v675
  %v1327 = vmul.f32 %v677, %v677
  %v1328 = vmul.f32 %v680, %v680
  %v1329 = vmul.f32 %v682, %v682
  %v1330 = vmul.f32 %v685, %v685
  %v1331 = vmul.f32 %v687, %v687
  %v1332 = vmul.f32 %v690, %v690
  %v1333 = vmul.f32 %v692, %v692
  %v1334 = vmul.f32 %v695, %v695
  %v1335 = vmul.f32 %v697, %v697
  %v1336 = vmul.f32 %v700, %v700
  %v1337 = vmul.f32 %v702, %v702
  %v1338 = vmul.f32 %v705, %v705
  %v1339 = vmul.f32 %v707, %v707
  %v1340 = vmul.f32 %v710, %v710
  %v1341 = vmul.f32 %v712, %v712
  %v1342 = vmul.f32 %v715, %v715
  %v1343 = vmul.f32 %v717, %v717
  %v1344 = vmul.f32 %v720, %v720
  %v1345 = vmul.f32 %v722, %v722
  %v1346 = vmul.f32 %v725, %v725
  %v1347 = vmul.f32 %v727, %v727
  %v1348 = vmul.f32 %v730, %v730
  %v1349 = vmul.f32 %v732, %v732
  %v1350 = vmul.f32 %v735, %v735
  %v1351 = vmul.f32 %v737, %v737
  %v1352 = vmul.f32 %v740, %v740
  %v1353 = vmul.f32 %v742, %v742
  %v1354 = vmul.f32 %v745, %v745
  %v1355 = vmul.f32 %v747, %v747
  %v1356 = vmul.f32 %v750, %v750
  %v1357 = vmul.f32 %v752, %v752
  %v1358 = vmul.f32 %v755, %v755
  %v1359 = vmul.f32 %v757, %v757
  %v1360 = vmul.f32 %v760, %v760
  %v1361 = vmul.f32 %v762, %v762
  %v1362 = vmul.f32 %v765, %v765
  %v1363 = vmul.f32 %v767, %v767
  %v1364 = vmul.f32 %v770, %v770
  %v1365 = vmul.f32 %v772, %v772
  %v1366 = vmul.f32 %v775, %v775
  %v1367 = vmul.f32 %v777, %v777
  %v1368 = vmul.f32 %v780, %v780
  %v1369 = vmul.f32 %v782, %v782
  %v1370 = vmul.f32 %v785, %v785
  %v1371 = vmul.f32 %v787, %v787
  %v1372 = vmul.f32 %v790, %v790
  %v1373 = vmul.f32 %v792, %v792
  %v1374 = vmul.f32 %v795, %v795
  %v1375 = vmul.f32 %v797, %v797
  %v1376 = vmul.f32 %v800, %v800
  %v1377 = vmul.f32 %v802, %v802
  %v1378 = vmul.f32 %v805, %v805
  %v1379 = vmul.f32 %v807, %v807
  %v1380 = vmul.f32 %v810, %v810
  %v1381 = vmul.f32 %v812, %v812
  %v1382 = vmul.f32 %v815, %v815
  %v1383 = vmul.f32 %v817, %v817
  %v1384 = vmul.f32 %v820, %v820
  %v1385 = vmul.f32 %v822, %v822
  %v1386 = vmul.f32 %v825, %v825
  %v1387 = vmul.f32 %v827, %v827
  %v1388 = vmul.f32 %v830, %v830
  %v1389 = vmul.f32 %v832, %v832
  %v1390 = vmul.f32 %v835, %v835
  %v1391 = vmul.f32 %v837, %v837
  %v1392 = vmul.f32 %v840, %v840
  %v1393 = vmul.f32 %v842, %v842
  %v1394 = vmul.f32 %v845, %v845
  %v1395 = vmul.f32 %v847, %v847
  %v1396 = vmul.f32 %v850, %v850
  %v1397 = vmul.f32 %v852, %v852
  %v1398 = vmul.f32 %v855, %v855
  %v1399 = vmul.f32 %v857, %v857
  %v1400 = vmul.f32 %v860, %v860
  %v1401 = vmul.f32 %v862, %v862
  %v1402 = vmul.f32 %v865, %v865
  %v1403 = vmul.f32 %v867, %v867
  %v1404 = vmul.f32 %v870, %v870
  %v1405 = vmul.f32 %v872, %v872
  %v1406 = vmul.f32 %v875, %v875
  %v1407 = vmul.f32 %v877, %v877
  %v1408 = vmul.f32 %v880, %v880
  %v1409 = vmul.f32 %v882, %v882
  %v1410 = vmul.f32 %v885, %v885
  %v1411 = vmul.f32 %v887, %v887
  %v1412 = vmul.f32 %v890, %v890
  %v1413 = vmul.f32 %v892, %v892
  %v1414 = vmul.f32 %v895, %v895
  %v1415 = vmul.f32 %v897, %v897
  %v1416 = vmul.f32 %v900, %v900
  %v1417 = vmul.f32 %v902, %v902
  %v1418 = vmul.f32 %v905, %v905
  %v1419 = vmul.f32 %v907, %v907
  %v1420 = vmul.f32 %v910, %v910
  %v1421 = vmul.f32 %v912, %v912
  %v1422 = vmul.f32 %v915, %v915
  %v1423 = vmul.f32 %v917, %v917
  %v1424 = vmul.f32 %v920, %v920
  %v1425 = vmul.f32 %v922, %v922
  %v1426 = vmul.f32 %v925, %v925
  %v1427 = vmul.f32 %v927, %v927
  %v1428 = vmul.f32 %v930, %v930
  %v1429 = vmul.f32 %v932, %v932
  %v1430 = vmul.f32 %v935, %v935
  %v1431 = vmul.f32 %v937, %v937
  %v1432 = vmul.f32 %v940, %v940
  %v1433 = vadd.f32 %v1312, %v1313
  %v1434 = vadd.f32 %v1433, %v1314
  %v1435 = vadd.f32 %v1434, %v1315
  %v1436 = vadd.f32 %v1435, %v1316
  %v1437 = vadd.f32 %v1436, %v1317
  %v1438 = vadd.f32 %v1437, %v1318
  %v1439 = vadd.f32 %v1438, %v1319
  %v1440 = vadd.f32 %v1439, %v1320
  %v1441 = vadd.f32 %v1440, %v1321
  %v1442 = vadd.f32 %v1441, %v1322
  %v1443 = vadd.f32 %v1442, %v1323
  %v1444 = vadd.f32 %v1443, %v1324
  %v1445 = vadd.f32 %v1444, %v1325
  %v1446 = vadd.f32 %v1445, %v1326
  %v1447 = vadd.f32 %v1446, %v1327
  %v1448 = vadd.f32 %v1447, %v1328
  %v1449 = vadd.f32 %v1448, %v1329
  %v1450 = vadd.f32 %v1449, %v1330
  %v1451 = vadd.f32 %v1450, %v1331
  %v1452 = vadd.f32 %v1451, %v1332
  %v1453 = vadd.f32 %v1452, %v1333
  %v1454 = vadd.f32 %v1453, %v1334
  %v1455 = vadd.f32 %v1454, %v1335
  %v1456 = vadd.f32 %v1455, %v1336
  %v1457 = vadd.f32 %v1456, %v1337
  %v1458 = vadd.f32 %v1457, %v1338
  %v1459 = vadd.f32 %v1458, %v1339
  %v1460 = vadd.f32 %v1459, %v1340
  %v1461 = vadd.f32 %v1460, %v1341
  %v1462 = vadd.f32 %v1461, %v1342
  %v1463 = vadd.f32 %v1462, %v1343
  %v1464 = vadd.f32 %v1463, %v1344
  %v1465 = vadd.f32 %v1464, %v1345
  %v1466 = vadd.f32 %v1465, %v1346
  %v1467 = vadd.f32 %v1466, %v1347
  %v1468 = vadd.f32 %v1467, %v1348
  %v1469 = vadd.f32 %v1468, %v1349
  %v1470 = vadd.f32 %v1469, %v1350
  %v1471 = vadd.f32 %v1470, %v1351
  %v1472 = vadd.f32 %v1471, %v1352
  %v1473 = vadd.f32 %v1472, %v1353
  %v1474 = vadd.f32 %v1473, %v1354
  %v1475 = vadd.f32 %v1474, %v1355
  %v1476 = vadd.f32 %v1475, %v1356
  %v1477 = vadd.f32 %v1476, %v1357
  %v1478 = vadd.f32 %v1477, %v1358
  %v1479 = vadd.f32 %v1478, %v1359
  %v1480 = vadd.f32 %v1479, %v1360
  %v1481 = vadd.f32 %v1480, %v1361
  %v1482 = vadd.f32 %v1481, %v1362
  %v1483 = vadd.f32 %v1482, %v1363
  %v1484 = vadd.f32 %v1483, %v1364
  %v1485 = vadd.f32 %v1484, %v1365
  %v1486 = vadd.f32 %v1485, %v1366
  %v1487 = vadd.f32 %v1486, %v1367
  %v1488 = vadd.f32 %v1487, %v1368
  %v1489 = vadd.f32 %v1488, %v1369
  %v1490 = vadd.f32 %v1489, %v1370
  %v1491 = vadd.f32 %v1490, %v1371
  %v1492 = vadd.f32 %v1491, %v1372
  %v1493 = vadd.f32 %v1492, %v1373
  %v1494 = vadd.f32 %v1493, %v1374
  %v1495 = vadd.f32 %v1494, %v1375
  %v1496 = vadd.f32 %v1495, %v1376
  %v1497 = vadd.f32 %v1496, %v1377
  %v1498 = vadd.f32 %v1497, %v1378
  %v1499 = vadd.f32 %v1498, %v1379
  %v1500 = vadd.f32 %v1499, %v1380
  %v1501 = vadd.f32 %v1500, %v1381
  %v1502 = vadd.f32 %v1501, %v1382
  %v1503 = vadd.f32 %v1502, %v1383
  %v1504 = vadd.f32 %v1503, %v1384
  %v1505 = vadd.f32 %v1504, %v1385
  %v1506 = vadd.f32 %v1505, %v1386
  %v1507 = vadd.f32 %v1506, %v1387
  %v1508 = vadd.f32 %v1507, %v1388
  %v1509 = vadd.f32 %v1508, %v1389
  %v1510 = vadd.f32 %v1509, %v1390
  %v1511 = vadd.f32 %v1510, %v1391
  %v1512 = vadd.f32 %v1511, %v1392
  %v1513 = vadd.f32 %v1512, %v1393
  %v1514 = vadd.f32 %v1513, %v1394
  %v1515 = vadd.f32 %v1514, %v1395
  %v1516 = vadd.f32 %v1515, %v1396
  %v1517 = vadd.f32 %v1516, %v1397
  %v1518 = vadd.f32 %v1517, %v1398
  %v1519 = vadd.f32 %v1518, %v1399
  %v1520 = vadd.f32 %v1519, %v1400
  %v1521 = vadd.f32 %v1520, %v1401
  %v1522 = vadd.f32 %v1521, %v1402
  %v1523 = vadd.f32 %v1522, %v1403
  %v1524 = vadd.f32 %v1523, %v1404
  %v1525 = vadd.f32 %v1524, %v1405
  %v1526 = vadd.f32 %v1525, %v1406
  %v1527 = vadd.f32 %v1526, %v1407
  %v1528 = vadd.f32 %v1527, %v1408
  %v1529 = vadd.f32 %v1528, %v1409
  %v1530 = vadd.f32 %v1529, %v1410
  %v1531 = vadd.f32 %v1530, %v1411
  %v1532 = vadd.f32 %v1531, %v1412
  %v1533 = vadd.f32 %v1532, %v1413
  %v1534 = vadd.f32 %v1533, %v1414
  %v1535 = vadd.f32 %v1534, %v1415
  %v1536 = vadd.f32 %v1535, %v1416
  %v1537 = vadd.f32 %v1536, %v1417
  %v1538 = vadd.f32 %v1537, %v1418
  %v1539 = vadd.f32 %v1538, %v1419
  %v1540 = vadd.f32 %v1539, %v1420
  %v1541 = vadd.f32 %v1540, %v1421
  %v1542 = vadd.f32 %v1541, %v1422
  %v1543 = vadd.f32 %v1542, %v1423
  %v1544 = vadd.f32 %v1543, %v1424
  %v1545 = vadd.f32 %v1544, %v1425
  %v1546 = vadd.f32 %v1545, %v1426
  %v1547 = vadd.f32 %v1546, %v1427
  %v1548 = vadd.f32 %v1547, %v1428
  %v1549 = vadd.f32 %v1548, %v1429
  %v1550 = vadd.f32 %v1549, %v1430
  %v1551 = vadd.f32 %v1550, %v1431
  %v1552 = vadd.f32 %v1551, %v1432
  %v1553 = vrot.slane %v1552, 4
  %v1554 = vadd.f32 %v1552, %v1553
  %v1555 = vrot.slane %v1554, 2
  %v1556 = vadd.f32 %v1554, %v1555
  %v1557 = vrot.slane %v1556, 1
  %v1558 = vadd.f32 %v1556, %v1557
  %1559 = vst [vmem:[%s3 + $0x1] sm:$0x1] %v1558
  // Predicated region
  $region10: #{dc_generator_forward.15} parent=0 // pred_check
    _
  $region11: #{dc_generator_forward.15} parent=0 // pred_check_branch
    %1561 = sbr.rel (0) target = $region13
  $region12: #{dc_generator_forward.15} parent=0 // pred_region
    _
  $region13: #{dc_generator_forward.15} parent=0 // pred_fallthru
    _
  // Predicated region
  $region14: #{dc_generator_forward.15} parent=0 // pred_check
    _
  $region15: #{dc_generator_forward.15} parent=0 // pred_check_branch
    %1563 = sbr.rel (0) target = $region17
  $region16: #{dc_generator_forward.15} parent=0 // pred_region
    _
  $region17: #{dc_generator_forward.15} parent=0 // pred_fallthru
    _
  // Predicated region
  $region18: #{dc_generator_forward.15} parent=0 // pred_check
    _
  $region19: #{dc_generator_forward.15} parent=0 // pred_check_branch
    %1565 = sbr.rel (0) target = $region21
  $region20: #{dc_generator_forward.15} parent=0 // pred_region
    _
  $region21: #{dc_generator_forward.15} parent=0 // pred_fallthru
    _
  // Predicated region
  $region22: #{dc_generator_forward.15} parent=0 // pred_check
    _
  $region23: #{dc_generator_forward.15} parent=0 // pred_check_branch
    %1567 = sbr.rel (0) target = $region25
  $region24: #{dc_generator_forward.15} parent=0 // pred_region
    _
  $region25: #{dc_generator_forward.15} parent=0 // pred_fallthru
    _

// kernel: dc_generator_forward.16
$region0: #{dc_generator_forward.16}
  #allocation0 [shape = 'u32[]', space=smem, size = 0x4, offset = 0x4, fixed_abs, tag = 'smem constant byte address 0x4 - core index']
  #allocation1 [shape = 'u32[72,128]{1,0:T(1,128)}', space=vmem, size = 0x9000, scoped, tag = 'internal scratch']
  %s0 = inlined_call_operand.vmem [shape: bf16[968,128], index: 0, kind: input, shape index: {}]
  %s1 = inlined_call_operand.vmem [shape: f32[1,128], index: 1, kind: input, shape index: {}]
  %s2 = inlined_call_operand.vmem [shape: f32[1,128], index: 2, kind: input, shape index: {}]
  %s3 = inlined_call_operand.vmem [shape: bf16[968,128], index: 3, kind: output, shape index: {}]
  %s4 = sld [smem:[#allocation0]]
  $region22: #{dc_generator_forward.16} parent=0
    _
  %s6 = ssub.s32 1, %s4
  %s7 = scalar_select 0, %s6, %s4
  // Predicated region
  $region2: #{dc_generator_forward.16} parent=0 // pred_check
    _
  $region3: #{dc_generator_forward.16} parent=0 // pred_check_branch
    %9 = sbr.rel (0) target = $region5
  $region4: #{dc_generator_forward.16} parent=0 // pred_region
    _
  $region5: #{dc_generator_forward.16} parent=0 // pred_fallthru
    _
  // Predicated region
  $region6: #{dc_generator_forward.16} parent=0 // pred_check
    _
  $region7: #{dc_generator_forward.16} parent=0 // pred_check_branch
    %11 = sbr.rel (0) target = $region9
  $region8: #{dc_generator_forward.16} parent=0 // pred_region
    _
  $region9: #{dc_generator_forward.16} parent=0 // pred_fallthru
    _
  // Predicated region
  $region10: #{dc_generator_forward.16} parent=0 // pred_check
    _
  $region11: #{dc_generator_forward.16} parent=0 // pred_check_branch
    %13 = sbr.rel (0) target = $region13
  $region12: #{dc_generator_forward.16} parent=0 // pred_region
    _
  $region13: #{dc_generator_forward.16} parent=0 // pred_fallthru
    _
  %v14 = vld [vmem:[%s0] sm:$0xf]
  %v15 = vld [vmem:[%s0 + $0x4] sm:$0xf]
  %v16 = vld [vmem:[%s0 + $0x8] sm:$0xf]
  %v17 = vld [vmem:[%s0 + $0xc] sm:$0xf]
  %v18 = vld [vmem:[%s0 + $0x10] sm:$0xf]
  %v19 = vld [vmem:[%s0 + $0x14] sm:$0xf]
  %v20 = vld [vmem:[%s0 + $0x18] sm:$0xf]
  %v21 = vld [vmem:[%s0 + $0x1c] sm:$0xf]
  %v22 = vld [vmem:[%s0 + $0x20] sm:$0xf]
  %v23 = vld [vmem:[%s0 + $0x24] sm:$0xf]
  %v24 = vld [vmem:[%s0 + $0x28] sm:$0xf]
  %v25 = vld [vmem:[%s0 + $0x2c] sm:$0xf]
  %v26 = vld [vmem:[%s0 + $0x30] sm:$0xf]
  %v27 = vld [vmem:[%s0 + $0x34] sm:$0xf]
  %v28 = vld [vmem:[%s0 + $0x38] sm:$0xf]
  %v29 = vld [vmem:[%s0 + $0x3c] sm:$0xf]
  %v30 = vld [vmem:[%s0 + $0x40] sm:$0xf]
  %v31 = vld [vmem:[%s0 + $0x44] sm:$0xf]
  %v32 = vld [vmem:[%s0 + $0x48] sm:$0xf]
  %v33 = vld [vmem:[%s0 + $0x4c] sm:$0xf]
  %v34 = vld [vmem:[%s0 + $0x50] sm:$0xf]
  %v35 = vld [vmem:[%s0 + $0x54] sm:$0xf]
  %v36 = vld [vmem:[%s0 + $0x58] sm:$0xf]
  %v37 = vld [vmem:[%s0 + $0x5c] sm:$0xf]
  %v38 = vld [vmem:[%s0 + $0x60] sm:$0xf]
  %v39 = vld [vmem:[%s0 + $0x64] sm:$0xf]
  %v40 = vld [vmem:[%s0 + $0x68] sm:$0xf]
  %v41 = vld [vmem:[%s0 + $0x6c] sm:$0xf]
  %v42 = vld [vmem:[%s0 + $0x70] sm:$0xf]
  %v43 = vld [vmem:[%s0 + $0x74] sm:$0xf]
  %v44 = vld [vmem:[%s0 + $0x78] sm:$0xf]
  %v45 = vld [vmem:[%s0 + $0x7c] sm:$0xf]
  %v46 = vld [vmem:[%s0 + $0x80] sm:$0xf]
  %v47 = vld [vmem:[%s0 + $0x84] sm:$0xf]
  %v48 = vld [vmem:[%s0 + $0x88] sm:$0xf]
  %v49 = vld [vmem:[%s0 + $0x8c] sm:$0xf]
  %v50 = vld [vmem:[%s0 + $0x90] sm:$0xf]
  %v51 = vld [vmem:[%s0 + $0x94] sm:$0xf]
  %v52 = vld [vmem:[%s0 + $0x98] sm:$0xf]
  %v53 = vld [vmem:[%s0 + $0x9c] sm:$0xf]
  %v54 = vld [vmem:[%s0 + $0xa0] sm:$0xf]
  %v55 = vld [vmem:[%s0 + $0xa4] sm:$0xf]
  %v56 = vld [vmem:[%s0 + $0xa8] sm:$0xf]
  %v57 = vld [vmem:[%s0 + $0xac] sm:$0xf]
  %v58 = vld [vmem:[%s0 + $0xb0] sm:$0xf]
  %v59 = vld [vmem:[%s0 + $0xb4] sm:$0xf]
  %v60 = vld [vmem:[%s0 + $0xb8] sm:$0xf]
  %v61 = vld [vmem:[%s0 + $0xbc] sm:$0xf]
  %v62 = vld [vmem:[%s0 + $0xc0] sm:$0xf]
  %v63 = vld [vmem:[%s0 + $0xc4] sm:$0xf]
  %v64 = vld [vmem:[%s0 + $0xc8] sm:$0xf]
  %v65 = vld [vmem:[%s0 + $0xcc] sm:$0xf]
  %v66 = vld [vmem:[%s0 + $0xd0] sm:$0xf]
  %v67 = vld [vmem:[%s0 + $0xd4] sm:$0xf]
  %v68 = vld [vmem:[%s0 + $0xd8] sm:$0xf]
  %v69 = vld [vmem:[%s0 + $0xdc] sm:$0xf]
  %v70 = vld [vmem:[%s0 + $0xe0] sm:$0xf]
  %v71 = vld [vmem:[%s0 + $0xe4] sm:$0xf]
  %v72 = vld [vmem:[%s0 + $0xe8] sm:$0xf]
  %v73 = vld [vmem:[%s0 + $0xec] sm:$0xf]
  %v74 = vld [vmem:[%s0 + $0xf0] sm:$0xf]
  %v75 = vld [vmem:[%s0 + $0xf4] sm:$0xf]
  %v76 = vld [vmem:[%s0 + $0xf8] sm:$0xf]
  %v77 = vld [vmem:[%s0 + $0xfc] sm:$0xf]
  %v78 = vld [vmem:[%s0 + $0x100] sm:$0xf]
  %v79 = vld [vmem:[%s0 + $0x104] sm:$0xf]
  %v80 = vld [vmem:[%s0 + $0x108] sm:$0xf]
  %v81 = vld [vmem:[%s0 + $0x10c] sm:$0xf]
  %v82 = vld [vmem:[%s0 + $0x110] sm:$0xf]
  %v83 = vld [vmem:[%s0 + $0x114] sm:$0xf]
  %v84 = vld [vmem:[%s0 + $0x118] sm:$0xf]
  %v85 = vld [vmem:[%s0 + $0x11c] sm:$0xf]
  %v86 = vld [vmem:[%s0 + $0x120] sm:$0xf]
  %v87 = vld [vmem:[%s0 + $0x124] sm:$0xf]
  %v88 = vld [vmem:[%s0 + $0x128] sm:$0xf]
  %v89 = vld [vmem:[%s0 + $0x12c] sm:$0xf]
  %v90 = vld [vmem:[%s0 + $0x130] sm:$0xf]
  %v91 = vld [vmem:[%s0 + $0x134] sm:$0xf]
  %v92 = vld [vmem:[%s0 + $0x138] sm:$0xf]
  %v93 = vld [vmem:[%s0 + $0x13c] sm:$0xf]
  %v94 = vld [vmem:[%s0 + $0x140] sm:$0xf]
  %v95 = vld [vmem:[%s0 + $0x144] sm:$0xf]
  %v96 = vld [vmem:[%s0 + $0x148] sm:$0xf]
  %v97 = vld [vmem:[%s0 + $0x14c] sm:$0xf]
  %v98 = vld [vmem:[%s0 + $0x150] sm:$0xf]
  %v99 = vld [vmem:[%s0 + $0x154] sm:$0xf]
  %v100 = vld [vmem:[%s0 + $0x158] sm:$0xf]
  %v101 = vld [vmem:[%s0 + $0x15c] sm:$0xf]
  %v102 = vld [vmem:[%s0 + $0x160] sm:$0xf]
  %v103 = vld [vmem:[%s0 + $0x164] sm:$0xf]
  %v104 = vld [vmem:[%s0 + $0x168] sm:$0xf]
  %v105 = vld [vmem:[%s0 + $0x16c] sm:$0xf]
  %v106 = vld [vmem:[%s0 + $0x170] sm:$0xf]
  %v107 = vld [vmem:[%s0 + $0x174] sm:$0xf]
  %v108 = vld [vmem:[%s0 + $0x178] sm:$0xf]
  %v109 = vld [vmem:[%s0 + $0x17c] sm:$0xf]
  %v110 = vld [vmem:[%s0 + $0x180] sm:$0xf]
  %v111 = vld [vmem:[%s0 + $0x184] sm:$0xf]
  %v112 = vld [vmem:[%s0 + $0x188] sm:$0xf]
  %v113 = vld [vmem:[%s0 + $0x18c] sm:$0xf]
  %v114 = vld [vmem:[%s0 + $0x190] sm:$0xf]
  %v115 = vld [vmem:[%s0 + $0x194] sm:$0xf]
  %v116 = vld [vmem:[%s0 + $0x198] sm:$0xf]
  %v117 = vld [vmem:[%s0 + $0x19c] sm:$0xf]
  %v118 = vld [vmem:[%s0 + $0x1a0] sm:$0xf]
  %v119 = vld [vmem:[%s0 + $0x1a4] sm:$0xf]
  %v120 = vld [vmem:[%s0 + $0x1a8] sm:$0xf]
  %v121 = vld [vmem:[%s0 + $0x1ac] sm:$0xf]
  %v122 = vld [vmem:[%s0 + $0x1b0] sm:$0xf]
  %v123 = vld [vmem:[%s0 + $0x1b4] sm:$0xf]
  %v124 = vld [vmem:[%s0 + $0x1b8] sm:$0xf]
  %v125 = vld [vmem:[%s0 + $0x1bc] sm:$0xf]
  %v126 = vld [vmem:[%s0 + $0x1c0] sm:$0xf]
  %v127 = vld [vmem:[%s0 + $0x1c4] sm:$0xf]
  %v128 = vld [vmem:[%s0 + $0x1c8] sm:$0xf]
  %v129 = vld [vmem:[%s0 + $0x1cc] sm:$0xf]
  %v130 = vld [vmem:[%s0 + $0x1d0] sm:$0xf]
  %v131 = vld [vmem:[%s0 + $0x1d4] sm:$0xf]
  %v132 = vld [vmem:[%s0 + $0x1d8] sm:$0xf]
  %v133 = vld [vmem:[%s0 + $0x1dc] sm:$0xf]
  %v134 = vld [vmem:[%s0 + $0x1e0] sm:$0xf]
  %v135 = vunpack.c.l.bf16 %v14
  %v136 = vunpack.c.l.bf16 %v15
  %v137 = vunpack.c.l.bf16 %v16
  %v138 = vunpack.c.l.bf16 %v17
  %v139 = vunpack.c.l.bf16 %v18
  %v140 = vunpack.c.l.bf16 %v19
  %v141 = vunpack.c.l.bf16 %v20
  %v142 = vunpack.c.l.bf16 %v21
  %v143 = vunpack.c.l.bf16 %v22
  %v144 = vunpack.c.l.bf16 %v23
  %v145 = vunpack.c.l.bf16 %v24
  %v146 = vunpack.c.l.bf16 %v25
  %v147 = vunpack.c.l.bf16 %v26
  %v148 = vunpack.c.l.bf16 %v27
  %v149 = vunpack.c.l.bf16 %v28
  %v150 = vunpack.c.l.bf16 %v29
  %v151 = vunpack.c.l.bf16 %v30
  %v152 = vunpack.c.l.bf16 %v31
  %v153 = vunpack.c.l.bf16 %v32
  %v154 = vunpack.c.l.bf16 %v33
  %v155 = vunpack.c.l.bf16 %v34
  %v156 = vunpack.c.l.bf16 %v35
  %v157 = vunpack.c.l.bf16 %v36
  %v158 = vunpack.c.l.bf16 %v37
  %v159 = vunpack.c.l.bf16 %v38
  %v160 = vunpack.c.l.bf16 %v39
  %v161 = vunpack.c.l.bf16 %v40
  %v162 = vunpack.c.l.bf16 %v41
  %v163 = vunpack.c.l.bf16 %v42
  %v164 = vunpack.c.l.bf16 %v43
  %v165 = vunpack.c.l.bf16 %v44
  %v166 = vunpack.c.l.bf16 %v45
  %v167 = vunpack.c.l.bf16 %v46
  %v168 = vunpack.c.l.bf16 %v47
  %v169 = vunpack.c.l.bf16 %v48
  %v170 = vunpack.c.l.bf16 %v49
  %v171 = vunpack.c.l.bf16 %v50
  %v172 = vunpack.c.l.bf16 %v51
  %v173 = vunpack.c.l.bf16 %v52
  %v174 = vunpack.c.l.bf16 %v53
  %v175 = vunpack.c.l.bf16 %v54
  %v176 = vunpack.c.l.bf16 %v55
  %v177 = vunpack.c.l.bf16 %v56
  %v178 = vunpack.c.l.bf16 %v57
  %v179 = vunpack.c.l.bf16 %v58
  %v180 = vunpack.c.l.bf16 %v59
  %v181 = vunpack.c.l.bf16 %v60
  %v182 = vunpack.c.l.bf16 %v61
  %v183 = vunpack.c.l.bf16 %v62
  %v184 = vunpack.c.l.bf16 %v63
  %v185 = vunpack.c.l.bf16 %v64
  %v186 = vunpack.c.l.bf16 %v65
  %v187 = vunpack.c.l.bf16 %v66
  %v188 = vunpack.c.l.bf16 %v67
  %v189 = vunpack.c.l.bf16 %v68
  %v190 = vunpack.c.l.bf16 %v69
  %v191 = vunpack.c.l.bf16 %v70
  %v192 = vunpack.c.l.bf16 %v71
  %v193 = vunpack.c.l.bf16 %v72
  %v194 = vunpack.c.l.bf16 %v73
  %v195 = vunpack.c.l.bf16 %v74
  %v196 = vunpack.c.l.bf16 %v75
  %v197 = vunpack.c.l.bf16 %v76
  %v198 = vunpack.c.l.bf16 %v77
  %v199 = vunpack.c.l.bf16 %v78
  %v200 = vunpack.c.l.bf16 %v79
  %v201 = vunpack.c.l.bf16 %v80
  %v202 = vunpack.c.l.bf16 %v81
  %v203 = vunpack.c.l.bf16 %v82
  %v204 = vunpack.c.l.bf16 %v83
  %v205 = vunpack.c.l.bf16 %v84
  %v206 = vunpack.c.l.bf16 %v85
  %v207 = vunpack.c.l.bf16 %v86
  %v208 = vunpack.c.l.bf16 %v87
  %v209 = vunpack.c.l.bf16 %v88
  %v210 = vunpack.c.l.bf16 %v89
  %v211 = vunpack.c.l.bf16 %v90
  %v212 = vunpack.c.l.bf16 %v91
  %v213 = vunpack.c.l.bf16 %v92
  %v214 = vunpack.c.l.bf16 %v93
  %v215 = vunpack.c.l.bf16 %v94
  %v216 = vunpack.c.l.bf16 %v95
  %v217 = vunpack.c.l.bf16 %v96
  %v218 = vunpack.c.l.bf16 %v97
  %v219 = vunpack.c.l.bf16 %v98
  %v220 = vunpack.c.l.bf16 %v99
  %v221 = vunpack.c.l.bf16 %v100
  %v222 = vunpack.c.l.bf16 %v101
  %v223 = vunpack.c.l.bf16 %v102
  %v224 = vunpack.c.l.bf16 %v103
  %v225 = vunpack.c.l.bf16 %v104
  %v226 = vunpack.c.l.bf16 %v105
  %v227 = vunpack.c.l.bf16 %v106
  %v228 = vunpack.c.l.bf16 %v107
  %v229 = vunpack.c.l.bf16 %v108
  %v230 = vunpack.c.l.bf16 %v109
  %v231 = vunpack.c.l.bf16 %v110
  %v232 = vunpack.c.l.bf16 %v111
  %v233 = vunpack.c.l.bf16 %v112
  %v234 = vunpack.c.l.bf16 %v113
  %v235 = vunpack.c.l.bf16 %v114
  %v236 = vunpack.c.l.bf16 %v115
  %v237 = vunpack.c.l.bf16 %v116
  %v238 = vunpack.c.l.bf16 %v117
  %v239 = vunpack.c.l.bf16 %v118
  %v240 = vunpack.c.l.bf16 %v119
  %v241 = vunpack.c.l.bf16 %v120
  %v242 = vunpack.c.l.bf16 %v121
  %v243 = vunpack.c.l.bf16 %v122
  %v244 = vunpack.c.l.bf16 %v123
  %v245 = vunpack.c.l.bf16 %v124
  %v246 = vunpack.c.l.bf16 %v125
  %v247 = vunpack.c.l.bf16 %v126
  %v248 = vunpack.c.l.bf16 %v127
  %v249 = vunpack.c.l.bf16 %v128
  %v250 = vunpack.c.l.bf16 %v129
  %v251 = vunpack.c.l.bf16 %v130
  %v252 = vunpack.c.l.bf16 %v131
  %v253 = vunpack.c.l.bf16 %v132
  %v254 = vunpack.c.l.bf16 %v133
  %v255 = vunpack.c.l.bf16 %v134
  %v256 = vld [vmem:[%s1] sm:$0x1]
  %v258 = vperm.slane %v256, 0
  %v260 = vmul.f32 %v135, %v258
  %v261 = vmul.f32 %v136, %v258
  %v262 = vmul.f32 %v137, %v258
  %v263 = vmul.f32 %v138, %v258
  %v264 = vmul.f32 %v139, %v258
  %v265 = vmul.f32 %v140, %v258
  %v266 = vmul.f32 %v141, %v258
  %v267 = vmul.f32 %v142, %v258
  %v268 = vmul.f32 %v143, %v258
  %v269 = vmul.f32 %v144, %v258
  %v270 = vmul.f32 %v145, %v258
  %v271 = vmul.f32 %v146, %v258
  %v272 = vmul.f32 %v147, %v258
  %v273 = vmul.f32 %v148, %v258
  %v274 = vmul.f32 %v149, %v258
  %v275 = vmul.f32 %v150, %v258
  %v276 = vmul.f32 %v151, %v258
  %v277 = vmul.f32 %v152, %v258
  %v278 = vmul.f32 %v153, %v258
  %v279 = vmul.f32 %v154, %v258
  %v280 = vmul.f32 %v155, %v258
  %v281 = vmul.f32 %v156, %v258
  %v282 = vmul.f32 %v157, %v258
  %v283 = vmul.f32 %v158, %v258
  %v284 = vmul.f32 %v159, %v258
  %v285 = vmul.f32 %v160, %v258
  %v286 = vmul.f32 %v161, %v258
  %v287 = vmul.f32 %v162, %v258
  %v288 = vmul.f32 %v163, %v258
  %v289 = vmul.f32 %v164, %v258
  %v290 = vmul.f32 %v165, %v258
  %v291 = vmul.f32 %v166, %v258
  %v292 = vmul.f32 %v167, %v258
  %v293 = vmul.f32 %v168, %v258
  %v294 = vmul.f32 %v169, %v258
  %v295 = vmul.f32 %v170, %v258
  %v296 = vmul.f32 %v171, %v258
  %v297 = vmul.f32 %v172, %v258
  %v298 = vmul.f32 %v173, %v258
  %v299 = vmul.f32 %v174, %v258
  %v300 = vmul.f32 %v175, %v258
  %v301 = vmul.f32 %v176, %v258
  %v302 = vmul.f32 %v177, %v258
  %v303 = vmul.f32 %v178, %v258
  %v304 = vmul.f32 %v179, %v258
  %v305 = vmul.f32 %v180, %v258
  %v306 = vmul.f32 %v181, %v258
  %v307 = vmul.f32 %v182, %v258
  %v308 = vmul.f32 %v183, %v258
  %v309 = vmul.f32 %v184, %v258
  %v310 = vmul.f32 %v185, %v258
  %v311 = vmul.f32 %v186, %v258
  %v312 = vmul.f32 %v187, %v258
  %v313 = vmul.f32 %v188, %v258
  %v314 = vmul.f32 %v189, %v258
  %v315 = vmul.f32 %v190, %v258
  %v316 = vmul.f32 %v191, %v258
  %v317 = vmul.f32 %v192, %v258
  %v318 = vmul.f32 %v193, %v258
  %v319 = vmul.f32 %v194, %v258
  %v320 = vmul.f32 %v195, %v258
  %v321 = vmul.f32 %v196, %v258
  %v322 = vmul.f32 %v197, %v258
  %v323 = vmul.f32 %v198, %v258
  %v324 = vmul.f32 %v199, %v258
  %v325 = vmul.f32 %v200, %v258
  %v326 = vmul.f32 %v201, %v258
  %v327 = vmul.f32 %v202, %v258
  %v328 = vmul.f32 %v203, %v258
  %v329 = vmul.f32 %v204, %v258
  %v330 = vmul.f32 %v205, %v258
  %v331 = vmul.f32 %v206, %v258
  %v332 = vmul.f32 %v207, %v258
  %v333 = vmul.f32 %v208, %v258
  %v334 = vmul.f32 %v209, %v258
  %v335 = vmul.f32 %v210, %v258
  %v336 = vmul.f32 %v211, %v258
  %v337 = vmul.f32 %v212, %v258
  %v338 = vmul.f32 %v213, %v258
  %v339 = vmul.f32 %v214, %v258
  %v340 = vmul.f32 %v215, %v258
  %v341 = vmul.f32 %v216, %v258
  %v342 = vmul.f32 %v217, %v258
  %v343 = vmul.f32 %v218, %v258
  %v344 = vmul.f32 %v219, %v258
  %v345 = vmul.f32 %v220, %v258
  %v346 = vmul.f32 %v221, %v258
  %v347 = vmul.f32 %v222, %v258
  %v348 = vmul.f32 %v223, %v258
  %v349 = vmul.f32 %v224, %v258
  %v350 = vmul.f32 %v225, %v258
  %v351 = vmul.f32 %v226, %v258
  %v352 = vmul.f32 %v227, %v258
  %v353 = vmul.f32 %v228, %v258
  %v354 = vmul.f32 %v229, %v258
  %v355 = vmul.f32 %v230, %v258
  %v356 = vmul.f32 %v231, %v258
  %v357 = vmul.f32 %v232, %v258
  %v358 = vmul.f32 %v233, %v258
  %v359 = vmul.f32 %v234, %v258
  %v360 = vmul.f32 %v235, %v258
  %v361 = vmul.f32 %v236, %v258
  %v362 = vmul.f32 %v237, %v258
  %v363 = vmul.f32 %v238, %v258
  %v364 = vmul.f32 %v239, %v258
  %v365 = vmul.f32 %v240, %v258
  %v366 = vmul.f32 %v241, %v258
  %v367 = vmul.f32 %v242, %v258
  %v368 = vmul.f32 %v243, %v258
  %v369 = vmul.f32 %v244, %v258
  %v370 = vmul.f32 %v245, %v258
  %v371 = vmul.f32 %v246, %v258
  %v372 = vmul.f32 %v247, %v258
  %v373 = vmul.f32 %v248, %v258
  %v374 = vmul.f32 %v249, %v258
  %v375 = vmul.f32 %v250, %v258
  %v376 = vmul.f32 %v251, %v258
  %v377 = vmul.f32 %v252, %v258
  %v378 = vmul.f32 %v253, %v258
  %v379 = vmul.f32 %v254, %v258
  %v380 = vmul.f32 %v255, %v258
  %v381 = vld [vmem:[%s2] sm:$0x1]
  %v383 = vperm.slane %v381, 0
  %v385 = vadd.f32 %v260, %v383
  %v386 = vadd.f32 %v261, %v383
  %v387 = vadd.f32 %v262, %v383
  %v388 = vadd.f32 %v263, %v383
  %v389 = vadd.f32 %v264, %v383
  %v390 = vadd.f32 %v265, %v383
  %v391 = vadd.f32 %v266, %v383
  %v392 = vadd.f32 %v267, %v383
  %v393 = vadd.f32 %v268, %v383
  %v394 = vadd.f32 %v269, %v383
  %v395 = vadd.f32 %v270, %v383
  %v396 = vadd.f32 %v271, %v383
  %v397 = vadd.f32 %v272, %v383
  %v398 = vadd.f32 %v273, %v383
  %v399 = vadd.f32 %v274, %v383
  %v400 = vadd.f32 %v275, %v383
  %v401 = vadd.f32 %v276, %v383
  %v402 = vadd.f32 %v277, %v383
  %v403 = vadd.f32 %v278, %v383
  %v404 = vadd.f32 %v279, %v383
  %v405 = vadd.f32 %v280, %v383
  %v406 = vadd.f32 %v281, %v383
  %v407 = vadd.f32 %v282, %v383
  %v408 = vadd.f32 %v283, %v383
  %v409 = vadd.f32 %v284, %v383
  %v410 = vadd.f32 %v285, %v383
  %v411 = vadd.f32 %v286, %v383
  %v412 = vadd.f32 %v287, %v383
  %v413 = vadd.f32 %v288, %v383
  %v414 = vadd.f32 %v289, %v383
  %v415 = vadd.f32 %v290, %v383
  %v416 = vadd.f32 %v291, %v383
  %v417 = vadd.f32 %v292, %v383
  %v418 = vadd.f32 %v293, %v383
  %v419 = vadd.f32 %v294, %v383
  %v420 = vadd.f32 %v295, %v383
  %v421 = vadd.f32 %v296, %v383
  %v422 = vadd.f32 %v297, %v383
  %v423 = vadd.f32 %v298, %v383
  %v424 = vadd.f32 %v299, %v383
  %v425 = vadd.f32 %v300, %v383
  %v426 = vadd.f32 %v301, %v383
  %v427 = vadd.f32 %v302, %v383
  %v428 = vadd.f32 %v303, %v383
  %v429 = vadd.f32 %v304, %v383
  %v430 = vadd.f32 %v305, %v383
  %v431 = vadd.f32 %v306, %v383
  %v432 = vadd.f32 %v307, %v383
  %v433 = vadd.f32 %v308, %v383
  %v434 = vadd.f32 %v309, %v383
  %v435 = vadd.f32 %v310, %v383
  %v436 = vadd.f32 %v311, %v383
  %v437 = vadd.f32 %v312, %v383
  %v438 = vadd.f32 %v313, %v383
  %v439 = vadd.f32 %v314, %v383
  %v440 = vadd.f32 %v315, %v383
  %v441 = vadd.f32 %v316, %v383
  %v442 = vadd.f32 %v317, %v383
  %v443 = vadd.f32 %v318, %v383
  %v444 = vadd.f32 %v319, %v383
  %v445 = vadd.f32 %v320, %v383
  %v446 = vadd.f32 %v321, %v383
  %v447 = vadd.f32 %v322, %v383
  %v448 = vadd.f32 %v323, %v383
  %v449 = vadd.f32 %v324, %v383
  %v450 = vadd.f32 %v325, %v383
  %v451 = vadd.f32 %v326, %v383
  %v452 = vadd.f32 %v327, %v383
  %v453 = vadd.f32 %v328, %v383
  %v454 = vadd.f32 %v329, %v383
  %v455 = vadd.f32 %v330, %v383
  %v456 = vadd.f32 %v331, %v383
  %v457 = vadd.f32 %v332, %v383
  %v458 = vadd.f32 %v333, %v383
  %v459 = vadd.f32 %v334, %v383
  %v460 = vadd.f32 %v335, %v383
  %v461 = vadd.f32 %v336, %v383
  %v462 = vadd.f32 %v337, %v383
  %v463 = vadd.f32 %v338, %v383
  %v464 = vadd.f32 %v339, %v383
  %v465 = vadd.f32 %v340, %v383
  %v466 = vadd.f32 %v341, %v383
  %v467 = vadd.f32 %v342, %v383
  %v468 = vadd.f32 %v343, %v383
  %v469 = vadd.f32 %v344, %v383
  %v470 = vadd.f32 %v345, %v383
  %v471 = vadd.f32 %v346, %v383
  %v472 = vadd.f32 %v347, %v383
  %v473 = vadd.f32 %v348, %v383
  %v474 = vadd.f32 %v349, %v383
  %v475 = vadd.f32 %v350, %v383
  %v476 = vadd.f32 %v351, %v383
  %v477 = vadd.f32 %v352, %v383
  %v478 = vadd.f32 %v353, %v383
  %v479 = vadd.f32 %v354, %v383
  %v480 = vadd.f32 %v355, %v383
  %v481 = vadd.f32 %v356, %v383
  %v482 = vadd.f32 %v357, %v383
  %v483 = vadd.f32 %v358, %v383
  %v484 = vadd.f32 %v359, %v383
  %v485 = vadd.f32 %v360, %v383
  %v486 = vadd.f32 %v361, %v383
  %v487 = vadd.f32 %v362, %v383
  %v488 = vadd.f32 %v363, %v383
  %v489 = vadd.f32 %v364, %v383
  %v490 = vadd.f32 %v365, %v383
  %v491 = vadd.f32 %v366, %v383
  %v492 = vadd.f32 %v367, %v383
  %v493 = vadd.f32 %v368, %v383
  %v494 = vadd.f32 %v369, %v383
  %v495 = vadd.f32 %v370, %v383
  %v496 = vadd.f32 %v371, %v383
  %v497 = vadd.f32 %v372, %v383
  %v498 = vadd.f32 %v373, %v383
  %v499 = vadd.f32 %v374, %v383
  %v500 = vadd.f32 %v375, %v383
  %v501 = vadd.f32 %v376, %v383
  %v502 = vadd.f32 %v377, %v383
  %v503 = vadd.f32 %v378, %v383
  %v504 = vadd.f32 %v379, %v383
  %v505 = vadd.f32 %v380, %v383
  %v506 = vmax.f32 %v385, 0.0
  %v507 = vmax.f32 %v386, 0.0
  %v508 = vmax.f32 %v387, 0.0
  %v509 = vmax.f32 %v388, 0.0
  %v510 = vmax.f32 %v389, 0.0
  %v511 = vmax.f32 %v390, 0.0
  %v512 = vmax.f32 %v391, 0.0
  %v513 = vmax.f32 %v392, 0.0
  %v514 = vmax.f32 %v393, 0.0
  %v515 = vmax.f32 %v394, 0.0
  %v516 = vmax.f32 %v395, 0.0
  %v517 = vmax.f32 %v396, 0.0
  %v518 = vmax.f32 %v397, 0.0
  %v519 = vmax.f32 %v398, 0.0
  %v520 = vmax.f32 %v399, 0.0
  %v521 = vmax.f32 %v400, 0.0
  %v522 = vmax.f32 %v401, 0.0
  %v523 = vmax.f32 %v402, 0.0
  %v524 = vmax.f32 %v403, 0.0
  %v525 = vmax.f32 %v404, 0.0
  %v526 = vmax.f32 %v405, 0.0
  %v527 = vmax.f32 %v406, 0.0
  %v528 = vmax.f32 %v407, 0.0
  %v529 = vmax.f32 %v408, 0.0
  %v530 = vmax.f32 %v409, 0.0
  %v531 = vmax.f32 %v410, 0.0
  %v532 = vmax.f32 %v411, 0.0
  %v533 = vmax.f32 %v412, 0.0
  %v534 = vmax.f32 %v413, 0.0
  %v535 = vmax.f32 %v414, 0.0
  %v536 = vmax.f32 %v415, 0.0
  %v537 = vmax.f32 %v416, 0.0
  %v538 = vmax.f32 %v417, 0.0
  %v539 = vmax.f32 %v418, 0.0
  %v540 = vmax.f32 %v419, 0.0
  %v541 = vmax.f32 %v420, 0.0
  %v542 = vmax.f32 %v421, 0.0
  %v543 = vmax.f32 %v422, 0.0
  %v544 = vmax.f32 %v423, 0.0
  %v545 = vmax.f32 %v424, 0.0
  %v546 = vmax.f32 %v425, 0.0
  %v547 = vmax.f32 %v426, 0.0
  %v548 = vmax.f32 %v427, 0.0
  %v549 = vmax.f32 %v428, 0.0
  %v550 = vmax.f32 %v429, 0.0
  %v551 = vmax.f32 %v430, 0.0
  %v552 = vmax.f32 %v431, 0.0
  %v553 = vmax.f32 %v432, 0.0
  %v554 = vmax.f32 %v433, 0.0
  %v555 = vmax.f32 %v434, 0.0
  %v556 = vmax.f32 %v435, 0.0
  %v557 = vmax.f32 %v436, 0.0
  %v558 = vmax.f32 %v437, 0.0
  %v559 = vmax.f32 %v438, 0.0
  %v560 = vmax.f32 %v439, 0.0
  %v561 = vmax.f32 %v440, 0.0
  %v562 = vmax.f32 %v441, 0.0
  %v563 = vmax.f32 %v442, 0.0
  %v564 = vmax.f32 %v443, 0.0
  %v565 = vmax.f32 %v444, 0.0
  %v566 = vmax.f32 %v445, 0.0
  %v567 = vmax.f32 %v446, 0.0
  %v568 = vmax.f32 %v447, 0.0
  %v569 = vmax.f32 %v448, 0.0
  %v570 = vmax.f32 %v449, 0.0
  %v571 = vmax.f32 %v450, 0.0
  %v572 = vmax.f32 %v451, 0.0
  %v573 = vmax.f32 %v452, 0.0
  %v574 = vmax.f32 %v453, 0.0
  %v575 = vmax.f32 %v454, 0.0
  %v576 = vmax.f32 %v455, 0.0
  %v577 = vmax.f32 %v456, 0.0
  %v578 = vmax.f32 %v457, 0.0
  %v579 = vmax.f32 %v458, 0.0
  %v580 = vmax.f32 %v459, 0.0
  %v581 = vmax.f32 %v460, 0.0
  %v582 = vmax.f32 %v461, 0.0
  %v583 = vmax.f32 %v462, 0.0
  %v584 = vmax.f32 %v463, 0.0
  %v585 = vmax.f32 %v464, 0.0
  %v586 = vmax.f32 %v465, 0.0
  %v587 = vmax.f32 %v466, 0.0
  %v588 = vmax.f32 %v467, 0.0
  %v589 = vmax.f32 %v468, 0.0
  %v590 = vmax.f32 %v469, 0.0
  %v591 = vmax.f32 %v470, 0.0
  %v592 = vmax.f32 %v471, 0.0
  %v593 = vmax.f32 %v472, 0.0
  %v594 = vmax.f32 %v473, 0.0
  %v595 = vmax.f32 %v474, 0.0
  %v596 = vmax.f32 %v475, 0.0
  %v597 = vmax.f32 %v476, 0.0
  %v598 = vmax.f32 %v477, 0.0
  %v599 = vmax.f32 %v478, 0.0
  %v600 = vmax.f32 %v479, 0.0
  %v601 = vmax.f32 %v480, 0.0
  %v602 = vmax.f32 %v481, 0.0
  %v603 = vmax.f32 %v482, 0.0
  %v604 = vmax.f32 %v483, 0.0
  %v605 = vmax.f32 %v484, 0.0
  %v606 = vmax.f32 %v485, 0.0
  %v607 = vmax.f32 %v486, 0.0
  %v608 = vmax.f32 %v487, 0.0
  %v609 = vmax.f32 %v488, 0.0
  %v610 = vmax.f32 %v489, 0.0
  %v611 = vmax.f32 %v490, 0.0
  %v612 = vmax.f32 %v491, 0.0
  %v613 = vmax.f32 %v492, 0.0
  %v614 = vmax.f32 %v493, 0.0
  %v615 = vmax.f32 %v494, 0.0
  %v616 = vmax.f32 %v495, 0.0
  %v617 = vmax.f32 %v496, 0.0
  %v618 = vmax.f32 %v497, 0.0
  %v619 = vmax.f32 %v498, 0.0
  %v620 = vmax.f32 %v499, 0.0
  %v621 = vmax.f32 %v500, 0.0
  %v622 = vmax.f32 %v501, 0.0
  %v623 = vmax.f32 %v502, 0.0
  %v624 = vmax.f32 %v503, 0.0
  %v625 = vmax.f32 %v504, 0.0
  %v626 = vmax.f32 %v505, 0.0
  %v627 = vpack.c.bf16 %v506, %v506
  %v628 = vpack.c.bf16 %v507, %v507
  %v629 = vpack.c.bf16 %v508, %v508
  %v630 = vpack.c.bf16 %v509, %v509
  %v631 = vpack.c.bf16 %v510, %v510
  %v632 = vpack.c.bf16 %v511, %v511
  %v633 = vpack.c.bf16 %v512, %v512
  %v634 = vpack.c.bf16 %v513, %v513
  %v635 = vpack.c.bf16 %v514, %v514
  %v636 = vpack.c.bf16 %v515, %v515
  %v637 = vpack.c.bf16 %v516, %v516
  %v638 = vpack.c.bf16 %v517, %v517
  %v639 = vpack.c.bf16 %v518, %v518
  %v640 = vpack.c.bf16 %v519, %v519
  %v641 = vpack.c.bf16 %v520, %v520
  %v642 = vpack.c.bf16 %v521, %v521
  %v643 = vpack.c.bf16 %v522, %v522
  %v644 = vpack.c.bf16 %v523, %v523
  %v645 = vpack.c.bf16 %v524, %v524
  %v646 = vpack.c.bf16 %v525, %v525
  %v647 = vpack.c.bf16 %v526, %v526
  %v648 = vpack.c.bf16 %v527, %v527
  %v649 = vpack.c.bf16 %v528, %v528
  %v650 = vpack.c.bf16 %v529, %v529
  %v651 = vpack.c.bf16 %v530, %v530
  %v652 = vpack.c.bf16 %v531, %v531
  %v653 = vpack.c.bf16 %v532, %v532
  %v654 = vpack.c.bf16 %v533, %v533
  %v655 = vpack.c.bf16 %v534, %v534
  %v656 = vpack.c.bf16 %v535, %v535
  %v657 = vpack.c.bf16 %v536, %v536
  %v658 = vpack.c.bf16 %v537, %v537
  %v659 = vpack.c.bf16 %v538, %v538
  %v660 = vpack.c.bf16 %v539, %v539
  %v661 = vpack.c.bf16 %v540, %v540
  %v662 = vpack.c.bf16 %v541, %v541
  %v663 = vpack.c.bf16 %v542, %v542
  %v664 = vpack.c.bf16 %v543, %v543
  %v665 = vpack.c.bf16 %v544, %v544
  %v666 = vpack.c.bf16 %v545, %v545
  %v667 = vpack.c.bf16 %v546, %v546
  %v668 = vpack.c.bf16 %v547, %v547
  %v669 = vpack.c.bf16 %v548, %v548
  %v670 = vpack.c.bf16 %v549, %v549
  %v671 = vpack.c.bf16 %v550, %v550
  %v672 = vpack.c.bf16 %v551, %v551
  %v673 = vpack.c.bf16 %v552, %v552
  %v674 = vpack.c.bf16 %v553, %v553
  %v675 = vpack.c.bf16 %v554, %v554
  %v676 = vpack.c.bf16 %v555, %v555
  %v677 = vpack.c.bf16 %v556, %v556
  %v678 = vpack.c.bf16 %v557, %v557
  %v679 = vpack.c.bf16 %v558, %v558
  %v680 = vpack.c.bf16 %v559, %v559
  %v681 = vpack.c.bf16 %v560, %v560
  %v682 = vpack.c.bf16 %v561, %v561
  %v683 = vpack.c.bf16 %v562, %v562
  %v684 = vpack.c.bf16 %v563, %v563
  %v685 = vpack.c.bf16 %v564, %v564
  %v686 = vpack.c.bf16 %v565, %v565
  %v687 = vpack.c.bf16 %v566, %v566
  %v688 = vpack.c.bf16 %v567, %v567
  %v689 = vpack.c.bf16 %v568, %v568
  %v690 = vpack.c.bf16 %v569, %v569
  %v691 = vpack.c.bf16 %v570, %v570
  %v692 = vpack.c.bf16 %v571, %v571
  %v693 = vpack.c.bf16 %v572, %v572
  %v694 = vpack.c.bf16 %v573, %v573
  %v695 = vpack.c.bf16 %v574, %v574
  %v696 = vpack.c.bf16 %v575, %v575
  %v697 = vpack.c.bf16 %v576, %v576
  %v698 = vpack.c.bf16 %v577, %v577
  %v699 = vpack.c.bf16 %v578, %v578
  %v700 = vpack.c.bf16 %v579, %v579
  %v701 = vpack.c.bf16 %v580, %v580
  %v702 = vpack.c.bf16 %v581, %v581
  %v703 = vpack.c.bf16 %v582, %v582
  %v704 = vpack.c.bf16 %v583, %v583
  %v705 = vpack.c.bf16 %v584, %v584
  %v706 = vpack.c.bf16 %v585, %v585
  %v707 = vpack.c.bf16 %v586, %v586
  %v708 = vpack.c.bf16 %v587, %v587
  %v709 = vpack.c.bf16 %v588, %v588
  %v710 = vpack.c.bf16 %v589, %v589
  %v711 = vpack.c.bf16 %v590, %v590
  %v712 = vpack.c.bf16 %v591, %v591
  %v713 = vpack.c.bf16 %v592, %v592
  %v714 = vpack.c.bf16 %v593, %v593
  %v715 = vpack.c.bf16 %v594, %v594
  %v716 = vpack.c.bf16 %v595, %v595
  %v717 = vpack.c.bf16 %v596, %v596
  %v718 = vpack.c.bf16 %v597, %v597
  %v719 = vpack.c.bf16 %v598, %v598
  %v720 = vpack.c.bf16 %v599, %v599
  %v721 = vpack.c.bf16 %v600, %v600
  %v722 = vpack.c.bf16 %v601, %v601
  %v723 = vpack.c.bf16 %v602, %v602
  %v724 = vpack.c.bf16 %v603, %v603
  %v725 = vpack.c.bf16 %v604, %v604
  %v726 = vpack.c.bf16 %v605, %v605
  %v727 = vpack.c.bf16 %v606, %v606
  %v728 = vpack.c.bf16 %v607, %v607
  %v729 = vpack.c.bf16 %v608, %v608
  %v730 = vpack.c.bf16 %v609, %v609
  %v731 = vpack.c.bf16 %v610, %v610
  %v732 = vpack.c.bf16 %v611, %v611
  %v733 = vpack.c.bf16 %v612, %v612
  %v734 = vpack.c.bf16 %v613, %v613
  %v735 = vpack.c.bf16 %v614, %v614
  %v736 = vpack.c.bf16 %v615, %v615
  %v737 = vpack.c.bf16 %v616, %v616
  %v738 = vpack.c.bf16 %v617, %v617
  %v739 = vpack.c.bf16 %v618, %v618
  %v740 = vpack.c.bf16 %v619, %v619
  %v741 = vpack.c.bf16 %v620, %v620
  %v742 = vpack.c.bf16 %v621, %v621
  %v743 = vpack.c.bf16 %v622, %v622
  %v744 = vpack.c.bf16 %v623, %v623
  %v745 = vpack.c.bf16 %v624, %v624
  %v746 = vpack.c.bf16 %v625, %v625
  %v747 = vpack.c.bf16 %v626, %v626
  %748 = vst [vmem:[%s3] sm:$0xf] %v627
  %749 = vst [vmem:[%s3 + $0x4] sm:$0xf] %v628
  %750 = vst [vmem:[%s3 + $0x8] sm:$0xf] %v629
  %751 = vst [vmem:[%s3 + $0xc] sm:$0xf] %v630
  %752 = vst [vmem:[%s3 + $0x10] sm:$0xf] %v631
  %753 = vst [vmem:[%s3 + $0x14] sm:$0xf] %v632
  %754 = vst [vmem:[%s3 + $0x18] sm:$0xf] %v633
  %755 = vst [vmem:[%s3 + $0x1c] sm:$0xf] %v634
  %756 = vst [vmem:[%s3 + $0x20] sm:$0xf] %v635
  %757 = vst [vmem:[%s3 + $0x24] sm:$0xf] %v636
  %758 = vst [vmem:[%s3 + $0x28] sm:$0xf] %v637
  %759 = vst [vmem:[%s3 + $0x2c] sm:$0xf] %v638
  %760 = vst [vmem:[%s3 + $0x30] sm:$0xf] %v639
  %761 = vst [vmem:[%s3 + $0x34] sm:$0xf] %v640
  %762 = vst [vmem:[%s3 + $0x38] sm:$0xf] %v641
  %763 = vst [vmem:[%s3 + $0x3c] sm:$0xf] %v642
  %764 = vst [vmem:[%s3 + $0x40] sm:$0xf] %v643
  %765 = vst [vmem:[%s3 + $0x44] sm:$0xf] %v644
  %766 = vst [vmem:[%s3 + $0x48] sm:$0xf] %v645
  %767 = vst [vmem:[%s3 + $0x4c] sm:$0xf] %v646
  %768 = vst [vmem:[%s3 + $0x50] sm:$0xf] %v647
  %769 = vst [vmem:[%s3 + $0x54] sm:$0xf] %v648
  %770 = vst [vmem:[%s3 + $0x58] sm:$0xf] %v649
  %771 = vst [vmem:[%s3 + $0x5c] sm:$0xf] %v650
  %772 = vst [vmem:[%s3 + $0x60] sm:$0xf] %v651
  %773 = vst [vmem:[%s3 + $0x64] sm:$0xf] %v652
  %774 = vst [vmem:[%s3 + $0x68] sm:$0xf] %v653
  %775 = vst [vmem:[%s3 + $0x6c] sm:$0xf] %v654
  %776 = vst [vmem:[%s3 + $0x70] sm:$0xf] %v655
  %777 = vst [vmem:[%s3 + $0x74] sm:$0xf] %v656
  %778 = vst [vmem:[%s3 + $0x78] sm:$0xf] %v657
  %779 = vst [vmem:[%s3 + $0x7c] sm:$0xf] %v658
  %780 = vst [vmem:[%s3 + $0x80] sm:$0xf] %v659
  %781 = vst [vmem:[%s3 + $0x84] sm:$0xf] %v660
  %782 = vst [vmem:[%s3 + $0x88] sm:$0xf] %v661
  %783 = vst [vmem:[%s3 + $0x8c] sm:$0xf] %v662
  %784 = vst [vmem:[%s3 + $0x90] sm:$0xf] %v663
  %785 = vst [vmem:[%s3 + $0x94] sm:$0xf] %v664
  %786 = vst [vmem:[%s3 + $0x98] sm:$0xf] %v665
  %787 = vst [vmem:[%s3 + $0x9c] sm:$0xf] %v666
  %788 = vst [vmem:[%s3 + $0xa0] sm:$0xf] %v667
  %789 = vst [vmem:[%s3 + $0xa4] sm:$0xf] %v668
  %790 = vst [vmem:[%s3 + $0xa8] sm:$0xf] %v669
  %791 = vst [vmem:[%s3 + $0xac] sm:$0xf] %v670
  %792 = vst [vmem:[%s3 + $0xb0] sm:$0xf] %v671
  %793 = vst [vmem:[%s3 + $0xb4] sm:$0xf] %v672
  %794 = vst [vmem:[%s3 + $0xb8] sm:$0xf] %v673
  %795 = vst [vmem:[%s3 + $0xbc] sm:$0xf] %v674
  %796 = vst [vmem:[%s3 + $0xc0] sm:$0xf] %v675
  %797 = vst [vmem:[%s3 + $0xc4] sm:$0xf] %v676
  %798 = vst [vmem:[%s3 + $0xc8] sm:$0xf] %v677
  %799 = vst [vmem:[%s3 + $0xcc] sm:$0xf] %v678
  %800 = vst [vmem:[%s3 + $0xd0] sm:$0xf] %v679
  %801 = vst [vmem:[%s3 + $0xd4] sm:$0xf] %v680
  %802 = vst [vmem:[%s3 + $0xd8] sm:$0xf] %v681
  %803 = vst [vmem:[%s3 + $0xdc] sm:$0xf] %v682
  %804 = vst [vmem:[%s3 + $0xe0] sm:$0xf] %v683
  %805 = vst [vmem:[%s3 + $0xe4] sm:$0xf] %v684
  %806 = vst [vmem:[%s3 + $0xe8] sm:$0xf] %v685
  %807 = vst [vmem:[%s3 + $0xec] sm:$0xf] %v686
  %808 = vst [vmem:[%s3 + $0xf0] sm:$0xf] %v687
  %809 = vst [vmem:[%s3 + $0xf4] sm:$0xf] %v688
  %810 = vst [vmem:[%s3 + $0xf8] sm:$0xf] %v689
  %811 = vst [vmem:[%s3 + $0xfc] sm:$0xf] %v690
  %812 = vst [vmem:[%s3 + $0x100] sm:$0xf] %v691
  %813 = vst [vmem:[%s3 + $0x104] sm:$0xf] %v692
  %814 = vst [vmem:[%s3 + $0x108] sm:$0xf] %v693
  %815 = vst [vmem:[%s3 + $0x10c] sm:$0xf] %v694
  %816 = vst [vmem:[%s3 + $0x110] sm:$0xf] %v695
  %817 = vst [vmem:[%s3 + $0x114] sm:$0xf] %v696
  %818 = vst [vmem:[%s3 + $0x118] sm:$0xf] %v697
  %819 = vst [vmem:[%s3 + $0x11c] sm:$0xf] %v698
  %820 = vst [vmem:[%s3 + $0x120] sm:$0xf] %v699
  %821 = vst [vmem:[%s3 + $0x124] sm:$0xf] %v700
  %822 = vst [vmem:[%s3 + $0x128] sm:$0xf] %v701
  %823 = vst [vmem:[%s3 + $0x12c] sm:$0xf] %v702
  %824 = vst [vmem:[%s3 + $0x130] sm:$0xf] %v703
  %825 = vst [vmem:[%s3 + $0x134] sm:$0xf] %v704
  %826 = vst [vmem:[%s3 + $0x138] sm:$0xf] %v705
  %827 = vst [vmem:[%s3 + $0x13c] sm:$0xf] %v706
  %828 = vst [vmem:[%s3 + $0x140] sm:$0xf] %v707
  %829 = vst [vmem:[%s3 + $0x144] sm:$0xf] %v708
  %830 = vst [vmem:[%s3 + $0x148] sm:$0xf] %v709
  %831 = vst [vmem:[%s3 + $0x14c] sm:$0xf] %v710
  %832 = vst [vmem:[%s3 + $0x150] sm:$0xf] %v711
  %833 = vst [vmem:[%s3 + $0x154] sm:$0xf] %v712
  %834 = vst [vmem:[%s3 + $0x158] sm:$0xf] %v713
  %835 = vst [vmem:[%s3 + $0x15c] sm:$0xf] %v714
  %836 = vst [vmem:[%s3 + $0x160] sm:$0xf] %v715
  %837 = vst [vmem:[%s3 + $0x164] sm:$0xf] %v716
  %838 = vst [vmem:[%s3 + $0x168] sm:$0xf] %v717
  %839 = vst [vmem:[%s3 + $0x16c] sm:$0xf] %v718
  %840 = vst [vmem:[%s3 + $0x170] sm:$0xf] %v719
  %841 = vst [vmem:[%s3 + $0x174] sm:$0xf] %v720
  %842 = vst [vmem:[%s3 + $0x178] sm:$0xf] %v721
  %843 = vst [vmem:[%s3 + $0x17c] sm:$0xf] %v722
  %844 = vst [vmem:[%s3 + $0x180] sm:$0xf] %v723
  %845 = vst [vmem:[%s3 + $0x184] sm:$0xf] %v724
  %846 = vst [vmem:[%s3 + $0x188] sm:$0xf] %v725
  %847 = vst [vmem:[%s3 + $0x18c] sm:$0xf] %v726
  %848 = vst [vmem:[%s3 + $0x190] sm:$0xf] %v727
  %849 = vst [vmem:[%s3 + $0x194] sm:$0xf] %v728
  %850 = vst [vmem:[%s3 + $0x198] sm:$0xf] %v729
  %851 = vst [vmem:[%s3 + $0x19c] sm:$0xf] %v730
  %852 = vst [vmem:[%s3 + $0x1a0] sm:$0xf] %v731
  %853 = vst [vmem:[%s3 + $0x1a4] sm:$0xf] %v732
  %854 = vst [vmem:[%s3 + $0x1a8] sm:$0xf] %v733
  %855 = vst [vmem:[%s3 + $0x1ac] sm:$0xf] %v734
  %856 = vst [vmem:[%s3 + $0x1b0] sm:$0xf] %v735
  %857 = vst [vmem:[%s3 + $0x1b4] sm:$0xf] %v736
  %858 = vst [vmem:[%s3 + $0x1b8] sm:$0xf] %v737
  %859 = vst [vmem:[%s3 + $0x1bc] sm:$0xf] %v738
  %860 = vst [vmem:[%s3 + $0x1c0] sm:$0xf] %v739
  %861 = vst [vmem:[%s3 + $0x1c4] sm:$0xf] %v740
  %862 = vst [vmem:[%s3 + $0x1c8] sm:$0xf] %v741
  %863 = vst [vmem:[%s3 + $0x1cc] sm:$0xf] %v742
  %864 = vst [vmem:[%s3 + $0x1d0] sm:$0xf] %v743
  %865 = vst [vmem:[%s3 + $0x1d4] sm:$0xf] %v744
  %866 = vst [vmem:[%s3 + $0x1d8] sm:$0xf] %v745
  %867 = vst [vmem:[%s3 + $0x1dc] sm:$0xf] %v746
  %868 = vst [vmem:[%s3 + $0x1e0] sm:$0xf] %v747
  // Predicated region
  $region14: #{dc_generator_forward.16} parent=0 // pred_check
    _
  $region15: #{dc_generator_forward.16} parent=0 // pred_check_branch
    %870 = sbr.rel (0) target = $region17
  $region16: #{dc_generator_forward.16} parent=0 // pred_region
    _
  $region17: #{dc_generator_forward.16} parent=0 // pred_fallthru
    _
  // Predicated region
  $region18: #{dc_generator_forward.16} parent=0 // pred_check
    _
  $region19: #{dc_generator_forward.16} parent=0 // pred_check_branch
    %872 = sbr.rel (0) target = $region21
  $region20: #{dc_generator_forward.16} parent=0 // pred_region
    _
  $region21: #{dc_generator_forward.16} parent=0 // pred_fallthru
    _

// kernel: dc_generator_forward.17
$region0: #{dc_generator_forward.17}
  #allocation0 [shape = 'u32[]', space=smem, size = 0x4, offset = 0x4, fixed_abs, tag = 'smem constant byte address 0x4 - core index']
  #allocation1 [shape = 'u32[72,128]{1,0:T(1,128)}', space=vmem, size = 0x9000, scoped, tag = 'internal scratch']
  %s0 = inlined_call_operand.vmem [shape: bf16[4064,32], index: 0, kind: input, shape index: {}]
  %s1 = inlined_call_operand.vmem [shape: bf16[32,128], index: 1, kind: input, shape index: {}]
  %s2 = inlined_call_operand.vmem [shape: f32[1,128], index: 2, kind: input, shape index: {}]
  %s3 = inlined_call_operand.vmem [shape: f32[4064,128], index: 3, kind: output, shape index: {}]
  %s4 = sld [smem:[#allocation0]]
  $region45: #{dc_generator_forward.17} parent=0
    _
  %s6 = ssub.s32 1, %s4
  %s7 = scalar_select 0, %s6, %s4
  loop: start=0, step=1, limit=4
  $region2: #{dc_generator_forward.17} parent=0 // loop_pre_header
    _
  $region3: #{dc_generator_forward.17} parent=0 // loop_header
    %s9 = sphi 0, %s13
    %p10 = scmp.ge.s32.totalorder %s9, 4
    %s19 = sphi 0, %s21
    %s22 = sphi 0, %s19
    %s23 = sphi 0, %s22
    %s39 = sphi 0, %s23
    %s43 = sphi 0, %s43
    %s45 = sphi 0, %s43
    %s46 = sphi 0, %s45
    %s60 = sphi 0, %s46
    %s64 = sphi 0, %s64
    %s66 = sphi 0, %s64
    %s67 = sphi 0, %s66
    %s81 = sphi 0, %s67
    %s87 = sphi 0, %s89
    %s90 = sphi 0, %s87
    %s91 = sphi 0, %s90
    %s107 = sphi 0, %s91
  $region4: #{dc_generator_forward.17} parent=0 // loop_header_branch
    %12 = sbr.rel (%p10) target = $region8
  $region5: #{dc_generator_forward.17} parent=0 // loop_body
    %s14 = ssub.s32 %s9, 1
    %s15 = ssub.s32 %s9, 2
    %s16 = sadd.s32 %s9, 1
    %s17 = ssub.s32 %s9, %s16
    %p18 = scmp.eq.s32.totalorder %s17, 0
    %s20 = sadd.s32 %s19, 1
    %s21 = scalar_select %p18, %s19, %s20
    %p24 = pneg %p18
    %p25 = scmp.eq.s32.totalorder %s9, 1
    %p26 = por %p24, %p25
    %p27 = scmp.ne.s32.totalorder %s19, %s22
    %p28 = scmp.eq.s32.totalorder %s9, 0
    %p29 = por %p27, %p28
    %p30 = scmp.ne.s32.totalorder %s19, %s22
    %p31 = scmp.eq.s32.totalorder %s14, 1
    %p32 = por %p30, %p31
    %p33 = scmp.ne.s32.totalorder %s22, %s23
    %p34 = scmp.eq.s32.totalorder %s14, 0
    %p35 = por %p33, %p34
    %p36 = scmp.ne.s32.totalorder %s22, %s23
    %p37 = scmp.eq.s32.totalorder %s15, 1
    %p38 = por %p36, %p37
    %p40 = scmp.ne.s32.totalorder %s23, %s39
    %p41 = scmp.eq.s32.totalorder %s15, 0
    %p42 = por %p40, %p41
    %s44 = sadd.s32 %s43, 1
    %p47 = scmp.eq.s32.totalorder %s9, 1
    %p48 = scmp.ne.s32.totalorder %s43, %s45
    %p49 = scmp.eq.s32.totalorder %s9, 0
    %p50 = por %p48, %p49
    %p51 = scmp.ne.s32.totalorder %s43, %s45
    %p52 = scmp.eq.s32.totalorder %s14, 1
    %p53 = por %p51, %p52
    %p54 = scmp.ne.s32.totalorder %s45, %s46
    %p55 = scmp.eq.s32.totalorder %s14, 0
    %p56 = por %p54, %p55
    %p57 = scmp.ne.s32.totalorder %s45, %s46
    %p58 = scmp.eq.s32.totalorder %s15, 1
    %p59 = por %p57, %p58
    %p61 = scmp.ne.s32.totalorder %s46, %s60
    %p62 = scmp.eq.s32.totalorder %s15, 0
    %p63 = por %p61, %p62
    %s65 = sadd.s32 %s64, 1
    %p68 = scmp.eq.s32.totalorder %s9, 1
    %p69 = scmp.ne.s32.totalorder %s64, %s66
    %p70 = scmp.eq.s32.totalorder %s9, 0
    %p71 = por %p69, %p70
    %p72 = scmp.ne.s32.totalorder %s64, %s66
    %p73 = scmp.eq.s32.totalorder %s14, 1
    %p74 = por %p72, %p73
    %p75 = scmp.ne.s32.totalorder %s66, %s67
    %p76 = scmp.eq.s32.totalorder %s14, 0
    %p77 = por %p75, %p76
    %p78 = scmp.ne.s32.totalorder %s66, %s67
    %p79 = scmp.eq.s32.totalorder %s15, 1
    %p80 = por %p78, %p79
    %p82 = scmp.ne.s32.totalorder %s67, %s81
    %p83 = scmp.eq.s32.totalorder %s15, 0
    %p84 = por %p82, %p83
    %s85 = ssub.s32 %s9, %s16
    %p86 = scmp.eq.s32.totalorder %s85, 0
    %s88 = sadd.s32 %s87, 1
    %s89 = scalar_select %p86, %s87, %s88
    %p92 = pneg %p86
    %p93 = scmp.eq.s32.totalorder %s9, 1
    %p94 = por %p92, %p93
    %p95 = scmp.ne.s32.totalorder %s87, %s90
    %p96 = scmp.eq.s32.totalorder %s9, 0
    %p97 = por %p95, %p96
    %p98 = scmp.ne.s32.totalorder %s87, %s90
    %p99 = scmp.eq.s32.totalorder %s14, 1
    %p100 = por %p98, %p99
    %p101 = scmp.ne.s32.totalorder %s90, %s91
    %p102 = scmp.eq.s32.totalorder %s14, 0
    %p103 = por %p101, %p102
    %p104 = scmp.ne.s32.totalorder %s90, %s91
    %p105 = scmp.eq.s32.totalorder %s15, 1
    %p106 = por %p104, %p105
    %p108 = scmp.ne.s32.totalorder %s91, %s107
    %p109 = scmp.eq.s32.totalorder %s15, 0
    %p110 = por %p108, %p109
    %p111 = scmp.le.s32.totalorder 1, %s9
    %p112 = scmp.lt.s32.totalorder %s9, 3
    %p113 = pnand %p111, %p112
    %p114 = pneg %p113
    // Predicated region
    $region9: #{dc_generator_forward.17} parent=5 // pred_check
      _
    $region10: #{dc_generator_forward.17} parent=5 // pred_check_branch
      %116 = sbr.rel (%p113) target = $region12
    $region11: #{dc_generator_forward.17} parent=5 // pred_region
      %s117 = ssub.s32 %s9, 1
      // Predicated region
      $region13: #{dc_generator_forward.17} parent=11 // pred_check
        %p118 = pneg %p56
      $region14: #{dc_generator_forward.17} parent=11 // pred_check_branch
        %120 = sbr.rel (%p118) target = $region16
      $region15: #{dc_generator_forward.17} parent=11 // pred_region
        _
      $region16: #{dc_generator_forward.17} parent=11 // pred_fallthru
        _
      // Predicated region
      $region17: #{dc_generator_forward.17} parent=11 // pred_check
        %p121 = pneg %p77
      $region18: #{dc_generator_forward.17} parent=11 // pred_check_branch
        %123 = sbr.rel (%p121) target = $region20
      $region19: #{dc_generator_forward.17} parent=11 // pred_region
        _
      $region20: #{dc_generator_forward.17} parent=11 // pred_fallthru
        _
    $region12: #{dc_generator_forward.17} parent=5 // pred_fallthru
      _
    %p124 = scmp.lt.s32.totalorder %s9, 2
    // Predicated region
    $region21: #{dc_generator_forward.17} parent=5 // pred_check
      %p125 = pneg %p124
    $region22: #{dc_generator_forward.17} parent=5 // pred_check_branch
      %127 = sbr.rel (%p125) target = $region24
    $region23: #{dc_generator_forward.17} parent=5 // pred_region
      // Predicated region
      $region25: #{dc_generator_forward.17} parent=23 // pred_check
        %p128 = pneg %p29
      $region26: #{dc_generator_forward.17} parent=23 // pred_check_branch
        %130 = sbr.rel (%p128) target = $region28
      $region27: #{dc_generator_forward.17} parent=23 // pred_region
        %s131 = smul.u32 254, %s9
        %p132 = scmp.lt.s32.totalorder %s131, 507
        %s133 = scalar_select %p132, %s131, 507
        %s134 = smul.addr %s133, 4
        %s135 = scalar_lea.vmem %s0, %s134
        %s136 = smul.u32 254, %s9
      $region28: #{dc_generator_forward.17} parent=23 // pred_fallthru
        _
    $region24: #{dc_generator_forward.17} parent=5 // pred_fallthru
      _
    %p137 = scmp.le.s32.totalorder 1, %s9
    %p138 = scmp.lt.s32.totalorder %s9, 3
    %p139 = pnand %p137, %p138
    %p140 = pneg %p139
    // Predicated region
    $region29: #{dc_generator_forward.17} parent=5 // pred_check
      _
    $region30: #{dc_generator_forward.17} parent=5 // pred_check_branch
      %142 = sbr.rel (%p139) target = $region32
    $region31: #{dc_generator_forward.17} parent=5 // pred_region
      %s143 = ssub.s32 %s9, 1
      %s144 = smul.u32 254, %s14
      %p145 = scmp.lt.s32.totalorder %s144, 507
      %s146 = scalar_select %p145, %s144, 507
      %s147 = smul.addr %s146, 4
      %s148 = scalar_lea.vmem %s0, %s147
      %p149 = pneg %p35
      %p150 = pneg %p32
      %p151 = pneg %p56
      %p152 = pneg %p53
      %p153 = pneg %p77
      %p154 = pneg %p74
      %p155 = pneg %p103
      %p156 = pneg %p100
      %s157 = smul.u32 254, %s14
      %p158 = scmp.lt.s32.totalorder %s157, 507
      %s159 = scalar_select %p158, %s157, 507
      %s160 = smul.addr %s159, 8
      %s161 = scalar_lea.vmem %s3, %s160
      %s162 = smul.u32 254, %s14
      %p163 = scmp.lt.s32.totalorder %s162, 507
      %s164 = scalar_select %p163, %s162, 507
      %s165 = smul.addr %s164, 4
      %s166 = scalar_lea.vmem %s0, %s165
      %s167 = smul.u32 254, %s14
      %s168 = smul.u32 254, %s14
      %p169 = scmp.lt.s32.totalorder %s168, 507
      %s170 = scalar_select %p169, %s168, 507
      %s171 = smul.addr %s170, 8
      %s172 = scalar_lea.vmem %s3, %s171
      %s173 = smul.u32 254, %s14
      %v175 = vld [vmem:[%s166] sm:$0xf]
      %v176 = vld [vmem:[%s166 + $0x4] sm:$0xf]
      %v177 = vld [vmem:[%s166 + $0x8] sm:$0xf]
      %v178 = vld [vmem:[%s166 + $0xc] sm:$0xf]
      %v179 = vld [vmem:[%s166 + $0x10] sm:$0xf]
      %v180 = vld [vmem:[%s166 + $0x14] sm:$0xf]
      %v181 = vld [vmem:[%s166 + $0x18] sm:$0xf]
      %v182 = vld [vmem:[%s166 + $0x1c] sm:$0xf]
      %v183 = vld [vmem:[%s166 + $0x20] sm:$0xf]
      %v184 = vld [vmem:[%s166 + $0x24] sm:$0xf]
      %v185 = vld [vmem:[%s166 + $0x28] sm:$0xf]
      %v186 = vld [vmem:[%s166 + $0x2c] sm:$0xf]
      %v187 = vld [vmem:[%s166 + $0x30] sm:$0xf]
      %v188 = vld [vmem:[%s166 + $0x34] sm:$0xf]
      %v189 = vld [vmem:[%s166 + $0x38] sm:$0xf]
      %v190 = vld [vmem:[%s166 + $0x3c] sm:$0xf]
      %v191 = vld [vmem:[%s166 + $0x40] sm:$0xf]
      %v192 = vld [vmem:[%s166 + $0x44] sm:$0xf]
      %v193 = vld [vmem:[%s166 + $0x48] sm:$0xf]
      %v194 = vld [vmem:[%s166 + $0x4c] sm:$0xf]
      %v195 = vld [vmem:[%s166 + $0x50] sm:$0xf]
      %v196 = vld [vmem:[%s166 + $0x54] sm:$0xf]
      %v197 = vld [vmem:[%s166 + $0x58] sm:$0xf]
      %v198 = vld [vmem:[%s166 + $0x5c] sm:$0xf]
      %v199 = vld [vmem:[%s166 + $0x60] sm:$0xf]
      %v200 = vld [vmem:[%s166 + $0x64] sm:$0xf]
      %v201 = vld [vmem:[%s166 + $0x68] sm:$0xf]
      %v202 = vld [vmem:[%s166 + $0x6c] sm:$0xf]
      %v203 = vld [vmem:[%s166 + $0x70] sm:$0xf]
      %v204 = vld [vmem:[%s166 + $0x74] sm:$0xf]
      %v205 = vld [vmem:[%s166 + $0x78] sm:$0xf]
      %v206 = vld [vmem:[%s166 + $0x7c] sm:$0xf]
      %v207 = vld [vmem:[%s166 + $0x80] sm:$0xf]
      %v208 = vld [vmem:[%s166 + $0x84] sm:$0xf]
      %v209 = vld [vmem:[%s166 + $0x88] sm:$0xf]
      %v210 = vld [vmem:[%s166 + $0x8c] sm:$0xf]
      %v211 = vld [vmem:[%s166 + $0x90] sm:$0xf]
      %v212 = vld [vmem:[%s166 + $0x94] sm:$0xf]
      %v213 = vld [vmem:[%s166 + $0x98] sm:$0xf]
      %v214 = vld [vmem:[%s166 + $0x9c] sm:$0xf]
      %v215 = vld [vmem:[%s166 + $0xa0] sm:$0xf]
      %v216 = vld [vmem:[%s166 + $0xa4] sm:$0xf]
      %v217 = vld [vmem:[%s166 + $0xa8] sm:$0xf]
      %v218 = vld [vmem:[%s166 + $0xac] sm:$0xf]
      %v219 = vld [vmem:[%s166 + $0xb0] sm:$0xf]
      %v220 = vld [vmem:[%s166 + $0xb4] sm:$0xf]
      %v221 = vld [vmem:[%s166 + $0xb8] sm:$0xf]
      %v222 = vld [vmem:[%s166 + $0xbc] sm:$0xf]
      %v223 = vld [vmem:[%s166 + $0xc0] sm:$0xf]
      %v224 = vld [vmem:[%s166 + $0xc4] sm:$0xf]
      %v225 = vld [vmem:[%s166 + $0xc8] sm:$0xf]
      %v226 = vld [vmem:[%s166 + $0xcc] sm:$0xf]
      %v227 = vld [vmem:[%s166 + $0xd0] sm:$0xf]
      %v228 = vld [vmem:[%s166 + $0xd4] sm:$0xf]
      %v229 = vld [vmem:[%s166 + $0xd8] sm:$0xf]
      %v230 = vld [vmem:[%s166 + $0xdc] sm:$0xf]
      %v231 = vld [vmem:[%s166 + $0xe0] sm:$0xf]
      %v232 = vld [vmem:[%s166 + $0xe4] sm:$0xf]
      %v233 = vld [vmem:[%s166 + $0xe8] sm:$0xf]
      %v234 = vld [vmem:[%s166 + $0xec] sm:$0xf]
      %v235 = vld [vmem:[%s166 + $0xf0] sm:$0xf]
      %v236 = vld [vmem:[%s166 + $0xf4] sm:$0xf]
      %v237 = vld [vmem:[%s166 + $0xf8] sm:$0xf]
      %v238 = vld [vmem:[%s166 + $0xfc] sm:$0xf]
      %v239 = vld [vmem:[%s166 + $0x100] sm:$0xf]
      %v240 = vld [vmem:[%s166 + $0x104] sm:$0xf]
      %v241 = vld [vmem:[%s166 + $0x108] sm:$0xf]
      %v242 = vld [vmem:[%s166 + $0x10c] sm:$0xf]
      %v243 = vld [vmem:[%s166 + $0x110] sm:$0xf]
      %v244 = vld [vmem:[%s166 + $0x114] sm:$0xf]
      %v245 = vld [vmem:[%s166 + $0x118] sm:$0xf]
      %v246 = vld [vmem:[%s166 + $0x11c] sm:$0xf]
      %v247 = vld [vmem:[%s166 + $0x120] sm:$0xf]
      %v248 = vld [vmem:[%s166 + $0x124] sm:$0xf]
      %v249 = vld [vmem:[%s166 + $0x128] sm:$0xf]
      %v250 = vld [vmem:[%s166 + $0x12c] sm:$0xf]
      %v251 = vld [vmem:[%s166 + $0x130] sm:$0xf]
      %v252 = vld [vmem:[%s166 + $0x134] sm:$0xf]
      %v253 = vld [vmem:[%s166 + $0x138] sm:$0xf]
      %v254 = vld [vmem:[%s166 + $0x13c] sm:$0xf]
      %v255 = vld [vmem:[%s166 + $0x140] sm:$0xf]
      %v256 = vld [vmem:[%s166 + $0x144] sm:$0xf]
      %v257 = vld [vmem:[%s166 + $0x148] sm:$0xf]
      %v258 = vld [vmem:[%s166 + $0x14c] sm:$0xf]
      %v259 = vld [vmem:[%s166 + $0x150] sm:$0xf]
      %v260 = vld [vmem:[%s166 + $0x154] sm:$0xf]
      %v261 = vld [vmem:[%s166 + $0x158] sm:$0xf]
      %v262 = vld [vmem:[%s166 + $0x15c] sm:$0xf]
      %v263 = vld [vmem:[%s166 + $0x160] sm:$0xf]
      %v264 = vld [vmem:[%s166 + $0x164] sm:$0xf]
      %v265 = vld [vmem:[%s166 + $0x168] sm:$0xf]
      %v266 = vld [vmem:[%s166 + $0x16c] sm:$0xf]
      %v267 = vld [vmem:[%s166 + $0x170] sm:$0xf]
      %v268 = vld [vmem:[%s166 + $0x174] sm:$0xf]
      %v269 = vld [vmem:[%s166 + $0x178] sm:$0xf]
      %v270 = vld [vmem:[%s166 + $0x17c] sm:$0xf]
      %v271 = vld [vmem:[%s166 + $0x180] sm:$0xf]
      %v272 = vld [vmem:[%s166 + $0x184] sm:$0xf]
      %v273 = vld [vmem:[%s166 + $0x188] sm:$0xf]
      %v274 = vld [vmem:[%s166 + $0x18c] sm:$0xf]
      %v275 = vld [vmem:[%s166 + $0x190] sm:$0xf]
      %v276 = vld [vmem:[%s166 + $0x194] sm:$0xf]
      %v277 = vld [vmem:[%s166 + $0x198] sm:$0xf]
      %v278 = vld [vmem:[%s166 + $0x19c] sm:$0xf]
      %v279 = vld [vmem:[%s166 + $0x1a0] sm:$0xf]
      %v280 = vld [vmem:[%s166 + $0x1a4] sm:$0xf]
      %v281 = vld [vmem:[%s166 + $0x1a8] sm:$0xf]
      %v282 = vld [vmem:[%s166 + $0x1ac] sm:$0xf]
      %v283 = vld [vmem:[%s166 + $0x1b0] sm:$0xf]
      %v284 = vld [vmem:[%s166 + $0x1b4] sm:$0xf]
      %v285 = vld [vmem:[%s166 + $0x1b8] sm:$0xf]
      %v286 = vld [vmem:[%s166 + $0x1bc] sm:$0xf]
      %v287 = vld [vmem:[%s166 + $0x1c0] sm:$0xf]
      %v288 = vld [vmem:[%s166 + $0x1c4] sm:$0xf]
      %v289 = vld [vmem:[%s166 + $0x1c8] sm:$0xf]
      %v290 = vld [vmem:[%s166 + $0x1cc] sm:$0xf]
      %v291 = vld [vmem:[%s166 + $0x1d0] sm:$0xf]
      %v292 = vld [vmem:[%s166 + $0x1d4] sm:$0xf]
      %v293 = vld [vmem:[%s166 + $0x1d8] sm:$0xf]
      %v294 = vld [vmem:[%s166 + $0x1dc] sm:$0xf]
      %v295 = vld [vmem:[%s166 + $0x1e0] sm:$0xf]
      %v296 = vld [vmem:[%s166 + $0x1e4] sm:$0xf]
      %v297 = vld [vmem:[%s166 + $0x1e8] sm:$0xf]
      %v298 = vld [vmem:[%s166 + $0x1ec] sm:$0xf]
      %v299 = vld [vmem:[%s166 + $0x1f0] sm:$0xf]
      %v300 = vld [vmem:[%s166 + $0x1f4] sm:$0xf]
      %v301 = vld [vmem:[%s166 + $0x1f8] sm:$0xf]
      %v302 = vld [vmem:[%s166 + $0x1fc] sm:$0xf]
      %v303 = vld [vmem:[%s166 + $0x200] sm:$0xf]
      %v304 = vld [vmem:[%s166 + $0x204] sm:$0xf]
      %v305 = vld [vmem:[%s166 + $0x208] sm:$0xf]
      %v306 = vld [vmem:[%s166 + $0x20c] sm:$0xf]
      %v307 = vld [vmem:[%s166 + $0x210] sm:$0xf]
      %v308 = vld [vmem:[%s166 + $0x214] sm:$0xf]
      %v309 = vld [vmem:[%s166 + $0x218] sm:$0xf]
      %v310 = vld [vmem:[%s166 + $0x21c] sm:$0xf]
      %v311 = vld [vmem:[%s166 + $0x220] sm:$0xf]
      %v312 = vld [vmem:[%s166 + $0x224] sm:$0xf]
      %v313 = vld [vmem:[%s166 + $0x228] sm:$0xf]
      %v314 = vld [vmem:[%s166 + $0x22c] sm:$0xf]
      %v315 = vld [vmem:[%s166 + $0x230] sm:$0xf]
      %v316 = vld [vmem:[%s166 + $0x234] sm:$0xf]
      %v317 = vld [vmem:[%s166 + $0x238] sm:$0xf]
      %v318 = vld [vmem:[%s166 + $0x23c] sm:$0xf]
      %v319 = vld [vmem:[%s166 + $0x240] sm:$0xf]
      %v320 = vld [vmem:[%s166 + $0x244] sm:$0xf]
      %v321 = vld [vmem:[%s166 + $0x248] sm:$0xf]
      %v322 = vld [vmem:[%s166 + $0x24c] sm:$0xf]
      %v323 = vld [vmem:[%s166 + $0x250] sm:$0xf]
      %v324 = vld [vmem:[%s166 + $0x254] sm:$0xf]
      %v325 = vld [vmem:[%s166 + $0x258] sm:$0xf]
      %v326 = vld [vmem:[%s166 + $0x25c] sm:$0xf]
      %v327 = vld [vmem:[%s166 + $0x260] sm:$0xf]
      %v328 = vld [vmem:[%s166 + $0x264] sm:$0xf]
      %v329 = vld [vmem:[%s166 + $0x268] sm:$0xf]
      %v330 = vld [vmem:[%s166 + $0x26c] sm:$0xf]
      %v331 = vld [vmem:[%s166 + $0x270] sm:$0xf]
      %v332 = vld [vmem:[%s166 + $0x274] sm:$0xf]
      %v333 = vld [vmem:[%s166 + $0x278] sm:$0xf]
      %v334 = vld [vmem:[%s166 + $0x27c] sm:$0xf]
      %v335 = vld [vmem:[%s166 + $0x280] sm:$0xf]
      %v336 = vld [vmem:[%s166 + $0x284] sm:$0xf]
      %v337 = vld [vmem:[%s166 + $0x288] sm:$0xf]
      %v338 = vld [vmem:[%s166 + $0x28c] sm:$0xf]
      %v339 = vld [vmem:[%s166 + $0x290] sm:$0xf]
      %v340 = vld [vmem:[%s166 + $0x294] sm:$0xf]
      %v341 = vld [vmem:[%s166 + $0x298] sm:$0xf]
      %v342 = vld [vmem:[%s166 + $0x29c] sm:$0xf]
      %v343 = vld [vmem:[%s166 + $0x2a0] sm:$0xf]
      %v344 = vld [vmem:[%s166 + $0x2a4] sm:$0xf]
      %v345 = vld [vmem:[%s166 + $0x2a8] sm:$0xf]
      %v346 = vld [vmem:[%s166 + $0x2ac] sm:$0xf]
      %v347 = vld [vmem:[%s166 + $0x2b0] sm:$0xf]
      %v348 = vld [vmem:[%s166 + $0x2b4] sm:$0xf]
      %v349 = vld [vmem:[%s166 + $0x2b8] sm:$0xf]
      %v350 = vld [vmem:[%s166 + $0x2bc] sm:$0xf]
      %v351 = vld [vmem:[%s166 + $0x2c0] sm:$0xf]
      %v352 = vld [vmem:[%s166 + $0x2c4] sm:$0xf]
      %v353 = vld [vmem:[%s166 + $0x2c8] sm:$0xf]
      %v354 = vld [vmem:[%s166 + $0x2cc] sm:$0xf]
      %v355 = vld [vmem:[%s166 + $0x2d0] sm:$0xf]
      %v356 = vld [vmem:[%s166 + $0x2d4] sm:$0xf]
      %v357 = vld [vmem:[%s166 + $0x2d8] sm:$0xf]
      %v358 = vld [vmem:[%s166 + $0x2dc] sm:$0xf]
      %v359 = vld [vmem:[%s166 + $0x2e0] sm:$0xf]
      %v360 = vld [vmem:[%s166 + $0x2e4] sm:$0xf]
      %v361 = vld [vmem:[%s166 + $0x2e8] sm:$0xf]
      %v362 = vld [vmem:[%s166 + $0x2ec] sm:$0xf]
      %v363 = vld [vmem:[%s166 + $0x2f0] sm:$0xf]
      %v364 = vld [vmem:[%s166 + $0x2f4] sm:$0xf]
      %v365 = vld [vmem:[%s166 + $0x2f8] sm:$0xf]
      %v366 = vld [vmem:[%s166 + $0x2fc] sm:$0xf]
      %v367 = vld [vmem:[%s166 + $0x300] sm:$0xf]
      %v368 = vld [vmem:[%s166 + $0x304] sm:$0xf]
      %v369 = vld [vmem:[%s166 + $0x308] sm:$0xf]
      %v370 = vld [vmem:[%s166 + $0x30c] sm:$0xf]
      %v371 = vld [vmem:[%s166 + $0x310] sm:$0xf]
      %v372 = vld [vmem:[%s166 + $0x314] sm:$0xf]
      %v373 = vld [vmem:[%s166 + $0x318] sm:$0xf]
      %v374 = vld [vmem:[%s166 + $0x31c] sm:$0xf]
      %v375 = vld [vmem:[%s166 + $0x320] sm:$0xf]
      %v376 = vld [vmem:[%s166 + $0x324] sm:$0xf]
      %v377 = vld [vmem:[%s166 + $0x328] sm:$0xf]
      %v378 = vld [vmem:[%s166 + $0x32c] sm:$0xf]
      %v379 = vld [vmem:[%s166 + $0x330] sm:$0xf]
      %v380 = vld [vmem:[%s166 + $0x334] sm:$0xf]
      %v381 = vld [vmem:[%s166 + $0x338] sm:$0xf]
      %v382 = vld [vmem:[%s166 + $0x33c] sm:$0xf]
      %v383 = vld [vmem:[%s166 + $0x340] sm:$0xf]
      %v384 = vld [vmem:[%s166 + $0x344] sm:$0xf]
      %v385 = vld [vmem:[%s166 + $0x348] sm:$0xf]
      %v386 = vld [vmem:[%s166 + $0x34c] sm:$0xf]
      %v387 = vld [vmem:[%s166 + $0x350] sm:$0xf]
      %v388 = vld [vmem:[%s166 + $0x354] sm:$0xf]
      %v389 = vld [vmem:[%s166 + $0x358] sm:$0xf]
      %v390 = vld [vmem:[%s166 + $0x35c] sm:$0xf]
      %v391 = vld [vmem:[%s166 + $0x360] sm:$0xf]
      %v392 = vld [vmem:[%s166 + $0x364] sm:$0xf]
      %v393 = vld [vmem:[%s166 + $0x368] sm:$0xf]
      %v394 = vld [vmem:[%s166 + $0x36c] sm:$0xf]
      %v395 = vld [vmem:[%s166 + $0x370] sm:$0xf]
      %v396 = vld [vmem:[%s166 + $0x374] sm:$0xf]
      %v397 = vld [vmem:[%s166 + $0x378] sm:$0xf]
      %v398 = vld [vmem:[%s166 + $0x37c] sm:$0xf]
      %v399 = vld [vmem:[%s166 + $0x380] sm:$0xf]
      %v400 = vld [vmem:[%s166 + $0x384] sm:$0xf]
      %v401 = vld [vmem:[%s166 + $0x388] sm:$0xf]
      %v402 = vld [vmem:[%s166 + $0x38c] sm:$0xf]
      %v403 = vld [vmem:[%s166 + $0x390] sm:$0xf]
      %v404 = vld [vmem:[%s166 + $0x394] sm:$0xf]
      %v405 = vld [vmem:[%s166 + $0x398] sm:$0xf]
      %v406 = vld [vmem:[%s166 + $0x39c] sm:$0xf]
      %v407 = vld [vmem:[%s166 + $0x3a0] sm:$0xf]
      %v408 = vld [vmem:[%s166 + $0x3a4] sm:$0xf]
      %v409 = vld [vmem:[%s166 + $0x3a8] sm:$0xf]
      %v410 = vld [vmem:[%s166 + $0x3ac] sm:$0xf]
      %v411 = vld [vmem:[%s166 + $0x3b0] sm:$0xf]
      %v412 = vld [vmem:[%s166 + $0x3b4] sm:$0xf]
      %v413 = vld [vmem:[%s166 + $0x3b8] sm:$0xf]
      %v414 = vld [vmem:[%s166 + $0x3bc] sm:$0xf]
      %v415 = vld [vmem:[%s166 + $0x3c0] sm:$0xf]
      %v416 = vld [vmem:[%s166 + $0x3c4] sm:$0xf]
      %v417 = vld [vmem:[%s166 + $0x3c8] sm:$0xf]
      %v418 = vld [vmem:[%s166 + $0x3cc] sm:$0xf]
      %v419 = vld [vmem:[%s166 + $0x3d0] sm:$0xf]
      %v420 = vld [vmem:[%s166 + $0x3d4] sm:$0xf]
      %v421 = vld [vmem:[%s166 + $0x3d8] sm:$0xf]
      %v422 = vld [vmem:[%s166 + $0x3dc] sm:$0xf]
      %v423 = vld [vmem:[%s166 + $0x3e0] sm:$0xf]
      %v424 = vld [vmem:[%s166 + $0x3e4] sm:$0xf]
      %v425 = vld [vmem:[%s166 + $0x3e8] sm:$0xf]
      %v426 = vld [vmem:[%s166 + $0x3ec] sm:$0xf]
      %v427 = vld [vmem:[%s166 + $0x3f0] sm:$0xf]
      %v428 = vld [vmem:[%s166 + $0x3f4] sm:$0xf]
      %v429 = vld [vmem:[%s1] sm:$0xf]
      %v430 = vld [vmem:[%s1 + $0x4] sm:$0xf]
      %v431 = vld [vmem:[%s1 + $0x8] sm:$0xf]
      %v432 = vld [vmem:[%s1 + $0xc] sm:$0xf]
      %v433 = vld [vmem:[%s2] sm:$0x1]
      %v435 = vperm.slane %v433, 0
      %v691 = vunpack.c.l.b16 %v175
      %v692 = vunpack.c.l.b16 %v176
      %v693 = vunpack.c.l.b16 %v177
      %v694 = vunpack.c.l.b16 %v178
      %v695 = vunpack.c.l.b16 %v179
      %v696 = vunpack.c.l.b16 %v180
      %v697 = vunpack.c.l.b16 %v181
      %v698 = vunpack.c.l.b16 %v182
      %v699 = vunpack.c.l.b16 %v183
      %v700 = vunpack.c.l.b16 %v184
      %v701 = vunpack.c.l.b16 %v185
      %v702 = vunpack.c.l.b16 %v186
      %v703 = vunpack.c.l.b16 %v187
      %v704 = vunpack.c.l.b16 %v188
      %v705 = vunpack.c.l.b16 %v189
      %v706 = vunpack.c.l.b16 %v190
      %v707 = vunpack.c.l.b16 %v191
      %v708 = vunpack.c.l.b16 %v192
      %v709 = vunpack.c.l.b16 %v193
      %v710 = vunpack.c.l.b16 %v194
      %v711 = vunpack.c.l.b16 %v195
      %v712 = vunpack.c.l.b16 %v196
      %v713 = vunpack.c.l.b16 %v197
      %v714 = vunpack.c.l.b16 %v198
      %v715 = vunpack.c.l.b16 %v199
      %v716 = vunpack.c.l.b16 %v200
      %v717 = vunpack.c.l.b16 %v201
      %v718 = vunpack.c.l.b16 %v202
      %v719 = vunpack.c.l.b16 %v203
      %v720 = vunpack.c.l.b16 %v204
      %v721 = vunpack.c.l.b16 %v205
      %v722 = vunpack.c.l.b16 %v206
      %v723 = vunpack.c.l.b16 %v207
      %v724 = vunpack.c.l.b16 %v208
      %v725 = vunpack.c.l.b16 %v209
      %v726 = vunpack.c.l.b16 %v210
      %v727 = vunpack.c.l.b16 %v211
      %v728 = vunpack.c.l.b16 %v212
      %v729 = vunpack.c.l.b16 %v213
      %v730 = vunpack.c.l.b16 %v214
      %v731 = vunpack.c.l.b16 %v215
      %v732 = vunpack.c.l.b16 %v216
      %v733 = vunpack.c.l.b16 %v217
      %v734 = vunpack.c.l.b16 %v218
      %v735 = vunpack.c.l.b16 %v219
      %v736 = vunpack.c.l.b16 %v220
      %v737 = vunpack.c.l.b16 %v221
      %v738 = vunpack.c.l.b16 %v222
      %v739 = vunpack.c.l.b16 %v223
      %v740 = vunpack.c.l.b16 %v224
      %v741 = vunpack.c.l.b16 %v225
      %v742 = vunpack.c.l.b16 %v226
      %v743 = vunpack.c.l.b16 %v227
      %v744 = vunpack.c.l.b16 %v228
      %v745 = vunpack.c.l.b16 %v229
      %v746 = vunpack.c.l.b16 %v230
      %v747 = vunpack.c.l.b16 %v231
      %v748 = vunpack.c.l.b16 %v232
      %v749 = vunpack.c.l.b16 %v233
      %v750 = vunpack.c.l.b16 %v234
      %v751 = vunpack.c.l.b16 %v235
      %v752 = vunpack.c.l.b16 %v236
      %v753 = vunpack.c.l.b16 %v237
      %v754 = vunpack.c.l.b16 %v238
      %v755 = vunpack.c.l.b16 %v239
      %v756 = vunpack.c.l.b16 %v240
      %v757 = vunpack.c.l.b16 %v241
      %v758 = vunpack.c.l.b16 %v242
      %v759 = vunpack.c.l.b16 %v243
      %v760 = vunpack.c.l.b16 %v244
      %v761 = vunpack.c.l.b16 %v245
      %v762 = vunpack.c.l.b16 %v246
      %v763 = vunpack.c.l.b16 %v247
      %v764 = vunpack.c.l.b16 %v248
      %v765 = vunpack.c.l.b16 %v249
      %v766 = vunpack.c.l.b16 %v250
      %v767 = vunpack.c.l.b16 %v251
      %v768 = vunpack.c.l.b16 %v252
      %v769 = vunpack.c.l.b16 %v253
      %v770 = vunpack.c.l.b16 %v254
      %v771 = vunpack.c.l.b16 %v255
      %v772 = vunpack.c.l.b16 %v256
      %v773 = vunpack.c.l.b16 %v257
      %v774 = vunpack.c.l.b16 %v258
      %v775 = vunpack.c.l.b16 %v259
      %v776 = vunpack.c.l.b16 %v260
      %v777 = vunpack.c.l.b16 %v261
      %v778 = vunpack.c.l.b16 %v262
      %v779 = vunpack.c.l.b16 %v263
      %v780 = vunpack.c.l.b16 %v264
      %v781 = vunpack.c.l.b16 %v265
      %v782 = vunpack.c.l.b16 %v266
      %v783 = vunpack.c.l.b16 %v267
      %v784 = vunpack.c.l.b16 %v268
      %v785 = vunpack.c.l.b16 %v269
      %v786 = vunpack.c.l.b16 %v270
      %v787 = vunpack.c.l.b16 %v271
      %v788 = vunpack.c.l.b16 %v272
      %v789 = vunpack.c.l.b16 %v273
      %v790 = vunpack.c.l.b16 %v274
      %v791 = vunpack.c.l.b16 %v275
      %v792 = vunpack.c.l.b16 %v276
      %v793 = vunpack.c.l.b16 %v277
      %v794 = vunpack.c.l.b16 %v278
      %v795 = vunpack.c.l.b16 %v279
      %v796 = vunpack.c.l.b16 %v280
      %v797 = vunpack.c.l.b16 %v281
      %v798 = vunpack.c.l.b16 %v282
      %v799 = vunpack.c.l.b16 %v283
      %v800 = vunpack.c.l.b16 %v284
      %v801 = vunpack.c.l.b16 %v285
      %v802 = vunpack.c.l.b16 %v286
      %v803 = vunpack.c.l.b16 %v287
      %v804 = vunpack.c.l.b16 %v288
      %v805 = vunpack.c.l.b16 %v289
      %v806 = vunpack.c.l.b16 %v290
      %v807 = vunpack.c.l.b16 %v291
      %v808 = vunpack.c.l.b16 %v292
      %v809 = vunpack.c.l.b16 %v293
      %v810 = vunpack.c.l.b16 %v294
      %v811 = vunpack.c.l.b16 %v295
      %v812 = vunpack.c.l.b16 %v296
      %v813 = vunpack.c.l.b16 %v297
      %v814 = vunpack.c.l.b16 %v298
      %v815 = vunpack.c.l.b16 %v299
      %v816 = vunpack.c.l.b16 %v300
      %v817 = vunpack.c.l.b16 %v301
      %v818 = vunpack.c.l.b16 %v302
      %v819 = vunpack.c.l.b16 %v303
      %v820 = vunpack.c.l.b16 %v304
      %v821 = vunpack.c.l.b16 %v305
      %v822 = vunpack.c.l.b16 %v306
      %v823 = vunpack.c.l.b16 %v307
      %v824 = vunpack.c.l.b16 %v308
      %v825 = vunpack.c.l.b16 %v309
      %v826 = vunpack.c.l.b16 %v310
      %v827 = vunpack.c.l.b16 %v311
      %v828 = vunpack.c.l.b16 %v312
      %v829 = vunpack.c.l.b16 %v313
      %v830 = vunpack.c.l.b16 %v314
      %v831 = vunpack.c.l.b16 %v315
      %v832 = vunpack.c.l.b16 %v316
      %v833 = vunpack.c.l.b16 %v317
      %v834 = vunpack.c.l.b16 %v318
      %v835 = vunpack.c.l.b16 %v319
      %v836 = vunpack.c.l.b16 %v320
      %v837 = vunpack.c.l.b16 %v321
      %v838 = vunpack.c.l.b16 %v322
      %v839 = vunpack.c.l.b16 %v323
      %v840 = vunpack.c.l.b16 %v324
      %v841 = vunpack.c.l.b16 %v325
      %v842 = vunpack.c.l.b16 %v326
      %v843 = vunpack.c.l.b16 %v327
      %v844 = vunpack.c.l.b16 %v328
      %v845 = vunpack.c.l.b16 %v329
      %v846 = vunpack.c.l.b16 %v330
      %v847 = vunpack.c.l.b16 %v331
      %v848 = vunpack.c.l.b16 %v332
      %v849 = vunpack.c.l.b16 %v333
      %v850 = vunpack.c.l.b16 %v334
      %v851 = vunpack.c.l.b16 %v335
      %v852 = vunpack.c.l.b16 %v336
      %v853 = vunpack.c.l.b16 %v337
      %v854 = vunpack.c.l.b16 %v338
      %v855 = vunpack.c.l.b16 %v339
      %v856 = vunpack.c.l.b16 %v340
      %v857 = vunpack.c.l.b16 %v341
      %v858 = vunpack.c.l.b16 %v342
      %v859 = vunpack.c.l.b16 %v343
      %v860 = vunpack.c.l.b16 %v344
      %v861 = vunpack.c.l.b16 %v345
      %v862 = vunpack.c.l.b16 %v346
      %v863 = vunpack.c.l.b16 %v347
      %v864 = vunpack.c.l.b16 %v348
      %v865 = vunpack.c.l.b16 %v349
      %v866 = vunpack.c.l.b16 %v350
      %v867 = vunpack.c.l.b16 %v351
      %v868 = vunpack.c.l.b16 %v352
      %v869 = vunpack.c.l.b16 %v353
      %v870 = vunpack.c.l.b16 %v354
      %v871 = vunpack.c.l.b16 %v355
      %v872 = vunpack.c.l.b16 %v356
      %v873 = vunpack.c.l.b16 %v357
      %v874 = vunpack.c.l.b16 %v358
      %v875 = vunpack.c.l.b16 %v359
      %v876 = vunpack.c.l.b16 %v360
      %v877 = vunpack.c.l.b16 %v361
      %v878 = vunpack.c.l.b16 %v362
      %v879 = vunpack.c.l.b16 %v363
      %v880 = vunpack.c.l.b16 %v364
      %v881 = vunpack.c.l.b16 %v365
      %v882 = vunpack.c.l.b16 %v366
      %v883 = vunpack.c.l.b16 %v367
      %v884 = vunpack.c.l.b16 %v368
      %v885 = vunpack.c.l.b16 %v369
      %v886 = vunpack.c.l.b16 %v370
      %v887 = vunpack.c.l.b16 %v371
      %v888 = vunpack.c.l.b16 %v372
      %v889 = vunpack.c.l.b16 %v373
      %v890 = vunpack.c.l.b16 %v374
      %v891 = vunpack.c.l.b16 %v375
      %v892 = vunpack.c.l.b16 %v376
      %v893 = vunpack.c.l.b16 %v377
      %v894 = vunpack.c.l.b16 %v378
      %v895 = vunpack.c.l.b16 %v379
      %v896 = vunpack.c.l.b16 %v380
      %v897 = vunpack.c.l.b16 %v381
      %v898 = vunpack.c.l.b16 %v382
      %v899 = vunpack.c.l.b16 %v383
      %v900 = vunpack.c.l.b16 %v384
      %v901 = vunpack.c.l.b16 %v385
      %v902 = vunpack.c.l.b16 %v386
      %v903 = vunpack.c.l.b16 %v387
      %v904 = vunpack.c.l.b16 %v388
      %v905 = vunpack.c.l.b16 %v389
      %v906 = vunpack.c.l.b16 %v390
      %v907 = vunpack.c.l.b16 %v391
      %v908 = vunpack.c.l.b16 %v392
      %v909 = vunpack.c.l.b16 %v393
      %v910 = vunpack.c.l.b16 %v394
      %v911 = vunpack.c.l.b16 %v395
      %v912 = vunpack.c.l.b16 %v396
      %v913 = vunpack.c.l.b16 %v397
      %v914 = vunpack.c.l.b16 %v398
      %v915 = vunpack.c.l.b16 %v399
      %v916 = vunpack.c.l.b16 %v400
      %v917 = vunpack.c.l.b16 %v401
      %v918 = vunpack.c.l.b16 %v402
      %v919 = vunpack.c.l.b16 %v403
      %v920 = vunpack.c.l.b16 %v404
      %v921 = vunpack.c.l.b16 %v405
      %v922 = vunpack.c.l.b16 %v406
      %v923 = vunpack.c.l.b16 %v407
      %v924 = vunpack.c.l.b16 %v408
      %v925 = vunpack.c.l.b16 %v409
      %v926 = vunpack.c.l.b16 %v410
      %v927 = vunpack.c.l.b16 %v411
      %v928 = vunpack.c.l.b16 %v412
      %v929 = vunpack.c.l.b16 %v413
      %v930 = vunpack.c.l.b16 %v414
      %v931 = vunpack.c.l.b16 %v415
      %v932 = vunpack.c.l.b16 %v416
      %v933 = vunpack.c.l.b16 %v417
      %v934 = vunpack.c.l.b16 %v418
      %v935 = vunpack.c.l.b16 %v419
      %v936 = vunpack.c.l.b16 %v420
      %v937 = vunpack.c.l.b16 %v421
      %v938 = vunpack.c.l.b16 %v422
      %v939 = vunpack.c.l.b16 %v423
      %v940 = vunpack.c.l.b16 %v424
      %v941 = vunpack.c.l.b16 %v425
      %v942 = vunpack.c.l.b16 %v426
      %v943 = vunpack.c.l.b16 %v427
      %v944 = vunpack.c.l.b16 %v428
      %v945 = vpack.c.b16 %v692, %v691
      %v946 = vpack.c.b16 %v694, %v693
      %v947 = vpack.c.b16 %v696, %v695
      %v948 = vpack.c.b16 %v698, %v697
      %v949 = vpack.c.b16 %v700, %v699
      %v950 = vpack.c.b16 %v702, %v701
      %v951 = vpack.c.b16 %v704, %v703
      %v952 = vpack.c.b16 %v706, %v705
      %v953 = vpack.c.b16 %v708, %v707
      %v954 = vpack.c.b16 %v710, %v709
      %v955 = vpack.c.b16 %v712, %v711
      %v956 = vpack.c.b16 %v714, %v713
      %v957 = vpack.c.b16 %v716, %v715
      %v958 = vpack.c.b16 %v718, %v717
      %v959 = vpack.c.b16 %v720, %v719
      %v960 = vpack.c.b16 %v722, %v721
      %v961 = vpack.c.b16 %v724, %v723
      %v962 = vpack.c.b16 %v726, %v725
      %v963 = vpack.c.b16 %v728, %v727
      %v964 = vpack.c.b16 %v730, %v729
      %v965 = vpack.c.b16 %v732, %v731
      %v966 = vpack.c.b16 %v734, %v733
      %v967 = vpack.c.b16 %v736, %v735
      %v968 = vpack.c.b16 %v738, %v737
      %v969 = vpack.c.b16 %v740, %v739
      %v970 = vpack.c.b16 %v742, %v741
      %v971 = vpack.c.b16 %v744, %v743
      %v972 = vpack.c.b16 %v746, %v745
      %v973 = vpack.c.b16 %v748, %v747
      %v974 = vpack.c.b16 %v750, %v749
      %v975 = vpack.c.b16 %v752, %v751
      %v976 = vpack.c.b16 %v754, %v753
      %v977 = vpack.c.b16 %v756, %v755
      %v978 = vpack.c.b16 %v758, %v757
      %v979 = vpack.c.b16 %v760, %v759
      %v980 = vpack.c.b16 %v762, %v761
      %v981 = vpack.c.b16 %v764, %v763
      %v982 = vpack.c.b16 %v766, %v765
      %v983 = vpack.c.b16 %v768, %v767
      %v984 = vpack.c.b16 %v770, %v769
      %v985 = vpack.c.b16 %v772, %v771
      %v986 = vpack.c.b16 %v774, %v773
      %v987 = vpack.c.b16 %v776, %v775
      %v988 = vpack.c.b16 %v778, %v777
      %v989 = vpack.c.b16 %v780, %v779
      %v990 = vpack.c.b16 %v782, %v781
      %v991 = vpack.c.b16 %v784, %v783
      %v992 = vpack.c.b16 %v786, %v785
      %v993 = vpack.c.b16 %v788, %v787
      %v994 = vpack.c.b16 %v790, %v789
      %v995 = vpack.c.b16 %v792, %v791
      %v996 = vpack.c.b16 %v794, %v793
      %v997 = vpack.c.b16 %v796, %v795
      %v998 = vpack.c.b16 %v798, %v797
      %v999 = vpack.c.b16 %v800, %v799
      %v1000 = vpack.c.b16 %v802, %v801
      %v1001 = vpack.c.b16 %v804, %v803
      %v1002 = vpack.c.b16 %v806, %v805
      %v1003 = vpack.c.b16 %v808, %v807
      %v1004 = vpack.c.b16 %v810, %v809
      %v1005 = vpack.c.b16 %v812, %v811
      %v1006 = vpack.c.b16 %v814, %v813
      %v1007 = vpack.c.b16 %v816, %v815
      %v1008 = vpack.c.b16 %v818, %v817
      %v1009 = vpack.c.b16 %v820, %v819
      %v1010 = vpack.c.b16 %v822, %v821
      %v1011 = vpack.c.b16 %v824, %v823
      %v1012 = vpack.c.b16 %v826, %v825
      %v1013 = vpack.c.b16 %v828, %v827
      %v1014 = vpack.c.b16 %v830, %v829
      %v1015 = vpack.c.b16 %v832, %v831
      %v1016 = vpack.c.b16 %v834, %v833
      %v1017 = vpack.c.b16 %v836, %v835
      %v1018 = vpack.c.b16 %v838, %v837
      %v1019 = vpack.c.b16 %v840, %v839
      %v1020 = vpack.c.b16 %v842, %v841
      %v1021 = vpack.c.b16 %v844, %v843
      %v1022 = vpack.c.b16 %v846, %v845
      %v1023 = vpack.c.b16 %v848, %v847
      %v1024 = vpack.c.b16 %v850, %v849
      %v1025 = vpack.c.b16 %v852, %v851
      %v1026 = vpack.c.b16 %v854, %v853
      %v1027 = vpack.c.b16 %v856, %v855
      %v1028 = vpack.c.b16 %v858, %v857
      %v1029 = vpack.c.b16 %v860, %v859
      %v1030 = vpack.c.b16 %v862, %v861
      %v1031 = vpack.c.b16 %v864, %v863
      %v1032 = vpack.c.b16 %v866, %v865
      %v1033 = vpack.c.b16 %v868, %v867
      %v1034 = vpack.c.b16 %v870, %v869
      %v1035 = vpack.c.b16 %v872, %v871
      %v1036 = vpack.c.b16 %v874, %v873
      %v1037 = vpack.c.b16 %v876, %v875
      %v1038 = vpack.c.b16 %v878, %v877
      %v1039 = vpack.c.b16 %v880, %v879
      %v1040 = vpack.c.b16 %v882, %v881
      %v1041 = vpack.c.b16 %v884, %v883
      %v1042 = vpack.c.b16 %v886, %v885
      %v1043 = vpack.c.b16 %v888, %v887
      %v1044 = vpack.c.b16 %v890, %v889
      %v1045 = vpack.c.b16 %v892, %v891
      %v1046 = vpack.c.b16 %v894, %v893
      %v1047 = vpack.c.b16 %v896, %v895
      %v1048 = vpack.c.b16 %v898, %v897
      %v1049 = vpack.c.b16 %v900, %v899
      %v1050 = vpack.c.b16 %v902, %v901
      %v1051 = vpack.c.b16 %v904, %v903
      %v1052 = vpack.c.b16 %v906, %v905
      %v1053 = vpack.c.b16 %v908, %v907
      %v1054 = vpack.c.b16 %v910, %v909
      %v1055 = vpack.c.b16 %v912, %v911
      %v1056 = vpack.c.b16 %v914, %v913
      %v1057 = vpack.c.b16 %v916, %v915
      %v1058 = vpack.c.b16 %v918, %v917
      %v1059 = vpack.c.b16 %v920, %v919
      %v1060 = vpack.c.b16 %v922, %v921
      %v1061 = vpack.c.b16 %v924, %v923
      %v1062 = vpack.c.b16 %v926, %v925
      %v1063 = vpack.c.b16 %v928, %v927
      %v1064 = vpack.c.b16 %v930, %v929
      %v1065 = vpack.c.b16 %v932, %v931
      %v1066 = vpack.c.b16 %v934, %v933
      %v1067 = vpack.c.b16 %v936, %v935
      %v1068 = vpack.c.b16 %v938, %v937
      %v1069 = vpack.c.b16 %v940, %v939
      %v1070 = vpack.c.b16 %v942, %v941
      %v1071 = vpack.c.b16 %v944, %v943
      %v1076 = vunpack.c.l.b16 %v429
      %v1077 = vunpack.c.l.b16 %v430
      %v1078 = vunpack.c.l.b16 %v431
      %v1079 = vunpack.c.l.b16 %v432
      %v1080 = vpack.c.b16 %v1077, %v1076
      %v1081 = vpack.c.b16 %v1079, %v1078
      %vm1084 = vcmask 261120
      %v1086 = vsel %vm1084, %v945, 0
      %v1089 = vsel %vm1084, %v946, 0
      %v1092 = vsel %vm1084, %v947, 0
      %v1095 = vsel %vm1084, %v948, 0
      %v1098 = vsel %vm1084, %v949, 0
      %v1101 = vsel %vm1084, %v950, 0
      %v1104 = vsel %vm1084, %v951, 0
      %v1107 = vsel %vm1084, %v952, 0
      %v1110 = vsel %vm1084, %v953, 0
      %v1113 = vsel %vm1084, %v954, 0
      %v1116 = vsel %vm1084, %v955, 0
      %v1119 = vsel %vm1084, %v956, 0
      %v1122 = vsel %vm1084, %v957, 0
      %v1125 = vsel %vm1084, %v958, 0
      %v1128 = vsel %vm1084, %v959, 0
      %v1131 = vsel %vm1084, %v960, 0
      %v1134 = vsel %vm1084, %v961, 0
      %v1137 = vsel %vm1084, %v962, 0
      %v1140 = vsel %vm1084, %v963, 0
      %v1143 = vsel %vm1084, %v964, 0
      %v1146 = vsel %vm1084, %v965, 0
      %v1149 = vsel %vm1084, %v966, 0
      %v1152 = vsel %vm1084, %v967, 0
      %v1155 = vsel %vm1084, %v968, 0
      %v1158 = vsel %vm1084, %v969, 0
      %v1161 = vsel %vm1084, %v970, 0
      %v1164 = vsel %vm1084, %v971, 0
      %v1167 = vsel %vm1084, %v972, 0
      %v1170 = vsel %vm1084, %v973, 0
      %v1173 = vsel %vm1084, %v974, 0
      %v1176 = vsel %vm1084, %v975, 0
      %v1179 = vsel %vm1084, %v976, 0
      %v1182 = vsel %vm1084, %v977, 0
      %v1185 = vsel %vm1084, %v978, 0
      %v1188 = vsel %vm1084, %v979, 0
      %v1191 = vsel %vm1084, %v980, 0
      %v1194 = vsel %vm1084, %v981, 0
      %v1197 = vsel %vm1084, %v982, 0
      %v1200 = vsel %vm1084, %v983, 0
      %v1203 = vsel %vm1084, %v984, 0
      %v1206 = vsel %vm1084, %v985, 0
      %v1209 = vsel %vm1084, %v986, 0
      %v1212 = vsel %vm1084, %v987, 0
      %v1215 = vsel %vm1084, %v988, 0
      %v1218 = vsel %vm1084, %v989, 0
      %v1221 = vsel %vm1084, %v990, 0
      %v1224 = vsel %vm1084, %v991, 0
      %v1227 = vsel %vm1084, %v992, 0
      %v1230 = vsel %vm1084, %v993, 0
      %v1233 = vsel %vm1084, %v994, 0
      %v1236 = vsel %vm1084, %v995, 0
      %v1239 = vsel %vm1084, %v996, 0
      %v1242 = vsel %vm1084, %v997, 0
      %v1245 = vsel %vm1084, %v998, 0
      %v1248 = vsel %vm1084, %v999, 0
      %v1251 = vsel %vm1084, %v1000, 0
      %v1254 = vsel %vm1084, %v1001, 0
      %v1257 = vsel %vm1084, %v1002, 0
      %v1260 = vsel %vm1084, %v1003, 0
      %v1263 = vsel %vm1084, %v1004, 0
      %v1266 = vsel %vm1084, %v1005, 0
      %v1269 = vsel %vm1084, %v1006, 0
      %v1272 = vsel %vm1084, %v1007, 0
      %v1275 = vsel %vm1084, %v1008, 0
      %v1278 = vsel %vm1084, %v1009, 0
      %v1281 = vsel %vm1084, %v1010, 0
      %v1284 = vsel %vm1084, %v1011, 0
      %v1287 = vsel %vm1084, %v1012, 0
      %v1290 = vsel %vm1084, %v1013, 0
      %v1293 = vsel %vm1084, %v1014, 0
      %v1296 = vsel %vm1084, %v1015, 0
      %v1299 = vsel %vm1084, %v1016, 0
      %v1302 = vsel %vm1084, %v1017, 0
      %v1305 = vsel %vm1084, %v1018, 0
      %v1308 = vsel %vm1084, %v1019, 0
      %v1311 = vsel %vm1084, %v1020, 0
      %v1314 = vsel %vm1084, %v1021, 0
      %v1317 = vsel %vm1084, %v1022, 0
      %v1320 = vsel %vm1084, %v1023, 0
      %v1323 = vsel %vm1084, %v1024, 0
      %v1326 = vsel %vm1084, %v1025, 0
      %v1329 = vsel %vm1084, %v1026, 0
      %v1332 = vsel %vm1084, %v1027, 0
      %v1335 = vsel %vm1084, %v1028, 0
      %v1338 = vsel %vm1084, %v1029, 0
      %v1341 = vsel %vm1084, %v1030, 0
      %v1344 = vsel %vm1084, %v1031, 0
      %v1347 = vsel %vm1084, %v1032, 0
      %v1350 = vsel %vm1084, %v1033, 0
      %v1353 = vsel %vm1084, %v1034, 0
      %v1356 = vsel %vm1084, %v1035, 0
      %v1359 = vsel %vm1084, %v1036, 0
      %v1362 = vsel %vm1084, %v1037, 0
      %v1365 = vsel %vm1084, %v1038, 0
      %v1368 = vsel %vm1084, %v1039, 0
      %v1371 = vsel %vm1084, %v1040, 0
      %v1374 = vsel %vm1084, %v1041, 0
      %v1377 = vsel %vm1084, %v1042, 0
      %v1380 = vsel %vm1084, %v1043, 0
      %v1383 = vsel %vm1084, %v1044, 0
      %v1386 = vsel %vm1084, %v1045, 0
      %v1389 = vsel %vm1084, %v1046, 0
      %v1392 = vsel %vm1084, %v1047, 0
      %v1395 = vsel %vm1084, %v1048, 0
      %v1398 = vsel %vm1084, %v1049, 0
      %v1401 = vsel %vm1084, %v1050, 0
      %v1404 = vsel %vm1084, %v1051, 0
      %v1407 = vsel %vm1084, %v1052, 0
      %v1410 = vsel %vm1084, %v1053, 0
      %v1413 = vsel %vm1084, %v1054, 0
      %v1416 = vsel %vm1084, %v1055, 0
      %v1419 = vsel %vm1084, %v1056, 0
      %v1422 = vsel %vm1084, %v1057, 0
      %v1425 = vsel %vm1084, %v1058, 0
      %v1428 = vsel %vm1084, %v1059, 0
      %v1431 = vsel %vm1084, %v1060, 0
      %v1434 = vsel %vm1084, %v1061, 0
      %v1437 = vsel %vm1084, %v1062, 0
      %v1440 = vsel %vm1084, %v1063, 0
      %v1443 = vsel %vm1084, %v1064, 0
      %v1446 = vsel %vm1084, %v1065, 0
      %v1449 = vsel %vm1084, %v1066, 0
      %v1452 = vsel %vm1084, %v1067, 0
      %v1455 = vsel %vm1084, %v1068, 0
      %v1458 = vsel %vm1084, %v1069, 0
      %v1461 = vsel %vm1084, %v1070, 0
      %v1464 = vsel %vm1084, %v1071, 0
      %1466 = vmatpush.bf16.msra.mxu0 0
      %1467 = vmatpush.bf16.msra.mxu0 0
      %1468 = vmatpush.bf16.msra.mxu0 0
      %1469 = vmatpush.bf16.msra.mxu0 0
      %1470 = vmatpush.bf16.msra.mxu0 0
      %1471 = vmatpush.bf16.msra.mxu0 0
      %1472 = vmatpush.bf16.msra.mxu0 %v1081
      %1473 = vmatpush.bf16.msra.mxu0 %v1080
      %1474 = vmatmul.bf16.gmra.mxu0 %v1086
      %v1475 = vpop.f32.mrf.mxu0
      %v1476 = vadd.f32 %v435, %v1475
      %v1477 = vpop.f32.mrf.mxu0
      %v1478 = vadd.f32 %v435, %v1477
      %1479 = vmatmul.bf16.gmra.mxu0 %v1089
      %v1480 = vpop.f32.mrf.mxu0
      %v1481 = vadd.f32 %v435, %v1480
      %v1482 = vpop.f32.mrf.mxu0
      %v1483 = vadd.f32 %v435, %v1482
      %1484 = vmatmul.bf16.gmra.mxu0 %v1092
      %v1485 = vpop.f32.mrf.mxu0
      %v1486 = vadd.f32 %v435, %v1485
      %v1487 = vpop.f32.mrf.mxu0
      %v1488 = vadd.f32 %v435, %v1487
      %1489 = vmatmul.bf16.gmra.mxu0 %v1095
      %v1490 = vpop.f32.mrf.mxu0
      %v1491 = vadd.f32 %v435, %v1490
      %v1492 = vpop.f32.mrf.mxu0
      %v1493 = vadd.f32 %v435, %v1492
      %1494 = vmatmul.bf16.gmra.mxu0 %v1098
      %v1495 = vpop.f32.mrf.mxu0
      %v1496 = vadd.f32 %v435, %v1495
      %v1497 = vpop.f32.mrf.mxu0
      %v1498 = vadd.f32 %v435, %v1497
      %1499 = vmatmul.bf16.gmra.mxu0 %v1101
      %v1500 = vpop.f32.mrf.mxu0
      %v1501 = vadd.f32 %v435, %v1500
      %v1502 = vpop.f32.mrf.mxu0
      %v1503 = vadd.f32 %v435, %v1502
      %1504 = vmatmul.bf16.gmra.mxu0 %v1104
      %v1505 = vpop.f32.mrf.mxu0
      %v1506 = vadd.f32 %v435, %v1505
      %v1507 = vpop.f32.mrf.mxu0
      %v1508 = vadd.f32 %v435, %v1507
      %1509 = vmatmul.bf16.gmra.mxu0 %v1107
      %v1510 = vpop.f32.mrf.mxu0
      %v1511 = vadd.f32 %v435, %v1510
      %v1512 = vpop.f32.mrf.mxu0
      %v1513 = vadd.f32 %v435, %v1512
      %1514 = vmatmul.bf16.gmra.mxu0 %v1110
      %v1515 = vpop.f32.mrf.mxu0
      %v1516 = vadd.f32 %v435, %v1515
      %v1517 = vpop.f32.mrf.mxu0
      %v1518 = vadd.f32 %v435, %v1517
      %1519 = vmatmul.bf16.gmra.mxu0 %v1113
      %v1520 = vpop.f32.mrf.mxu0
      %v1521 = vadd.f32 %v435, %v1520
      %v1522 = vpop.f32.mrf.mxu0
      %v1523 = vadd.f32 %v435, %v1522
      %1524 = vmatmul.bf16.gmra.mxu0 %v1116
      %v1525 = vpop.f32.mrf.mxu0
      %v1526 = vadd.f32 %v435, %v1525
      %v1527 = vpop.f32.mrf.mxu0
      %v1528 = vadd.f32 %v435, %v1527
      %1529 = vmatmul.bf16.gmra.mxu0 %v1119
      %v1530 = vpop.f32.mrf.mxu0
      %v1531 = vadd.f32 %v435, %v1530
      %v1532 = vpop.f32.mrf.mxu0
      %v1533 = vadd.f32 %v435, %v1532
      %1534 = vmatmul.bf16.gmra.mxu0 %v1122
      %v1535 = vpop.f32.mrf.mxu0
      %v1536 = vadd.f32 %v435, %v1535
      %v1537 = vpop.f32.mrf.mxu0
      %v1538 = vadd.f32 %v435, %v1537
      %1539 = vmatmul.bf16.gmra.mxu0 %v1125
      %v1540 = vpop.f32.mrf.mxu0
      %v1541 = vadd.f32 %v435, %v1540
      %v1542 = vpop.f32.mrf.mxu0
      %v1543 = vadd.f32 %v435, %v1542
      %1544 = vmatmul.bf16.gmra.mxu0 %v1128
      %v1545 = vpop.f32.mrf.mxu0
      %v1546 = vadd.f32 %v435, %v1545
      %v1547 = vpop.f32.mrf.mxu0
      %v1548 = vadd.f32 %v435, %v1547
      %1549 = vmatmul.bf16.gmra.mxu0 %v1131
      %v1550 = vpop.f32.mrf.mxu0
      %v1551 = vadd.f32 %v435, %v1550
      %v1552 = vpop.f32.mrf.mxu0
      %v1553 = vadd.f32 %v435, %v1552
      %1554 = vmatmul.bf16.gmra.mxu0 %v1134
      %v1555 = vpop.f32.mrf.mxu0
      %v1556 = vadd.f32 %v435, %v1555
      %v1557 = vpop.f32.mrf.mxu0
      %v1558 = vadd.f32 %v435, %v1557
      %1559 = vmatmul.bf16.gmra.mxu0 %v1137
      %v1560 = vpop.f32.mrf.mxu0
      %v1561 = vadd.f32 %v435, %v1560
      %v1562 = vpop.f32.mrf.mxu0
      %v1563 = vadd.f32 %v435, %v1562
      %1564 = vmatmul.bf16.gmra.mxu0 %v1140
      %v1565 = vpop.f32.mrf.mxu0
      %v1566 = vadd.f32 %v435, %v1565
      %v1567 = vpop.f32.mrf.mxu0
      %v1568 = vadd.f32 %v435, %v1567
      %1569 = vmatmul.bf16.gmra.mxu0 %v1143
      %v1570 = vpop.f32.mrf.mxu0
      %v1571 = vadd.f32 %v435, %v1570
      %v1572 = vpop.f32.mrf.mxu0
      %v1573 = vadd.f32 %v435, %v1572
      %1574 = vmatmul.bf16.gmra.mxu0 %v1146
      %v1575 = vpop.f32.mrf.mxu0
      %v1576 = vadd.f32 %v435, %v1575
      %v1577 = vpop.f32.mrf.mxu0
      %v1578 = vadd.f32 %v435, %v1577
      %1579 = vmatmul.bf16.gmra.mxu0 %v1149
      %v1580 = vpop.f32.mrf.mxu0
      %v1581 = vadd.f32 %v435, %v1580
      %v1582 = vpop.f32.mrf.mxu0
      %v1583 = vadd.f32 %v435, %v1582
      %1584 = vmatmul.bf16.gmra.mxu0 %v1152
      %v1585 = vpop.f32.mrf.mxu0
      %v1586 = vadd.f32 %v435, %v1585
      %v1587 = vpop.f32.mrf.mxu0
      %v1588 = vadd.f32 %v435, %v1587
      %1589 = vmatmul.bf16.gmra.mxu0 %v1155
      %v1590 = vpop.f32.mrf.mxu0
      %v1591 = vadd.f32 %v435, %v1590
      %v1592 = vpop.f32.mrf.mxu0
      %v1593 = vadd.f32 %v435, %v1592
      %1594 = vmatmul.bf16.gmra.mxu0 %v1158
      %v1595 = vpop.f32.mrf.mxu0
      %v1596 = vadd.f32 %v435, %v1595
      %v1597 = vpop.f32.mrf.mxu0
      %v1598 = vadd.f32 %v435, %v1597
      %1599 = vmatmul.bf16.gmra.mxu0 %v1161
      %v1600 = vpop.f32.mrf.mxu0
      %v1601 = vadd.f32 %v435, %v1600
      %v1602 = vpop.f32.mrf.mxu0
      %v1603 = vadd.f32 %v435, %v1602
      %1604 = vmatmul.bf16.gmra.mxu0 %v1164
      %v1605 = vpop.f32.mrf.mxu0
      %v1606 = vadd.f32 %v435, %v1605
      %v1607 = vpop.f32.mrf.mxu0
      %v1608 = vadd.f32 %v435, %v1607
      %1609 = vmatmul.bf16.gmra.mxu0 %v1167
      %v1610 = vpop.f32.mrf.mxu0
      %v1611 = vadd.f32 %v435, %v1610
      %v1612 = vpop.f32.mrf.mxu0
      %v1613 = vadd.f32 %v435, %v1612
      %1614 = vmatmul.bf16.gmra.mxu0 %v1170
      %v1615 = vpop.f32.mrf.mxu0
      %v1616 = vadd.f32 %v435, %v1615
      %v1617 = vpop.f32.mrf.mxu0
      %v1618 = vadd.f32 %v435, %v1617
      %1619 = vmatmul.bf16.gmra.mxu0 %v1173
      %v1620 = vpop.f32.mrf.mxu0
      %v1621 = vadd.f32 %v435, %v1620
      %v1622 = vpop.f32.mrf.mxu0
      %v1623 = vadd.f32 %v435, %v1622
      %1624 = vmatmul.bf16.gmra.mxu0 %v1176
      %v1625 = vpop.f32.mrf.mxu0
      %v1626 = vadd.f32 %v435, %v1625
      %v1627 = vpop.f32.mrf.mxu0
      %v1628 = vadd.f32 %v435, %v1627
      %1629 = vmatmul.bf16.gmra.mxu0 %v1179
      %v1630 = vpop.f32.mrf.mxu0
      %v1631 = vadd.f32 %v435, %v1630
      %v1632 = vpop.f32.mrf.mxu0
      %v1633 = vadd.f32 %v435, %v1632
      %1634 = vmatmul.bf16.gmra.mxu0 %v1182
      %v1635 = vpop.f32.mrf.mxu0
      %v1636 = vadd.f32 %v435, %v1635
      %v1637 = vpop.f32.mrf.mxu0
      %v1638 = vadd.f32 %v435, %v1637
      %1639 = vmatmul.bf16.gmra.mxu0 %v1185
      %v1640 = vpop.f32.mrf.mxu0
      %v1641 = vadd.f32 %v435, %v1640
      %v1642 = vpop.f32.mrf.mxu0
      %v1643 = vadd.f32 %v435, %v1642
      %1644 = vmatmul.bf16.gmra.mxu0 %v1188
      %v1645 = vpop.f32.mrf.mxu0
      %v1646 = vadd.f32 %v435, %v1645
      %v1647 = vpop.f32.mrf.mxu0
      %v1648 = vadd.f32 %v435, %v1647
      %1649 = vmatmul.bf16.gmra.mxu0 %v1191
      %v1650 = vpop.f32.mrf.mxu0
      %v1651 = vadd.f32 %v435, %v1650
      %v1652 = vpop.f32.mrf.mxu0
      %v1653 = vadd.f32 %v435, %v1652
      %1654 = vmatmul.bf16.gmra.mxu0 %v1194
      %v1655 = vpop.f32.mrf.mxu0
      %v1656 = vadd.f32 %v435, %v1655
      %v1657 = vpop.f32.mrf.mxu0
      %v1658 = vadd.f32 %v435, %v1657
      %1659 = vmatmul.bf16.gmra.mxu0 %v1197
      %v1660 = vpop.f32.mrf.mxu0
      %v1661 = vadd.f32 %v435, %v1660
      %v1662 = vpop.f32.mrf.mxu0
      %v1663 = vadd.f32 %v435, %v1662
      %1664 = vmatmul.bf16.gmra.mxu0 %v1200
      %v1665 = vpop.f32.mrf.mxu0
      %v1666 = vadd.f32 %v435, %v1665
      %v1667 = vpop.f32.mrf.mxu0
      %v1668 = vadd.f32 %v435, %v1667
      %1669 = vmatmul.bf16.gmra.mxu0 %v1203
      %v1670 = vpop.f32.mrf.mxu0
      %v1671 = vadd.f32 %v435, %v1670
      %v1672 = vpop.f32.mrf.mxu0
      %v1673 = vadd.f32 %v435, %v1672
      %1674 = vmatmul.bf16.gmra.mxu0 %v1206
      %v1675 = vpop.f32.mrf.mxu0
      %v1676 = vadd.f32 %v435, %v1675
      %v1677 = vpop.f32.mrf.mxu0
      %v1678 = vadd.f32 %v435, %v1677
      %1679 = vmatmul.bf16.gmra.mxu0 %v1209
      %v1680 = vpop.f32.mrf.mxu0
      %v1681 = vadd.f32 %v435, %v1680
      %v1682 = vpop.f32.mrf.mxu0
      %v1683 = vadd.f32 %v435, %v1682
      %1684 = vmatmul.bf16.gmra.mxu0 %v1212
      %v1685 = vpop.f32.mrf.mxu0
      %v1686 = vadd.f32 %v435, %v1685
      %v1687 = vpop.f32.mrf.mxu0
      %v1688 = vadd.f32 %v435, %v1687
      %1689 = vmatmul.bf16.gmra.mxu0 %v1215
      %v1690 = vpop.f32.mrf.mxu0
      %v1691 = vadd.f32 %v435, %v1690
      %v1692 = vpop.f32.mrf.mxu0
      %v1693 = vadd.f32 %v435, %v1692
      %1694 = vmatmul.bf16.gmra.mxu0 %v1218
      %v1695 = vpop.f32.mrf.mxu0
      %v1696 = vadd.f32 %v435, %v1695
      %v1697 = vpop.f32.mrf.mxu0
      %v1698 = vadd.f32 %v435, %v1697
      %1699 = vmatmul.bf16.gmra.mxu0 %v1221
      %v1700 = vpop.f32.mrf.mxu0
      %v1701 = vadd.f32 %v435, %v1700
      %v1702 = vpop.f32.mrf.mxu0
      %v1703 = vadd.f32 %v435, %v1702
      %1704 = vmatmul.bf16.gmra.mxu0 %v1224
      %v1705 = vpop.f32.mrf.mxu0
      %v1706 = vadd.f32 %v435, %v1705
      %v1707 = vpop.f32.mrf.mxu0
      %v1708 = vadd.f32 %v435, %v1707
      %1709 = vmatmul.bf16.gmra.mxu0 %v1227
      %v1710 = vpop.f32.mrf.mxu0
      %v1711 = vadd.f32 %v435, %v1710
      %v1712 = vpop.f32.mrf.mxu0
      %v1713 = vadd.f32 %v435, %v1712
      %1714 = vmatmul.bf16.gmra.mxu0 %v1230
      %v1715 = vpop.f32.mrf.mxu0
      %v1716 = vadd.f32 %v435, %v1715
      %v1717 = vpop.f32.mrf.mxu0
      %v1718 = vadd.f32 %v435, %v1717
      %1719 = vmatmul.bf16.gmra.mxu0 %v1233
      %v1720 = vpop.f32.mrf.mxu0
      %v1721 = vadd.f32 %v435, %v1720
      %v1722 = vpop.f32.mrf.mxu0
      %v1723 = vadd.f32 %v435, %v1722
      %1724 = vmatmul.bf16.gmra.mxu0 %v1236
      %v1725 = vpop.f32.mrf.mxu0
      %v1726 = vadd.f32 %v435, %v1725
      %v1727 = vpop.f32.mrf.mxu0
      %v1728 = vadd.f32 %v435, %v1727
      %1729 = vmatmul.bf16.gmra.mxu0 %v1239
      %v1730 = vpop.f32.mrf.mxu0
      %v1731 = vadd.f32 %v435, %v1730
      %v1732 = vpop.f32.mrf.mxu0
      %v1733 = vadd.f32 %v435, %v1732
      %1734 = vmatmul.bf16.gmra.mxu0 %v1242
      %v1735 = vpop.f32.mrf.mxu0
      %v1736 = vadd.f32 %v435, %v1735
      %v1737 = vpop.f32.mrf.mxu0
      %v1738 = vadd.f32 %v435, %v1737
      %1739 = vmatmul.bf16.gmra.mxu0 %v1245
      %v1740 = vpop.f32.mrf.mxu0
      %v1741 = vadd.f32 %v435, %v1740
      %v1742 = vpop.f32.mrf.mxu0
      %v1743 = vadd.f32 %v435, %v1742
      %1744 = vmatmul.bf16.gmra.mxu0 %v1248
      %v1745 = vpop.f32.mrf.mxu0
      %v1746 = vadd.f32 %v435, %v1745
      %v1747 = vpop.f32.mrf.mxu0
      %v1748 = vadd.f32 %v435, %v1747
      %1749 = vmatmul.bf16.gmra.mxu0 %v1251
      %v1750 = vpop.f32.mrf.mxu0
      %v1751 = vadd.f32 %v435, %v1750
      %v1752 = vpop.f32.mrf.mxu0
      %v1753 = vadd.f32 %v435, %v1752
      %1754 = vmatmul.bf16.gmra.mxu0 %v1254
      %v1755 = vpop.f32.mrf.mxu0
      %v1756 = vadd.f32 %v435, %v1755
      %v1757 = vpop.f32.mrf.mxu0
      %v1758 = vadd.f32 %v435, %v1757
      %1759 = vmatmul.bf16.gmra.mxu0 %v1257
      %v1760 = vpop.f32.mrf.mxu0
      %v1761 = vadd.f32 %v435, %v1760
      %v1762 = vpop.f32.mrf.mxu0
      %v1763 = vadd.f32 %v435, %v1762
      %1764 = vmatmul.bf16.gmra.mxu0 %v1260
      %v1765 = vpop.f32.mrf.mxu0
      %v1766 = vadd.f32 %v435, %v1765
      %v1767 = vpop.f32.mrf.mxu0
      %v1768 = vadd.f32 %v435, %v1767
      %1769 = vmatmul.bf16.gmra.mxu0 %v1263
      %v1770 = vpop.f32.mrf.mxu0
      %v1771 = vadd.f32 %v435, %v1770
      %v1772 = vpop.f32.mrf.mxu0
      %v1773 = vadd.f32 %v435, %v1772
      %1774 = vmatmul.bf16.gmra.mxu0 %v1266
      %v1775 = vpop.f32.mrf.mxu0
      %v1776 = vadd.f32 %v435, %v1775
      %v1777 = vpop.f32.mrf.mxu0
      %v1778 = vadd.f32 %v435, %v1777
      %1779 = vmatmul.bf16.gmra.mxu0 %v1269
      %v1780 = vpop.f32.mrf.mxu0
      %v1781 = vadd.f32 %v435, %v1780
      %v1782 = vpop.f32.mrf.mxu0
      %v1783 = vadd.f32 %v435, %v1782
      %1784 = vmatmul.bf16.gmra.mxu0 %v1272
      %v1785 = vpop.f32.mrf.mxu0
      %v1786 = vadd.f32 %v435, %v1785
      %v1787 = vpop.f32.mrf.mxu0
      %v1788 = vadd.f32 %v435, %v1787
      %1789 = vmatmul.bf16.gmra.mxu0 %v1275
      %v1790 = vpop.f32.mrf.mxu0
      %v1791 = vadd.f32 %v435, %v1790
      %v1792 = vpop.f32.mrf.mxu0
      %v1793 = vadd.f32 %v435, %v1792
      %1794 = vmatmul.bf16.gmra.mxu0 %v1278
      %v1795 = vpop.f32.mrf.mxu0
      %v1796 = vadd.f32 %v435, %v1795
      %v1797 = vpop.f32.mrf.mxu0
      %v1798 = vadd.f32 %v435, %v1797
      %1799 = vmatmul.bf16.gmra.mxu0 %v1281
      %v1800 = vpop.f32.mrf.mxu0
      %v1801 = vadd.f32 %v435, %v1800
      %v1802 = vpop.f32.mrf.mxu0
      %v1803 = vadd.f32 %v435, %v1802
      %1804 = vmatmul.bf16.gmra.mxu0 %v1284
      %v1805 = vpop.f32.mrf.mxu0
      %v1806 = vadd.f32 %v435, %v1805
      %v1807 = vpop.f32.mrf.mxu0
      %v1808 = vadd.f32 %v435, %v1807
      %1809 = vmatmul.bf16.gmra.mxu0 %v1287
      %v1810 = vpop.f32.mrf.mxu0
      %v1811 = vadd.f32 %v435, %v1810
      %v1812 = vpop.f32.mrf.mxu0
      %v1813 = vadd.f32 %v435, %v1812
      %1814 = vmatmul.bf16.gmra.mxu0 %v1290
      %v1815 = vpop.f32.mrf.mxu0
      %v1816 = vadd.f32 %v435, %v1815
      %v1817 = vpop.f32.mrf.mxu0
      %v1818 = vadd.f32 %v435, %v1817
      %1819 = vmatmul.bf16.gmra.mxu0 %v1293
      %v1820 = vpop.f32.mrf.mxu0
      %v1821 = vadd.f32 %v435, %v1820
      %v1822 = vpop.f32.mrf.mxu0
      %v1823 = vadd.f32 %v435, %v1822
      %1824 = vmatmul.bf16.gmra.mxu0 %v1296
      %v1825 = vpop.f32.mrf.mxu0
      %v1826 = vadd.f32 %v435, %v1825
      %v1827 = vpop.f32.mrf.mxu0
      %v1828 = vadd.f32 %v435, %v1827
      %1829 = vmatmul.bf16.gmra.mxu0 %v1299
      %v1830 = vpop.f32.mrf.mxu0
      %v1831 = vadd.f32 %v435, %v1830
      %v1832 = vpop.f32.mrf.mxu0
      %v1833 = vadd.f32 %v435, %v1832
      %1834 = vmatmul.bf16.gmra.mxu0 %v1302
      %v1835 = vpop.f32.mrf.mxu0
      %v1836 = vadd.f32 %v435, %v1835
      %v1837 = vpop.f32.mrf.mxu0
      %v1838 = vadd.f32 %v435, %v1837
      %1839 = vmatmul.bf16.gmra.mxu0 %v1305
      %v1840 = vpop.f32.mrf.mxu0
      %v1841 = vadd.f32 %v435, %v1840
      %v1842 = vpop.f32.mrf.mxu0
      %v1843 = vadd.f32 %v435, %v1842
      %1844 = vmatmul.bf16.gmra.mxu0 %v1308
      %v1845 = vpop.f32.mrf.mxu0
      %v1846 = vadd.f32 %v435, %v1845
      %v1847 = vpop.f32.mrf.mxu0
      %v1848 = vadd.f32 %v435, %v1847
      %1849 = vmatmul.bf16.gmra.mxu0 %v1311
      %v1850 = vpop.f32.mrf.mxu0
      %v1851 = vadd.f32 %v435, %v1850
      %v1852 = vpop.f32.mrf.mxu0
      %v1853 = vadd.f32 %v435, %v1852
      %1854 = vmatmul.bf16.gmra.mxu0 %v1314
      %v1855 = vpop.f32.mrf.mxu0
      %v1856 = vadd.f32 %v435, %v1855
      %v1857 = vpop.f32.mrf.mxu0
      %v1858 = vadd.f32 %v435, %v1857
      %1859 = vmatmul.bf16.gmra.mxu0 %v1317
      %v1860 = vpop.f32.mrf.mxu0
      %v1861 = vadd.f32 %v435, %v1860
      %v1862 = vpop.f32.mrf.mxu0
      %v1863 = vadd.f32 %v435, %v1862
      %1864 = vmatmul.bf16.gmra.mxu0 %v1320
      %v1865 = vpop.f32.mrf.mxu0
      %v1866 = vadd.f32 %v435, %v1865
      %v1867 = vpop.f32.mrf.mxu0
      %v1868 = vadd.f32 %v435, %v1867
      %1869 = vmatmul.bf16.gmra.mxu0 %v1323
      %v1870 = vpop.f32.mrf.mxu0
      %v1871 = vadd.f32 %v435, %v1870
      %v1872 = vpop.f32.mrf.mxu0
      %v1873 = vadd.f32 %v435, %v1872
      %1874 = vmatmul.bf16.gmra.mxu0 %v1326
      %v1875 = vpop.f32.mrf.mxu0
      %v1876 = vadd.f32 %v435, %v1875
      %v1877 = vpop.f32.mrf.mxu0
      %v1878 = vadd.f32 %v435, %v1877
      %1879 = vmatmul.bf16.gmra.mxu0 %v1329
      %v1880 = vpop.f32.mrf.mxu0
      %v1881 = vadd.f32 %v435, %v1880
      %v1882 = vpop.f32.mrf.mxu0
      %v1883 = vadd.f32 %v435, %v1882
      %1884 = vmatmul.bf16.gmra.mxu0 %v1332
      %v1885 = vpop.f32.mrf.mxu0
      %v1886 = vadd.f32 %v435, %v1885
      %v1887 = vpop.f32.mrf.mxu0
      %v1888 = vadd.f32 %v435, %v1887
      %1889 = vmatmul.bf16.gmra.mxu0 %v1335
      %v1890 = vpop.f32.mrf.mxu0
      %v1891 = vadd.f32 %v435, %v1890
      %v1892 = vpop.f32.mrf.mxu0
      %v1893 = vadd.f32 %v435, %v1892
      %1894 = vmatmul.bf16.gmra.mxu0 %v1338
      %v1895 = vpop.f32.mrf.mxu0
      %v1896 = vadd.f32 %v435, %v1895
      %v1897 = vpop.f32.mrf.mxu0
      %v1898 = vadd.f32 %v435, %v1897
      %1899 = vmatmul.bf16.gmra.mxu0 %v1341
      %v1900 = vpop.f32.mrf.mxu0
      %v1901 = vadd.f32 %v435, %v1900
      %v1902 = vpop.f32.mrf.mxu0
      %v1903 = vadd.f32 %v435, %v1902
      %1904 = vmatmul.bf16.gmra.mxu0 %v1344
      %v1905 = vpop.f32.mrf.mxu0
      %v1906 = vadd.f32 %v435, %v1905
      %v1907 = vpop.f32.mrf.mxu0
      %v1908 = vadd.f32 %v435, %v1907
      %1909 = vmatmul.bf16.gmra.mxu0 %v1347
      %v1910 = vpop.f32.mrf.mxu0
      %v1911 = vadd.f32 %v435, %v1910
      %v1912 = vpop.f32.mrf.mxu0
      %v1913 = vadd.f32 %v435, %v1912
      %1914 = vmatmul.bf16.gmra.mxu0 %v1350
      %v1915 = vpop.f32.mrf.mxu0
      %v1916 = vadd.f32 %v435, %v1915
      %v1917 = vpop.f32.mrf.mxu0
      %v1918 = vadd.f32 %v435, %v1917
      %1919 = vmatmul.bf16.gmra.mxu0 %v1353
      %v1920 = vpop.f32.mrf.mxu0
      %v1921 = vadd.f32 %v435, %v1920
      %v1922 = vpop.f32.mrf.mxu0
      %v1923 = vadd.f32 %v435, %v1922
      %1924 = vmatmul.bf16.gmra.mxu0 %v1356
      %v1925 = vpop.f32.mrf.mxu0
      %v1926 = vadd.f32 %v435, %v1925
      %v1927 = vpop.f32.mrf.mxu0
      %v1928 = vadd.f32 %v435, %v1927
      %1929 = vmatmul.bf16.gmra.mxu0 %v1359
      %v1930 = vpop.f32.mrf.mxu0
      %v1931 = vadd.f32 %v435, %v1930
      %v1932 = vpop.f32.mrf.mxu0
      %v1933 = vadd.f32 %v435, %v1932
      %1934 = vmatmul.bf16.gmra.mxu0 %v1362
      %v1935 = vpop.f32.mrf.mxu0
      %v1936 = vadd.f32 %v435, %v1935
      %v1937 = vpop.f32.mrf.mxu0
      %v1938 = vadd.f32 %v435, %v1937
      %1939 = vmatmul.bf16.gmra.mxu0 %v1365
      %v1940 = vpop.f32.mrf.mxu0
      %v1941 = vadd.f32 %v435, %v1940
      %v1942 = vpop.f32.mrf.mxu0
      %v1943 = vadd.f32 %v435, %v1942
      %1944 = vmatmul.bf16.gmra.mxu0 %v1368
      %v1945 = vpop.f32.mrf.mxu0
      %v1946 = vadd.f32 %v435, %v1945
      %v1947 = vpop.f32.mrf.mxu0
      %v1948 = vadd.f32 %v435, %v1947
      %1949 = vmatmul.bf16.gmra.mxu0 %v1371
      %v1950 = vpop.f32.mrf.mxu0
      %v1951 = vadd.f32 %v435, %v1950
      %v1952 = vpop.f32.mrf.mxu0
      %v1953 = vadd.f32 %v435, %v1952
      %1954 = vmatmul.bf16.gmra.mxu0 %v1374
      %v1955 = vpop.f32.mrf.mxu0
      %v1956 = vadd.f32 %v435, %v1955
      %v1957 = vpop.f32.mrf.mxu0
      %v1958 = vadd.f32 %v435, %v1957
      %1959 = vmatmul.bf16.gmra.mxu0 %v1377
      %v1960 = vpop.f32.mrf.mxu0
      %v1961 = vadd.f32 %v435, %v1960
      %v1962 = vpop.f32.mrf.mxu0
      %v1963 = vadd.f32 %v435, %v1962
      %1964 = vmatmul.bf16.gmra.mxu0 %v1380
      %v1965 = vpop.f32.mrf.mxu0
      %v1966 = vadd.f32 %v435, %v1965
      %v1967 = vpop.f32.mrf.mxu0
      %v1968 = vadd.f32 %v435, %v1967
      %1969 = vmatmul.bf16.gmra.mxu0 %v1383
      %v1970 = vpop.f32.mrf.mxu0
      %v1971 = vadd.f32 %v435, %v1970
      %v1972 = vpop.f32.mrf.mxu0
      %v1973 = vadd.f32 %v435, %v1972
      %1974 = vmatmul.bf16.gmra.mxu0 %v1386
      %v1975 = vpop.f32.mrf.mxu0
      %v1976 = vadd.f32 %v435, %v1975
      %v1977 = vpop.f32.mrf.mxu0
      %v1978 = vadd.f32 %v435, %v1977
      %1979 = vmatmul.bf16.gmra.mxu0 %v1389
      %v1980 = vpop.f32.mrf.mxu0
      %v1981 = vadd.f32 %v435, %v1980
      %v1982 = vpop.f32.mrf.mxu0
      %v1983 = vadd.f32 %v435, %v1982
      %1984 = vmatmul.bf16.gmra.mxu0 %v1392
      %v1985 = vpop.f32.mrf.mxu0
      %v1986 = vadd.f32 %v435, %v1985
      %v1987 = vpop.f32.mrf.mxu0
      %v1988 = vadd.f32 %v435, %v1987
      %1989 = vmatmul.bf16.gmra.mxu0 %v1395
      %v1990 = vpop.f32.mrf.mxu0
      %v1991 = vadd.f32 %v435, %v1990
      %v1992 = vpop.f32.mrf.mxu0
      %v1993 = vadd.f32 %v435, %v1992
      %1994 = vmatmul.bf16.gmra.mxu0 %v1398
      %v1995 = vpop.f32.mrf.mxu0
      %v1996 = vadd.f32 %v435, %v1995
      %v1997 = vpop.f32.mrf.mxu0
      %v1998 = vadd.f32 %v435, %v1997
      %1999 = vmatmul.bf16.gmra.mxu0 %v1401
      %v2000 = vpop.f32.mrf.mxu0
      %v2001 = vadd.f32 %v435, %v2000
      %v2002 = vpop.f32.mrf.mxu0
      %v2003 = vadd.f32 %v435, %v2002
      %2004 = vmatmul.bf16.gmra.mxu0 %v1404
      %v2005 = vpop.f32.mrf.mxu0
      %v2006 = vadd.f32 %v435, %v2005
      %v2007 = vpop.f32.mrf.mxu0
      %v2008 = vadd.f32 %v435, %v2007
      %2009 = vmatmul.bf16.gmra.mxu0 %v1407
      %v2010 = vpop.f32.mrf.mxu0
      %v2011 = vadd.f32 %v435, %v2010
      %v2012 = vpop.f32.mrf.mxu0
      %v2013 = vadd.f32 %v435, %v2012
      %2014 = vmatmul.bf16.gmra.mxu0 %v1410
      %v2015 = vpop.f32.mrf.mxu0
      %v2016 = vadd.f32 %v435, %v2015
      %v2017 = vpop.f32.mrf.mxu0
      %v2018 = vadd.f32 %v435, %v2017
      %2019 = vmatmul.bf16.gmra.mxu0 %v1413
      %v2020 = vpop.f32.mrf.mxu0
      %v2021 = vadd.f32 %v435, %v2020
      %v2022 = vpop.f32.mrf.mxu0
      %v2023 = vadd.f32 %v435, %v2022
      %2024 = vmatmul.bf16.gmra.mxu0 %v1416
      %v2025 = vpop.f32.mrf.mxu0
      %v2026 = vadd.f32 %v435, %v2025
      %v2027 = vpop.f32.mrf.mxu0
      %v2028 = vadd.f32 %v435, %v2027
      %2029 = vmatmul.bf16.gmra.mxu0 %v1419
      %v2030 = vpop.f32.mrf.mxu0
      %v2031 = vadd.f32 %v435, %v2030
      %v2032 = vpop.f32.mrf.mxu0
      %v2033 = vadd.f32 %v435, %v2032
      %2034 = vmatmul.bf16.gmra.mxu0 %v1422
      %v2035 = vpop.f32.mrf.mxu0
      %v2036 = vadd.f32 %v435, %v2035
      %v2037 = vpop.f32.mrf.mxu0
      %v2038 = vadd.f32 %v435, %v2037
      %2039 = vmatmul.bf16.gmra.mxu0 %v1425
      %v2040 = vpop.f32.mrf.mxu0
      %v2041 = vadd.f32 %v435, %v2040
      %v2042 = vpop.f32.mrf.mxu0
      %v2043 = vadd.f32 %v435, %v2042
      %2044 = vmatmul.bf16.gmra.mxu0 %v1428
      %v2045 = vpop.f32.mrf.mxu0
      %v2046 = vadd.f32 %v435, %v2045
      %v2047 = vpop.f32.mrf.mxu0
      %v2048 = vadd.f32 %v435, %v2047
      %2049 = vmatmul.bf16.gmra.mxu0 %v1431
      %v2050 = vpop.f32.mrf.mxu0
      %v2051 = vadd.f32 %v435, %v2050
      %v2052 = vpop.f32.mrf.mxu0
      %v2053 = vadd.f32 %v435, %v2052
      %2054 = vmatmul.bf16.gmra.mxu0 %v1434
      %v2055 = vpop.f32.mrf.mxu0
      %v2056 = vadd.f32 %v435, %v2055
      %v2057 = vpop.f32.mrf.mxu0
      %v2058 = vadd.f32 %v435, %v2057
      %2059 = vmatmul.bf16.gmra.mxu0 %v1437
      %v2060 = vpop.f32.mrf.mxu0
      %v2061 = vadd.f32 %v435, %v2060
      %v2062 = vpop.f32.mrf.mxu0
      %v2063 = vadd.f32 %v435, %v2062
      %2064 = vmatmul.bf16.gmra.mxu0 %v1440
      %v2065 = vpop.f32.mrf.mxu0
      %v2066 = vadd.f32 %v435, %v2065
      %v2067 = vpop.f32.mrf.mxu0
      %v2068 = vadd.f32 %v435, %v2067
      %2069 = vmatmul.bf16.gmra.mxu0 %v1443
      %v2070 = vpop.f32.mrf.mxu0
      %v2071 = vadd.f32 %v435, %v2070
      %v2072 = vpop.f32.mrf.mxu0
      %v2073 = vadd.f32 %v435, %v2072
      %2074 = vmatmul.bf16.gmra.mxu0 %v1446
      %v2075 = vpop.f32.mrf.mxu0
      %v2076 = vadd.f32 %v435, %v2075
      %v2077 = vpop.f32.mrf.mxu0
      %v2078 = vadd.f32 %v435, %v2077
      %2079 = vmatmul.bf16.gmra.mxu0 %v1449
      %v2080 = vpop.f32.mrf.mxu0
      %v2081 = vadd.f32 %v435, %v2080
      %v2082 = vpop.f32.mrf.mxu0
      %v2083 = vadd.f32 %v435, %v2082
      %2084 = vmatmul.bf16.gmra.mxu0 %v1452
      %v2085 = vpop.f32.mrf.mxu0
      %v2086 = vadd.f32 %v435, %v2085
      %v2087 = vpop.f32.mrf.mxu0
      %v2088 = vadd.f32 %v435, %v2087
      %2089 = vmatmul.bf16.gmra.mxu0 %v1455
      %v2090 = vpop.f32.mrf.mxu0
      %v2091 = vadd.f32 %v435, %v2090
      %v2092 = vpop.f32.mrf.mxu0
      %v2093 = vadd.f32 %v435, %v2092
      %2094 = vmatmul.bf16.gmra.mxu0 %v1458
      %v2095 = vpop.f32.mrf.mxu0
      %v2096 = vadd.f32 %v435, %v2095
      %v2097 = vpop.f32.mrf.mxu0
      %v2098 = vadd.f32 %v435, %v2097
      %2099 = vmatmul.bf16.gmra.mxu0 %v1461
      %v2100 = vpop.f32.mrf.mxu0
      %v2101 = vadd.f32 %v435, %v2100
      %v2102 = vpop.f32.mrf.mxu0
      %v2103 = vadd.f32 %v435, %v2102
      %2104 = vmatmul.bf16.gmra.mxu0 %v1464
      %v2105 = vpop.f32.mrf.mxu0
      %v2106 = vadd.f32 %v435, %v2105
      %v2107 = vpop.f32.mrf.mxu0
      %v2108 = vadd.f32 %v435, %v2107
      %2109 = vdwg.mxu0
      %v2110 = vtanh.pop %v1476
      %v2111 = vtanh.pop %v1478
      %v2112 = vtanh.pop %v1481
      %v2113 = vtanh.pop %v1483
      %v2114 = vtanh.pop %v1486
      %v2115 = vtanh.pop %v1488
      %v2116 = vtanh.pop %v1491
      %v2117 = vtanh.pop %v1493
      %v2118 = vtanh.pop %v1496
      %v2119 = vtanh.pop %v1498
      %v2120 = vtanh.pop %v1501
      %v2121 = vtanh.pop %v1503
      %v2122 = vtanh.pop %v1506
      %v2123 = vtanh.pop %v1508
      %v2124 = vtanh.pop %v1511
      %v2125 = vtanh.pop %v1513
      %v2126 = vtanh.pop %v1516
      %v2127 = vtanh.pop %v1518
      %v2128 = vtanh.pop %v1521
      %v2129 = vtanh.pop %v1523
      %v2130 = vtanh.pop %v1526
      %v2131 = vtanh.pop %v1528
      %v2132 = vtanh.pop %v1531
      %v2133 = vtanh.pop %v1533
      %v2134 = vtanh.pop %v1536
      %v2135 = vtanh.pop %v1538
      %v2136 = vtanh.pop %v1541
      %v2137 = vtanh.pop %v1543
      %v2138 = vtanh.pop %v1546
      %v2139 = vtanh.pop %v1548
      %v2140 = vtanh.pop %v1551
      %v2141 = vtanh.pop %v1553
      %v2142 = vtanh.pop %v1556
      %v2143 = vtanh.pop %v1558
      %v2144 = vtanh.pop %v1561
      %v2145 = vtanh.pop %v1563
      %v2146 = vtanh.pop %v1566
      %v2147 = vtanh.pop %v1568
      %v2148 = vtanh.pop %v1571
      %v2149 = vtanh.pop %v1573
      %v2150 = vtanh.pop %v1576
      %v2151 = vtanh.pop %v1578
      %v2152 = vtanh.pop %v1581
      %v2153 = vtanh.pop %v1583
      %v2154 = vtanh.pop %v1586
      %v2155 = vtanh.pop %v1588
      %v2156 = vtanh.pop %v1591
      %v2157 = vtanh.pop %v1593
      %v2158 = vtanh.pop %v1596
      %v2159 = vtanh.pop %v1598
      %v2160 = vtanh.pop %v1601
      %v2161 = vtanh.pop %v1603
      %v2162 = vtanh.pop %v1606
      %v2163 = vtanh.pop %v1608
      %v2164 = vtanh.pop %v1611
      %v2165 = vtanh.pop %v1613
      %v2166 = vtanh.pop %v1616
      %v2167 = vtanh.pop %v1618
      %v2168 = vtanh.pop %v1621
      %v2169 = vtanh.pop %v1623
      %v2170 = vtanh.pop %v1626
      %v2171 = vtanh.pop %v1628
      %v2172 = vtanh.pop %v1631
      %v2173 = vtanh.pop %v1633
      %v2174 = vtanh.pop %v1636
      %v2175 = vtanh.pop %v1638
      %v2176 = vtanh.pop %v1641
      %v2177 = vtanh.pop %v1643
      %v2178 = vtanh.pop %v1646
      %v2179 = vtanh.pop %v1648
      %v2180 = vtanh.pop %v1651
      %v2181 = vtanh.pop %v1653
      %v2182 = vtanh.pop %v1656
      %v2183 = vtanh.pop %v1658
      %v2184 = vtanh.pop %v1661
      %v2185 = vtanh.pop %v1663
      %v2186 = vtanh.pop %v1666
      %v2187 = vtanh.pop %v1668
      %v2188 = vtanh.pop %v1671
      %v2189 = vtanh.pop %v1673
      %v2190 = vtanh.pop %v1676
      %v2191 = vtanh.pop %v1678
      %v2192 = vtanh.pop %v1681
      %v2193 = vtanh.pop %v1683
      %v2194 = vtanh.pop %v1686
      %v2195 = vtanh.pop %v1688
      %v2196 = vtanh.pop %v1691
      %v2197 = vtanh.pop %v1693
      %v2198 = vtanh.pop %v1696
      %v2199 = vtanh.pop %v1698
      %v2200 = vtanh.pop %v1701
      %v2201 = vtanh.pop %v1703
      %v2202 = vtanh.pop %v1706
      %v2203 = vtanh.pop %v1708
      %v2204 = vtanh.pop %v1711
      %v2205 = vtanh.pop %v1713
      %v2206 = vtanh.pop %v1716
      %v2207 = vtanh.pop %v1718
      %v2208 = vtanh.pop %v1721
      %v2209 = vtanh.pop %v1723
      %v2210 = vtanh.pop %v1726
      %v2211 = vtanh.pop %v1728
      %v2212 = vtanh.pop %v1731
      %v2213 = vtanh.pop %v1733
      %v2214 = vtanh.pop %v1736
      %v2215 = vtanh.pop %v1738
      %v2216 = vtanh.pop %v1741
      %v2217 = vtanh.pop %v1743
      %v2218 = vtanh.pop %v1746
      %v2219 = vtanh.pop %v1748
      %v2220 = vtanh.pop %v1751
      %v2221 = vtanh.pop %v1753
      %v2222 = vtanh.pop %v1756
      %v2223 = vtanh.pop %v1758
      %v2224 = vtanh.pop %v1761
      %v2225 = vtanh.pop %v1763
      %v2226 = vtanh.pop %v1766
      %v2227 = vtanh.pop %v1768
      %v2228 = vtanh.pop %v1771
      %v2229 = vtanh.pop %v1773
      %v2230 = vtanh.pop %v1776
      %v2231 = vtanh.pop %v1778
      %v2232 = vtanh.pop %v1781
      %v2233 = vtanh.pop %v1783
      %v2234 = vtanh.pop %v1786
      %v2235 = vtanh.pop %v1788
      %v2236 = vtanh.pop %v1791
      %v2237 = vtanh.pop %v1793
      %v2238 = vtanh.pop %v1796
      %v2239 = vtanh.pop %v1798
      %v2240 = vtanh.pop %v1801
      %v2241 = vtanh.pop %v1803
      %v2242 = vtanh.pop %v1806
      %v2243 = vtanh.pop %v1808
      %v2244 = vtanh.pop %v1811
      %v2245 = vtanh.pop %v1813
      %v2246 = vtanh.pop %v1816
      %v2247 = vtanh.pop %v1818
      %v2248 = vtanh.pop %v1821
      %v2249 = vtanh.pop %v1823
      %v2250 = vtanh.pop %v1826
      %v2251 = vtanh.pop %v1828
      %v2252 = vtanh.pop %v1831
      %v2253 = vtanh.pop %v1833
      %v2254 = vtanh.pop %v1836
      %v2255 = vtanh.pop %v1838
      %v2256 = vtanh.pop %v1841
      %v2257 = vtanh.pop %v1843
      %v2258 = vtanh.pop %v1846
      %v2259 = vtanh.pop %v1848
      %v2260 = vtanh.pop %v1851
      %v2261 = vtanh.pop %v1853
      %v2262 = vtanh.pop %v1856
      %v2263 = vtanh.pop %v1858
      %v2264 = vtanh.pop %v1861
      %v2265 = vtanh.pop %v1863
      %v2266 = vtanh.pop %v1866
      %v2267 = vtanh.pop %v1868
      %v2268 = vtanh.pop %v1871
      %v2269 = vtanh.pop %v1873
      %v2270 = vtanh.pop %v1876
      %v2271 = vtanh.pop %v1878
      %v2272 = vtanh.pop %v1881
      %v2273 = vtanh.pop %v1883
      %v2274 = vtanh.pop %v1886
      %v2275 = vtanh.pop %v1888
      %v2276 = vtanh.pop %v1891
      %v2277 = vtanh.pop %v1893
      %v2278 = vtanh.pop %v1896
      %v2279 = vtanh.pop %v1898
      %v2280 = vtanh.pop %v1901
      %v2281 = vtanh.pop %v1903
      %v2282 = vtanh.pop %v1906
      %v2283 = vtanh.pop %v1908
      %v2284 = vtanh.pop %v1911
      %v2285 = vtanh.pop %v1913
      %v2286 = vtanh.pop %v1916
      %v2287 = vtanh.pop %v1918
      %v2288 = vtanh.pop %v1921
      %v2289 = vtanh.pop %v1923
      %v2290 = vtanh.pop %v1926
      %v2291 = vtanh.pop %v1928
      %v2292 = vtanh.pop %v1931
      %v2293 = vtanh.pop %v1933
      %v2294 = vtanh.pop %v1936
      %v2295 = vtanh.pop %v1938
      %v2296 = vtanh.pop %v1941
      %v2297 = vtanh.pop %v1943
      %v2298 = vtanh.pop %v1946
      %v2299 = vtanh.pop %v1948
      %v2300 = vtanh.pop %v1951
      %v2301 = vtanh.pop %v1953
      %v2302 = vtanh.pop %v1956
      %v2303 = vtanh.pop %v1958
      %v2304 = vtanh.pop %v1961
      %v2305 = vtanh.pop %v1963
      %v2306 = vtanh.pop %v1966
      %v2307 = vtanh.pop %v1968
      %v2308 = vtanh.pop %v1971
      %v2309 = vtanh.pop %v1973
      %v2310 = vtanh.pop %v1976
      %v2311 = vtanh.pop %v1978
      %v2312 = vtanh.pop %v1981
      %v2313 = vtanh.pop %v1983
      %v2314 = vtanh.pop %v1986
      %v2315 = vtanh.pop %v1988
      %v2316 = vtanh.pop %v1991
      %v2317 = vtanh.pop %v1993
      %v2318 = vtanh.pop %v1996
      %v2319 = vtanh.pop %v1998
      %v2320 = vtanh.pop %v2001
      %v2321 = vtanh.pop %v2003
      %v2322 = vtanh.pop %v2006
      %v2323 = vtanh.pop %v2008
      %v2324 = vtanh.pop %v2011
      %v2325 = vtanh.pop %v2013
      %v2326 = vtanh.pop %v2016
      %v2327 = vtanh.pop %v2018
      %v2328 = vtanh.pop %v2021
      %v2329 = vtanh.pop %v2023
      %v2330 = vtanh.pop %v2026
      %v2331 = vtanh.pop %v2028
      %v2332 = vtanh.pop %v2031
      %v2333 = vtanh.pop %v2033
      %v2334 = vtanh.pop %v2036
      %v2335 = vtanh.pop %v2038
      %v2336 = vtanh.pop %v2041
      %v2337 = vtanh.pop %v2043
      %v2338 = vtanh.pop %v2046
      %v2339 = vtanh.pop %v2048
      %v2340 = vtanh.pop %v2051
      %v2341 = vtanh.pop %v2053
      %v2342 = vtanh.pop %v2056
      %v2343 = vtanh.pop %v2058
      %v2344 = vtanh.pop %v2061
      %v2345 = vtanh.pop %v2063
      %v2346 = vtanh.pop %v2066
      %v2347 = vtanh.pop %v2068
      %v2348 = vtanh.pop %v2071
      %v2349 = vtanh.pop %v2073
      %v2350 = vtanh.pop %v2076
      %v2351 = vtanh.pop %v2078
      %v2352 = vtanh.pop %v2081
      %v2353 = vtanh.pop %v2083
      %v2354 = vtanh.pop %v2086
      %v2355 = vtanh.pop %v2088
      %v2356 = vtanh.pop %v2091
      %v2357 = vtanh.pop %v2093
      %v2358 = vtanh.pop %v2096
      %v2359 = vtanh.pop %v2098
      %v2360 = vtanh.pop %v2101
      %v2361 = vtanh.pop %v2103
      %v2362 = vtanh.pop %v2106
      %v2363 = vtanh.pop %v2108
      %2364 = vst [vmem:[%s172] sm:$0xff] %v2110
      %2365 = vst [vmem:[%s172 + $0x8] sm:$0xff] %v2111
      %2366 = vst [vmem:[%s172 + $0x10] sm:$0xff] %v2112
      %2367 = vst [vmem:[%s172 + $0x18] sm:$0xff] %v2113
      %2368 = vst [vmem:[%s172 + $0x20] sm:$0xff] %v2114
      %2369 = vst [vmem:[%s172 + $0x28] sm:$0xff] %v2115
      %2370 = vst [vmem:[%s172 + $0x30] sm:$0xff] %v2116
      %2371 = vst [vmem:[%s172 + $0x38] sm:$0xff] %v2117
      %2372 = vst [vmem:[%s172 + $0x40] sm:$0xff] %v2118
      %2373 = vst [vmem:[%s172 + $0x48] sm:$0xff] %v2119
      %2374 = vst [vmem:[%s172 + $0x50] sm:$0xff] %v2120
      %2375 = vst [vmem:[%s172 + $0x58] sm:$0xff] %v2121
      %2376 = vst [vmem:[%s172 + $0x60] sm:$0xff] %v2122
      %2377 = vst [vmem:[%s172 + $0x68] sm:$0xff] %v2123
      %2378 = vst [vmem:[%s172 + $0x70] sm:$0xff] %v2124
      %2379 = vst [vmem:[%s172 + $0x78] sm:$0xff] %v2125
      %2380 = vst [vmem:[%s172 + $0x80] sm:$0xff] %v2126
      %2381 = vst [vmem:[%s172 + $0x88] sm:$0xff] %v2127
      %2382 = vst [vmem:[%s172 + $0x90] sm:$0xff] %v2128
      %2383 = vst [vmem:[%s172 + $0x98] sm:$0xff] %v2129
      %2384 = vst [vmem:[%s172 + $0xa0] sm:$0xff] %v2130
      %2385 = vst [vmem:[%s172 + $0xa8] sm:$0xff] %v2131
      %2386 = vst [vmem:[%s172 + $0xb0] sm:$0xff] %v2132
      %2387 = vst [vmem:[%s172 + $0xb8] sm:$0xff] %v2133
      %2388 = vst [vmem:[%s172 + $0xc0] sm:$0xff] %v2134
      %2389 = vst [vmem:[%s172 + $0xc8] sm:$0xff] %v2135
      %2390 = vst [vmem:[%s172 + $0xd0] sm:$0xff] %v2136
      %2391 = vst [vmem:[%s172 + $0xd8] sm:$0xff] %v2137
      %2392 = vst [vmem:[%s172 + $0xe0] sm:$0xff] %v2138
      %2393 = vst [vmem:[%s172 + $0xe8] sm:$0xff] %v2139
      %2394 = vst [vmem:[%s172 + $0xf0] sm:$0xff] %v2140
      %2395 = vst [vmem:[%s172 + $0xf8] sm:$0xff] %v2141
      %2396 = vst [vmem:[%s172 + $0x100] sm:$0xff] %v2142
      %2397 = vst [vmem:[%s172 + $0x108] sm:$0xff] %v2143
      %2398 = vst [vmem:[%s172 + $0x110] sm:$0xff] %v2144
      %2399 = vst [vmem:[%s172 + $0x118] sm:$0xff] %v2145
      %2400 = vst [vmem:[%s172 + $0x120] sm:$0xff] %v2146
      %2401 = vst [vmem:[%s172 + $0x128] sm:$0xff] %v2147
      %2402 = vst [vmem:[%s172 + $0x130] sm:$0xff] %v2148
      %2403 = vst [vmem:[%s172 + $0x138] sm:$0xff] %v2149
      %2404 = vst [vmem:[%s172 + $0x140] sm:$0xff] %v2150
      %2405 = vst [vmem:[%s172 + $0x148] sm:$0xff] %v2151
      %2406 = vst [vmem:[%s172 + $0x150] sm:$0xff] %v2152
      %2407 = vst [vmem:[%s172 + $0x158] sm:$0xff] %v2153
      %2408 = vst [vmem:[%s172 + $0x160] sm:$0xff] %v2154
      %2409 = vst [vmem:[%s172 + $0x168] sm:$0xff] %v2155
      %2410 = vst [vmem:[%s172 + $0x170] sm:$0xff] %v2156
      %2411 = vst [vmem:[%s172 + $0x178] sm:$0xff] %v2157
      %2412 = vst [vmem:[%s172 + $0x180] sm:$0xff] %v2158
      %2413 = vst [vmem:[%s172 + $0x188] sm:$0xff] %v2159
      %2414 = vst [vmem:[%s172 + $0x190] sm:$0xff] %v2160
      %2415 = vst [vmem:[%s172 + $0x198] sm:$0xff] %v2161
      %2416 = vst [vmem:[%s172 + $0x1a0] sm:$0xff] %v2162
      %2417 = vst [vmem:[%s172 + $0x1a8] sm:$0xff] %v2163
      %2418 = vst [vmem:[%s172 + $0x1b0] sm:$0xff] %v2164
      %2419 = vst [vmem:[%s172 + $0x1b8] sm:$0xff] %v2165
      %2420 = vst [vmem:[%s172 + $0x1c0] sm:$0xff] %v2166
      %2421 = vst [vmem:[%s172 + $0x1c8] sm:$0xff] %v2167
      %2422 = vst [vmem:[%s172 + $0x1d0] sm:$0xff] %v2168
      %2423 = vst [vmem:[%s172 + $0x1d8] sm:$0xff] %v2169
      %2424 = vst [vmem:[%s172 + $0x1e0] sm:$0xff] %v2170
      %2425 = vst [vmem:[%s172 + $0x1e8] sm:$0xff] %v2171
      %2426 = vst [vmem:[%s172 + $0x1f0] sm:$0xff] %v2172
      %2427 = vst [vmem:[%s172 + $0x1f8] sm:$0xff] %v2173
      %2428 = vst [vmem:[%s172 + $0x200] sm:$0xff] %v2174
      %2429 = vst [vmem:[%s172 + $0x208] sm:$0xff] %v2175
      %2430 = vst [vmem:[%s172 + $0x210] sm:$0xff] %v2176
      %2431 = vst [vmem:[%s172 + $0x218] sm:$0xff] %v2177
      %2432 = vst [vmem:[%s172 + $0x220] sm:$0xff] %v2178
      %2433 = vst [vmem:[%s172 + $0x228] sm:$0xff] %v2179
      %2434 = vst [vmem:[%s172 + $0x230] sm:$0xff] %v2180
      %2435 = vst [vmem:[%s172 + $0x238] sm:$0xff] %v2181
      %2436 = vst [vmem:[%s172 + $0x240] sm:$0xff] %v2182
      %2437 = vst [vmem:[%s172 + $0x248] sm:$0xff] %v2183
      %2438 = vst [vmem:[%s172 + $0x250] sm:$0xff] %v2184
      %2439 = vst [vmem:[%s172 + $0x258] sm:$0xff] %v2185
      %2440 = vst [vmem:[%s172 + $0x260] sm:$0xff] %v2186
      %2441 = vst [vmem:[%s172 + $0x268] sm:$0xff] %v2187
      %2442 = vst [vmem:[%s172 + $0x270] sm:$0xff] %v2188
      %2443 = vst [vmem:[%s172 + $0x278] sm:$0xff] %v2189
      %2444 = vst [vmem:[%s172 + $0x280] sm:$0xff] %v2190
      %2445 = vst [vmem:[%s172 + $0x288] sm:$0xff] %v2191
      %2446 = vst [vmem:[%s172 + $0x290] sm:$0xff] %v2192
      %2447 = vst [vmem:[%s172 + $0x298] sm:$0xff] %v2193
      %2448 = vst [vmem:[%s172 + $0x2a0] sm:$0xff] %v2194
      %2449 = vst [vmem:[%s172 + $0x2a8] sm:$0xff] %v2195
      %2450 = vst [vmem:[%s172 + $0x2b0] sm:$0xff] %v2196
      %2451 = vst [vmem:[%s172 + $0x2b8] sm:$0xff] %v2197
      %2452 = vst [vmem:[%s172 + $0x2c0] sm:$0xff] %v2198
      %2453 = vst [vmem:[%s172 + $0x2c8] sm:$0xff] %v2199
      %2454 = vst [vmem:[%s172 + $0x2d0] sm:$0xff] %v2200
      %2455 = vst [vmem:[%s172 + $0x2d8] sm:$0xff] %v2201
      %2456 = vst [vmem:[%s172 + $0x2e0] sm:$0xff] %v2202
      %2457 = vst [vmem:[%s172 + $0x2e8] sm:$0xff] %v2203
      %2458 = vst [vmem:[%s172 + $0x2f0] sm:$0xff] %v2204
      %2459 = vst [vmem:[%s172 + $0x2f8] sm:$0xff] %v2205
      %2460 = vst [vmem:[%s172 + $0x300] sm:$0xff] %v2206
      %2461 = vst [vmem:[%s172 + $0x308] sm:$0xff] %v2207
      %2462 = vst [vmem:[%s172 + $0x310] sm:$0xff] %v2208
      %2463 = vst [vmem:[%s172 + $0x318] sm:$0xff] %v2209
      %2464 = vst [vmem:[%s172 + $0x320] sm:$0xff] %v2210
      %2465 = vst [vmem:[%s172 + $0x328] sm:$0xff] %v2211
      %2466 = vst [vmem:[%s172 + $0x330] sm:$0xff] %v2212
      %2467 = vst [vmem:[%s172 + $0x338] sm:$0xff] %v2213
      %2468 = vst [vmem:[%s172 + $0x340] sm:$0xff] %v2214
      %2469 = vst [vmem:[%s172 + $0x348] sm:$0xff] %v2215
      %2470 = vst [vmem:[%s172 + $0x350] sm:$0xff] %v2216
      %2471 = vst [vmem:[%s172 + $0x358] sm:$0xff] %v2217
      %2472 = vst [vmem:[%s172 + $0x360] sm:$0xff] %v2218
      %2473 = vst [vmem:[%s172 + $0x368] sm:$0xff] %v2219
      %2474 = vst [vmem:[%s172 + $0x370] sm:$0xff] %v2220
      %2475 = vst [vmem:[%s172 + $0x378] sm:$0xff] %v2221
      %2476 = vst [vmem:[%s172 + $0x380] sm:$0xff] %v2222
      %2477 = vst [vmem:[%s172 + $0x388] sm:$0xff] %v2223
      %2478 = vst [vmem:[%s172 + $0x390] sm:$0xff] %v2224
      %2479 = vst [vmem:[%s172 + $0x398] sm:$0xff] %v2225
      %2480 = vst [vmem:[%s172 + $0x3a0] sm:$0xff] %v2226
      %2481 = vst [vmem:[%s172 + $0x3a8] sm:$0xff] %v2227
      %2482 = vst [vmem:[%s172 + $0x3b0] sm:$0xff] %v2228
      %2483 = vst [vmem:[%s172 + $0x3b8] sm:$0xff] %v2229
      %2484 = vst [vmem:[%s172 + $0x3c0] sm:$0xff] %v2230
      %2485 = vst [vmem:[%s172 + $0x3c8] sm:$0xff] %v2231
      %2486 = vst [vmem:[%s172 + $0x3d0] sm:$0xff] %v2232
      %2487 = vst [vmem:[%s172 + $0x3d8] sm:$0xff] %v2233
      %2488 = vst [vmem:[%s172 + $0x3e0] sm:$0xff] %v2234
      %2489 = vst [vmem:[%s172 + $0x3e8] sm:$0xff] %v2235
      %2490 = vst [vmem:[%s172 + $0x3f0] sm:$0xff] %v2236
      %2491 = vst [vmem:[%s172 + $0x3f8] sm:$0xff] %v2237
      %2492 = vst [vmem:[%s172 + $0x400] sm:$0xff] %v2238
      %2493 = vst [vmem:[%s172 + $0x408] sm:$0xff] %v2239
      %2494 = vst [vmem:[%s172 + $0x410] sm:$0xff] %v2240
      %2495 = vst [vmem:[%s172 + $0x418] sm:$0xff] %v2241
      %2496 = vst [vmem:[%s172 + $0x420] sm:$0xff] %v2242
      %2497 = vst [vmem:[%s172 + $0x428] sm:$0xff] %v2243
      %2498 = vst [vmem:[%s172 + $0x430] sm:$0xff] %v2244
      %2499 = vst [vmem:[%s172 + $0x438] sm:$0xff] %v2245
      %2500 = vst [vmem:[%s172 + $0x440] sm:$0xff] %v2246
      %2501 = vst [vmem:[%s172 + $0x448] sm:$0xff] %v2247
      %2502 = vst [vmem:[%s172 + $0x450] sm:$0xff] %v2248
      %2503 = vst [vmem:[%s172 + $0x458] sm:$0xff] %v2249
      %2504 = vst [vmem:[%s172 + $0x460] sm:$0xff] %v2250
      %2505 = vst [vmem:[%s172 + $0x468] sm:$0xff] %v2251
      %2506 = vst [vmem:[%s172 + $0x470] sm:$0xff] %v2252
      %2507 = vst [vmem:[%s172 + $0x478] sm:$0xff] %v2253
      %2508 = vst [vmem:[%s172 + $0x480] sm:$0xff] %v2254
      %2509 = vst [vmem:[%s172 + $0x488] sm:$0xff] %v2255
      %2510 = vst [vmem:[%s172 + $0x490] sm:$0xff] %v2256
      %2511 = vst [vmem:[%s172 + $0x498] sm:$0xff] %v2257
      %2512 = vst [vmem:[%s172 + $0x4a0] sm:$0xff] %v2258
      %2513 = vst [vmem:[%s172 + $0x4a8] sm:$0xff] %v2259
      %2514 = vst [vmem:[%s172 + $0x4b0] sm:$0xff] %v2260
      %2515 = vst [vmem:[%s172 + $0x4b8] sm:$0xff] %v2261
      %2516 = vst [vmem:[%s172 + $0x4c0] sm:$0xff] %v2262
      %2517 = vst [vmem:[%s172 + $0x4c8] sm:$0xff] %v2263
      %2518 = vst [vmem:[%s172 + $0x4d0] sm:$0xff] %v2264
      %2519 = vst [vmem:[%s172 + $0x4d8] sm:$0xff] %v2265
      %2520 = vst [vmem:[%s172 + $0x4e0] sm:$0xff] %v2266
      %2521 = vst [vmem:[%s172 + $0x4e8] sm:$0xff] %v2267
      %2522 = vst [vmem:[%s172 + $0x4f0] sm:$0xff] %v2268
      %2523 = vst [vmem:[%s172 + $0x4f8] sm:$0xff] %v2269
      %2524 = vst [vmem:[%s172 + $0x500] sm:$0xff] %v2270
      %2525 = vst [vmem:[%s172 + $0x508] sm:$0xff] %v2271
      %2526 = vst [vmem:[%s172 + $0x510] sm:$0xff] %v2272
      %2527 = vst [vmem:[%s172 + $0x518] sm:$0xff] %v2273
      %2528 = vst [vmem:[%s172 + $0x520] sm:$0xff] %v2274
      %2529 = vst [vmem:[%s172 + $0x528] sm:$0xff] %v2275
      %2530 = vst [vmem:[%s172 + $0x530] sm:$0xff] %v2276
      %2531 = vst [vmem:[%s172 + $0x538] sm:$0xff] %v2277
      %2532 = vst [vmem:[%s172 + $0x540] sm:$0xff] %v2278
      %2533 = vst [vmem:[%s172 + $0x548] sm:$0xff] %v2279
      %2534 = vst [vmem:[%s172 + $0x550] sm:$0xff] %v2280
      %2535 = vst [vmem:[%s172 + $0x558] sm:$0xff] %v2281
      %2536 = vst [vmem:[%s172 + $0x560] sm:$0xff] %v2282
      %2537 = vst [vmem:[%s172 + $0x568] sm:$0xff] %v2283
      %2538 = vst [vmem:[%s172 + $0x570] sm:$0xff] %v2284
      %2539 = vst [vmem:[%s172 + $0x578] sm:$0xff] %v2285
      %2540 = vst [vmem:[%s172 + $0x580] sm:$0xff] %v2286
      %2541 = vst [vmem:[%s172 + $0x588] sm:$0xff] %v2287
      %2542 = vst [vmem:[%s172 + $0x590] sm:$0xff] %v2288
      %2543 = vst [vmem:[%s172 + $0x598] sm:$0xff] %v2289
      %2544 = vst [vmem:[%s172 + $0x5a0] sm:$0xff] %v2290
      %2545 = vst [vmem:[%s172 + $0x5a8] sm:$0xff] %v2291
      %2546 = vst [vmem:[%s172 + $0x5b0] sm:$0xff] %v2292
      %2547 = vst [vmem:[%s172 + $0x5b8] sm:$0xff] %v2293
      %2548 = vst [vmem:[%s172 + $0x5c0] sm:$0xff] %v2294
      %2549 = vst [vmem:[%s172 + $0x5c8] sm:$0xff] %v2295
      %2550 = vst [vmem:[%s172 + $0x5d0] sm:$0xff] %v2296
      %2551 = vst [vmem:[%s172 + $0x5d8] sm:$0xff] %v2297
      %2552 = vst [vmem:[%s172 + $0x5e0] sm:$0xff] %v2298
      %2553 = vst [vmem:[%s172 + $0x5e8] sm:$0xff] %v2299
      %2554 = vst [vmem:[%s172 + $0x5f0] sm:$0xff] %v2300
      %2555 = vst [vmem:[%s172 + $0x5f8] sm:$0xff] %v2301
      %2556 = vst [vmem:[%s172 + $0x600] sm:$0xff] %v2302
      %2557 = vst [vmem:[%s172 + $0x608] sm:$0xff] %v2303
      %2558 = vst [vmem:[%s172 + $0x610] sm:$0xff] %v2304
      %2559 = vst [vmem:[%s172 + $0x618] sm:$0xff] %v2305
      %2560 = vst [vmem:[%s172 + $0x620] sm:$0xff] %v2306
      %2561 = vst [vmem:[%s172 + $0x628] sm:$0xff] %v2307
      %2562 = vst [vmem:[%s172 + $0x630] sm:$0xff] %v2308
      %2563 = vst [vmem:[%s172 + $0x638] sm:$0xff] %v2309
      %2564 = vst [vmem:[%s172 + $0x640] sm:$0xff] %v2310
      %2565 = vst [vmem:[%s172 + $0x648] sm:$0xff] %v2311
      %2566 = vst [vmem:[%s172 + $0x650] sm:$0xff] %v2312
      %2567 = vst [vmem:[%s172 + $0x658] sm:$0xff] %v2313
      %2568 = vst [vmem:[%s172 + $0x660] sm:$0xff] %v2314
      %2569 = vst [vmem:[%s172 + $0x668] sm:$0xff] %v2315
      %2570 = vst [vmem:[%s172 + $0x670] sm:$0xff] %v2316
      %2571 = vst [vmem:[%s172 + $0x678] sm:$0xff] %v2317
      %2572 = vst [vmem:[%s172 + $0x680] sm:$0xff] %v2318
      %2573 = vst [vmem:[%s172 + $0x688] sm:$0xff] %v2319
      %2574 = vst [vmem:[%s172 + $0x690] sm:$0xff] %v2320
      %2575 = vst [vmem:[%s172 + $0x698] sm:$0xff] %v2321
      %2576 = vst [vmem:[%s172 + $0x6a0] sm:$0xff] %v2322
      %2577 = vst [vmem:[%s172 + $0x6a8] sm:$0xff] %v2323
      %2578 = vst [vmem:[%s172 + $0x6b0] sm:$0xff] %v2324
      %2579 = vst [vmem:[%s172 + $0x6b8] sm:$0xff] %v2325
      %2580 = vst [vmem:[%s172 + $0x6c0] sm:$0xff] %v2326
      %2581 = vst [vmem:[%s172 + $0x6c8] sm:$0xff] %v2327
      %2582 = vst [vmem:[%s172 + $0x6d0] sm:$0xff] %v2328
      %2583 = vst [vmem:[%s172 + $0x6d8] sm:$0xff] %v2329
      %2584 = vst [vmem:[%s172 + $0x6e0] sm:$0xff] %v2330
      %2585 = vst [vmem:[%s172 + $0x6e8] sm:$0xff] %v2331
      %2586 = vst [vmem:[%s172 + $0x6f0] sm:$0xff] %v2332
      %2587 = vst [vmem:[%s172 + $0x6f8] sm:$0xff] %v2333
      %2588 = vst [vmem:[%s172 + $0x700] sm:$0xff] %v2334
      %2589 = vst [vmem:[%s172 + $0x708] sm:$0xff] %v2335
      %2590 = vst [vmem:[%s172 + $0x710] sm:$0xff] %v2336
      %2591 = vst [vmem:[%s172 + $0x718] sm:$0xff] %v2337
      %2592 = vst [vmem:[%s172 + $0x720] sm:$0xff] %v2338
      %2593 = vst [vmem:[%s172 + $0x728] sm:$0xff] %v2339
      %2594 = vst [vmem:[%s172 + $0x730] sm:$0xff] %v2340
      %2595 = vst [vmem:[%s172 + $0x738] sm:$0xff] %v2341
      %2596 = vst [vmem:[%s172 + $0x740] sm:$0xff] %v2342
      %2597 = vst [vmem:[%s172 + $0x748] sm:$0xff] %v2343
      %2598 = vst [vmem:[%s172 + $0x750] sm:$0xff] %v2344
      %2599 = vst [vmem:[%s172 + $0x758] sm:$0xff] %v2345
      %2600 = vst [vmem:[%s172 + $0x760] sm:$0xff] %v2346
      %2601 = vst [vmem:[%s172 + $0x768] sm:$0xff] %v2347
      %2602 = vst [vmem:[%s172 + $0x770] sm:$0xff] %v2348
      %2603 = vst [vmem:[%s172 + $0x778] sm:$0xff] %v2349
      %2604 = vst [vmem:[%s172 + $0x780] sm:$0xff] %v2350
      %2605 = vst [vmem:[%s172 + $0x788] sm:$0xff] %v2351
      %2606 = vst [vmem:[%s172 + $0x790] sm:$0xff] %v2352
      %2607 = vst [vmem:[%s172 + $0x798] sm:$0xff] %v2353
      %2608 = vst [vmem:[%s172 + $0x7a0] sm:$0xff] %v2354
      %2609 = vst [vmem:[%s172 + $0x7a8] sm:$0xff] %v2355
      %2610 = vst [vmem:[%s172 + $0x7b0] sm:$0xff] %v2356
      %2611 = vst [vmem:[%s172 + $0x7b8] sm:$0xff] %v2357
      %2612 = vst [vmem:[%s172 + $0x7c0] sm:$0xff] %v2358
      %2613 = vst [vmem:[%s172 + $0x7c8] sm:$0xff] %v2359
      %2614 = vst [vmem:[%s172 + $0x7d0] sm:$0xff] %v2360
      %2615 = vst [vmem:[%s172 + $0x7d8] sm:$0xff] %v2361
      %2616 = vst [vmem:[%s172 + $0x7e0] sm:$0xff] %v2362
      %2617 = vst [vmem:[%s172 + $0x7e8] sm:$0xff] %v2363
      %s2618 = smul.u32 254, %s14
      %p2619 = scmp.lt.s32.totalorder %s2618, 507
      %s2620 = scalar_select %p2619, %s2618, 507
      %s2621 = smul.addr %s2620, 8
      %s2622 = scalar_lea.vmem %s3, %s2621
      // Predicated region
      $region33: #{dc_generator_forward.17} parent=31 // pred_check
        %p2623 = pneg %p100
      $region34: #{dc_generator_forward.17} parent=31 // pred_check_branch
        %2625 = sbr.rel (%p2623) target = $region36
      $region35: #{dc_generator_forward.17} parent=31 // pred_region
        %s2626 = smul.u32 254, %s14
      $region36: #{dc_generator_forward.17} parent=31 // pred_fallthru
        _
    $region32: #{dc_generator_forward.17} parent=5 // pred_fallthru
      _
    %p2627 = scmp.le.s32.totalorder 2, %s9
    // Predicated region
    $region37: #{dc_generator_forward.17} parent=5 // pred_check
      %p2628 = pneg %p2627
    $region38: #{dc_generator_forward.17} parent=5 // pred_check_branch
      %2630 = sbr.rel (%p2628) target = $region40
    $region39: #{dc_generator_forward.17} parent=5 // pred_region
      %s2631 = ssub.s32 %s9, 2
      // Predicated region
      $region41: #{dc_generator_forward.17} parent=39 // pred_check
        %p2632 = pneg %p106
      $region42: #{dc_generator_forward.17} parent=39 // pred_check_branch
        %2634 = sbr.rel (%p2632) target = $region44
      $region43: #{dc_generator_forward.17} parent=39 // pred_region
        %s2635 = smul.u32 254, %s15
        %p2636 = scmp.lt.s32.totalorder %s2635, 507
        %s2637 = scalar_select %p2636, %s2635, 507
        %s2638 = smul.addr %s2637, 8
        %s2639 = scalar_lea.vmem %s3, %s2638
      $region44: #{dc_generator_forward.17} parent=39 // pred_fallthru
        _
    $region40: #{dc_generator_forward.17} parent=5 // pred_fallthru
      _
  $region6: #{dc_generator_forward.17} parent=0 // loop_footer
    %s13 = sadd.s32 1, %s9
  $region7: #{dc_generator_forward.17} parent=0 // loop_footer_branch
    %8 = sbr.rel target = $region3
  $region8: #{dc_generator_forward.17} parent=0 // loop_exit
    _

</llo_original>
